<compile_context>
chip_gen: v6e
topology: v6e:2x2x1
jax: 0.10.0
libtpu: 0.0.40
codegen_flags: <defaults>
</compile_context>

<pallas_src>
import functools

import jax
import jax.numpy as jnp
from jax import lax
from jax.experimental import pallas as pl
from jax.experimental.pallas import tpu as pltpu

BN_EPS = 1e-5


def _resblock_kernel(x_ref, s1_ref, b1_ref, w1_ref, s2_ref, b2_ref, w2_ref,
                     m_ref, o_ref, pad_ref, *, tap_offsets, halo,
                     compute_dtype, precision):
    # x_ref  : (1, Cp, HW)      f32  one batch element, channels x flat spatial
    # s*,b*  : (Cp, 1)          f32  folded BN scale / shift
    # w*     : (9, Cp, Cp)      compute_dtype  per-tap (Cout, Cin) matrices
    # m_ref  : (9, 1, HW)       f32  per-tap spatial validity mask (0/1)
    # o_ref  : (1, Cp, HW)      f32
    # pad_ref: (Cp, HW+2*halo)  f32  lane-padded activation scratch (shared by
    #                                both convs), halo = W + 1
    Cp = x_ref.shape[1]
    HW = x_ref.shape[2]

    x = x_ref[0]                                            # (Cp, HW) f32

    # Zero only the halo lanes (interior is always fully overwritten below).
    pad_ref[:, :halo] = jnp.zeros((Cp, halo), jnp.float32)
    pad_ref[:, halo + HW:] = jnp.zeros((Cp, halo), jnp.float32)

    def conv3x3(w_ref):
        """9-tap shifted-slice conv on the MXU; returns f32 (Cp, HW)."""
        acc = None
        for tap, off in enumerate(tap_offsets):
            start = halo + off                              # static offset
            shifted = pad_ref[:, start:start + HW] * m_ref[tap]
            part = jnp.dot(w_ref[tap], shifted.astype(compute_dtype),
                           preferred_element_type=jnp.float32,
                           precision=precision)
            acc = part if acc is None else acc + part
        return acc

    # bn1 + relu1 (vectorized per-channel scale/shift, channels on sublanes)
    pad_ref[:, halo:halo + HW] = jnp.maximum(x * s1_ref[...] + b1_ref[...],
                                             0.0)
    c1 = conv3x3(w1_ref)

    # bn2 + relu2 (scratch interior reused for the second activation)
    pad_ref[:, halo:halo + HW] = jnp.maximum(c1 * s2_ref[...] + b2_ref[...],
                                             0.0)

    # conv2 + residual identity (lane-dense store: last dim = HW)
    o_ref[0] = conv3x3(w2_ref) + x


def my_basic_res_block_bn(x, params, *, compute_dtype=jnp.bfloat16):
    """x: (N, C, H, W) float32.  params: BN1/conv1/BN2/conv2 parameters.

    compute_dtype: dtype of the MXU matmul operands (accumulation is always
    f32). bf16 is the native MXU dtype on v6e/v7x; use f32 for bit-accurate
    results.
    """
    g1, be1, m1, v1, w1, g2, be2, m2, v2, w2 = params
    N, C, H, W = x.shape
    Cout = w1.shape[0]
    assert Cout == C, "stride=1 / downsample=None requires planes == inplanes"
    HW = H * W

    # Fold eval-mode BN into per-channel scale / shift.
    s1 = g1 / jnp.sqrt(v1 + BN_EPS)
    b1 = be1 - m1 * s1
    s2 = g2 / jnp.sqrt(v2 + BN_EPS)
    b2 = be2 - m2 * s2

    # Pad channels up to a multiple of 8 (sublane tile). Padded channels stay
    # exactly zero through the whole block and are sliced off at the end.
    Cp = max(8, -(-C // 8) * 8)
    cpad = Cp - C

    x_p = jnp.pad(x, ((0, 0), (0, cpad), (0, 0), (0, 0))).reshape(N, Cp, HW)
    x_p = x_p.astype(jnp.float32)

    def pad_vec(v):
        return jnp.pad(v, (0, cpad)).reshape(Cp, 1).astype(jnp.float32)

    def pad_w(w):
        # (Cout, Cin, 3, 3) -> (9, Cp, Cp); tap index = kh * 3 + kw.
        wt = jnp.transpose(w, (2, 3, 0, 1)).reshape(9, Cout, C)
        wt = jnp.pad(wt, ((0, 0), (0, cpad), (0, cpad)))
        return wt.astype(compute_dtype)

    # Per-tap spatial validity masks for the implicit 'same' zero padding, and
    # the per-tap flattened-lane offsets.
    hh = jnp.arange(H)[:, None]
    ww = jnp.arange(W)[None, :]
    masks, offs = [], []
    for kh in range(3):
        for kw in range(3):
            dh, dw = kh - 1, kw - 1
            valid = ((hh + dh >= 0) & (hh + dh < H) &
                     (ww + dw >= 0) & (ww + dw < W))
            masks.append(valid.reshape(1, HW))
            offs.append(dh * W + dw)
    mask = jnp.stack(masks).astype(jnp.float32)            # (9, 1, HW)

    precision = (lax.Precision.HIGHEST
                 if compute_dtype == jnp.float32 else None)
    halo = W + 1
    kernel = functools.partial(_resblock_kernel,
                               tap_offsets=tuple(offs), halo=halo,
                               compute_dtype=compute_dtype,
                               precision=precision)

    def full_spec(shape):
        return pl.BlockSpec(shape, lambda n: (0,) * len(shape))

    out_p = pl.pallas_call(
        kernel,
        out_shape=jax.ShapeDtypeStruct((N, Cp, HW), jnp.float32),
        grid=(N,),
        in_specs=[
            pl.BlockSpec((1, Cp, HW), lambda n: (n, 0, 0)),   # x (lane-dense)
            full_spec((Cp, 1)),                               # s1
            full_spec((Cp, 1)),                               # b1
            full_spec((9, Cp, Cp)),                           # w1 taps (VMEM)
            full_spec((Cp, 1)),                               # s2
            full_spec((Cp, 1)),                               # b2
            full_spec((9, Cp, Cp)),                           # w2 taps (VMEM)
            full_spec((9, 1, HW)),                            # tap masks
        ],
        out_specs=pl.BlockSpec((1, Cp, HW), lambda n: (n, 0, 0)),
        scratch_shapes=[
            pltpu.VMEM((Cp, HW + 2 * halo), jnp.float32),     # shared act pad
        ],
        compiler_params=pltpu.CompilerParams(
            dimension_semantics=("parallel",)),               # v7x megacore
    )(x_p, pad_vec(s1), pad_vec(b1), pad_w(w1),
      pad_vec(s2), pad_vec(b2), pad_w(w2), mask)

    return out_p[:, :C, :].reshape(N, C, H, W)


def _reference(x, params):
    """Pure-JAX reference (eval-mode BN), for correctness checking."""
    g1, be1, m1, v1, w1, g2, be2, m2, v2, w2 = params

    def bn(y, g, b, m, v):
        g = g[None, :, None, None]
        b = b[None, :, None, None]
        m = m[None, :, None, None]
        v = v[None, :, None, None]
        return (y - m) / jnp.sqrt(v + BN_EPS) * g + b

    dn = lax.conv_dimension_numbers(x.shape, w1.shape,
                                    ('NCHW', 'OIHW', 'NCHW'))
    a1 = jnp.maximum(bn(x, g1, be1, m1, v1), 0.0)
    c1 = lax.conv_general_dilated(a1, w1, (1, 1), [(1, 1), (1, 1)],
                                  dimension_numbers=dn,
                                  precision=lax.Precision.HIGHEST)
    a2 = jnp.maximum(bn(c1, g2, be2, m2, v2), 0.0)
    c2 = lax.conv_general_dilated(a2, w2, (1, 1), [(1, 1), (1, 1)],
                                  dimension_numbers=dn,
                                  precision=lax.Precision.HIGHEST)
    return c2 + x


if __name__ == "__main__":
    N, C, H, W = 2, 4, 16, 16          # inplanes = planes = 4, stride = 1
    key = jax.random.PRNGKey(0)
    keys = jax.random.split(key, 11)

    x = jax.random.normal(keys[0], (N, C, H, W), jnp.float32)

    params = (
        jax.random.uniform(keys[1], (C,), jnp.float32, 0.5, 1.5),     # gamma1
        0.1 * jax.random.normal(keys[2], (C,), jnp.float32),          # beta1
        0.1 * jax.random.normal(keys[3], (C,), jnp.float32),          # mean1
        jax.random.uniform(keys[4], (C,), jnp.float32, 0.5, 1.5),     # var1
        0.2 * jax.random.normal(keys[5], (C, C, 3, 3), jnp.float32),  # conv1 w
        jax.random.uniform(keys[6], (C,), jnp.float32, 0.5, 1.5),     # gamma2
        0.1 * jax.random.normal(keys[7], (C,), jnp.float32),          # beta2
        0.1 * jax.random.normal(keys[8], (C,), jnp.float32),          # mean2
        jax.random.uniform(keys[9], (C,), jnp.float32, 0.5, 1.5),     # var2
        0.2 * jax.random.normal(keys[10], (C, C, 3, 3), jnp.float32), # conv2 w
    )

    ref = jax.block_until_ready(_reference(x, params))

    # f32 MXU path: must match the f32 reference tightly.
    out_f32 = jax.block_until_ready(
        my_basic_res_block_bn(x, params, compute_dtype=jnp.float32))
    assert out_f32.shape == (N, C, H, W)
    assert jnp.allclose(out_f32, ref, atol=1e-3, rtol=1e-3), \
        "f32 kernel mismatch vs reference"

    # bf16-operand MXU path (v6e/v7x-native), f32 accumulation: loose check.
    out_bf16 = jax.block_until_ready(
        my_basic_res_block_bn(x, params, compute_dtype=jnp.bfloat16))
    rel_err = jnp.linalg.norm(out_bf16 - ref) / jnp.linalg.norm(ref)
    assert rel_err < 3e-2, f"bf16 kernel relative error too large: {rel_err}"

    print("KERNEL_OK")
</pallas_src>

<mosaic_0001>
module attributes {stable_mosaic.version = 11 : i64} {
  func.func @_resblock_kernel(%arg0: i32, %arg1: memref<1x8x256xf32, #tpu.memory_space<vmem>>, %arg2: memref<8x1xf32, #tpu.memory_space<vmem>>, %arg3: memref<8x1xf32, #tpu.memory_space<vmem>>, %arg4: memref<9x8x8xf32, #tpu.memory_space<vmem>>, %arg5: memref<8x1xf32, #tpu.memory_space<vmem>>, %arg6: memref<8x1xf32, #tpu.memory_space<vmem>>, %arg7: memref<9x8x8xf32, #tpu.memory_space<vmem>>, %arg8: memref<9x1x256xf32, #tpu.memory_space<vmem>>, %arg9: memref<1x8x256xf32, #tpu.memory_space<vmem>>, %arg10: memref<8x290xf32, #tpu.memory_space<vmem>>) attributes {dimension_semantics = [#tpu.dimension_semantics<parallel>], iteration_bounds = array<i64: 2>, scalar_prefetch = 0 : i64, scratch_operands = 1 : i64, tpu.core_type = #tpu.core_type<tc>, window_params = [{transform_indices = @transform_0, window_bounds = array<i64: 1, 8, 256>}, {pipeline_mode = #tpu.pipeline_mode<synchronous>, transform_indices = @transform_1, window_bounds = array<i64: 8, 1>}, {pipeline_mode = #tpu.pipeline_mode<synchronous>, transform_indices = @transform_2, window_bounds = array<i64: 8, 1>}, {pipeline_mode = #tpu.pipeline_mode<synchronous>, transform_indices = @transform_3, window_bounds = array<i64: 9, 8, 8>}, {pipeline_mode = #tpu.pipeline_mode<synchronous>, transform_indices = @transform_4, window_bounds = array<i64: 8, 1>}, {pipeline_mode = #tpu.pipeline_mode<synchronous>, transform_indices = @transform_5, window_bounds = array<i64: 8, 1>}, {pipeline_mode = #tpu.pipeline_mode<synchronous>, transform_indices = @transform_6, window_bounds = array<i64: 9, 8, 8>}, {pipeline_mode = #tpu.pipeline_mode<synchronous>, transform_indices = @transform_7, window_bounds = array<i64: 9, 1, 256>}, {transform_indices = @transform_8, window_bounds = array<i64: 1, 8, 256>}]} {
    %c0 = arith.constant 0 : index
    %c0_0 = arith.constant 0 : index
    %c0_1 = arith.constant 0 : index
    %0 = vector.load %arg1[%c0, %c0_0, %c0_1] : memref<1x8x256xf32, #tpu.memory_space<vmem>>, vector<1x8x256xf32>
    %1 = vector.shape_cast %0 : vector<1x8x256xf32> to vector<8x256xf32>
    %cst = arith.constant 0.000000e+00 : f32
    %2 = vector.broadcast %cst : f32 to vector<8x17xf32>
    %c0_2 = arith.constant 0 : index
    %c0_3 = arith.constant 0 : index
    %3 = vector.load %arg10[%c0_2, %c0_3] : memref<8x290xf32, #tpu.memory_space<vmem>>, vector<8x17xf32>
    tpu.vector_store %arg10[%c0_2, %c0_3], %2 {strides = array<i32>} : memref<8x290xf32, #tpu.memory_space<vmem>>, vector<8x17xf32>,
    %cst_4 = arith.constant 0.000000e+00 : f32
    %4 = vector.broadcast %cst_4 : f32 to vector<8x17xf32>
    %c0_5 = arith.constant 0 : index
    %c273 = arith.constant 273 : index
    %5 = vector.load %arg10[%c0_5, %c273] : memref<8x290xf32, #tpu.memory_space<vmem>>, vector<8x17xf32>
    tpu.vector_store %arg10[%c0_5, %c273], %4 {strides = array<i32>} : memref<8x290xf32, #tpu.memory_space<vmem>>, vector<8x17xf32>,
    %c0_6 = arith.constant 0 : index
    %c0_7 = arith.constant 0 : index
    %6 = vector.load %arg2[%c0_6, %c0_7] : memref<8x1xf32, #tpu.memory_space<vmem>>, vector<8x1xf32>
    %7 = vector.broadcast %6 : vector<8x1xf32> to vector<8x256xf32>
    %8 = arith.mulf %1, %7 : vector<8x256xf32>
    %c0_8 = arith.constant 0 : index
    %c0_9 = arith.constant 0 : index
    %9 = vector.load %arg3[%c0_8, %c0_9] : memref<8x1xf32, #tpu.memory_space<vmem>>, vector<8x1xf32>
    %10 = vector.broadcast %9 : vector<8x1xf32> to vector<8x256xf32>
    %11 = arith.addf %8, %10 : vector<8x256xf32>
    %cst_10 = arith.constant 0.000000e+00 : f32
    %12 = vector.broadcast %cst_10 : f32 to vector<8x256xf32>
    %13 = arith.maximumf %11, %12 : vector<8x256xf32>
    %c0_11 = arith.constant 0 : index
    %c17 = arith.constant 17 : index
    %14 = vector.load %arg10[%c0_11, %c17] : memref<8x290xf32, #tpu.memory_space<vmem>>, vector<8x256xf32>
    tpu.vector_store %arg10[%c0_11, %c17], %13 {strides = array<i32>} : memref<8x290xf32, #tpu.memory_space<vmem>>, vector<8x256xf32>,
    %c0_12 = arith.constant 0 : index
    %c0_13 = arith.constant 0 : index
    %15 = vector.load %arg10[%c0_12, %c0_13] : memref<8x290xf32, #tpu.memory_space<vmem>>, vector<8x256xf32>
    %c0_14 = arith.constant 0 : index
    %c0_15 = arith.constant 0 : index
    %c0_16 = arith.constant 0 : index
    %16 = vector.load %arg8[%c0_14, %c0_15, %c0_16] : memref<9x1x256xf32, #tpu.memory_space<vmem>>, vector<1x1x256xf32>
    %17 = vector.shape_cast %16 : vector<1x1x256xf32> to vector<1x256xf32>
    %18 = vector.broadcast %17 : vector<1x256xf32> to vector<8x256xf32>
    %19 = arith.mulf %15, %18 : vector<8x256xf32>
    %c0_17 = arith.constant 0 : index
    %c0_18 = arith.constant 0 : index
    %c0_19 = arith.constant 0 : index
    %20 = vector.load %arg4[%c0_17, %c0_18, %c0_19] : memref<9x8x8xf32, #tpu.memory_space<vmem>>, vector<1x8x8xf32>
    %21 = vector.shape_cast %20 : vector<1x8x8xf32> to vector<8x8xf32>
    %cst_20 = arith.constant dense<0.000000e+00> : vector<8x256xf32>
    %22 = tpu.matmul %21, %19, %cst_20 {dimension_numbers = #tpu.dot_dimension_numbers<[1], [0], [0], [1], [0, 0, 1, 1], [], []>, precision = #tpu.contract_precision<fp32>} : vector<8x8xf32>, vector<8x256xf32>, vector<8x256xf32> -> vector<8x256xf32>
    %c0_21 = arith.constant 0 : index
    %c1 = arith.constant 1 : index
    %23 = vector.load %arg10[%c0_21, %c1] : memref<8x290xf32, #tpu.memory_space<vmem>>, vector<8x256xf32>
    %c1_22 = arith.constant 1 : index
    %c0_23 = arith.constant 0 : index
    %c0_24 = arith.constant 0 : index
    %24 = vector.load %arg8[%c1_22, %c0_23, %c0_24] : memref<9x1x256xf32, #tpu.memory_space<vmem>>, vector<1x1x256xf32>
    %25 = vector.shape_cast %24 : vector<1x1x256xf32> to vector<1x256xf32>
    %26 = vector.broadcast %25 : vector<1x256xf32> to vector<8x256xf32>
    %27 = arith.mulf %23, %26 : vector<8x256xf32>
    %c1_25 = arith.constant 1 : index
    %c0_26 = arith.constant 0 : index
    %c0_27 = arith.constant 0 : index
    %28 = vector.load %arg4[%c1_25, %c0_26, %c0_27] : memref<9x8x8xf32, #tpu.memory_space<vmem>>, vector<1x8x8xf32>
    %29 = vector.shape_cast %28 : vector<1x8x8xf32> to vector<8x8xf32>
    %cst_28 = arith.constant dense<0.000000e+00> : vector<8x256xf32>
    %30 = tpu.matmul %29, %27, %cst_28 {dimension_numbers = #tpu.dot_dimension_numbers<[1], [0], [0], [1], [0, 0, 1, 1], [], []>, precision = #tpu.contract_precision<fp32>} : vector<8x8xf32>, vector<8x256xf32>, vector<8x256xf32> -> vector<8x256xf32>
    %31 = arith.addf %22, %30 : vector<8x256xf32>
    %c0_29 = arith.constant 0 : index
    %c2 = arith.constant 2 : index
    %32 = vector.load %arg10[%c0_29, %c2] : memref<8x290xf32, #tpu.memory_space<vmem>>, vector<8x256xf32>
    %c2_30 = arith.constant 2 : index
    %c0_31 = arith.constant 0 : index
    %c0_32 = arith.constant 0 : index
    %33 = vector.load %arg8[%c2_30, %c0_31, %c0_32] : memref<9x1x256xf32, #tpu.memory_space<vmem>>, vector<1x1x256xf32>
    %34 = vector.shape_cast %33 : vector<1x1x256xf32> to vector<1x256xf32>
    %35 = vector.broadcast %34 : vector<1x256xf32> to vector<8x256xf32>
    %36 = arith.mulf %32, %35 : vector<8x256xf32>
    %c2_33 = arith.constant 2 : index
    %c0_34 = arith.constant 0 : index
    %c0_35 = arith.constant 0 : index
    %37 = vector.load %arg4[%c2_33, %c0_34, %c0_35] : memref<9x8x8xf32, #tpu.memory_space<vmem>>, vector<1x8x8xf32>
    %38 = vector.shape_cast %37 : vector<1x8x8xf32> to vector<8x8xf32>
    %cst_36 = arith.constant dense<0.000000e+00> : vector<8x256xf32>
    %39 = tpu.matmul %38, %36, %cst_36 {dimension_numbers = #tpu.dot_dimension_numbers<[1], [0], [0], [1], [0, 0, 1, 1], [], []>, precision = #tpu.contract_precision<fp32>} : vector<8x8xf32>, vector<8x256xf32>, vector<8x256xf32> -> vector<8x256xf32>
    %40 = arith.addf %31, %39 : vector<8x256xf32>
    %c0_37 = arith.constant 0 : index
    %c16 = arith.constant 16 : index
    %41 = vector.load %arg10[%c0_37, %c16] : memref<8x290xf32, #tpu.memory_space<vmem>>, vector<8x256xf32>
    %c3 = arith.constant 3 : index
    %c0_38 = arith.constant 0 : index
    %c0_39 = arith.constant 0 : index
    %42 = vector.load %arg8[%c3, %c0_38, %c0_39] : memref<9x1x256xf32, #tpu.memory_space<vmem>>, vector<1x1x256xf32>
    %43 = vector.shape_cast %42 : vector<1x1x256xf32> to vector<1x256xf32>
    %44 = vector.broadcast %43 : vector<1x256xf32> to vector<8x256xf32>
    %45 = arith.mulf %41, %44 : vector<8x256xf32>
    %c3_40 = arith.constant 3 : index
    %c0_41 = arith.constant 0 : index
    %c0_42 = arith.constant 0 : index
    %46 = vector.load %arg4[%c3_40, %c0_41, %c0_42] : memref<9x8x8xf32, #tpu.memory_space<vmem>>, vector<1x8x8xf32>
    %47 = vector.shape_cast %46 : vector<1x8x8xf32> to vector<8x8xf32>
    %cst_43 = arith.constant dense<0.000000e+00> : vector<8x256xf32>
    %48 = tpu.matmul %47, %45, %cst_43 {dimension_numbers = #tpu.dot_dimension_numbers<[1], [0], [0], [1], [0, 0, 1, 1], [], []>, precision = #tpu.contract_precision<fp32>} : vector<8x8xf32>, vector<8x256xf32>, vector<8x256xf32> -> vector<8x256xf32>
    %49 = arith.addf %40, %48 : vector<8x256xf32>
    %c0_44 = arith.constant 0 : index
    %c17_45 = arith.constant 17 : index
    %50 = vector.load %arg10[%c0_44, %c17_45] : memref<8x290xf32, #tpu.memory_space<vmem>>, vector<8x256xf32>
    %c4 = arith.constant 4 : index
    %c0_46 = arith.constant 0 : index
    %c0_47 = arith.constant 0 : index
    %51 = vector.load %arg8[%c4, %c0_46, %c0_47] : memref<9x1x256xf32, #tpu.memory_space<vmem>>, vector<1x1x256xf32>
    %52 = vector.shape_cast %51 : vector<1x1x256xf32> to vector<1x256xf32>
    %53 = vector.broadcast %52 : vector<1x256xf32> to vector<8x256xf32>
    %54 = arith.mulf %50, %53 : vector<8x256xf32>
    %c4_48 = arith.constant 4 : index
    %c0_49 = arith.constant 0 : index
    %c0_50 = arith.constant 0 : index
    %55 = vector.load %arg4[%c4_48, %c0_49, %c0_50] : memref<9x8x8xf32, #tpu.memory_space<vmem>>, vector<1x8x8xf32>
    %56 = vector.shape_cast %55 : vector<1x8x8xf32> to vector<8x8xf32>
    %cst_51 = arith.constant dense<0.000000e+00> : vector<8x256xf32>
    %57 = tpu.matmul %56, %54, %cst_51 {dimension_numbers = #tpu.dot_dimension_numbers<[1], [0], [0], [1], [0, 0, 1, 1], [], []>, precision = #tpu.contract_precision<fp32>} : vector<8x8xf32>, vector<8x256xf32>, vector<8x256xf32> -> vector<8x256xf32>
    %58 = arith.addf %49, %57 : vector<8x256xf32>
    %c0_52 = arith.constant 0 : index
    %c18 = arith.constant 18 : index
    %59 = vector.load %arg10[%c0_52, %c18] : memref<8x290xf32, #tpu.memory_space<vmem>>, vector<8x256xf32>
    %c5 = arith.constant 5 : index
    %c0_53 = arith.constant 0 : index
    %c0_54 = arith.constant 0 : index
    %60 = vector.load %arg8[%c5, %c0_53, %c0_54] : memref<9x1x256xf32, #tpu.memory_space<vmem>>, vector<1x1x256xf32>
    %61 = vector.shape_cast %60 : vector<1x1x256xf32> to vector<1x256xf32>
    %62 = vector.broadcast %61 : vector<1x256xf32> to vector<8x256xf32>
    %63 = arith.mulf %59, %62 : vector<8x256xf32>
    %c5_55 = arith.constant 5 : index
    %c0_56 = arith.constant 0 : index
    %c0_57 = arith.constant 0 : index
    %64 = vector.load %arg4[%c5_55, %c0_56, %c0_57] : memref<9x8x8xf32, #tpu.memory_space<vmem>>, vector<1x8x8xf32>
    %65 = vector.shape_cast %64 : vector<1x8x8xf32> to vector<8x8xf32>
    %cst_58 = arith.constant dense<0.000000e+00> : vector<8x256xf32>
    %66 = tpu.matmul %65, %63, %cst_58 {dimension_numbers = #tpu.dot_dimension_numbers<[1], [0], [0], [1], [0, 0, 1, 1], [], []>, precision = #tpu.contract_precision<fp32>} : vector<8x8xf32>, vector<8x256xf32>, vector<8x256xf32> -> vector<8x256xf32>
    %67 = arith.addf %58, %66 : vector<8x256xf32>
    %c0_59 = arith.constant 0 : index
    %c32 = arith.constant 32 : index
    %68 = vector.load %arg10[%c0_59, %c32] : memref<8x290xf32, #tpu.memory_space<vmem>>, vector<8x256xf32>
    %c6 = arith.constant 6 : index
    %c0_60 = arith.constant 0 : index
    %c0_61 = arith.constant 0 : index
    %69 = vector.load %arg8[%c6, %c0_60, %c0_61] : memref<9x1x256xf32, #tpu.memory_space<vmem>>, vector<1x1x256xf32>
    %70 = vector.shape_cast %69 : vector<1x1x256xf32> to vector<1x256xf32>
    %71 = vector.broadcast %70 : vector<1x256xf32> to vector<8x256xf32>
    %72 = arith.mulf %68, %71 : vector<8x256xf32>
    %c6_62 = arith.constant 6 : index
    %c0_63 = arith.constant 0 : index
    %c0_64 = arith.constant 0 : index
    %73 = vector.load %arg4[%c6_62, %c0_63, %c0_64] : memref<9x8x8xf32, #tpu.memory_space<vmem>>, vector<1x8x8xf32>
    %74 = vector.shape_cast %73 : vector<1x8x8xf32> to vector<8x8xf32>
    %cst_65 = arith.constant dense<0.000000e+00> : vector<8x256xf32>
    %75 = tpu.matmul %74, %72, %cst_65 {dimension_numbers = #tpu.dot_dimension_numbers<[1], [0], [0], [1], [0, 0, 1, 1], [], []>, precision = #tpu.contract_precision<fp32>} : vector<8x8xf32>, vector<8x256xf32>, vector<8x256xf32> -> vector<8x256xf32>
    %76 = arith.addf %67, %75 : vector<8x256xf32>
    %c0_66 = arith.constant 0 : index
    %c33 = arith.constant 33 : index
    %77 = vector.load %arg10[%c0_66, %c33] : memref<8x290xf32, #tpu.memory_space<vmem>>, vector<8x256xf32>
    %c7 = arith.constant 7 : index
    %c0_67 = arith.constant 0 : index
    %c0_68 = arith.constant 0 : index
    %78 = vector.load %arg8[%c7, %c0_67, %c0_68] : memref<9x1x256xf32, #tpu.memory_space<vmem>>, vector<1x1x256xf32>
    %79 = vector.shape_cast %78 : vector<1x1x256xf32> to vector<1x256xf32>
    %80 = vector.broadcast %79 : vector<1x256xf32> to vector<8x256xf32>
    %81 = arith.mulf %77, %80 : vector<8x256xf32>
    %c7_69 = arith.constant 7 : index
    %c0_70 = arith.constant 0 : index
    %c0_71 = arith.constant 0 : index
    %82 = vector.load %arg4[%c7_69, %c0_70, %c0_71] : memref<9x8x8xf32, #tpu.memory_space<vmem>>, vector<1x8x8xf32>
    %83 = vector.shape_cast %82 : vector<1x8x8xf32> to vector<8x8xf32>
    %cst_72 = arith.constant dense<0.000000e+00> : vector<8x256xf32>
    %84 = tpu.matmul %83, %81, %cst_72 {dimension_numbers = #tpu.dot_dimension_numbers<[1], [0], [0], [1], [0, 0, 1, 1], [], []>, precision = #tpu.contract_precision<fp32>} : vector<8x8xf32>, vector<8x256xf32>, vector<8x256xf32> -> vector<8x256xf32>
    %85 = arith.addf %76, %84 : vector<8x256xf32>
    %c0_73 = arith.constant 0 : index
    %c34 = arith.constant 34 : index
    %86 = vector.load %arg10[%c0_73, %c34] : memref<8x290xf32, #tpu.memory_space<vmem>>, vector<8x256xf32>
    %c8 = arith.constant 8 : index
    %c0_74 = arith.constant 0 : index
    %c0_75 = arith.constant 0 : index
    %87 = vector.load %arg8[%c8, %c0_74, %c0_75] : memref<9x1x256xf32, #tpu.memory_space<vmem>>, vector<1x1x256xf32>
    %88 = vector.shape_cast %87 : vector<1x1x256xf32> to vector<1x256xf32>
    %89 = vector.broadcast %88 : vector<1x256xf32> to vector<8x256xf32>
    %90 = arith.mulf %86, %89 : vector<8x256xf32>
    %c8_76 = arith.constant 8 : index
    %c0_77 = arith.constant 0 : index
    %c0_78 = arith.constant 0 : index
    %91 = vector.load %arg4[%c8_76, %c0_77, %c0_78] : memref<9x8x8xf32, #tpu.memory_space<vmem>>, vector<1x8x8xf32>
    %92 = vector.shape_cast %91 : vector<1x8x8xf32> to vector<8x8xf32>
    %cst_79 = arith.constant dense<0.000000e+00> : vector<8x256xf32>
    %93 = tpu.matmul %92, %90, %cst_79 {dimension_numbers = #tpu.dot_dimension_numbers<[1], [0], [0], [1], [0, 0, 1, 1], [], []>, precision = #tpu.contract_precision<fp32>} : vector<8x8xf32>, vector<8x256xf32>, vector<8x256xf32> -> vector<8x256xf32>
    %94 = arith.addf %85, %93 : vector<8x256xf32>
    %c0_80 = arith.constant 0 : index
    %c0_81 = arith.constant 0 : index
    %95 = vector.load %arg5[%c0_80, %c0_81] : memref<8x1xf32, #tpu.memory_space<vmem>>, vector<8x1xf32>
    %96 = vector.broadcast %95 : vector<8x1xf32> to vector<8x256xf32>
    %97 = arith.mulf %94, %96 : vector<8x256xf32>
    %c0_82 = arith.constant 0 : index
    %c0_83 = arith.constant 0 : index
    %98 = vector.load %arg6[%c0_82, %c0_83] : memref<8x1xf32, #tpu.memory_space<vmem>>, vector<8x1xf32>
    %99 = vector.broadcast %98 : vector<8x1xf32> to vector<8x256xf32>
    %100 = arith.addf %97, %99 : vector<8x256xf32>
    %cst_84 = arith.constant 0.000000e+00 : f32
    %101 = vector.broadcast %cst_84 : f32 to vector<8x256xf32>
    %102 = arith.maximumf %100, %101 : vector<8x256xf32>
    %c0_85 = arith.constant 0 : index
    %c17_86 = arith.constant 17 : index
    %103 = vector.load %arg10[%c0_85, %c17_86] : memref<8x290xf32, #tpu.memory_space<vmem>>, vector<8x256xf32>
    tpu.vector_store %arg10[%c0_85, %c17_86], %102 {strides = array<i32>} : memref<8x290xf32, #tpu.memory_space<vmem>>, vector<8x256xf32>,
    %c0_87 = arith.constant 0 : index
    %c0_88 = arith.constant 0 : index
    %104 = vector.load %arg10[%c0_87, %c0_88] : memref<8x290xf32, #tpu.memory_space<vmem>>, vector<8x256xf32>
    %c0_89 = arith.constant 0 : index
    %c0_90 = arith.constant 0 : index
    %c0_91 = arith.constant 0 : index
    %105 = vector.load %arg8[%c0_89, %c0_90, %c0_91] : memref<9x1x256xf32, #tpu.memory_space<vmem>>, vector<1x1x256xf32>
    %106 = vector.shape_cast %105 : vector<1x1x256xf32> to vector<1x256xf32>
    %107 = vector.broadcast %106 : vector<1x256xf32> to vector<8x256xf32>
    %108 = arith.mulf %104, %107 : vector<8x256xf32>
    %c0_92 = arith.constant 0 : index
    %c0_93 = arith.constant 0 : index
    %c0_94 = arith.constant 0 : index
    %109 = vector.load %arg7[%c0_92, %c0_93, %c0_94] : memref<9x8x8xf32, #tpu.memory_space<vmem>>, vector<1x8x8xf32>
    %110 = vector.shape_cast %109 : vector<1x8x8xf32> to vector<8x8xf32>
    %cst_95 = arith.constant dense<0.000000e+00> : vector<8x256xf32>
    %111 = tpu.matmul %110, %108, %cst_95 {dimension_numbers = #tpu.dot_dimension_numbers<[1], [0], [0], [1], [0, 0, 1, 1], [], []>, precision = #tpu.contract_precision<fp32>} : vector<8x8xf32>, vector<8x256xf32>, vector<8x256xf32> -> vector<8x256xf32>
    %c0_96 = arith.constant 0 : index
    %c1_97 = arith.constant 1 : index
    %112 = vector.load %arg10[%c0_96, %c1_97] : memref<8x290xf32, #tpu.memory_space<vmem>>, vector<8x256xf32>
    %c1_98 = arith.constant 1 : index
    %c0_99 = arith.constant 0 : index
    %c0_100 = arith.constant 0 : index
    %113 = vector.load %arg8[%c1_98, %c0_99, %c0_100] : memref<9x1x256xf32, #tpu.memory_space<vmem>>, vector<1x1x256xf32>
    %114 = vector.shape_cast %113 : vector<1x1x256xf32> to vector<1x256xf32>
    %115 = vector.broadcast %114 : vector<1x256xf32> to vector<8x256xf32>
    %116 = arith.mulf %112, %115 : vector<8x256xf32>
    %c1_101 = arith.constant 1 : index
    %c0_102 = arith.constant 0 : index
    %c0_103 = arith.constant 0 : index
    %117 = vector.load %arg7[%c1_101, %c0_102, %c0_103] : memref<9x8x8xf32, #tpu.memory_space<vmem>>, vector<1x8x8xf32>
    %118 = vector.shape_cast %117 : vector<1x8x8xf32> to vector<8x8xf32>
    %cst_104 = arith.constant dense<0.000000e+00> : vector<8x256xf32>
    %119 = tpu.matmul %118, %116, %cst_104 {dimension_numbers = #tpu.dot_dimension_numbers<[1], [0], [0], [1], [0, 0, 1, 1], [], []>, precision = #tpu.contract_precision<fp32>} : vector<8x8xf32>, vector<8x256xf32>, vector<8x256xf32> -> vector<8x256xf32>
    %120 = arith.addf %111, %119 : vector<8x256xf32>
    %c0_105 = arith.constant 0 : index
    %c2_106 = arith.constant 2 : index
    %121 = vector.load %arg10[%c0_105, %c2_106] : memref<8x290xf32, #tpu.memory_space<vmem>>, vector<8x256xf32>
    %c2_107 = arith.constant 2 : index
    %c0_108 = arith.constant 0 : index
    %c0_109 = arith.constant 0 : index
    %122 = vector.load %arg8[%c2_107, %c0_108, %c0_109] : memref<9x1x256xf32, #tpu.memory_space<vmem>>, vector<1x1x256xf32>
    %123 = vector.shape_cast %122 : vector<1x1x256xf32> to vector<1x256xf32>
    %124 = vector.broadcast %123 : vector<1x256xf32> to vector<8x256xf32>
    %125 = arith.mulf %121, %124 : vector<8x256xf32>
    %c2_110 = arith.constant 2 : index
    %c0_111 = arith.constant 0 : index
    %c0_112 = arith.constant 0 : index
    %126 = vector.load %arg7[%c2_110, %c0_111, %c0_112] : memref<9x8x8xf32, #tpu.memory_space<vmem>>, vector<1x8x8xf32>
    %127 = vector.shape_cast %126 : vector<1x8x8xf32> to vector<8x8xf32>
    %cst_113 = arith.constant dense<0.000000e+00> : vector<8x256xf32>
    %128 = tpu.matmul %127, %125, %cst_113 {dimension_numbers = #tpu.dot_dimension_numbers<[1], [0], [0], [1], [0, 0, 1, 1], [], []>, precision = #tpu.contract_precision<fp32>} : vector<8x8xf32>, vector<8x256xf32>, vector<8x256xf32> -> vector<8x256xf32>
    %129 = arith.addf %120, %128 : vector<8x256xf32>
    %c0_114 = arith.constant 0 : index
    %c16_115 = arith.constant 16 : index
    %130 = vector.load %arg10[%c0_114, %c16_115] : memref<8x290xf32, #tpu.memory_space<vmem>>, vector<8x256xf32>
    %c3_116 = arith.constant 3 : index
    %c0_117 = arith.constant 0 : index
    %c0_118 = arith.constant 0 : index
    %131 = vector.load %arg8[%c3_116, %c0_117, %c0_118] : memref<9x1x256xf32, #tpu.memory_space<vmem>>, vector<1x1x256xf32>
    %132 = vector.shape_cast %131 : vector<1x1x256xf32> to vector<1x256xf32>
    %133 = vector.broadcast %132 : vector<1x256xf32> to vector<8x256xf32>
    %134 = arith.mulf %130, %133 : vector<8x256xf32>
    %c3_119 = arith.constant 3 : index
    %c0_120 = arith.constant 0 : index
    %c0_121 = arith.constant 0 : index
    %135 = vector.load %arg7[%c3_119, %c0_120, %c0_121] : memref<9x8x8xf32, #tpu.memory_space<vmem>>, vector<1x8x8xf32>
    %136 = vector.shape_cast %135 : vector<1x8x8xf32> to vector<8x8xf32>
    %cst_122 = arith.constant dense<0.000000e+00> : vector<8x256xf32>
    %137 = tpu.matmul %136, %134, %cst_122 {dimension_numbers = #tpu.dot_dimension_numbers<[1], [0], [0], [1], [0, 0, 1, 1], [], []>, precision = #tpu.contract_precision<fp32>} : vector<8x8xf32>, vector<8x256xf32>, vector<8x256xf32> -> vector<8x256xf32>
    %138 = arith.addf %129, %137 : vector<8x256xf32>
    %c0_123 = arith.constant 0 : index
    %c17_124 = arith.constant 17 : index
    %139 = vector.load %arg10[%c0_123, %c17_124] : memref<8x290xf32, #tpu.memory_space<vmem>>, vector<8x256xf32>
    %c4_125 = arith.constant 4 : index
    %c0_126 = arith.constant 0 : index
    %c0_127 = arith.constant 0 : index
    %140 = vector.load %arg8[%c4_125, %c0_126, %c0_127] : memref<9x1x256xf32, #tpu.memory_space<vmem>>, vector<1x1x256xf32>
    %141 = vector.shape_cast %140 : vector<1x1x256xf32> to vector<1x256xf32>
    %142 = vector.broadcast %141 : vector<1x256xf32> to vector<8x256xf32>
    %143 = arith.mulf %139, %142 : vector<8x256xf32>
    %c4_128 = arith.constant 4 : index
    %c0_129 = arith.constant 0 : index
    %c0_130 = arith.constant 0 : index
    %144 = vector.load %arg7[%c4_128, %c0_129, %c0_130] : memref<9x8x8xf32, #tpu.memory_space<vmem>>, vector<1x8x8xf32>
    %145 = vector.shape_cast %144 : vector<1x8x8xf32> to vector<8x8xf32>
    %cst_131 = arith.constant dense<0.000000e+00> : vector<8x256xf32>
    %146 = tpu.matmul %145, %143, %cst_131 {dimension_numbers = #tpu.dot_dimension_numbers<[1], [0], [0], [1], [0, 0, 1, 1], [], []>, precision = #tpu.contract_precision<fp32>} : vector<8x8xf32>, vector<8x256xf32>, vector<8x256xf32> -> vector<8x256xf32>
    %147 = arith.addf %138, %146 : vector<8x256xf32>
    %c0_132 = arith.constant 0 : index
    %c18_133 = arith.constant 18 : index
    %148 = vector.load %arg10[%c0_132, %c18_133] : memref<8x290xf32, #tpu.memory_space<vmem>>, vector<8x256xf32>
    %c5_134 = arith.constant 5 : index
    %c0_135 = arith.constant 0 : index
    %c0_136 = arith.constant 0 : index
    %149 = vector.load %arg8[%c5_134, %c0_135, %c0_136] : memref<9x1x256xf32, #tpu.memory_space<vmem>>, vector<1x1x256xf32>
    %150 = vector.shape_cast %149 : vector<1x1x256xf32> to vector<1x256xf32>
    %151 = vector.broadcast %150 : vector<1x256xf32> to vector<8x256xf32>
    %152 = arith.mulf %148, %151 : vector<8x256xf32>
    %c5_137 = arith.constant 5 : index
    %c0_138 = arith.constant 0 : index
    %c0_139 = arith.constant 0 : index
    %153 = vector.load %arg7[%c5_137, %c0_138, %c0_139] : memref<9x8x8xf32, #tpu.memory_space<vmem>>, vector<1x8x8xf32>
    %154 = vector.shape_cast %153 : vector<1x8x8xf32> to vector<8x8xf32>
    %cst_140 = arith.constant dense<0.000000e+00> : vector<8x256xf32>
    %155 = tpu.matmul %154, %152, %cst_140 {dimension_numbers = #tpu.dot_dimension_numbers<[1], [0], [0], [1], [0, 0, 1, 1], [], []>, precision = #tpu.contract_precision<fp32>} : vector<8x8xf32>, vector<8x256xf32>, vector<8x256xf32> -> vector<8x256xf32>
    %156 = arith.addf %147, %155 : vector<8x256xf32>
    %c0_141 = arith.constant 0 : index
    %c32_142 = arith.constant 32 : index
    %157 = vector.load %arg10[%c0_141, %c32_142] : memref<8x290xf32, #tpu.memory_space<vmem>>, vector<8x256xf32>
    %c6_143 = arith.constant 6 : index
    %c0_144 = arith.constant 0 : index
    %c0_145 = arith.constant 0 : index
    %158 = vector.load %arg8[%c6_143, %c0_144, %c0_145] : memref<9x1x256xf32, #tpu.memory_space<vmem>>, vector<1x1x256xf32>
    %159 = vector.shape_cast %158 : vector<1x1x256xf32> to vector<1x256xf32>
    %160 = vector.broadcast %159 : vector<1x256xf32> to vector<8x256xf32>
    %161 = arith.mulf %157, %160 : vector<8x256xf32>
    %c6_146 = arith.constant 6 : index
    %c0_147 = arith.constant 0 : index
    %c0_148 = arith.constant 0 : index
    %162 = vector.load %arg7[%c6_146, %c0_147, %c0_148] : memref<9x8x8xf32, #tpu.memory_space<vmem>>, vector<1x8x8xf32>
    %163 = vector.shape_cast %162 : vector<1x8x8xf32> to vector<8x8xf32>
    %cst_149 = arith.constant dense<0.000000e+00> : vector<8x256xf32>
    %164 = tpu.matmul %163, %161, %cst_149 {dimension_numbers = #tpu.dot_dimension_numbers<[1], [0], [0], [1], [0, 0, 1, 1], [], []>, precision = #tpu.contract_precision<fp32>} : vector<8x8xf32>, vector<8x256xf32>, vector<8x256xf32> -> vector<8x256xf32>
    %165 = arith.addf %156, %164 : vector<8x256xf32>
    %c0_150 = arith.constant 0 : index
    %c33_151 = arith.constant 33 : index
    %166 = vector.load %arg10[%c0_150, %c33_151] : memref<8x290xf32, #tpu.memory_space<vmem>>, vector<8x256xf32>
    %c7_152 = arith.constant 7 : index
    %c0_153 = arith.constant 0 : index
    %c0_154 = arith.constant 0 : index
    %167 = vector.load %arg8[%c7_152, %c0_153, %c0_154] : memref<9x1x256xf32, #tpu.memory_space<vmem>>, vector<1x1x256xf32>
    %168 = vector.shape_cast %167 : vector<1x1x256xf32> to vector<1x256xf32>
    %169 = vector.broadcast %168 : vector<1x256xf32> to vector<8x256xf32>
    %170 = arith.mulf %166, %169 : vector<8x256xf32>
    %c7_155 = arith.constant 7 : index
    %c0_156 = arith.constant 0 : index
    %c0_157 = arith.constant 0 : index
    %171 = vector.load %arg7[%c7_155, %c0_156, %c0_157] : memref<9x8x8xf32, #tpu.memory_space<vmem>>, vector<1x8x8xf32>
    %172 = vector.shape_cast %171 : vector<1x8x8xf32> to vector<8x8xf32>
    %cst_158 = arith.constant dense<0.000000e+00> : vector<8x256xf32>
    %173 = tpu.matmul %172, %170, %cst_158 {dimension_numbers = #tpu.dot_dimension_numbers<[1], [0], [0], [1], [0, 0, 1, 1], [], []>, precision = #tpu.contract_precision<fp32>} : vector<8x8xf32>, vector<8x256xf32>, vector<8x256xf32> -> vector<8x256xf32>
    %174 = arith.addf %165, %173 : vector<8x256xf32>
    %c0_159 = arith.constant 0 : index
    %c34_160 = arith.constant 34 : index
    %175 = vector.load %arg10[%c0_159, %c34_160] : memref<8x290xf32, #tpu.memory_space<vmem>>, vector<8x256xf32>
    %c8_161 = arith.constant 8 : index
    %c0_162 = arith.constant 0 : index
    %c0_163 = arith.constant 0 : index
    %176 = vector.load %arg8[%c8_161, %c0_162, %c0_163] : memref<9x1x256xf32, #tpu.memory_space<vmem>>, vector<1x1x256xf32>
    %177 = vector.shape_cast %176 : vector<1x1x256xf32> to vector<1x256xf32>
    %178 = vector.broadcast %177 : vector<1x256xf32> to vector<8x256xf32>
    %179 = arith.mulf %175, %178 : vector<8x256xf32>
    %c8_164 = arith.constant 8 : index
    %c0_165 = arith.constant 0 : index
    %c0_166 = arith.constant 0 : index
    %180 = vector.load %arg7[%c8_164, %c0_165, %c0_166] : memref<9x8x8xf32, #tpu.memory_space<vmem>>, vector<1x8x8xf32>
    %181 = vector.shape_cast %180 : vector<1x8x8xf32> to vector<8x8xf32>
    %cst_167 = arith.constant dense<0.000000e+00> : vector<8x256xf32>
    %182 = tpu.matmul %181, %179, %cst_167 {dimension_numbers = #tpu.dot_dimension_numbers<[1], [0], [0], [1], [0, 0, 1, 1], [], []>, precision = #tpu.contract_precision<fp32>} : vector<8x8xf32>, vector<8x256xf32>, vector<8x256xf32> -> vector<8x256xf32>
    %183 = arith.addf %174, %182 : vector<8x256xf32>
    %184 = arith.addf %183, %1 : vector<8x256xf32>
    %c0_168 = arith.constant 0 : index
    %c0_169 = arith.constant 0 : index
    %c0_170 = arith.constant 0 : index
    %185 = vector.load %arg9[%c0_168, %c0_169, %c0_170] : memref<1x8x256xf32, #tpu.memory_space<vmem>>, vector<1x8x256xf32>
    %186 = vector.shape_cast %185 : vector<1x8x256xf32> to vector<8x256xf32>
    %187 = vector.shape_cast %184 : vector<8x256xf32> to vector<1x8x256xf32>
    tpu.vector_store %arg9[%c0_168, %c0_169, %c0_170], %187 {strides = array<i32>} : memref<1x8x256xf32, #tpu.memory_space<vmem>>, vector<1x8x256xf32>,
    return
  }
  func.func @transform_0(%arg0: i32) -> (i32, i32, i32) {
    %c0_i32 = arith.constant 0 : i32
    %c0_i32_0 = arith.constant 0 : i32
    %c0_i32_1 = arith.constant 0 : i32
    return %arg0, %c0_i32, %c0_i32_0 : i32, i32, i32
  }
  func.func @transform_1(%arg0: i32) -> (i32, i32) {
    %c0_i32 = arith.constant 0 : i32
    %c0_i32_0 = arith.constant 0 : i32
    %c0_i32_1 = arith.constant 0 : i32
    return %c0_i32, %c0_i32_0 : i32, i32
  }
  func.func @transform_2(%arg0: i32) -> (i32, i32) {
    %c0_i32 = arith.constant 0 : i32
    %c0_i32_0 = arith.constant 0 : i32
    %c0_i32_1 = arith.constant 0 : i32
    return %c0_i32, %c0_i32_0 : i32, i32
  }
  func.func @transform_3(%arg0: i32) -> (i32, i32, i32) {
    %c0_i32 = arith.constant 0 : i32
    %c0_i32_0 = arith.constant 0 : i32
    %c0_i32_1 = arith.constant 0 : i32
    %c0_i32_2 = arith.constant 0 : i32
    return %c0_i32, %c0_i32_0, %c0_i32_1 : i32, i32, i32
  }
  func.func @transform_4(%arg0: i32) -> (i32, i32) {
    %c0_i32 = arith.constant 0 : i32
    %c0_i32_0 = arith.constant 0 : i32
    %c0_i32_1 = arith.constant 0 : i32
    return %c0_i32, %c0_i32_0 : i32, i32
  }
  func.func @transform_5(%arg0: i32) -> (i32, i32) {
    %c0_i32 = arith.constant 0 : i32
    %c0_i32_0 = arith.constant 0 : i32
    %c0_i32_1 = arith.constant 0 : i32
    return %c0_i32, %c0_i32_0 : i32, i32
  }
  func.func @transform_6(%arg0: i32) -> (i32, i32, i32) {
    %c0_i32 = arith.constant 0 : i32
    %c0_i32_0 = arith.constant 0 : i32
    %c0_i32_1 = arith.constant 0 : i32
    %c0_i32_2 = arith.constant 0 : i32
    return %c0_i32, %c0_i32_0, %c0_i32_1 : i32, i32, i32
  }
  func.func @transform_7(%arg0: i32) -> (i32, i32, i32) {
    %c0_i32 = arith.constant 0 : i32
    %c0_i32_0 = arith.constant 0 : i32
    %c0_i32_1 = arith.constant 0 : i32
    %c0_i32_2 = arith.constant 0 : i32
    return %c0_i32, %c0_i32_0, %c0_i32_1 : i32, i32, i32
  }
  func.func @transform_8(%arg0: i32) -> (i32, i32, i32) {
    %c0_i32 = arith.constant 0 : i32
    %c0_i32_0 = arith.constant 0 : i32
    %c0_i32_1 = arith.constant 0 : i32
    return %arg0, %c0_i32, %c0_i32_0 : i32, i32, i32
  }
}

</mosaic_0001>

<llo_original>
// kernel: tpu_custom_call.1
$region0: #{tpu_custom_call.1}
  #allocation0 [shape = 'u32[]', space=smem, size = 0x4, offset = 0x4, fixed_abs, tag = 'smem constant byte address 0x4 - core index']
  #allocation1 [shape = 'u32[144,128]{1,0:T(1,128)}', space=vmem, size = 0x12000, scoped, tag = 'internal scratch']
  #allocation2 [shape = 'f32[8,290]{1,0:T(8,128)}', space=vmem, size = 0x3000, scoped, tag = 'scratch operand']
  %s0 = inlined_call_operand.vmem [shape: f32[2,8,256], index: 0, kind: input, shape index: {}]
  %s1 = inlined_call_operand.vmem [shape: f32[8,1], index: 1, kind: input, shape index: {}]
  %s2 = inlined_call_operand.vmem [shape: f32[8,1], index: 2, kind: input, shape index: {}]
  %s3 = inlined_call_operand.vmem [shape: f32[9,8,8], index: 3, kind: input, shape index: {}]
  %s4 = inlined_call_operand.vmem [shape: f32[8,1], index: 4, kind: input, shape index: {}]
  %s5 = inlined_call_operand.vmem [shape: f32[8,1], index: 5, kind: input, shape index: {}]
  %s6 = inlined_call_operand.vmem [shape: f32[9,8,8], index: 6, kind: input, shape index: {}]
  %s7 = inlined_call_operand.vmem [shape: f32[9,1,256], index: 7, kind: input, shape index: {}]
  %s8 = inlined_call_operand.hbm [shape: f32[2,8,256], index: 8, kind: output, shape index: {}]
  %s9 = sld [smem:[#allocation0]]
  $region65: #{tpu_custom_call.1} parent=0
    _
  %s11 = ssub.s32 1, %s9
  %s12 = scalar_select 0, %s11, %s9
  $region1: #{tpu_custom_call.1} parent=0
    #allocation3 [shape = 'u8[16384]{0}', space=vmem, size = 0x4000, scoped, tag = 'output window, operand 0']
    #allocation4 [shape = 's32[2]{0}', space=sflag, size = 0x8, scoped, tag = 'scoped memory for tpu_custom_call.1']
    %13 = vsyncpa [#allocation4], 0
    %s14 = scalar_lea.sflag [#allocation4], 1
    %15 = vsyncpa %s14, 0
    loop: start=0, step=1, limit=4
    $region2: #{tpu_custom_call.1} parent=1 // loop_pre_header
      _
    $region3: #{tpu_custom_call.1} parent=1 // loop_header
      %s17 = sphi 0, %s21
      %p18 = scmp.ge.s32.totalorder %s17, 4
      %s27 = sphi 0, %s29
      %s30 = sphi 0, %s27
      %s31 = sphi 0, %s30
      %s47 = sphi 0, %s31
      %s51 = sphi 0, %s51
      %s53 = sphi 0, %s51
      %s54 = sphi 0, %s53
      %s68 = sphi 0, %s54
      %s72 = sphi 0, %s72
      %s74 = sphi 0, %s72
      %s75 = sphi 0, %s74
      %s89 = sphi 0, %s75
      %s93 = sphi 0, %s93
      %s95 = sphi 0, %s93
      %s96 = sphi 0, %s95
      %s110 = sphi 0, %s96
      %s114 = sphi 0, %s114
      %s116 = sphi 0, %s114
      %s117 = sphi 0, %s116
      %s131 = sphi 0, %s117
      %s135 = sphi 0, %s135
      %s137 = sphi 0, %s135
      %s138 = sphi 0, %s137
      %s152 = sphi 0, %s138
      %s156 = sphi 0, %s156
      %s158 = sphi 0, %s156
      %s159 = sphi 0, %s158
      %s173 = sphi 0, %s159
      %s177 = sphi 0, %s177
      %s179 = sphi 0, %s177
      %s180 = sphi 0, %s179
      %s194 = sphi 0, %s180
      %s200 = sphi 0, %s202
      %s203 = sphi 0, %s200
      %s204 = sphi 0, %s203
      %s220 = sphi 0, %s204
    $region4: #{tpu_custom_call.1} parent=1 // loop_header_branch
      %20 = sbr.rel (%p18) target = $region8
    $region5: #{tpu_custom_call.1} parent=1 // loop_body
      %s22 = ssub.s32 %s17, 1
      %s23 = ssub.s32 %s17, 2
      %s24 = sadd.s32 %s17, 1
      %s25 = ssub.s32 %s17, %s24
      %p26 = scmp.eq.s32.totalorder %s25, 0
      %s28 = sadd.s32 %s27, 1
      %s29 = scalar_select %p26, %s27, %s28
      %p32 = pneg %p26
      %p33 = scmp.eq.s32.totalorder %s17, 1
      %p34 = por %p32, %p33
      %p35 = scmp.ne.s32.totalorder %s27, %s30
      %p36 = scmp.eq.s32.totalorder %s17, 0
      %p37 = por %p35, %p36
      %p38 = scmp.ne.s32.totalorder %s27, %s30
      %p39 = scmp.eq.s32.totalorder %s22, 1
      %p40 = por %p38, %p39
      %p41 = scmp.ne.s32.totalorder %s30, %s31
      %p42 = scmp.eq.s32.totalorder %s22, 0
      %p43 = por %p41, %p42
      %p44 = scmp.ne.s32.totalorder %s30, %s31
      %p45 = scmp.eq.s32.totalorder %s23, 1
      %p46 = por %p44, %p45
      %p48 = scmp.ne.s32.totalorder %s31, %s47
      %p49 = scmp.eq.s32.totalorder %s23, 0
      %p50 = por %p48, %p49
      %s52 = sadd.s32 %s51, 1
      %p55 = scmp.eq.s32.totalorder %s17, 1
      %p56 = scmp.ne.s32.totalorder %s51, %s53
      %p57 = scmp.eq.s32.totalorder %s17, 0
      %p58 = por %p56, %p57
      %p59 = scmp.ne.s32.totalorder %s51, %s53
      %p60 = scmp.eq.s32.totalorder %s22, 1
      %p61 = por %p59, %p60
      %p62 = scmp.ne.s32.totalorder %s53, %s54
      %p63 = scmp.eq.s32.totalorder %s22, 0
      %p64 = por %p62, %p63
      %p65 = scmp.ne.s32.totalorder %s53, %s54
      %p66 = scmp.eq.s32.totalorder %s23, 1
      %p67 = por %p65, %p66
      %p69 = scmp.ne.s32.totalorder %s54, %s68
      %p70 = scmp.eq.s32.totalorder %s23, 0
      %p71 = por %p69, %p70
      %s73 = sadd.s32 %s72, 1
      %p76 = scmp.eq.s32.totalorder %s17, 1
      %p77 = scmp.ne.s32.totalorder %s72, %s74
      %p78 = scmp.eq.s32.totalorder %s17, 0
      %p79 = por %p77, %p78
      %p80 = scmp.ne.s32.totalorder %s72, %s74
      %p81 = scmp.eq.s32.totalorder %s22, 1
      %p82 = por %p80, %p81
      %p83 = scmp.ne.s32.totalorder %s74, %s75
      %p84 = scmp.eq.s32.totalorder %s22, 0
      %p85 = por %p83, %p84
      %p86 = scmp.ne.s32.totalorder %s74, %s75
      %p87 = scmp.eq.s32.totalorder %s23, 1
      %p88 = por %p86, %p87
      %p90 = scmp.ne.s32.totalorder %s75, %s89
      %p91 = scmp.eq.s32.totalorder %s23, 0
      %p92 = por %p90, %p91
      %s94 = sadd.s32 %s93, 1
      %p97 = scmp.eq.s32.totalorder %s17, 1
      %p98 = scmp.ne.s32.totalorder %s93, %s95
      %p99 = scmp.eq.s32.totalorder %s17, 0
      %p100 = por %p98, %p99
      %p101 = scmp.ne.s32.totalorder %s93, %s95
      %p102 = scmp.eq.s32.totalorder %s22, 1
      %p103 = por %p101, %p102
      %p104 = scmp.ne.s32.totalorder %s95, %s96
      %p105 = scmp.eq.s32.totalorder %s22, 0
      %p106 = por %p104, %p105
      %p107 = scmp.ne.s32.totalorder %s95, %s96
      %p108 = scmp.eq.s32.totalorder %s23, 1
      %p109 = por %p107, %p108
      %p111 = scmp.ne.s32.totalorder %s96, %s110
      %p112 = scmp.eq.s32.totalorder %s23, 0
      %p113 = por %p111, %p112
      %s115 = sadd.s32 %s114, 1
      %p118 = scmp.eq.s32.totalorder %s17, 1
      %p119 = scmp.ne.s32.totalorder %s114, %s116
      %p120 = scmp.eq.s32.totalorder %s17, 0
      %p121 = por %p119, %p120
      %p122 = scmp.ne.s32.totalorder %s114, %s116
      %p123 = scmp.eq.s32.totalorder %s22, 1
      %p124 = por %p122, %p123
      %p125 = scmp.ne.s32.totalorder %s116, %s117
      %p126 = scmp.eq.s32.totalorder %s22, 0
      %p127 = por %p125, %p126
      %p128 = scmp.ne.s32.totalorder %s116, %s117
      %p129 = scmp.eq.s32.totalorder %s23, 1
      %p130 = por %p128, %p129
      %p132 = scmp.ne.s32.totalorder %s117, %s131
      %p133 = scmp.eq.s32.totalorder %s23, 0
      %p134 = por %p132, %p133
      %s136 = sadd.s32 %s135, 1
      %p139 = scmp.eq.s32.totalorder %s17, 1
      %p140 = scmp.ne.s32.totalorder %s135, %s137
      %p141 = scmp.eq.s32.totalorder %s17, 0
      %p142 = por %p140, %p141
      %p143 = scmp.ne.s32.totalorder %s135, %s137
      %p144 = scmp.eq.s32.totalorder %s22, 1
      %p145 = por %p143, %p144
      %p146 = scmp.ne.s32.totalorder %s137, %s138
      %p147 = scmp.eq.s32.totalorder %s22, 0
      %p148 = por %p146, %p147
      %p149 = scmp.ne.s32.totalorder %s137, %s138
      %p150 = scmp.eq.s32.totalorder %s23, 1
      %p151 = por %p149, %p150
      %p153 = scmp.ne.s32.totalorder %s138, %s152
      %p154 = scmp.eq.s32.totalorder %s23, 0
      %p155 = por %p153, %p154
      %s157 = sadd.s32 %s156, 1
      %p160 = scmp.eq.s32.totalorder %s17, 1
      %p161 = scmp.ne.s32.totalorder %s156, %s158
      %p162 = scmp.eq.s32.totalorder %s17, 0
      %p163 = por %p161, %p162
      %p164 = scmp.ne.s32.totalorder %s156, %s158
      %p165 = scmp.eq.s32.totalorder %s22, 1
      %p166 = por %p164, %p165
      %p167 = scmp.ne.s32.totalorder %s158, %s159
      %p168 = scmp.eq.s32.totalorder %s22, 0
      %p169 = por %p167, %p168
      %p170 = scmp.ne.s32.totalorder %s158, %s159
      %p171 = scmp.eq.s32.totalorder %s23, 1
      %p172 = por %p170, %p171
      %p174 = scmp.ne.s32.totalorder %s159, %s173
      %p175 = scmp.eq.s32.totalorder %s23, 0
      %p176 = por %p174, %p175
      %s178 = sadd.s32 %s177, 1
      %p181 = scmp.eq.s32.totalorder %s17, 1
      %p182 = scmp.ne.s32.totalorder %s177, %s179
      %p183 = scmp.eq.s32.totalorder %s17, 0
      %p184 = por %p182, %p183
      %p185 = scmp.ne.s32.totalorder %s177, %s179
      %p186 = scmp.eq.s32.totalorder %s22, 1
      %p187 = por %p185, %p186
      %p188 = scmp.ne.s32.totalorder %s179, %s180
      %p189 = scmp.eq.s32.totalorder %s22, 0
      %p190 = por %p188, %p189
      %p191 = scmp.ne.s32.totalorder %s179, %s180
      %p192 = scmp.eq.s32.totalorder %s23, 1
      %p193 = por %p191, %p192
      %p195 = scmp.ne.s32.totalorder %s180, %s194
      %p196 = scmp.eq.s32.totalorder %s23, 0
      %p197 = por %p195, %p196
      %s198 = ssub.s32 %s17, %s24
      %p199 = scmp.eq.s32.totalorder %s198, 0
      %s201 = sadd.s32 %s200, 1
      %s202 = scalar_select %p199, %s200, %s201
      %p205 = pneg %p199
      %p206 = scmp.eq.s32.totalorder %s17, 1
      %p207 = por %p205, %p206
      %p208 = scmp.ne.s32.totalorder %s200, %s203
      %p209 = scmp.eq.s32.totalorder %s17, 0
      %p210 = por %p208, %p209
      %p211 = scmp.ne.s32.totalorder %s200, %s203
      %p212 = scmp.eq.s32.totalorder %s22, 1
      %p213 = por %p211, %p212
      %p214 = scmp.ne.s32.totalorder %s203, %s204
      %p215 = scmp.eq.s32.totalorder %s22, 0
      %p216 = por %p214, %p215
      %p217 = scmp.ne.s32.totalorder %s203, %s204
      %p218 = scmp.eq.s32.totalorder %s23, 1
      %p219 = por %p217, %p218
      %p221 = scmp.ne.s32.totalorder %s204, %s220
      %p222 = scmp.eq.s32.totalorder %s23, 0
      %p223 = por %p221, %p222
      %p224 = scmp.le.s32.totalorder 1, %s17
      %p225 = scmp.lt.s32.totalorder %s17, 3
      %p226 = pnand %p224, %p225
      %p227 = pneg %p226
      // Predicated region
      $region9: #{tpu_custom_call.1} parent=5 // pred_check
        _
      $region10: #{tpu_custom_call.1} parent=5 // pred_check_branch
        %229 = sbr.rel (%p226) target = $region12
      $region11: #{tpu_custom_call.1} parent=5 // pred_region
        %s230 = ssub.s32 %s17, 1
        // Predicated region
        $region13: #{tpu_custom_call.1} parent=11 // pred_check
          %p231 = pneg %p64
        $region14: #{tpu_custom_call.1} parent=11 // pred_check_branch
          %233 = sbr.rel (%p231) target = $region16
        $region15: #{tpu_custom_call.1} parent=11 // pred_region
          _
        $region16: #{tpu_custom_call.1} parent=11 // pred_fallthru
          _
        // Predicated region
        $region17: #{tpu_custom_call.1} parent=11 // pred_check
          %p234 = pneg %p85
        $region18: #{tpu_custom_call.1} parent=11 // pred_check_branch
          %236 = sbr.rel (%p234) target = $region20
        $region19: #{tpu_custom_call.1} parent=11 // pred_region
          _
        $region20: #{tpu_custom_call.1} parent=11 // pred_fallthru
          _
        // Predicated region
        $region21: #{tpu_custom_call.1} parent=11 // pred_check
          %p237 = pneg %p106
        $region22: #{tpu_custom_call.1} parent=11 // pred_check_branch
          %239 = sbr.rel (%p237) target = $region24
        $region23: #{tpu_custom_call.1} parent=11 // pred_region
          _
        $region24: #{tpu_custom_call.1} parent=11 // pred_fallthru
          _
        // Predicated region
        $region25: #{tpu_custom_call.1} parent=11 // pred_check
          %p240 = pneg %p127
        $region26: #{tpu_custom_call.1} parent=11 // pred_check_branch
          %242 = sbr.rel (%p240) target = $region28
        $region27: #{tpu_custom_call.1} parent=11 // pred_region
          _
        $region28: #{tpu_custom_call.1} parent=11 // pred_fallthru
          _
        // Predicated region
        $region29: #{tpu_custom_call.1} parent=11 // pred_check
          %p243 = pneg %p148
        $region30: #{tpu_custom_call.1} parent=11 // pred_check_branch
          %245 = sbr.rel (%p243) target = $region32
        $region31: #{tpu_custom_call.1} parent=11 // pred_region
          _
        $region32: #{tpu_custom_call.1} parent=11 // pred_fallthru
          _
        // Predicated region
        $region33: #{tpu_custom_call.1} parent=11 // pred_check
          %p246 = pneg %p169
        $region34: #{tpu_custom_call.1} parent=11 // pred_check_branch
          %248 = sbr.rel (%p246) target = $region36
        $region35: #{tpu_custom_call.1} parent=11 // pred_region
          _
        $region36: #{tpu_custom_call.1} parent=11 // pred_fallthru
          _
        // Predicated region
        $region37: #{tpu_custom_call.1} parent=11 // pred_check
          %p249 = pneg %p190
        $region38: #{tpu_custom_call.1} parent=11 // pred_check_branch
          %251 = sbr.rel (%p249) target = $region40
        $region39: #{tpu_custom_call.1} parent=11 // pred_region
          _
        $region40: #{tpu_custom_call.1} parent=11 // pred_fallthru
          _
      $region12: #{tpu_custom_call.1} parent=5 // pred_fallthru
        _
      %p252 = scmp.lt.s32.totalorder %s17, 2
      // Predicated region
      $region41: #{tpu_custom_call.1} parent=5 // pred_check
        %p253 = pneg %p252
      $region42: #{tpu_custom_call.1} parent=5 // pred_check_branch
        %255 = sbr.rel (%p253) target = $region44
      $region43: #{tpu_custom_call.1} parent=5 // pred_region
        // Predicated region
        $region45: #{tpu_custom_call.1} parent=43 // pred_check
          %p256 = pneg %p37
        $region46: #{tpu_custom_call.1} parent=43 // pred_check_branch
          %258 = sbr.rel (%p256) target = $region48
        $region47: #{tpu_custom_call.1} parent=43 // pred_region
          %p259 = scmp.lt.s32.totalorder %s17, 1
          %s260 = scalar_select %p259, %s17, 1
          %s261 = smul.addr %s260, 2
          %s262 = smul.addr %s261, 8
          %s263 = scalar_lea.vmem %s0, %s262
        $region48: #{tpu_custom_call.1} parent=43 // pred_fallthru
          _
      $region44: #{tpu_custom_call.1} parent=5 // pred_fallthru
        _
      %p264 = scmp.le.s32.totalorder 1, %s17
      %p265 = scmp.lt.s32.totalorder %s17, 3
      %p266 = pnand %p264, %p265
      %p267 = pneg %p266
      // Predicated region
      $region49: #{tpu_custom_call.1} parent=5 // pred_check
        _
      $region50: #{tpu_custom_call.1} parent=5 // pred_check_branch
        %269 = sbr.rel (%p266) target = $region52
      $region51: #{tpu_custom_call.1} parent=5 // pred_region
        %s270 = ssub.s32 %s17, 1
        %p271 = scmp.lt.s32.totalorder %s22, 1
        %s272 = scalar_select %p271, %s22, 1
        %s273 = smul.addr %s272, 2
        %s274 = smul.addr %s273, 8
        %s275 = scalar_lea.vmem %s0, %s274
        %p276 = pneg %p43
        %p277 = pneg %p40
        %p278 = pneg %p64
        %p279 = pneg %p61
        %p280 = pneg %p85
        %p281 = pneg %p82
        %p282 = pneg %p106
        %p283 = pneg %p103
        %p284 = pneg %p127
        %p285 = pneg %p124
        %p286 = pneg %p148
        %p287 = pneg %p145
        %p288 = pneg %p169
        %p289 = pneg %p166
        %p290 = pneg %p190
        %p291 = pneg %p187
        %p292 = pneg %p216
        %p293 = pneg %p213
        %s294 = sand.u32 %s203, 1
        %s295 = scalar_lea.sflag [#allocation4], %s294
        %s296 = sand.u32 %s203, 1
        %s297 = smul.addr %s296, 16
        %s298 = scalar_lea.vmem [#allocation3], %s297
        %p299 = scmp.lt.s32.totalorder %s22, 1
        %s300 = scalar_select %p299, %s22, 1
        %s301 = smul.addr %s300, 2
        %s302 = smul.addr %s301, 8
        %s303 = scalar_lea.vmem %s0, %s302
        %v304 = vld [vmem:[%s303] sm:$0xff]
        %v305 = vld [vmem:[%s303 + $0x8] sm:$0xff]
        %vm306 = vcmask 138240
        %307 = vst.msk [vmem:[#allocation2] sm:$0xff] %vm306, 0.0
        %vm308 = vcmask 277640
        %309 = vst.msk [vmem:[#allocation2 + $0x10] sm:$0xff] %vm308, 0.0
        %v310 = vld [vmem:[%s1] sm:$0xff]
        %312 = vset.pattern.permute.xlu0 0
        %313 = vperm.xlu0 %312, %v310
        %v314 = vpop.permute.xlu0 %313
        %v316 = vmul.f32 %v304, %v314
        %v317 = vmul.f32 %v305, %v314
        %v318 = vld [vmem:[%s2] sm:$0xff]
        %320 = vset.pattern.permute.xlu0 0
        %321 = vperm.xlu0 %320, %v318
        %v322 = vpop.permute.xlu0 %321
        %v324 = vadd.f32 %v316, %v322
        %v325 = vadd.f32 %v317, %v322
        %v326 = vmax.f32 %v324, 0.0
        %v327 = vmax.f32 %v325, 0.0
        %330 = vrot.lane.b32.xlu0 %v326, 17
        %v331 = vpop.permute.xlu0 %330
        %332 = vrot.lane.b32.xlu0 %v327, 17
        %v333 = vpop.permute.xlu0 %332
        %v334 = vsel %vm306, %v331, %v333
        %vm338 = vcmask 1047688
        %339 = vst.msk [vmem:[#allocation2] sm:$0xff] %vm338, %v331
        %340 = vst [vmem:[#allocation2 + $0x8] sm:$0xff] %v334
        %341 = vst.msk [vmem:[#allocation2 + $0x10] sm:$0xff] %vm306, %v333
        %v342 = vld [vmem:[#allocation2] sm:$0xff]
        %v343 = vld [vmem:[#allocation2 + $0x8] sm:$0xff]
        %v344 = vld [vmem:[%s7] sm:$0x3]
        %v346 = vlaneseq
        %v347 = vshrl.u32 %v346, 7
        %v348 = vsub.s32 0, %v347
        %v349 = vrot.slane %v344, %v348
        %v350 = vlaneseq
        %v351 = vshrl.u32 %v350, 7
        %v352 = vsub.s32 1, %v351
        %v353 = vrot.slane %v344, %v352
        %v356 = vmul.f32 %v342, %v349
        %v357 = vmul.f32 %v343, %v353
        %v358 = vld [vmem:[%s3] sm:$0xff]
        %v359 = vld [vmem:[#allocation2 + $0x10] sm:$0xff]
        %s360 = scalar_lea.vmem %s7, 2
        %v361 = vld [vmem:[%s360] sm:$0x3]
        %v363 = vlaneseq
        %v364 = vshrl.u32 %v363, 7
        %v365 = vsub.s32 0, %v364
        %v366 = vrot.slane %v361, %v365
        %v367 = vlaneseq
        %v368 = vshrl.u32 %v367, 7
        %v369 = vsub.s32 1, %v368
        %v370 = vrot.slane %v361, %v369
        %371 = vrot.lane.b32.xlu0 %v366, 1
        %v372 = vpop.permute.xlu0 %371
        %373 = vrot.lane.b32.xlu0 %v370, 1
        %v374 = vpop.permute.xlu0 %373
        %vm375 = vcmask 7168
        %v376 = vsel %vm375, %v372, %v374
        %v380 = vmul.f32 %v342, %v372
        %v381 = vmul.f32 %v343, %v376
        %v382 = vmul.f32 %v359, %v374
        %s383 = scalar_lea.vmem %s3, 8
        %v384 = vld [vmem:[%s383] sm:$0xff]
        %388 = vrot.lane.b32.xlu0 %v380, 127
        %v389 = vpop.permute.xlu0 %388
        %390 = vrot.lane.b32.xlu0 %v381, 127
        %v391 = vpop.permute.xlu0 %390
        %392 = vrot.lane.b32.xlu0 %v382, 127
        %v393 = vpop.permute.xlu0 %392
        %vm394 = vcmask 1039360
        %v395 = vsel %vm394, %v389, %v391
        %v396 = vsel %vm394, %v391, %v393
        %vm399 = vcmask 64512
        %v401 = vsel %vm399, %v384, 0
        %403 = vmatprep.subr.mxu0 0.0
        %404 = vmatpush1.msra.mxu0 0.0
        %405 = vmatprep.subr.mxu0 0.0
        %406 = vmatpush1.msra.mxu0 0.0
        %407 = vmatprep.subr.mxu0 0.0
        %408 = vmatpush1.msra.mxu0 0.0
        %409 = vmatprep.subr.mxu0 0.0
        %410 = vmatpush1.msra.mxu0 0.0
        %411 = vmatprep.subr.mxu0 0.0
        %412 = vmatpush1.msra.mxu0 0.0
        %413 = vmatprep.subr.mxu0 0.0
        %414 = vmatpush1.msra.mxu0 0.0
        %415 = vmatprep.subr.mxu0 0.0
        %416 = vmatpush1.msra.mxu0 0.0
        %417 = vmatprep.subr.mxu0 0.0
        %418 = vmatpush1.msra.mxu0 0.0
        %419 = vmatprep.subr.mxu0 0.0
        %420 = vmatpush1.msra.mxu0 0.0
        %421 = vmatprep.subr.mxu0 0.0
        %422 = vmatpush1.msra.mxu0 0.0
        %423 = vmatprep.subr.mxu0 0.0
        %424 = vmatpush1.msra.mxu0 0.0
        %425 = vmatprep.subr.mxu0 0.0
        %426 = vmatpush1.msra.mxu0 0.0
        %427 = vmatprep.subr.mxu0 0.0
        %428 = vmatpush1.msra.mxu0 0.0
        %429 = vmatprep.subr.mxu0 0.0
        %430 = vmatpush1.msra.mxu0 0.0
        %431 = vmatprep.subr.mxu0 0.0
        %432 = vmatpush1.msra.mxu0 0.0
        %v433 = vand.u32 %v396, 4294901760
        %434 = vmatprep.subr.mxu0 %v433
        %v435 = vand.u32 %v395, 4294901760
        %436 = vmatpush1.msra.mxu0 %v435
        %437 = vmatprep.subr.mxu0 0.0
        %438 = vmatpush2.msra.mxu0 0.0
        %439 = vmatprep.subr.mxu0 0.0
        %440 = vmatpush2.msra.mxu0 0.0
        %441 = vmatprep.subr.mxu0 0.0
        %442 = vmatpush2.msra.mxu0 0.0
        %443 = vmatprep.subr.mxu0 0.0
        %444 = vmatpush2.msra.mxu0 0.0
        %445 = vmatprep.subr.mxu0 0.0
        %446 = vmatpush2.msra.mxu0 0.0
        %447 = vmatprep.subr.mxu0 0.0
        %448 = vmatpush2.msra.mxu0 0.0
        %449 = vmatprep.subr.mxu0 0.0
        %450 = vmatpush2.msra.mxu0 0.0
        %451 = vmatprep.subr.mxu0 0.0
        %452 = vmatpush2.msra.mxu0 0.0
        %453 = vmatprep.subr.mxu0 0.0
        %454 = vmatpush2.msra.mxu0 0.0
        %455 = vmatprep.subr.mxu0 0.0
        %456 = vmatpush2.msra.mxu0 0.0
        %457 = vmatprep.subr.mxu0 0.0
        %458 = vmatpush2.msra.mxu0 0.0
        %459 = vmatprep.subr.mxu0 0.0
        %460 = vmatpush2.msra.mxu0 0.0
        %461 = vmatprep.subr.mxu0 0.0
        %462 = vmatpush2.msra.mxu0 0.0
        %463 = vmatprep.subr.mxu0 0.0
        %464 = vmatpush2.msra.mxu0 0.0
        %465 = vmatprep.subr.mxu0 0.0
        %466 = vmatpush2.msra.mxu0 0.0
        %467 = vmatprep.subr.mxu0 0.0
        %468 = vmatpush2.msra.mxu0 0.0
        %469 = vmatprep.mubr.f32.mxu0 0.0
        %v470 = vand.u32 %v401, 4294901760
        %v471 = vsub.f32 %v401, %v470
        %v472 = vand.u32 %v471, 4294901760
        %v473 = vsub.f32 %v471, %v472
        %v474 = vand.u32 %v473, 4294901760
        %475 = vmatmul.mubr.f32.gmra.mxu0 %v474
        %v476 = vpop.f32.mrf.mxu0
        %v477 = vadd.f32 0.0, %v476
        %v478 = vpop.f32.mrf.mxu0
        %v479 = vadd.f32 0.0, %v478
        %480 = vdwg.mxu0
        %481 = vmatprep.subr.mxu0 0.0
        %482 = vmatpush1.msra.mxu0 0.0
        %483 = vmatprep.subr.mxu0 0.0
        %484 = vmatpush1.msra.mxu0 0.0
        %485 = vmatprep.subr.mxu0 0.0
        %486 = vmatpush1.msra.mxu0 0.0
        %487 = vmatprep.subr.mxu0 0.0
        %488 = vmatpush1.msra.mxu0 0.0
        %489 = vmatprep.subr.mxu0 0.0
        %490 = vmatpush1.msra.mxu0 0.0
        %491 = vmatprep.subr.mxu0 0.0
        %492 = vmatpush1.msra.mxu0 0.0
        %493 = vmatprep.subr.mxu0 0.0
        %494 = vmatpush1.msra.mxu0 0.0
        %495 = vmatprep.subr.mxu0 0.0
        %496 = vmatpush1.msra.mxu0 0.0
        %497 = vmatprep.subr.mxu0 0.0
        %498 = vmatpush1.msra.mxu0 0.0
        %499 = vmatprep.subr.mxu0 0.0
        %500 = vmatpush1.msra.mxu0 0.0
        %501 = vmatprep.subr.mxu0 0.0
        %502 = vmatpush1.msra.mxu0 0.0
        %503 = vmatprep.subr.mxu0 0.0
        %504 = vmatpush1.msra.mxu0 0.0
        %505 = vmatprep.subr.mxu0 0.0
        %506 = vmatpush1.msra.mxu0 0.0
        %507 = vmatprep.subr.mxu0 0.0
        %508 = vmatpush1.msra.mxu0 0.0
        %509 = vmatprep.subr.mxu0 0.0
        %510 = vmatpush1.msra.mxu0 0.0
        %v511 = vand.u32 %v396, 4294901760
        %v512 = vsub.f32 %v396, %v511
        %v513 = vand.u32 %v512, 4294901760
        %v514 = vsub.f32 %v512, %v513
        %v515 = vand.u32 %v514, 4294901760
        %516 = vmatprep.subr.mxu0 %v515
        %v517 = vand.u32 %v395, 4294901760
        %v518 = vsub.f32 %v395, %v517
        %v519 = vand.u32 %v518, 4294901760
        %v520 = vsub.f32 %v518, %v519
        %v521 = vand.u32 %v520, 4294901760
        %522 = vmatpush1.msra.mxu0 %v521
        %523 = vmatprep.subr.mxu0 0.0
        %524 = vmatpush2.msra.mxu0 0.0
        %525 = vmatprep.subr.mxu0 0.0
        %526 = vmatpush2.msra.mxu0 0.0
        %527 = vmatprep.subr.mxu0 0.0
        %528 = vmatpush2.msra.mxu0 0.0
        %529 = vmatprep.subr.mxu0 0.0
        %530 = vmatpush2.msra.mxu0 0.0
        %531 = vmatprep.subr.mxu0 0.0
        %532 = vmatpush2.msra.mxu0 0.0
        %533 = vmatprep.subr.mxu0 0.0
        %534 = vmatpush2.msra.mxu0 0.0
        %535 = vmatprep.subr.mxu0 0.0
        %536 = vmatpush2.msra.mxu0 0.0
        %537 = vmatprep.subr.mxu0 0.0
        %538 = vmatpush2.msra.mxu0 0.0
        %539 = vmatprep.subr.mxu0 0.0
        %540 = vmatpush2.msra.mxu0 0.0
        %541 = vmatprep.subr.mxu0 0.0
        %542 = vmatpush2.msra.mxu0 0.0
        %543 = vmatprep.subr.mxu0 0.0
        %544 = vmatpush2.msra.mxu0 0.0
        %545 = vmatprep.subr.mxu0 0.0
        %546 = vmatpush2.msra.mxu0 0.0
        %547 = vmatprep.subr.mxu0 0.0
        %548 = vmatpush2.msra.mxu0 0.0
        %549 = vmatprep.subr.mxu0 0.0
        %550 = vmatpush2.msra.mxu0 0.0
        %551 = vmatprep.subr.mxu0 0.0
        %552 = vmatpush2.msra.mxu0 0.0
        %553 = vmatprep.subr.mxu0 0.0
        %554 = vmatpush2.msra.mxu0 0.0
        %555 = vmatprep.mubr.f32.mxu0 0.0
        %v556 = vand.u32 %v401, 4294901760
        %557 = vmatmul.mubr.f32.gmra.mxu0 %v556
        %v558 = vpop.f32.mrf.mxu0
        %v559 = vadd.f32 %v477, %v558
        %v560 = vpop.f32.mrf.mxu0
        %v561 = vadd.f32 %v479, %v560
        %562 = vdwg.mxu0
        %563 = vmatprep.subr.mxu0 0.0
        %564 = vmatpush1.msra.mxu0 0.0
        %565 = vmatprep.subr.mxu0 0.0
        %566 = vmatpush1.msra.mxu0 0.0
        %567 = vmatprep.subr.mxu0 0.0
        %568 = vmatpush1.msra.mxu0 0.0
        %569 = vmatprep.subr.mxu0 0.0
        %570 = vmatpush1.msra.mxu0 0.0
        %571 = vmatprep.subr.mxu0 0.0
        %572 = vmatpush1.msra.mxu0 0.0
        %573 = vmatprep.subr.mxu0 0.0
        %574 = vmatpush1.msra.mxu0 0.0
        %575 = vmatprep.subr.mxu0 0.0
        %576 = vmatpush1.msra.mxu0 0.0
        %577 = vmatprep.subr.mxu0 0.0
        %578 = vmatpush1.msra.mxu0 0.0
        %579 = vmatprep.subr.mxu0 0.0
        %580 = vmatpush1.msra.mxu0 0.0
        %581 = vmatprep.subr.mxu0 0.0
        %582 = vmatpush1.msra.mxu0 0.0
        %583 = vmatprep.subr.mxu0 0.0
        %584 = vmatpush1.msra.mxu0 0.0
        %585 = vmatprep.subr.mxu0 0.0
        %586 = vmatpush1.msra.mxu0 0.0
        %587 = vmatprep.subr.mxu0 0.0
        %588 = vmatpush1.msra.mxu0 0.0
        %589 = vmatprep.subr.mxu0 0.0
        %590 = vmatpush1.msra.mxu0 0.0
        %591 = vmatprep.subr.mxu0 0.0
        %592 = vmatpush1.msra.mxu0 0.0
        %v593 = vand.u32 %v396, 4294901760
        %v594 = vsub.f32 %v396, %v593
        %595 = vmatprep.subr.mxu0 %v594
        %v596 = vand.u32 %v395, 4294901760
        %v597 = vsub.f32 %v395, %v596
        %598 = vmatpush1.msra.mxu0 %v597
        %599 = vmatprep.subr.mxu0 0.0
        %600 = vmatpush2.msra.mxu0 0.0
        %601 = vmatprep.subr.mxu0 0.0
        %602 = vmatpush2.msra.mxu0 0.0
        %603 = vmatprep.subr.mxu0 0.0
        %604 = vmatpush2.msra.mxu0 0.0
        %605 = vmatprep.subr.mxu0 0.0
        %606 = vmatpush2.msra.mxu0 0.0
        %607 = vmatprep.subr.mxu0 0.0
        %608 = vmatpush2.msra.mxu0 0.0
        %609 = vmatprep.subr.mxu0 0.0
        %610 = vmatpush2.msra.mxu0 0.0
        %611 = vmatprep.subr.mxu0 0.0
        %612 = vmatpush2.msra.mxu0 0.0
        %613 = vmatprep.subr.mxu0 0.0
        %614 = vmatpush2.msra.mxu0 0.0
        %615 = vmatprep.subr.mxu0 0.0
        %616 = vmatpush2.msra.mxu0 0.0
        %617 = vmatprep.subr.mxu0 0.0
        %618 = vmatpush2.msra.mxu0 0.0
        %619 = vmatprep.subr.mxu0 0.0
        %620 = vmatpush2.msra.mxu0 0.0
        %621 = vmatprep.subr.mxu0 0.0
        %622 = vmatpush2.msra.mxu0 0.0
        %623 = vmatprep.subr.mxu0 0.0
        %624 = vmatpush2.msra.mxu0 0.0
        %625 = vmatprep.subr.mxu0 0.0
        %626 = vmatpush2.msra.mxu0 0.0
        %627 = vmatprep.subr.mxu0 0.0
        %628 = vmatpush2.msra.mxu0 0.0
        %629 = vmatprep.subr.mxu0 0.0
        %630 = vmatpush2.msra.mxu0 0.0
        %631 = vmatprep.mubr.f32.mxu0 0.0
        %v632 = vand.u32 %v401, 4294901760
        %v633 = vsub.f32 %v401, %v632
        %634 = vmatmul.mubr.f32.gmra.mxu0 %v633
        %v635 = vpop.f32.mrf.mxu0
        %v636 = vadd.f32 %v559, %v635
        %v637 = vpop.f32.mrf.mxu0
        %v638 = vadd.f32 %v561, %v637
        %639 = vdwg.mxu0
        %640 = vmatprep.subr.mxu0 0.0
        %641 = vmatpush1.msra.mxu0 0.0
        %642 = vmatprep.subr.mxu0 0.0
        %643 = vmatpush1.msra.mxu0 0.0
        %644 = vmatprep.subr.mxu0 0.0
        %645 = vmatpush1.msra.mxu0 0.0
        %646 = vmatprep.subr.mxu0 0.0
        %647 = vmatpush1.msra.mxu0 0.0
        %648 = vmatprep.subr.mxu0 0.0
        %649 = vmatpush1.msra.mxu0 0.0
        %650 = vmatprep.subr.mxu0 0.0
        %651 = vmatpush1.msra.mxu0 0.0
        %652 = vmatprep.subr.mxu0 0.0
        %653 = vmatpush1.msra.mxu0 0.0
        %654 = vmatprep.subr.mxu0 0.0
        %655 = vmatpush1.msra.mxu0 0.0
        %656 = vmatprep.subr.mxu0 0.0
        %657 = vmatpush1.msra.mxu0 0.0
        %658 = vmatprep.subr.mxu0 0.0
        %659 = vmatpush1.msra.mxu0 0.0
        %660 = vmatprep.subr.mxu0 0.0
        %661 = vmatpush1.msra.mxu0 0.0
        %662 = vmatprep.subr.mxu0 0.0
        %663 = vmatpush1.msra.mxu0 0.0
        %664 = vmatprep.subr.mxu0 0.0
        %665 = vmatpush1.msra.mxu0 0.0
        %666 = vmatprep.subr.mxu0 0.0
        %667 = vmatpush1.msra.mxu0 0.0
        %668 = vmatprep.subr.mxu0 0.0
        %669 = vmatpush1.msra.mxu0 0.0
        %v670 = vand.u32 %v396, 4294901760
        %671 = vmatprep.subr.mxu0 %v670
        %v672 = vand.u32 %v395, 4294901760
        %673 = vmatpush1.msra.mxu0 %v672
        %674 = vmatprep.subr.mxu0 0.0
        %675 = vmatpush2.msra.mxu0 0.0
        %676 = vmatprep.subr.mxu0 0.0
        %677 = vmatpush2.msra.mxu0 0.0
        %678 = vmatprep.subr.mxu0 0.0
        %679 = vmatpush2.msra.mxu0 0.0
        %680 = vmatprep.subr.mxu0 0.0
        %681 = vmatpush2.msra.mxu0 0.0
        %682 = vmatprep.subr.mxu0 0.0
        %683 = vmatpush2.msra.mxu0 0.0
        %684 = vmatprep.subr.mxu0 0.0
        %685 = vmatpush2.msra.mxu0 0.0
        %686 = vmatprep.subr.mxu0 0.0
        %687 = vmatpush2.msra.mxu0 0.0
        %688 = vmatprep.subr.mxu0 0.0
        %689 = vmatpush2.msra.mxu0 0.0
        %690 = vmatprep.subr.mxu0 0.0
        %691 = vmatpush2.msra.mxu0 0.0
        %692 = vmatprep.subr.mxu0 0.0
        %693 = vmatpush2.msra.mxu0 0.0
        %694 = vmatprep.subr.mxu0 0.0
        %695 = vmatpush2.msra.mxu0 0.0
        %696 = vmatprep.subr.mxu0 0.0
        %697 = vmatpush2.msra.mxu0 0.0
        %698 = vmatprep.subr.mxu0 0.0
        %699 = vmatpush2.msra.mxu0 0.0
        %700 = vmatprep.subr.mxu0 0.0
        %701 = vmatpush2.msra.mxu0 0.0
        %702 = vmatprep.subr.mxu0 0.0
        %703 = vmatpush2.msra.mxu0 0.0
        %704 = vmatprep.subr.mxu0 0.0
        %705 = vmatpush2.msra.mxu0 0.0
        %706 = vmatprep.mubr.f32.mxu0 0.0
        %v707 = vand.u32 %v401, 4294901760
        %v708 = vsub.f32 %v401, %v707
        %v709 = vand.u32 %v708, 4294901760
        %710 = vmatmul.mubr.f32.gmra.mxu0 %v709
        %v711 = vpop.f32.mrf.mxu0
        %v712 = vadd.f32 %v636, %v711
        %v713 = vpop.f32.mrf.mxu0
        %v714 = vadd.f32 %v638, %v713
        %715 = vdwg.mxu0
        %716 = vmatprep.subr.mxu0 0.0
        %717 = vmatpush1.msra.mxu0 0.0
        %718 = vmatprep.subr.mxu0 0.0
        %719 = vmatpush1.msra.mxu0 0.0
        %720 = vmatprep.subr.mxu0 0.0
        %721 = vmatpush1.msra.mxu0 0.0
        %722 = vmatprep.subr.mxu0 0.0
        %723 = vmatpush1.msra.mxu0 0.0
        %724 = vmatprep.subr.mxu0 0.0
        %725 = vmatpush1.msra.mxu0 0.0
        %726 = vmatprep.subr.mxu0 0.0
        %727 = vmatpush1.msra.mxu0 0.0
        %728 = vmatprep.subr.mxu0 0.0
        %729 = vmatpush1.msra.mxu0 0.0
        %730 = vmatprep.subr.mxu0 0.0
        %731 = vmatpush1.msra.mxu0 0.0
        %732 = vmatprep.subr.mxu0 0.0
        %733 = vmatpush1.msra.mxu0 0.0
        %734 = vmatprep.subr.mxu0 0.0
        %735 = vmatpush1.msra.mxu0 0.0
        %736 = vmatprep.subr.mxu0 0.0
        %737 = vmatpush1.msra.mxu0 0.0
        %738 = vmatprep.subr.mxu0 0.0
        %739 = vmatpush1.msra.mxu0 0.0
        %740 = vmatprep.subr.mxu0 0.0
        %741 = vmatpush1.msra.mxu0 0.0
        %742 = vmatprep.subr.mxu0 0.0
        %743 = vmatpush1.msra.mxu0 0.0
        %744 = vmatprep.subr.mxu0 0.0
        %745 = vmatpush1.msra.mxu0 0.0
        %v746 = vand.u32 %v396, 4294901760
        %v747 = vsub.f32 %v396, %v746
        %v748 = vand.u32 %v747, 4294901760
        %749 = vmatprep.subr.mxu0 %v748
        %v750 = vand.u32 %v395, 4294901760
        %v751 = vsub.f32 %v395, %v750
        %v752 = vand.u32 %v751, 4294901760
        %753 = vmatpush1.msra.mxu0 %v752
        %754 = vmatprep.subr.mxu0 0.0
        %755 = vmatpush2.msra.mxu0 0.0
        %756 = vmatprep.subr.mxu0 0.0
        %757 = vmatpush2.msra.mxu0 0.0
        %758 = vmatprep.subr.mxu0 0.0
        %759 = vmatpush2.msra.mxu0 0.0
        %760 = vmatprep.subr.mxu0 0.0
        %761 = vmatpush2.msra.mxu0 0.0
        %762 = vmatprep.subr.mxu0 0.0
        %763 = vmatpush2.msra.mxu0 0.0
        %764 = vmatprep.subr.mxu0 0.0
        %765 = vmatpush2.msra.mxu0 0.0
        %766 = vmatprep.subr.mxu0 0.0
        %767 = vmatpush2.msra.mxu0 0.0
        %768 = vmatprep.subr.mxu0 0.0
        %769 = vmatpush2.msra.mxu0 0.0
        %770 = vmatprep.subr.mxu0 0.0
        %771 = vmatpush2.msra.mxu0 0.0
        %772 = vmatprep.subr.mxu0 0.0
        %773 = vmatpush2.msra.mxu0 0.0
        %774 = vmatprep.subr.mxu0 0.0
        %775 = vmatpush2.msra.mxu0 0.0
        %776 = vmatprep.subr.mxu0 0.0
        %777 = vmatpush2.msra.mxu0 0.0
        %778 = vmatprep.subr.mxu0 0.0
        %779 = vmatpush2.msra.mxu0 0.0
        %780 = vmatprep.subr.mxu0 0.0
        %781 = vmatpush2.msra.mxu0 0.0
        %782 = vmatprep.subr.mxu0 0.0
        %783 = vmatpush2.msra.mxu0 0.0
        %784 = vmatprep.subr.mxu0 0.0
        %785 = vmatpush2.msra.mxu0 0.0
        %786 = vmatprep.mubr.f32.mxu0 0.0
        %v787 = vand.u32 %v401, 4294901760
        %788 = vmatmul.mubr.f32.gmra.mxu0 %v787
        %v789 = vpop.f32.mrf.mxu0
        %v790 = vadd.f32 %v712, %v789
        %v791 = vpop.f32.mrf.mxu0
        %v792 = vadd.f32 %v714, %v791
        %793 = vdwg.mxu0
        %794 = vmatprep.subr.mxu0 0.0
        %795 = vmatpush1.msra.mxu0 0.0
        %796 = vmatprep.subr.mxu0 0.0
        %797 = vmatpush1.msra.mxu0 0.0
        %798 = vmatprep.subr.mxu0 0.0
        %799 = vmatpush1.msra.mxu0 0.0
        %800 = vmatprep.subr.mxu0 0.0
        %801 = vmatpush1.msra.mxu0 0.0
        %802 = vmatprep.subr.mxu0 0.0
        %803 = vmatpush1.msra.mxu0 0.0
        %804 = vmatprep.subr.mxu0 0.0
        %805 = vmatpush1.msra.mxu0 0.0
        %806 = vmatprep.subr.mxu0 0.0
        %807 = vmatpush1.msra.mxu0 0.0
        %808 = vmatprep.subr.mxu0 0.0
        %809 = vmatpush1.msra.mxu0 0.0
        %810 = vmatprep.subr.mxu0 0.0
        %811 = vmatpush1.msra.mxu0 0.0
        %812 = vmatprep.subr.mxu0 0.0
        %813 = vmatpush1.msra.mxu0 0.0
        %814 = vmatprep.subr.mxu0 0.0
        %815 = vmatpush1.msra.mxu0 0.0
        %816 = vmatprep.subr.mxu0 0.0
        %817 = vmatpush1.msra.mxu0 0.0
        %818 = vmatprep.subr.mxu0 0.0
        %819 = vmatpush1.msra.mxu0 0.0
        %820 = vmatprep.subr.mxu0 0.0
        %821 = vmatpush1.msra.mxu0 0.0
        %822 = vmatprep.subr.mxu0 0.0
        %823 = vmatpush1.msra.mxu0 0.0
        %v824 = vand.u32 %v396, 4294901760
        %825 = vmatprep.subr.mxu0 %v824
        %v826 = vand.u32 %v395, 4294901760
        %827 = vmatpush1.msra.mxu0 %v826
        %828 = vmatprep.subr.mxu0 0.0
        %829 = vmatpush2.msra.mxu0 0.0
        %830 = vmatprep.subr.mxu0 0.0
        %831 = vmatpush2.msra.mxu0 0.0
        %832 = vmatprep.subr.mxu0 0.0
        %833 = vmatpush2.msra.mxu0 0.0
        %834 = vmatprep.subr.mxu0 0.0
        %835 = vmatpush2.msra.mxu0 0.0
        %836 = vmatprep.subr.mxu0 0.0
        %837 = vmatpush2.msra.mxu0 0.0
        %838 = vmatprep.subr.mxu0 0.0
        %839 = vmatpush2.msra.mxu0 0.0
        %840 = vmatprep.subr.mxu0 0.0
        %841 = vmatpush2.msra.mxu0 0.0
        %842 = vmatprep.subr.mxu0 0.0
        %843 = vmatpush2.msra.mxu0 0.0
        %844 = vmatprep.subr.mxu0 0.0
        %845 = vmatpush2.msra.mxu0 0.0
        %846 = vmatprep.subr.mxu0 0.0
        %847 = vmatpush2.msra.mxu0 0.0
        %848 = vmatprep.subr.mxu0 0.0
        %849 = vmatpush2.msra.mxu0 0.0
        %850 = vmatprep.subr.mxu0 0.0
        %851 = vmatpush2.msra.mxu0 0.0
        %852 = vmatprep.subr.mxu0 0.0
        %853 = vmatpush2.msra.mxu0 0.0
        %854 = vmatprep.subr.mxu0 0.0
        %855 = vmatpush2.msra.mxu0 0.0
        %856 = vmatprep.subr.mxu0 0.0
        %857 = vmatpush2.msra.mxu0 0.0
        %858 = vmatprep.subr.mxu0 0.0
        %859 = vmatpush2.msra.mxu0 0.0
        %860 = vmatprep.mubr.f32.mxu0 0.0
        %v861 = vand.u32 %v401, 4294901760
        %862 = vmatmul.mubr.f32.gmra.mxu0 %v861
        %v863 = vpop.f32.mrf.mxu0
        %v864 = vadd.f32 %v790, %v863
        %v865 = vpop.f32.mrf.mxu0
        %v866 = vadd.f32 %v792, %v865
        %867 = vdwg.mxu0
        %v869 = vsel %vm399, %v358, 0
        %871 = vmatprep.subr.mxu0 0.0
        %872 = vmatpush1.msra.mxu0 0.0
        %873 = vmatprep.subr.mxu0 0.0
        %874 = vmatpush1.msra.mxu0 0.0
        %875 = vmatprep.subr.mxu0 0.0
        %876 = vmatpush1.msra.mxu0 0.0
        %877 = vmatprep.subr.mxu0 0.0
        %878 = vmatpush1.msra.mxu0 0.0
        %879 = vmatprep.subr.mxu0 0.0
        %880 = vmatpush1.msra.mxu0 0.0
        %881 = vmatprep.subr.mxu0 0.0
        %882 = vmatpush1.msra.mxu0 0.0
        %883 = vmatprep.subr.mxu0 0.0
        %884 = vmatpush1.msra.mxu0 0.0
        %885 = vmatprep.subr.mxu0 0.0
        %886 = vmatpush1.msra.mxu0 0.0
        %887 = vmatprep.subr.mxu0 0.0
        %888 = vmatpush1.msra.mxu0 0.0
        %889 = vmatprep.subr.mxu0 0.0
        %890 = vmatpush1.msra.mxu0 0.0
        %891 = vmatprep.subr.mxu0 0.0
        %892 = vmatpush1.msra.mxu0 0.0
        %893 = vmatprep.subr.mxu0 0.0
        %894 = vmatpush1.msra.mxu0 0.0
        %895 = vmatprep.subr.mxu0 0.0
        %896 = vmatpush1.msra.mxu0 0.0
        %897 = vmatprep.subr.mxu0 0.0
        %898 = vmatpush1.msra.mxu0 0.0
        %899 = vmatprep.subr.mxu0 0.0
        %900 = vmatpush1.msra.mxu0 0.0
        %v901 = vand.u32 %v357, 4294901760
        %902 = vmatprep.subr.mxu0 %v901
        %v903 = vand.u32 %v356, 4294901760
        %904 = vmatpush1.msra.mxu0 %v903
        %905 = vmatprep.subr.mxu0 0.0
        %906 = vmatpush2.msra.mxu0 0.0
        %907 = vmatprep.subr.mxu0 0.0
        %908 = vmatpush2.msra.mxu0 0.0
        %909 = vmatprep.subr.mxu0 0.0
        %910 = vmatpush2.msra.mxu0 0.0
        %911 = vmatprep.subr.mxu0 0.0
        %912 = vmatpush2.msra.mxu0 0.0
        %913 = vmatprep.subr.mxu0 0.0
        %914 = vmatpush2.msra.mxu0 0.0
        %915 = vmatprep.subr.mxu0 0.0
        %916 = vmatpush2.msra.mxu0 0.0
        %917 = vmatprep.subr.mxu0 0.0
        %918 = vmatpush2.msra.mxu0 0.0
        %919 = vmatprep.subr.mxu0 0.0
        %920 = vmatpush2.msra.mxu0 0.0
        %921 = vmatprep.subr.mxu0 0.0
        %922 = vmatpush2.msra.mxu0 0.0
        %923 = vmatprep.subr.mxu0 0.0
        %924 = vmatpush2.msra.mxu0 0.0
        %925 = vmatprep.subr.mxu0 0.0
        %926 = vmatpush2.msra.mxu0 0.0
        %927 = vmatprep.subr.mxu0 0.0
        %928 = vmatpush2.msra.mxu0 0.0
        %929 = vmatprep.subr.mxu0 0.0
        %930 = vmatpush2.msra.mxu0 0.0
        %931 = vmatprep.subr.mxu0 0.0
        %932 = vmatpush2.msra.mxu0 0.0
        %933 = vmatprep.subr.mxu0 0.0
        %934 = vmatpush2.msra.mxu0 0.0
        %935 = vmatprep.subr.mxu0 0.0
        %936 = vmatpush2.msra.mxu0 0.0
        %937 = vmatprep.mubr.f32.mxu0 0.0
        %v938 = vand.u32 %v869, 4294901760
        %v939 = vsub.f32 %v869, %v938
        %v940 = vand.u32 %v939, 4294901760
        %v941 = vsub.f32 %v939, %v940
        %v942 = vand.u32 %v941, 4294901760
        %943 = vmatmul.mubr.f32.gmra.mxu0 %v942
        %v944 = vpop.f32.mrf.mxu0
        %v945 = vadd.f32 %v864, %v944
        %v946 = vpop.f32.mrf.mxu0
        %v947 = vadd.f32 %v866, %v946
        %948 = vdwg.mxu0
        %949 = vmatprep.subr.mxu0 0.0
        %950 = vmatpush1.msra.mxu0 0.0
        %951 = vmatprep.subr.mxu0 0.0
        %952 = vmatpush1.msra.mxu0 0.0
        %953 = vmatprep.subr.mxu0 0.0
        %954 = vmatpush1.msra.mxu0 0.0
        %955 = vmatprep.subr.mxu0 0.0
        %956 = vmatpush1.msra.mxu0 0.0
        %957 = vmatprep.subr.mxu0 0.0
        %958 = vmatpush1.msra.mxu0 0.0
        %959 = vmatprep.subr.mxu0 0.0
        %960 = vmatpush1.msra.mxu0 0.0
        %961 = vmatprep.subr.mxu0 0.0
        %962 = vmatpush1.msra.mxu0 0.0
        %963 = vmatprep.subr.mxu0 0.0
        %964 = vmatpush1.msra.mxu0 0.0
        %965 = vmatprep.subr.mxu0 0.0
        %966 = vmatpush1.msra.mxu0 0.0
        %967 = vmatprep.subr.mxu0 0.0
        %968 = vmatpush1.msra.mxu0 0.0
        %969 = vmatprep.subr.mxu0 0.0
        %970 = vmatpush1.msra.mxu0 0.0
        %971 = vmatprep.subr.mxu0 0.0
        %972 = vmatpush1.msra.mxu0 0.0
        %973 = vmatprep.subr.mxu0 0.0
        %974 = vmatpush1.msra.mxu0 0.0
        %975 = vmatprep.subr.mxu0 0.0
        %976 = vmatpush1.msra.mxu0 0.0
        %977 = vmatprep.subr.mxu0 0.0
        %978 = vmatpush1.msra.mxu0 0.0
        %v979 = vand.u32 %v357, 4294901760
        %v980 = vsub.f32 %v357, %v979
        %v981 = vand.u32 %v980, 4294901760
        %v982 = vsub.f32 %v980, %v981
        %v983 = vand.u32 %v982, 4294901760
        %984 = vmatprep.subr.mxu0 %v983
        %v985 = vand.u32 %v356, 4294901760
        %v986 = vsub.f32 %v356, %v985
        %v987 = vand.u32 %v986, 4294901760
        %v988 = vsub.f32 %v986, %v987
        %v989 = vand.u32 %v988, 4294901760
        %990 = vmatpush1.msra.mxu0 %v989
        %991 = vmatprep.subr.mxu0 0.0
        %992 = vmatpush2.msra.mxu0 0.0
        %993 = vmatprep.subr.mxu0 0.0
        %994 = vmatpush2.msra.mxu0 0.0
        %995 = vmatprep.subr.mxu0 0.0
        %996 = vmatpush2.msra.mxu0 0.0
        %997 = vmatprep.subr.mxu0 0.0
        %998 = vmatpush2.msra.mxu0 0.0
        %999 = vmatprep.subr.mxu0 0.0
        %1000 = vmatpush2.msra.mxu0 0.0
        %1001 = vmatprep.subr.mxu0 0.0
        %1002 = vmatpush2.msra.mxu0 0.0
        %1003 = vmatprep.subr.mxu0 0.0
        %1004 = vmatpush2.msra.mxu0 0.0
        %1005 = vmatprep.subr.mxu0 0.0
        %1006 = vmatpush2.msra.mxu0 0.0
        %1007 = vmatprep.subr.mxu0 0.0
        %1008 = vmatpush2.msra.mxu0 0.0
        %1009 = vmatprep.subr.mxu0 0.0
        %1010 = vmatpush2.msra.mxu0 0.0
        %1011 = vmatprep.subr.mxu0 0.0
        %1012 = vmatpush2.msra.mxu0 0.0
        %1013 = vmatprep.subr.mxu0 0.0
        %1014 = vmatpush2.msra.mxu0 0.0
        %1015 = vmatprep.subr.mxu0 0.0
        %1016 = vmatpush2.msra.mxu0 0.0
        %1017 = vmatprep.subr.mxu0 0.0
        %1018 = vmatpush2.msra.mxu0 0.0
        %1019 = vmatprep.subr.mxu0 0.0
        %1020 = vmatpush2.msra.mxu0 0.0
        %1021 = vmatprep.subr.mxu0 0.0
        %1022 = vmatpush2.msra.mxu0 0.0
        %1023 = vmatprep.mubr.f32.mxu0 0.0
        %v1024 = vand.u32 %v869, 4294901760
        %1025 = vmatmul.mubr.f32.gmra.mxu0 %v1024
        %v1026 = vpop.f32.mrf.mxu0
        %v1027 = vadd.f32 %v945, %v1026
        %v1028 = vpop.f32.mrf.mxu0
        %v1029 = vadd.f32 %v947, %v1028
        %1030 = vdwg.mxu0
        %1031 = vmatprep.subr.mxu0 0.0
        %1032 = vmatpush1.msra.mxu0 0.0
        %1033 = vmatprep.subr.mxu0 0.0
        %1034 = vmatpush1.msra.mxu0 0.0
        %1035 = vmatprep.subr.mxu0 0.0
        %1036 = vmatpush1.msra.mxu0 0.0
        %1037 = vmatprep.subr.mxu0 0.0
        %1038 = vmatpush1.msra.mxu0 0.0
        %1039 = vmatprep.subr.mxu0 0.0
        %1040 = vmatpush1.msra.mxu0 0.0
        %1041 = vmatprep.subr.mxu0 0.0
        %1042 = vmatpush1.msra.mxu0 0.0
        %1043 = vmatprep.subr.mxu0 0.0
        %1044 = vmatpush1.msra.mxu0 0.0
        %1045 = vmatprep.subr.mxu0 0.0
        %1046 = vmatpush1.msra.mxu0 0.0
        %1047 = vmatprep.subr.mxu0 0.0
        %1048 = vmatpush1.msra.mxu0 0.0
        %1049 = vmatprep.subr.mxu0 0.0
        %1050 = vmatpush1.msra.mxu0 0.0
        %1051 = vmatprep.subr.mxu0 0.0
        %1052 = vmatpush1.msra.mxu0 0.0
        %1053 = vmatprep.subr.mxu0 0.0
        %1054 = vmatpush1.msra.mxu0 0.0
        %1055 = vmatprep.subr.mxu0 0.0
        %1056 = vmatpush1.msra.mxu0 0.0
        %1057 = vmatprep.subr.mxu0 0.0
        %1058 = vmatpush1.msra.mxu0 0.0
        %1059 = vmatprep.subr.mxu0 0.0
        %1060 = vmatpush1.msra.mxu0 0.0
        %v1061 = vand.u32 %v357, 4294901760
        %v1062 = vsub.f32 %v357, %v1061
        %1063 = vmatprep.subr.mxu0 %v1062
        %v1064 = vand.u32 %v356, 4294901760
        %v1065 = vsub.f32 %v356, %v1064
        %1066 = vmatpush1.msra.mxu0 %v1065
        %1067 = vmatprep.subr.mxu0 0.0
        %1068 = vmatpush2.msra.mxu0 0.0
        %1069 = vmatprep.subr.mxu0 0.0
        %1070 = vmatpush2.msra.mxu0 0.0
        %1071 = vmatprep.subr.mxu0 0.0
        %1072 = vmatpush2.msra.mxu0 0.0
        %1073 = vmatprep.subr.mxu0 0.0
        %1074 = vmatpush2.msra.mxu0 0.0
        %1075 = vmatprep.subr.mxu0 0.0
        %1076 = vmatpush2.msra.mxu0 0.0
        %1077 = vmatprep.subr.mxu0 0.0
        %1078 = vmatpush2.msra.mxu0 0.0
        %1079 = vmatprep.subr.mxu0 0.0
        %1080 = vmatpush2.msra.mxu0 0.0
        %1081 = vmatprep.subr.mxu0 0.0
        %1082 = vmatpush2.msra.mxu0 0.0
        %1083 = vmatprep.subr.mxu0 0.0
        %1084 = vmatpush2.msra.mxu0 0.0
        %1085 = vmatprep.subr.mxu0 0.0
        %1086 = vmatpush2.msra.mxu0 0.0
        %1087 = vmatprep.subr.mxu0 0.0
        %1088 = vmatpush2.msra.mxu0 0.0
        %1089 = vmatprep.subr.mxu0 0.0
        %1090 = vmatpush2.msra.mxu0 0.0
        %1091 = vmatprep.subr.mxu0 0.0
        %1092 = vmatpush2.msra.mxu0 0.0
        %1093 = vmatprep.subr.mxu0 0.0
        %1094 = vmatpush2.msra.mxu0 0.0
        %1095 = vmatprep.subr.mxu0 0.0
        %1096 = vmatpush2.msra.mxu0 0.0
        %1097 = vmatprep.subr.mxu0 0.0
        %1098 = vmatpush2.msra.mxu0 0.0
        %1099 = vmatprep.mubr.f32.mxu0 0.0
        %v1100 = vand.u32 %v869, 4294901760
        %v1101 = vsub.f32 %v869, %v1100
        %1102 = vmatmul.mubr.f32.gmra.mxu0 %v1101
        %v1103 = vpop.f32.mrf.mxu0
        %v1104 = vadd.f32 %v1027, %v1103
        %v1105 = vpop.f32.mrf.mxu0
        %v1106 = vadd.f32 %v1029, %v1105
        %1107 = vdwg.mxu0
        %1108 = vmatprep.subr.mxu0 0.0
        %1109 = vmatpush1.msra.mxu0 0.0
        %1110 = vmatprep.subr.mxu0 0.0
        %1111 = vmatpush1.msra.mxu0 0.0
        %1112 = vmatprep.subr.mxu0 0.0
        %1113 = vmatpush1.msra.mxu0 0.0
        %1114 = vmatprep.subr.mxu0 0.0
        %1115 = vmatpush1.msra.mxu0 0.0
        %1116 = vmatprep.subr.mxu0 0.0
        %1117 = vmatpush1.msra.mxu0 0.0
        %1118 = vmatprep.subr.mxu0 0.0
        %1119 = vmatpush1.msra.mxu0 0.0
        %1120 = vmatprep.subr.mxu0 0.0
        %1121 = vmatpush1.msra.mxu0 0.0
        %1122 = vmatprep.subr.mxu0 0.0
        %1123 = vmatpush1.msra.mxu0 0.0
        %1124 = vmatprep.subr.mxu0 0.0
        %1125 = vmatpush1.msra.mxu0 0.0
        %1126 = vmatprep.subr.mxu0 0.0
        %1127 = vmatpush1.msra.mxu0 0.0
        %1128 = vmatprep.subr.mxu0 0.0
        %1129 = vmatpush1.msra.mxu0 0.0
        %1130 = vmatprep.subr.mxu0 0.0
        %1131 = vmatpush1.msra.mxu0 0.0
        %1132 = vmatprep.subr.mxu0 0.0
        %1133 = vmatpush1.msra.mxu0 0.0
        %1134 = vmatprep.subr.mxu0 0.0
        %1135 = vmatpush1.msra.mxu0 0.0
        %1136 = vmatprep.subr.mxu0 0.0
        %1137 = vmatpush1.msra.mxu0 0.0
        %v1138 = vand.u32 %v357, 4294901760
        %1139 = vmatprep.subr.mxu0 %v1138
        %v1140 = vand.u32 %v356, 4294901760
        %1141 = vmatpush1.msra.mxu0 %v1140
        %1142 = vmatprep.subr.mxu0 0.0
        %1143 = vmatpush2.msra.mxu0 0.0
        %1144 = vmatprep.subr.mxu0 0.0
        %1145 = vmatpush2.msra.mxu0 0.0
        %1146 = vmatprep.subr.mxu0 0.0
        %1147 = vmatpush2.msra.mxu0 0.0
        %1148 = vmatprep.subr.mxu0 0.0
        %1149 = vmatpush2.msra.mxu0 0.0
        %1150 = vmatprep.subr.mxu0 0.0
        %1151 = vmatpush2.msra.mxu0 0.0
        %1152 = vmatprep.subr.mxu0 0.0
        %1153 = vmatpush2.msra.mxu0 0.0
        %1154 = vmatprep.subr.mxu0 0.0
        %1155 = vmatpush2.msra.mxu0 0.0
        %1156 = vmatprep.subr.mxu0 0.0
        %1157 = vmatpush2.msra.mxu0 0.0
        %1158 = vmatprep.subr.mxu0 0.0
        %1159 = vmatpush2.msra.mxu0 0.0
        %1160 = vmatprep.subr.mxu0 0.0
        %1161 = vmatpush2.msra.mxu0 0.0
        %1162 = vmatprep.subr.mxu0 0.0
        %1163 = vmatpush2.msra.mxu0 0.0
        %1164 = vmatprep.subr.mxu0 0.0
        %1165 = vmatpush2.msra.mxu0 0.0
        %1166 = vmatprep.subr.mxu0 0.0
        %1167 = vmatpush2.msra.mxu0 0.0
        %1168 = vmatprep.subr.mxu0 0.0
        %1169 = vmatpush2.msra.mxu0 0.0
        %1170 = vmatprep.subr.mxu0 0.0
        %1171 = vmatpush2.msra.mxu0 0.0
        %1172 = vmatprep.subr.mxu0 0.0
        %1173 = vmatpush2.msra.mxu0 0.0
        %1174 = vmatprep.mubr.f32.mxu0 0.0
        %v1175 = vand.u32 %v869, 4294901760
        %v1176 = vsub.f32 %v869, %v1175
        %v1177 = vand.u32 %v1176, 4294901760
        %1178 = vmatmul.mubr.f32.gmra.mxu0 %v1177
        %v1179 = vpop.f32.mrf.mxu0
        %v1180 = vadd.f32 %v1104, %v1179
        %v1181 = vpop.f32.mrf.mxu0
        %v1182 = vadd.f32 %v1106, %v1181
        %1183 = vdwg.mxu0
        %1184 = vmatprep.subr.mxu0 0.0
        %1185 = vmatpush1.msra.mxu0 0.0
        %1186 = vmatprep.subr.mxu0 0.0
        %1187 = vmatpush1.msra.mxu0 0.0
        %1188 = vmatprep.subr.mxu0 0.0
        %1189 = vmatpush1.msra.mxu0 0.0
        %1190 = vmatprep.subr.mxu0 0.0
        %1191 = vmatpush1.msra.mxu0 0.0
        %1192 = vmatprep.subr.mxu0 0.0
        %1193 = vmatpush1.msra.mxu0 0.0
        %1194 = vmatprep.subr.mxu0 0.0
        %1195 = vmatpush1.msra.mxu0 0.0
        %1196 = vmatprep.subr.mxu0 0.0
        %1197 = vmatpush1.msra.mxu0 0.0
        %1198 = vmatprep.subr.mxu0 0.0
        %1199 = vmatpush1.msra.mxu0 0.0
        %1200 = vmatprep.subr.mxu0 0.0
        %1201 = vmatpush1.msra.mxu0 0.0
        %1202 = vmatprep.subr.mxu0 0.0
        %1203 = vmatpush1.msra.mxu0 0.0
        %1204 = vmatprep.subr.mxu0 0.0
        %1205 = vmatpush1.msra.mxu0 0.0
        %1206 = vmatprep.subr.mxu0 0.0
        %1207 = vmatpush1.msra.mxu0 0.0
        %1208 = vmatprep.subr.mxu0 0.0
        %1209 = vmatpush1.msra.mxu0 0.0
        %1210 = vmatprep.subr.mxu0 0.0
        %1211 = vmatpush1.msra.mxu0 0.0
        %1212 = vmatprep.subr.mxu0 0.0
        %1213 = vmatpush1.msra.mxu0 0.0
        %v1214 = vand.u32 %v357, 4294901760
        %v1215 = vsub.f32 %v357, %v1214
        %v1216 = vand.u32 %v1215, 4294901760
        %1217 = vmatprep.subr.mxu0 %v1216
        %v1218 = vand.u32 %v356, 4294901760
        %v1219 = vsub.f32 %v356, %v1218
        %v1220 = vand.u32 %v1219, 4294901760
        %1221 = vmatpush1.msra.mxu0 %v1220
        %1222 = vmatprep.subr.mxu0 0.0
        %1223 = vmatpush2.msra.mxu0 0.0
        %1224 = vmatprep.subr.mxu0 0.0
        %1225 = vmatpush2.msra.mxu0 0.0
        %1226 = vmatprep.subr.mxu0 0.0
        %1227 = vmatpush2.msra.mxu0 0.0
        %1228 = vmatprep.subr.mxu0 0.0
        %1229 = vmatpush2.msra.mxu0 0.0
        %1230 = vmatprep.subr.mxu0 0.0
        %1231 = vmatpush2.msra.mxu0 0.0
        %1232 = vmatprep.subr.mxu0 0.0
        %1233 = vmatpush2.msra.mxu0 0.0
        %1234 = vmatprep.subr.mxu0 0.0
        %1235 = vmatpush2.msra.mxu0 0.0
        %1236 = vmatprep.subr.mxu0 0.0
        %1237 = vmatpush2.msra.mxu0 0.0
        %1238 = vmatprep.subr.mxu0 0.0
        %1239 = vmatpush2.msra.mxu0 0.0
        %1240 = vmatprep.subr.mxu0 0.0
        %1241 = vmatpush2.msra.mxu0 0.0
        %1242 = vmatprep.subr.mxu0 0.0
        %1243 = vmatpush2.msra.mxu0 0.0
        %1244 = vmatprep.subr.mxu0 0.0
        %1245 = vmatpush2.msra.mxu0 0.0
        %1246 = vmatprep.subr.mxu0 0.0
        %1247 = vmatpush2.msra.mxu0 0.0
        %1248 = vmatprep.subr.mxu0 0.0
        %1249 = vmatpush2.msra.mxu0 0.0
        %1250 = vmatprep.subr.mxu0 0.0
        %1251 = vmatpush2.msra.mxu0 0.0
        %1252 = vmatprep.subr.mxu0 0.0
        %1253 = vmatpush2.msra.mxu0 0.0
        %1254 = vmatprep.mubr.f32.mxu0 0.0
        %v1255 = vand.u32 %v869, 4294901760
        %1256 = vmatmul.mubr.f32.gmra.mxu0 %v1255
        %v1257 = vpop.f32.mrf.mxu0
        %v1258 = vadd.f32 %v1180, %v1257
        %v1259 = vpop.f32.mrf.mxu0
        %v1260 = vadd.f32 %v1182, %v1259
        %1261 = vdwg.mxu0
        %1262 = vmatprep.subr.mxu0 0.0
        %1263 = vmatpush1.msra.mxu0 0.0
        %1264 = vmatprep.subr.mxu0 0.0
        %1265 = vmatpush1.msra.mxu0 0.0
        %1266 = vmatprep.subr.mxu0 0.0
        %1267 = vmatpush1.msra.mxu0 0.0
        %1268 = vmatprep.subr.mxu0 0.0
        %1269 = vmatpush1.msra.mxu0 0.0
        %1270 = vmatprep.subr.mxu0 0.0
        %1271 = vmatpush1.msra.mxu0 0.0
        %1272 = vmatprep.subr.mxu0 0.0
        %1273 = vmatpush1.msra.mxu0 0.0
        %1274 = vmatprep.subr.mxu0 0.0
        %1275 = vmatpush1.msra.mxu0 0.0
        %1276 = vmatprep.subr.mxu0 0.0
        %1277 = vmatpush1.msra.mxu0 0.0
        %1278 = vmatprep.subr.mxu0 0.0
        %1279 = vmatpush1.msra.mxu0 0.0
        %1280 = vmatprep.subr.mxu0 0.0
        %1281 = vmatpush1.msra.mxu0 0.0
        %1282 = vmatprep.subr.mxu0 0.0
        %1283 = vmatpush1.msra.mxu0 0.0
        %1284 = vmatprep.subr.mxu0 0.0
        %1285 = vmatpush1.msra.mxu0 0.0
        %1286 = vmatprep.subr.mxu0 0.0
        %1287 = vmatpush1.msra.mxu0 0.0
        %1288 = vmatprep.subr.mxu0 0.0
        %1289 = vmatpush1.msra.mxu0 0.0
        %1290 = vmatprep.subr.mxu0 0.0
        %1291 = vmatpush1.msra.mxu0 0.0
        %v1292 = vand.u32 %v357, 4294901760
        %1293 = vmatprep.subr.mxu0 %v1292
        %v1294 = vand.u32 %v356, 4294901760
        %1295 = vmatpush1.msra.mxu0 %v1294
        %1296 = vmatprep.subr.mxu0 0.0
        %1297 = vmatpush2.msra.mxu0 0.0
        %1298 = vmatprep.subr.mxu0 0.0
        %1299 = vmatpush2.msra.mxu0 0.0
        %1300 = vmatprep.subr.mxu0 0.0
        %1301 = vmatpush2.msra.mxu0 0.0
        %1302 = vmatprep.subr.mxu0 0.0
        %1303 = vmatpush2.msra.mxu0 0.0
        %1304 = vmatprep.subr.mxu0 0.0
        %1305 = vmatpush2.msra.mxu0 0.0
        %1306 = vmatprep.subr.mxu0 0.0
        %1307 = vmatpush2.msra.mxu0 0.0
        %1308 = vmatprep.subr.mxu0 0.0
        %1309 = vmatpush2.msra.mxu0 0.0
        %1310 = vmatprep.subr.mxu0 0.0
        %1311 = vmatpush2.msra.mxu0 0.0
        %1312 = vmatprep.subr.mxu0 0.0
        %1313 = vmatpush2.msra.mxu0 0.0
        %1314 = vmatprep.subr.mxu0 0.0
        %1315 = vmatpush2.msra.mxu0 0.0
        %1316 = vmatprep.subr.mxu0 0.0
        %1317 = vmatpush2.msra.mxu0 0.0
        %1318 = vmatprep.subr.mxu0 0.0
        %1319 = vmatpush2.msra.mxu0 0.0
        %1320 = vmatprep.subr.mxu0 0.0
        %1321 = vmatpush2.msra.mxu0 0.0
        %1322 = vmatprep.subr.mxu0 0.0
        %1323 = vmatpush2.msra.mxu0 0.0
        %1324 = vmatprep.subr.mxu0 0.0
        %1325 = vmatpush2.msra.mxu0 0.0
        %1326 = vmatprep.subr.mxu0 0.0
        %1327 = vmatpush2.msra.mxu0 0.0
        %1328 = vmatprep.mubr.f32.mxu0 0.0
        %v1329 = vand.u32 %v869, 4294901760
        %1330 = vmatmul.mubr.f32.gmra.mxu0 %v1329
        %v1331 = vpop.f32.mrf.mxu0
        %v1332 = vadd.f32 %v1258, %v1331
        %v1333 = vpop.f32.mrf.mxu0
        %v1334 = vadd.f32 %v1260, %v1333
        %1335 = vdwg.mxu0
        %s1336 = scalar_lea.vmem %s7, 4
        %v1337 = vld [vmem:[%s1336] sm:$0x3]
        %v1339 = vlaneseq
        %v1340 = vshrl.u32 %v1339, 7
        %v1341 = vsub.s32 0, %v1340
        %v1342 = vrot.slane %v1337, %v1341
        %v1343 = vlaneseq
        %v1344 = vshrl.u32 %v1343, 7
        %v1345 = vsub.s32 1, %v1344
        %v1346 = vrot.slane %v1337, %v1345
        %1347 = vrot.lane.b32.xlu0 %v1342, 2
        %v1348 = vpop.permute.xlu0 %1347
        %1349 = vrot.lane.b32.xlu0 %v1346, 2
        %v1350 = vpop.permute.xlu0 %1349
        %vm1351 = vcmask 15360
        %v1352 = vsel %vm1351, %v1348, %v1350
        %v1356 = vmul.f32 %v342, %v1348
        %v1357 = vmul.f32 %v343, %v1352
        %v1358 = vmul.f32 %v359, %v1350
        %s1359 = scalar_lea.vmem %s3, 16
        %v1360 = vld [vmem:[%s1359] sm:$0xff]
        %1364 = vrot.lane.b32.xlu0 %v1356, 126
        %v1365 = vpop.permute.xlu0 %1364
        %1366 = vrot.lane.b32.xlu0 %v1357, 126
        %v1367 = vpop.permute.xlu0 %1366
        %1368 = vrot.lane.b32.xlu0 %v1358, 126
        %v1369 = vpop.permute.xlu0 %1368
        %vm1370 = vcmask 1031168
        %v1371 = vsel %vm1370, %v1365, %v1367
        %v1372 = vsel %vm1370, %v1367, %v1369
        %v1376 = vsel %vm399, %v1360, 0
        %1378 = vmatprep.subr.mxu0 0.0
        %1379 = vmatpush1.msra.mxu0 0.0
        %1380 = vmatprep.subr.mxu0 0.0
        %1381 = vmatpush1.msra.mxu0 0.0
        %1382 = vmatprep.subr.mxu0 0.0
        %1383 = vmatpush1.msra.mxu0 0.0
        %1384 = vmatprep.subr.mxu0 0.0
        %1385 = vmatpush1.msra.mxu0 0.0
        %1386 = vmatprep.subr.mxu0 0.0
        %1387 = vmatpush1.msra.mxu0 0.0
        %1388 = vmatprep.subr.mxu0 0.0
        %1389 = vmatpush1.msra.mxu0 0.0
        %1390 = vmatprep.subr.mxu0 0.0
        %1391 = vmatpush1.msra.mxu0 0.0
        %1392 = vmatprep.subr.mxu0 0.0
        %1393 = vmatpush1.msra.mxu0 0.0
        %1394 = vmatprep.subr.mxu0 0.0
        %1395 = vmatpush1.msra.mxu0 0.0
        %1396 = vmatprep.subr.mxu0 0.0
        %1397 = vmatpush1.msra.mxu0 0.0
        %1398 = vmatprep.subr.mxu0 0.0
        %1399 = vmatpush1.msra.mxu0 0.0
        %1400 = vmatprep.subr.mxu0 0.0
        %1401 = vmatpush1.msra.mxu0 0.0
        %1402 = vmatprep.subr.mxu0 0.0
        %1403 = vmatpush1.msra.mxu0 0.0
        %1404 = vmatprep.subr.mxu0 0.0
        %1405 = vmatpush1.msra.mxu0 0.0
        %1406 = vmatprep.subr.mxu0 0.0
        %1407 = vmatpush1.msra.mxu0 0.0
        %v1408 = vand.u32 %v1372, 4294901760
        %1409 = vmatprep.subr.mxu0 %v1408
        %v1410 = vand.u32 %v1371, 4294901760
        %1411 = vmatpush1.msra.mxu0 %v1410
        %1412 = vmatprep.subr.mxu0 0.0
        %1413 = vmatpush2.msra.mxu0 0.0
        %1414 = vmatprep.subr.mxu0 0.0
        %1415 = vmatpush2.msra.mxu0 0.0
        %1416 = vmatprep.subr.mxu0 0.0
        %1417 = vmatpush2.msra.mxu0 0.0
        %1418 = vmatprep.subr.mxu0 0.0
        %1419 = vmatpush2.msra.mxu0 0.0
        %1420 = vmatprep.subr.mxu0 0.0
        %1421 = vmatpush2.msra.mxu0 0.0
        %1422 = vmatprep.subr.mxu0 0.0
        %1423 = vmatpush2.msra.mxu0 0.0
        %1424 = vmatprep.subr.mxu0 0.0
        %1425 = vmatpush2.msra.mxu0 0.0
        %1426 = vmatprep.subr.mxu0 0.0
        %1427 = vmatpush2.msra.mxu0 0.0
        %1428 = vmatprep.subr.mxu0 0.0
        %1429 = vmatpush2.msra.mxu0 0.0
        %1430 = vmatprep.subr.mxu0 0.0
        %1431 = vmatpush2.msra.mxu0 0.0
        %1432 = vmatprep.subr.mxu0 0.0
        %1433 = vmatpush2.msra.mxu0 0.0
        %1434 = vmatprep.subr.mxu0 0.0
        %1435 = vmatpush2.msra.mxu0 0.0
        %1436 = vmatprep.subr.mxu0 0.0
        %1437 = vmatpush2.msra.mxu0 0.0
        %1438 = vmatprep.subr.mxu0 0.0
        %1439 = vmatpush2.msra.mxu0 0.0
        %1440 = vmatprep.subr.mxu0 0.0
        %1441 = vmatpush2.msra.mxu0 0.0
        %1442 = vmatprep.subr.mxu0 0.0
        %1443 = vmatpush2.msra.mxu0 0.0
        %1444 = vmatprep.mubr.f32.mxu0 0.0
        %v1445 = vand.u32 %v1376, 4294901760
        %v1446 = vsub.f32 %v1376, %v1445
        %v1447 = vand.u32 %v1446, 4294901760
        %v1448 = vsub.f32 %v1446, %v1447
        %v1449 = vand.u32 %v1448, 4294901760
        %1450 = vmatmul.mubr.f32.gmra.mxu0 %v1449
        %v1451 = vpop.f32.mrf.mxu0
        %v1452 = vadd.f32 0.0, %v1451
        %v1453 = vpop.f32.mrf.mxu0
        %v1454 = vadd.f32 0.0, %v1453
        %1455 = vdwg.mxu0
        %1456 = vmatprep.subr.mxu0 0.0
        %1457 = vmatpush1.msra.mxu0 0.0
        %1458 = vmatprep.subr.mxu0 0.0
        %1459 = vmatpush1.msra.mxu0 0.0
        %1460 = vmatprep.subr.mxu0 0.0
        %1461 = vmatpush1.msra.mxu0 0.0
        %1462 = vmatprep.subr.mxu0 0.0
        %1463 = vmatpush1.msra.mxu0 0.0
        %1464 = vmatprep.subr.mxu0 0.0
        %1465 = vmatpush1.msra.mxu0 0.0
        %1466 = vmatprep.subr.mxu0 0.0
        %1467 = vmatpush1.msra.mxu0 0.0
        %1468 = vmatprep.subr.mxu0 0.0
        %1469 = vmatpush1.msra.mxu0 0.0
        %1470 = vmatprep.subr.mxu0 0.0
        %1471 = vmatpush1.msra.mxu0 0.0
        %1472 = vmatprep.subr.mxu0 0.0
        %1473 = vmatpush1.msra.mxu0 0.0
        %1474 = vmatprep.subr.mxu0 0.0
        %1475 = vmatpush1.msra.mxu0 0.0
        %1476 = vmatprep.subr.mxu0 0.0
        %1477 = vmatpush1.msra.mxu0 0.0
        %1478 = vmatprep.subr.mxu0 0.0
        %1479 = vmatpush1.msra.mxu0 0.0
        %1480 = vmatprep.subr.mxu0 0.0
        %1481 = vmatpush1.msra.mxu0 0.0
        %1482 = vmatprep.subr.mxu0 0.0
        %1483 = vmatpush1.msra.mxu0 0.0
        %1484 = vmatprep.subr.mxu0 0.0
        %1485 = vmatpush1.msra.mxu0 0.0
        %v1486 = vand.u32 %v1372, 4294901760
        %v1487 = vsub.f32 %v1372, %v1486
        %v1488 = vand.u32 %v1487, 4294901760
        %v1489 = vsub.f32 %v1487, %v1488
        %v1490 = vand.u32 %v1489, 4294901760
        %1491 = vmatprep.subr.mxu0 %v1490
        %v1492 = vand.u32 %v1371, 4294901760
        %v1493 = vsub.f32 %v1371, %v1492
        %v1494 = vand.u32 %v1493, 4294901760
        %v1495 = vsub.f32 %v1493, %v1494
        %v1496 = vand.u32 %v1495, 4294901760
        %1497 = vmatpush1.msra.mxu0 %v1496
        %1498 = vmatprep.subr.mxu0 0.0
        %1499 = vmatpush2.msra.mxu0 0.0
        %1500 = vmatprep.subr.mxu0 0.0
        %1501 = vmatpush2.msra.mxu0 0.0
        %1502 = vmatprep.subr.mxu0 0.0
        %1503 = vmatpush2.msra.mxu0 0.0
        %1504 = vmatprep.subr.mxu0 0.0
        %1505 = vmatpush2.msra.mxu0 0.0
        %1506 = vmatprep.subr.mxu0 0.0
        %1507 = vmatpush2.msra.mxu0 0.0
        %1508 = vmatprep.subr.mxu0 0.0
        %1509 = vmatpush2.msra.mxu0 0.0
        %1510 = vmatprep.subr.mxu0 0.0
        %1511 = vmatpush2.msra.mxu0 0.0
        %1512 = vmatprep.subr.mxu0 0.0
        %1513 = vmatpush2.msra.mxu0 0.0
        %1514 = vmatprep.subr.mxu0 0.0
        %1515 = vmatpush2.msra.mxu0 0.0
        %1516 = vmatprep.subr.mxu0 0.0
        %1517 = vmatpush2.msra.mxu0 0.0
        %1518 = vmatprep.subr.mxu0 0.0
        %1519 = vmatpush2.msra.mxu0 0.0
        %1520 = vmatprep.subr.mxu0 0.0
        %1521 = vmatpush2.msra.mxu0 0.0
        %1522 = vmatprep.subr.mxu0 0.0
        %1523 = vmatpush2.msra.mxu0 0.0
        %1524 = vmatprep.subr.mxu0 0.0
        %1525 = vmatpush2.msra.mxu0 0.0
        %1526 = vmatprep.subr.mxu0 0.0
        %1527 = vmatpush2.msra.mxu0 0.0
        %1528 = vmatprep.subr.mxu0 0.0
        %1529 = vmatpush2.msra.mxu0 0.0
        %1530 = vmatprep.mubr.f32.mxu0 0.0
        %v1531 = vand.u32 %v1376, 4294901760
        %1532 = vmatmul.mubr.f32.gmra.mxu0 %v1531
        %v1533 = vpop.f32.mrf.mxu0
        %v1534 = vadd.f32 %v1452, %v1533
        %v1535 = vpop.f32.mrf.mxu0
        %v1536 = vadd.f32 %v1454, %v1535
        %1537 = vdwg.mxu0
        %1538 = vmatprep.subr.mxu0 0.0
        %1539 = vmatpush1.msra.mxu0 0.0
        %1540 = vmatprep.subr.mxu0 0.0
        %1541 = vmatpush1.msra.mxu0 0.0
        %1542 = vmatprep.subr.mxu0 0.0
        %1543 = vmatpush1.msra.mxu0 0.0
        %1544 = vmatprep.subr.mxu0 0.0
        %1545 = vmatpush1.msra.mxu0 0.0
        %1546 = vmatprep.subr.mxu0 0.0
        %1547 = vmatpush1.msra.mxu0 0.0
        %1548 = vmatprep.subr.mxu0 0.0
        %1549 = vmatpush1.msra.mxu0 0.0
        %1550 = vmatprep.subr.mxu0 0.0
        %1551 = vmatpush1.msra.mxu0 0.0
        %1552 = vmatprep.subr.mxu0 0.0
        %1553 = vmatpush1.msra.mxu0 0.0
        %1554 = vmatprep.subr.mxu0 0.0
        %1555 = vmatpush1.msra.mxu0 0.0
        %1556 = vmatprep.subr.mxu0 0.0
        %1557 = vmatpush1.msra.mxu0 0.0
        %1558 = vmatprep.subr.mxu0 0.0
        %1559 = vmatpush1.msra.mxu0 0.0
        %1560 = vmatprep.subr.mxu0 0.0
        %1561 = vmatpush1.msra.mxu0 0.0
        %1562 = vmatprep.subr.mxu0 0.0
        %1563 = vmatpush1.msra.mxu0 0.0
        %1564 = vmatprep.subr.mxu0 0.0
        %1565 = vmatpush1.msra.mxu0 0.0
        %1566 = vmatprep.subr.mxu0 0.0
        %1567 = vmatpush1.msra.mxu0 0.0
        %v1568 = vand.u32 %v1372, 4294901760
        %v1569 = vsub.f32 %v1372, %v1568
        %1570 = vmatprep.subr.mxu0 %v1569
        %v1571 = vand.u32 %v1371, 4294901760
        %v1572 = vsub.f32 %v1371, %v1571
        %1573 = vmatpush1.msra.mxu0 %v1572
        %1574 = vmatprep.subr.mxu0 0.0
        %1575 = vmatpush2.msra.mxu0 0.0
        %1576 = vmatprep.subr.mxu0 0.0
        %1577 = vmatpush2.msra.mxu0 0.0
        %1578 = vmatprep.subr.mxu0 0.0
        %1579 = vmatpush2.msra.mxu0 0.0
        %1580 = vmatprep.subr.mxu0 0.0
        %1581 = vmatpush2.msra.mxu0 0.0
        %1582 = vmatprep.subr.mxu0 0.0
        %1583 = vmatpush2.msra.mxu0 0.0
        %1584 = vmatprep.subr.mxu0 0.0
        %1585 = vmatpush2.msra.mxu0 0.0
        %1586 = vmatprep.subr.mxu0 0.0
        %1587 = vmatpush2.msra.mxu0 0.0
        %1588 = vmatprep.subr.mxu0 0.0
        %1589 = vmatpush2.msra.mxu0 0.0
        %1590 = vmatprep.subr.mxu0 0.0
        %1591 = vmatpush2.msra.mxu0 0.0
        %1592 = vmatprep.subr.mxu0 0.0
        %1593 = vmatpush2.msra.mxu0 0.0
        %1594 = vmatprep.subr.mxu0 0.0
        %1595 = vmatpush2.msra.mxu0 0.0
        %1596 = vmatprep.subr.mxu0 0.0
        %1597 = vmatpush2.msra.mxu0 0.0
        %1598 = vmatprep.subr.mxu0 0.0
        %1599 = vmatpush2.msra.mxu0 0.0
        %1600 = vmatprep.subr.mxu0 0.0
        %1601 = vmatpush2.msra.mxu0 0.0
        %1602 = vmatprep.subr.mxu0 0.0
        %1603 = vmatpush2.msra.mxu0 0.0
        %1604 = vmatprep.subr.mxu0 0.0
        %1605 = vmatpush2.msra.mxu0 0.0
        %1606 = vmatprep.mubr.f32.mxu0 0.0
        %v1607 = vand.u32 %v1376, 4294901760
        %v1608 = vsub.f32 %v1376, %v1607
        %1609 = vmatmul.mubr.f32.gmra.mxu0 %v1608
        %v1610 = vpop.f32.mrf.mxu0
        %v1611 = vadd.f32 %v1534, %v1610
        %v1612 = vpop.f32.mrf.mxu0
        %v1613 = vadd.f32 %v1536, %v1612
        %1614 = vdwg.mxu0
        %1615 = vmatprep.subr.mxu0 0.0
        %1616 = vmatpush1.msra.mxu0 0.0
        %1617 = vmatprep.subr.mxu0 0.0
        %1618 = vmatpush1.msra.mxu0 0.0
        %1619 = vmatprep.subr.mxu0 0.0
        %1620 = vmatpush1.msra.mxu0 0.0
        %1621 = vmatprep.subr.mxu0 0.0
        %1622 = vmatpush1.msra.mxu0 0.0
        %1623 = vmatprep.subr.mxu0 0.0
        %1624 = vmatpush1.msra.mxu0 0.0
        %1625 = vmatprep.subr.mxu0 0.0
        %1626 = vmatpush1.msra.mxu0 0.0
        %1627 = vmatprep.subr.mxu0 0.0
        %1628 = vmatpush1.msra.mxu0 0.0
        %1629 = vmatprep.subr.mxu0 0.0
        %1630 = vmatpush1.msra.mxu0 0.0
        %1631 = vmatprep.subr.mxu0 0.0
        %1632 = vmatpush1.msra.mxu0 0.0
        %1633 = vmatprep.subr.mxu0 0.0
        %1634 = vmatpush1.msra.mxu0 0.0
        %1635 = vmatprep.subr.mxu0 0.0
        %1636 = vmatpush1.msra.mxu0 0.0
        %1637 = vmatprep.subr.mxu0 0.0
        %1638 = vmatpush1.msra.mxu0 0.0
        %1639 = vmatprep.subr.mxu0 0.0
        %1640 = vmatpush1.msra.mxu0 0.0
        %1641 = vmatprep.subr.mxu0 0.0
        %1642 = vmatpush1.msra.mxu0 0.0
        %1643 = vmatprep.subr.mxu0 0.0
        %1644 = vmatpush1.msra.mxu0 0.0
        %v1645 = vand.u32 %v1372, 4294901760
        %1646 = vmatprep.subr.mxu0 %v1645
        %v1647 = vand.u32 %v1371, 4294901760
        %1648 = vmatpush1.msra.mxu0 %v1647
        %1649 = vmatprep.subr.mxu0 0.0
        %1650 = vmatpush2.msra.mxu0 0.0
        %1651 = vmatprep.subr.mxu0 0.0
        %1652 = vmatpush2.msra.mxu0 0.0
        %1653 = vmatprep.subr.mxu0 0.0
        %1654 = vmatpush2.msra.mxu0 0.0
        %1655 = vmatprep.subr.mxu0 0.0
        %1656 = vmatpush2.msra.mxu0 0.0
        %1657 = vmatprep.subr.mxu0 0.0
        %1658 = vmatpush2.msra.mxu0 0.0
        %1659 = vmatprep.subr.mxu0 0.0
        %1660 = vmatpush2.msra.mxu0 0.0
        %1661 = vmatprep.subr.mxu0 0.0
        %1662 = vmatpush2.msra.mxu0 0.0
        %1663 = vmatprep.subr.mxu0 0.0
        %1664 = vmatpush2.msra.mxu0 0.0
        %1665 = vmatprep.subr.mxu0 0.0
        %1666 = vmatpush2.msra.mxu0 0.0
        %1667 = vmatprep.subr.mxu0 0.0
        %1668 = vmatpush2.msra.mxu0 0.0
        %1669 = vmatprep.subr.mxu0 0.0
        %1670 = vmatpush2.msra.mxu0 0.0
        %1671 = vmatprep.subr.mxu0 0.0
        %1672 = vmatpush2.msra.mxu0 0.0
        %1673 = vmatprep.subr.mxu0 0.0
        %1674 = vmatpush2.msra.mxu0 0.0
        %1675 = vmatprep.subr.mxu0 0.0
        %1676 = vmatpush2.msra.mxu0 0.0
        %1677 = vmatprep.subr.mxu0 0.0
        %1678 = vmatpush2.msra.mxu0 0.0
        %1679 = vmatprep.subr.mxu0 0.0
        %1680 = vmatpush2.msra.mxu0 0.0
        %1681 = vmatprep.mubr.f32.mxu0 0.0
        %v1682 = vand.u32 %v1376, 4294901760
        %v1683 = vsub.f32 %v1376, %v1682
        %v1684 = vand.u32 %v1683, 4294901760
        %1685 = vmatmul.mubr.f32.gmra.mxu0 %v1684
        %v1686 = vpop.f32.mrf.mxu0
        %v1687 = vadd.f32 %v1611, %v1686
        %v1688 = vpop.f32.mrf.mxu0
        %v1689 = vadd.f32 %v1613, %v1688
        %1690 = vdwg.mxu0
        %1691 = vmatprep.subr.mxu0 0.0
        %1692 = vmatpush1.msra.mxu0 0.0
        %1693 = vmatprep.subr.mxu0 0.0
        %1694 = vmatpush1.msra.mxu0 0.0
        %1695 = vmatprep.subr.mxu0 0.0
        %1696 = vmatpush1.msra.mxu0 0.0
        %1697 = vmatprep.subr.mxu0 0.0
        %1698 = vmatpush1.msra.mxu0 0.0
        %1699 = vmatprep.subr.mxu0 0.0
        %1700 = vmatpush1.msra.mxu0 0.0
        %1701 = vmatprep.subr.mxu0 0.0
        %1702 = vmatpush1.msra.mxu0 0.0
        %1703 = vmatprep.subr.mxu0 0.0
        %1704 = vmatpush1.msra.mxu0 0.0
        %1705 = vmatprep.subr.mxu0 0.0
        %1706 = vmatpush1.msra.mxu0 0.0
        %1707 = vmatprep.subr.mxu0 0.0
        %1708 = vmatpush1.msra.mxu0 0.0
        %1709 = vmatprep.subr.mxu0 0.0
        %1710 = vmatpush1.msra.mxu0 0.0
        %1711 = vmatprep.subr.mxu0 0.0
        %1712 = vmatpush1.msra.mxu0 0.0
        %1713 = vmatprep.subr.mxu0 0.0
        %1714 = vmatpush1.msra.mxu0 0.0
        %1715 = vmatprep.subr.mxu0 0.0
        %1716 = vmatpush1.msra.mxu0 0.0
        %1717 = vmatprep.subr.mxu0 0.0
        %1718 = vmatpush1.msra.mxu0 0.0
        %1719 = vmatprep.subr.mxu0 0.0
        %1720 = vmatpush1.msra.mxu0 0.0
        %v1721 = vand.u32 %v1372, 4294901760
        %v1722 = vsub.f32 %v1372, %v1721
        %v1723 = vand.u32 %v1722, 4294901760
        %1724 = vmatprep.subr.mxu0 %v1723
        %v1725 = vand.u32 %v1371, 4294901760
        %v1726 = vsub.f32 %v1371, %v1725
        %v1727 = vand.u32 %v1726, 4294901760
        %1728 = vmatpush1.msra.mxu0 %v1727
        %1729 = vmatprep.subr.mxu0 0.0
        %1730 = vmatpush2.msra.mxu0 0.0
        %1731 = vmatprep.subr.mxu0 0.0
        %1732 = vmatpush2.msra.mxu0 0.0
        %1733 = vmatprep.subr.mxu0 0.0
        %1734 = vmatpush2.msra.mxu0 0.0
        %1735 = vmatprep.subr.mxu0 0.0
        %1736 = vmatpush2.msra.mxu0 0.0
        %1737 = vmatprep.subr.mxu0 0.0
        %1738 = vmatpush2.msra.mxu0 0.0
        %1739 = vmatprep.subr.mxu0 0.0
        %1740 = vmatpush2.msra.mxu0 0.0
        %1741 = vmatprep.subr.mxu0 0.0
        %1742 = vmatpush2.msra.mxu0 0.0
        %1743 = vmatprep.subr.mxu0 0.0
        %1744 = vmatpush2.msra.mxu0 0.0
        %1745 = vmatprep.subr.mxu0 0.0
        %1746 = vmatpush2.msra.mxu0 0.0
        %1747 = vmatprep.subr.mxu0 0.0
        %1748 = vmatpush2.msra.mxu0 0.0
        %1749 = vmatprep.subr.mxu0 0.0
        %1750 = vmatpush2.msra.mxu0 0.0
        %1751 = vmatprep.subr.mxu0 0.0
        %1752 = vmatpush2.msra.mxu0 0.0
        %1753 = vmatprep.subr.mxu0 0.0
        %1754 = vmatpush2.msra.mxu0 0.0
        %1755 = vmatprep.subr.mxu0 0.0
        %1756 = vmatpush2.msra.mxu0 0.0
        %1757 = vmatprep.subr.mxu0 0.0
        %1758 = vmatpush2.msra.mxu0 0.0
        %1759 = vmatprep.subr.mxu0 0.0
        %1760 = vmatpush2.msra.mxu0 0.0
        %1761 = vmatprep.mubr.f32.mxu0 0.0
        %v1762 = vand.u32 %v1376, 4294901760
        %1763 = vmatmul.mubr.f32.gmra.mxu0 %v1762
        %v1764 = vpop.f32.mrf.mxu0
        %v1765 = vadd.f32 %v1687, %v1764
        %v1766 = vpop.f32.mrf.mxu0
        %v1767 = vadd.f32 %v1689, %v1766
        %1768 = vdwg.mxu0
        %1769 = vmatprep.subr.mxu0 0.0
        %1770 = vmatpush1.msra.mxu0 0.0
        %1771 = vmatprep.subr.mxu0 0.0
        %1772 = vmatpush1.msra.mxu0 0.0
        %1773 = vmatprep.subr.mxu0 0.0
        %1774 = vmatpush1.msra.mxu0 0.0
        %1775 = vmatprep.subr.mxu0 0.0
        %1776 = vmatpush1.msra.mxu0 0.0
        %1777 = vmatprep.subr.mxu0 0.0
        %1778 = vmatpush1.msra.mxu0 0.0
        %1779 = vmatprep.subr.mxu0 0.0
        %1780 = vmatpush1.msra.mxu0 0.0
        %1781 = vmatprep.subr.mxu0 0.0
        %1782 = vmatpush1.msra.mxu0 0.0
        %1783 = vmatprep.subr.mxu0 0.0
        %1784 = vmatpush1.msra.mxu0 0.0
        %1785 = vmatprep.subr.mxu0 0.0
        %1786 = vmatpush1.msra.mxu0 0.0
        %1787 = vmatprep.subr.mxu0 0.0
        %1788 = vmatpush1.msra.mxu0 0.0
        %1789 = vmatprep.subr.mxu0 0.0
        %1790 = vmatpush1.msra.mxu0 0.0
        %1791 = vmatprep.subr.mxu0 0.0
        %1792 = vmatpush1.msra.mxu0 0.0
        %1793 = vmatprep.subr.mxu0 0.0
        %1794 = vmatpush1.msra.mxu0 0.0
        %1795 = vmatprep.subr.mxu0 0.0
        %1796 = vmatpush1.msra.mxu0 0.0
        %1797 = vmatprep.subr.mxu0 0.0
        %1798 = vmatpush1.msra.mxu0 0.0
        %v1799 = vand.u32 %v1372, 4294901760
        %1800 = vmatprep.subr.mxu0 %v1799
        %v1801 = vand.u32 %v1371, 4294901760
        %1802 = vmatpush1.msra.mxu0 %v1801
        %1803 = vmatprep.subr.mxu0 0.0
        %1804 = vmatpush2.msra.mxu0 0.0
        %1805 = vmatprep.subr.mxu0 0.0
        %1806 = vmatpush2.msra.mxu0 0.0
        %1807 = vmatprep.subr.mxu0 0.0
        %1808 = vmatpush2.msra.mxu0 0.0
        %1809 = vmatprep.subr.mxu0 0.0
        %1810 = vmatpush2.msra.mxu0 0.0
        %1811 = vmatprep.subr.mxu0 0.0
        %1812 = vmatpush2.msra.mxu0 0.0
        %1813 = vmatprep.subr.mxu0 0.0
        %1814 = vmatpush2.msra.mxu0 0.0
        %1815 = vmatprep.subr.mxu0 0.0
        %1816 = vmatpush2.msra.mxu0 0.0
        %1817 = vmatprep.subr.mxu0 0.0
        %1818 = vmatpush2.msra.mxu0 0.0
        %1819 = vmatprep.subr.mxu0 0.0
        %1820 = vmatpush2.msra.mxu0 0.0
        %1821 = vmatprep.subr.mxu0 0.0
        %1822 = vmatpush2.msra.mxu0 0.0
        %1823 = vmatprep.subr.mxu0 0.0
        %1824 = vmatpush2.msra.mxu0 0.0
        %1825 = vmatprep.subr.mxu0 0.0
        %1826 = vmatpush2.msra.mxu0 0.0
        %1827 = vmatprep.subr.mxu0 0.0
        %1828 = vmatpush2.msra.mxu0 0.0
        %1829 = vmatprep.subr.mxu0 0.0
        %1830 = vmatpush2.msra.mxu0 0.0
        %1831 = vmatprep.subr.mxu0 0.0
        %1832 = vmatpush2.msra.mxu0 0.0
        %1833 = vmatprep.subr.mxu0 0.0
        %1834 = vmatpush2.msra.mxu0 0.0
        %1835 = vmatprep.mubr.f32.mxu0 0.0
        %v1836 = vand.u32 %v1376, 4294901760
        %1837 = vmatmul.mubr.f32.gmra.mxu0 %v1836
        %v1838 = vpop.f32.mrf.mxu0
        %v1839 = vadd.f32 %v1765, %v1838
        %v1840 = vpop.f32.mrf.mxu0
        %v1841 = vadd.f32 %v1767, %v1840
        %1842 = vdwg.mxu0
        %v1843 = vadd.f32 %v1332, %v1839
        %v1844 = vadd.f32 %v1334, %v1841
        %s1845 = scalar_lea.vmem %s7, 6
        %v1846 = vld [vmem:[%s1845] sm:$0x3]
        %v1848 = vlaneseq
        %v1849 = vshrl.u32 %v1848, 7
        %v1850 = vsub.s32 0, %v1849
        %v1851 = vrot.slane %v1846, %v1850
        %v1852 = vlaneseq
        %v1853 = vshrl.u32 %v1852, 7
        %v1854 = vsub.s32 1, %v1853
        %v1855 = vrot.slane %v1846, %v1854
        %1856 = vrot.lane.b32.xlu0 %v1851, 16
        %v1857 = vpop.permute.xlu0 %1856
        %1858 = vrot.lane.b32.xlu0 %v1855, 16
        %v1859 = vpop.permute.xlu0 %1858
        %vm1860 = vcmask 130048
        %v1861 = vsel %vm1860, %v1857, %v1859
        %v1865 = vmul.f32 %v342, %v1857
        %v1866 = vmul.f32 %v343, %v1861
        %v1867 = vmul.f32 %v359, %v1859
        %s1868 = scalar_lea.vmem %s3, 24
        %v1869 = vld [vmem:[%s1868] sm:$0xff]
        %1873 = vrot.lane.b32.xlu0 %v1865, 112
        %v1874 = vpop.permute.xlu0 %1873
        %1875 = vrot.lane.b32.xlu0 %v1866, 112
        %v1876 = vpop.permute.xlu0 %1875
        %1877 = vrot.lane.b32.xlu0 %v1867, 112
        %v1878 = vpop.permute.xlu0 %1877
        %vm1879 = vcmask 916480
        %v1880 = vsel %vm1879, %v1874, %v1876
        %v1881 = vsel %vm1879, %v1876, %v1878
        %v1885 = vsel %vm399, %v1869, 0
        %1887 = vmatprep.subr.mxu0 0.0
        %1888 = vmatpush1.msra.mxu0 0.0
        %1889 = vmatprep.subr.mxu0 0.0
        %1890 = vmatpush1.msra.mxu0 0.0
        %1891 = vmatprep.subr.mxu0 0.0
        %1892 = vmatpush1.msra.mxu0 0.0
        %1893 = vmatprep.subr.mxu0 0.0
        %1894 = vmatpush1.msra.mxu0 0.0
        %1895 = vmatprep.subr.mxu0 0.0
        %1896 = vmatpush1.msra.mxu0 0.0
        %1897 = vmatprep.subr.mxu0 0.0
        %1898 = vmatpush1.msra.mxu0 0.0
        %1899 = vmatprep.subr.mxu0 0.0
        %1900 = vmatpush1.msra.mxu0 0.0
        %1901 = vmatprep.subr.mxu0 0.0
        %1902 = vmatpush1.msra.mxu0 0.0
        %1903 = vmatprep.subr.mxu0 0.0
        %1904 = vmatpush1.msra.mxu0 0.0
        %1905 = vmatprep.subr.mxu0 0.0
        %1906 = vmatpush1.msra.mxu0 0.0
        %1907 = vmatprep.subr.mxu0 0.0
        %1908 = vmatpush1.msra.mxu0 0.0
        %1909 = vmatprep.subr.mxu0 0.0
        %1910 = vmatpush1.msra.mxu0 0.0
        %1911 = vmatprep.subr.mxu0 0.0
        %1912 = vmatpush1.msra.mxu0 0.0
        %1913 = vmatprep.subr.mxu0 0.0
        %1914 = vmatpush1.msra.mxu0 0.0
        %1915 = vmatprep.subr.mxu0 0.0
        %1916 = vmatpush1.msra.mxu0 0.0
        %v1917 = vand.u32 %v1881, 4294901760
        %1918 = vmatprep.subr.mxu0 %v1917
        %v1919 = vand.u32 %v1880, 4294901760
        %1920 = vmatpush1.msra.mxu0 %v1919
        %1921 = vmatprep.subr.mxu0 0.0
        %1922 = vmatpush2.msra.mxu0 0.0
        %1923 = vmatprep.subr.mxu0 0.0
        %1924 = vmatpush2.msra.mxu0 0.0
        %1925 = vmatprep.subr.mxu0 0.0
        %1926 = vmatpush2.msra.mxu0 0.0
        %1927 = vmatprep.subr.mxu0 0.0
        %1928 = vmatpush2.msra.mxu0 0.0
        %1929 = vmatprep.subr.mxu0 0.0
        %1930 = vmatpush2.msra.mxu0 0.0
        %1931 = vmatprep.subr.mxu0 0.0
        %1932 = vmatpush2.msra.mxu0 0.0
        %1933 = vmatprep.subr.mxu0 0.0
        %1934 = vmatpush2.msra.mxu0 0.0
        %1935 = vmatprep.subr.mxu0 0.0
        %1936 = vmatpush2.msra.mxu0 0.0
        %1937 = vmatprep.subr.mxu0 0.0
        %1938 = vmatpush2.msra.mxu0 0.0
        %1939 = vmatprep.subr.mxu0 0.0
        %1940 = vmatpush2.msra.mxu0 0.0
        %1941 = vmatprep.subr.mxu0 0.0
        %1942 = vmatpush2.msra.mxu0 0.0
        %1943 = vmatprep.subr.mxu0 0.0
        %1944 = vmatpush2.msra.mxu0 0.0
        %1945 = vmatprep.subr.mxu0 0.0
        %1946 = vmatpush2.msra.mxu0 0.0
        %1947 = vmatprep.subr.mxu0 0.0
        %1948 = vmatpush2.msra.mxu0 0.0
        %1949 = vmatprep.subr.mxu0 0.0
        %1950 = vmatpush2.msra.mxu0 0.0
        %1951 = vmatprep.subr.mxu0 0.0
        %1952 = vmatpush2.msra.mxu0 0.0
        %1953 = vmatprep.mubr.f32.mxu0 0.0
        %v1954 = vand.u32 %v1885, 4294901760
        %v1955 = vsub.f32 %v1885, %v1954
        %v1956 = vand.u32 %v1955, 4294901760
        %v1957 = vsub.f32 %v1955, %v1956
        %v1958 = vand.u32 %v1957, 4294901760
        %1959 = vmatmul.mubr.f32.gmra.mxu0 %v1958
        %v1960 = vpop.f32.mrf.mxu0
        %v1961 = vadd.f32 0.0, %v1960
        %v1962 = vpop.f32.mrf.mxu0
        %v1963 = vadd.f32 0.0, %v1962
        %1964 = vdwg.mxu0
        %1965 = vmatprep.subr.mxu0 0.0
        %1966 = vmatpush1.msra.mxu0 0.0
        %1967 = vmatprep.subr.mxu0 0.0
        %1968 = vmatpush1.msra.mxu0 0.0
        %1969 = vmatprep.subr.mxu0 0.0
        %1970 = vmatpush1.msra.mxu0 0.0
        %1971 = vmatprep.subr.mxu0 0.0
        %1972 = vmatpush1.msra.mxu0 0.0
        %1973 = vmatprep.subr.mxu0 0.0
        %1974 = vmatpush1.msra.mxu0 0.0
        %1975 = vmatprep.subr.mxu0 0.0
        %1976 = vmatpush1.msra.mxu0 0.0
        %1977 = vmatprep.subr.mxu0 0.0
        %1978 = vmatpush1.msra.mxu0 0.0
        %1979 = vmatprep.subr.mxu0 0.0
        %1980 = vmatpush1.msra.mxu0 0.0
        %1981 = vmatprep.subr.mxu0 0.0
        %1982 = vmatpush1.msra.mxu0 0.0
        %1983 = vmatprep.subr.mxu0 0.0
        %1984 = vmatpush1.msra.mxu0 0.0
        %1985 = vmatprep.subr.mxu0 0.0
        %1986 = vmatpush1.msra.mxu0 0.0
        %1987 = vmatprep.subr.mxu0 0.0
        %1988 = vmatpush1.msra.mxu0 0.0
        %1989 = vmatprep.subr.mxu0 0.0
        %1990 = vmatpush1.msra.mxu0 0.0
        %1991 = vmatprep.subr.mxu0 0.0
        %1992 = vmatpush1.msra.mxu0 0.0
        %1993 = vmatprep.subr.mxu0 0.0
        %1994 = vmatpush1.msra.mxu0 0.0
        %v1995 = vand.u32 %v1881, 4294901760
        %v1996 = vsub.f32 %v1881, %v1995
        %v1997 = vand.u32 %v1996, 4294901760
        %v1998 = vsub.f32 %v1996, %v1997
        %v1999 = vand.u32 %v1998, 4294901760
        %2000 = vmatprep.subr.mxu0 %v1999
        %v2001 = vand.u32 %v1880, 4294901760
        %v2002 = vsub.f32 %v1880, %v2001
        %v2003 = vand.u32 %v2002, 4294901760
        %v2004 = vsub.f32 %v2002, %v2003
        %v2005 = vand.u32 %v2004, 4294901760
        %2006 = vmatpush1.msra.mxu0 %v2005
        %2007 = vmatprep.subr.mxu0 0.0
        %2008 = vmatpush2.msra.mxu0 0.0
        %2009 = vmatprep.subr.mxu0 0.0
        %2010 = vmatpush2.msra.mxu0 0.0
        %2011 = vmatprep.subr.mxu0 0.0
        %2012 = vmatpush2.msra.mxu0 0.0
        %2013 = vmatprep.subr.mxu0 0.0
        %2014 = vmatpush2.msra.mxu0 0.0
        %2015 = vmatprep.subr.mxu0 0.0
        %2016 = vmatpush2.msra.mxu0 0.0
        %2017 = vmatprep.subr.mxu0 0.0
        %2018 = vmatpush2.msra.mxu0 0.0
        %2019 = vmatprep.subr.mxu0 0.0
        %2020 = vmatpush2.msra.mxu0 0.0
        %2021 = vmatprep.subr.mxu0 0.0
        %2022 = vmatpush2.msra.mxu0 0.0
        %2023 = vmatprep.subr.mxu0 0.0
        %2024 = vmatpush2.msra.mxu0 0.0
        %2025 = vmatprep.subr.mxu0 0.0
        %2026 = vmatpush2.msra.mxu0 0.0
        %2027 = vmatprep.subr.mxu0 0.0
        %2028 = vmatpush2.msra.mxu0 0.0
        %2029 = vmatprep.subr.mxu0 0.0
        %2030 = vmatpush2.msra.mxu0 0.0
        %2031 = vmatprep.subr.mxu0 0.0
        %2032 = vmatpush2.msra.mxu0 0.0
        %2033 = vmatprep.subr.mxu0 0.0
        %2034 = vmatpush2.msra.mxu0 0.0
        %2035 = vmatprep.subr.mxu0 0.0
        %2036 = vmatpush2.msra.mxu0 0.0
        %2037 = vmatprep.subr.mxu0 0.0
        %2038 = vmatpush2.msra.mxu0 0.0
        %2039 = vmatprep.mubr.f32.mxu0 0.0
        %v2040 = vand.u32 %v1885, 4294901760
        %2041 = vmatmul.mubr.f32.gmra.mxu0 %v2040
        %v2042 = vpop.f32.mrf.mxu0
        %v2043 = vadd.f32 %v1961, %v2042
        %v2044 = vpop.f32.mrf.mxu0
        %v2045 = vadd.f32 %v1963, %v2044
        %2046 = vdwg.mxu0
        %2047 = vmatprep.subr.mxu0 0.0
        %2048 = vmatpush1.msra.mxu0 0.0
        %2049 = vmatprep.subr.mxu0 0.0
        %2050 = vmatpush1.msra.mxu0 0.0
        %2051 = vmatprep.subr.mxu0 0.0
        %2052 = vmatpush1.msra.mxu0 0.0
        %2053 = vmatprep.subr.mxu0 0.0
        %2054 = vmatpush1.msra.mxu0 0.0
        %2055 = vmatprep.subr.mxu0 0.0
        %2056 = vmatpush1.msra.mxu0 0.0
        %2057 = vmatprep.subr.mxu0 0.0
        %2058 = vmatpush1.msra.mxu0 0.0
        %2059 = vmatprep.subr.mxu0 0.0
        %2060 = vmatpush1.msra.mxu0 0.0
        %2061 = vmatprep.subr.mxu0 0.0
        %2062 = vmatpush1.msra.mxu0 0.0
        %2063 = vmatprep.subr.mxu0 0.0
        %2064 = vmatpush1.msra.mxu0 0.0
        %2065 = vmatprep.subr.mxu0 0.0
        %2066 = vmatpush1.msra.mxu0 0.0
        %2067 = vmatprep.subr.mxu0 0.0
        %2068 = vmatpush1.msra.mxu0 0.0
        %2069 = vmatprep.subr.mxu0 0.0
        %2070 = vmatpush1.msra.mxu0 0.0
        %2071 = vmatprep.subr.mxu0 0.0
        %2072 = vmatpush1.msra.mxu0 0.0
        %2073 = vmatprep.subr.mxu0 0.0
        %2074 = vmatpush1.msra.mxu0 0.0
        %2075 = vmatprep.subr.mxu0 0.0
        %2076 = vmatpush1.msra.mxu0 0.0
        %v2077 = vand.u32 %v1881, 4294901760
        %v2078 = vsub.f32 %v1881, %v2077
        %2079 = vmatprep.subr.mxu0 %v2078
        %v2080 = vand.u32 %v1880, 4294901760
        %v2081 = vsub.f32 %v1880, %v2080
        %2082 = vmatpush1.msra.mxu0 %v2081
        %2083 = vmatprep.subr.mxu0 0.0
        %2084 = vmatpush2.msra.mxu0 0.0
        %2085 = vmatprep.subr.mxu0 0.0
        %2086 = vmatpush2.msra.mxu0 0.0
        %2087 = vmatprep.subr.mxu0 0.0
        %2088 = vmatpush2.msra.mxu0 0.0
        %2089 = vmatprep.subr.mxu0 0.0
        %2090 = vmatpush2.msra.mxu0 0.0
        %2091 = vmatprep.subr.mxu0 0.0
        %2092 = vmatpush2.msra.mxu0 0.0
        %2093 = vmatprep.subr.mxu0 0.0
        %2094 = vmatpush2.msra.mxu0 0.0
        %2095 = vmatprep.subr.mxu0 0.0
        %2096 = vmatpush2.msra.mxu0 0.0
        %2097 = vmatprep.subr.mxu0 0.0
        %2098 = vmatpush2.msra.mxu0 0.0
        %2099 = vmatprep.subr.mxu0 0.0
        %2100 = vmatpush2.msra.mxu0 0.0
        %2101 = vmatprep.subr.mxu0 0.0
        %2102 = vmatpush2.msra.mxu0 0.0
        %2103 = vmatprep.subr.mxu0 0.0
        %2104 = vmatpush2.msra.mxu0 0.0
        %2105 = vmatprep.subr.mxu0 0.0
        %2106 = vmatpush2.msra.mxu0 0.0
        %2107 = vmatprep.subr.mxu0 0.0
        %2108 = vmatpush2.msra.mxu0 0.0
        %2109 = vmatprep.subr.mxu0 0.0
        %2110 = vmatpush2.msra.mxu0 0.0
        %2111 = vmatprep.subr.mxu0 0.0
        %2112 = vmatpush2.msra.mxu0 0.0
        %2113 = vmatprep.subr.mxu0 0.0
        %2114 = vmatpush2.msra.mxu0 0.0
        %2115 = vmatprep.mubr.f32.mxu0 0.0
        %v2116 = vand.u32 %v1885, 4294901760
        %v2117 = vsub.f32 %v1885, %v2116
        %2118 = vmatmul.mubr.f32.gmra.mxu0 %v2117
        %v2119 = vpop.f32.mrf.mxu0
        %v2120 = vadd.f32 %v2043, %v2119
        %v2121 = vpop.f32.mrf.mxu0
        %v2122 = vadd.f32 %v2045, %v2121
        %2123 = vdwg.mxu0
        %2124 = vmatprep.subr.mxu0 0.0
        %2125 = vmatpush1.msra.mxu0 0.0
        %2126 = vmatprep.subr.mxu0 0.0
        %2127 = vmatpush1.msra.mxu0 0.0
        %2128 = vmatprep.subr.mxu0 0.0
        %2129 = vmatpush1.msra.mxu0 0.0
        %2130 = vmatprep.subr.mxu0 0.0
        %2131 = vmatpush1.msra.mxu0 0.0
        %2132 = vmatprep.subr.mxu0 0.0
        %2133 = vmatpush1.msra.mxu0 0.0
        %2134 = vmatprep.subr.mxu0 0.0
        %2135 = vmatpush1.msra.mxu0 0.0
        %2136 = vmatprep.subr.mxu0 0.0
        %2137 = vmatpush1.msra.mxu0 0.0
        %2138 = vmatprep.subr.mxu0 0.0
        %2139 = vmatpush1.msra.mxu0 0.0
        %2140 = vmatprep.subr.mxu0 0.0
        %2141 = vmatpush1.msra.mxu0 0.0
        %2142 = vmatprep.subr.mxu0 0.0
        %2143 = vmatpush1.msra.mxu0 0.0
        %2144 = vmatprep.subr.mxu0 0.0
        %2145 = vmatpush1.msra.mxu0 0.0
        %2146 = vmatprep.subr.mxu0 0.0
        %2147 = vmatpush1.msra.mxu0 0.0
        %2148 = vmatprep.subr.mxu0 0.0
        %2149 = vmatpush1.msra.mxu0 0.0
        %2150 = vmatprep.subr.mxu0 0.0
        %2151 = vmatpush1.msra.mxu0 0.0
        %2152 = vmatprep.subr.mxu0 0.0
        %2153 = vmatpush1.msra.mxu0 0.0
        %v2154 = vand.u32 %v1881, 4294901760
        %2155 = vmatprep.subr.mxu0 %v2154
        %v2156 = vand.u32 %v1880, 4294901760
        %2157 = vmatpush1.msra.mxu0 %v2156
        %2158 = vmatprep.subr.mxu0 0.0
        %2159 = vmatpush2.msra.mxu0 0.0
        %2160 = vmatprep.subr.mxu0 0.0
        %2161 = vmatpush2.msra.mxu0 0.0
        %2162 = vmatprep.subr.mxu0 0.0
        %2163 = vmatpush2.msra.mxu0 0.0
        %2164 = vmatprep.subr.mxu0 0.0
        %2165 = vmatpush2.msra.mxu0 0.0
        %2166 = vmatprep.subr.mxu0 0.0
        %2167 = vmatpush2.msra.mxu0 0.0
        %2168 = vmatprep.subr.mxu0 0.0
        %2169 = vmatpush2.msra.mxu0 0.0
        %2170 = vmatprep.subr.mxu0 0.0
        %2171 = vmatpush2.msra.mxu0 0.0
        %2172 = vmatprep.subr.mxu0 0.0
        %2173 = vmatpush2.msra.mxu0 0.0
        %2174 = vmatprep.subr.mxu0 0.0
        %2175 = vmatpush2.msra.mxu0 0.0
        %2176 = vmatprep.subr.mxu0 0.0
        %2177 = vmatpush2.msra.mxu0 0.0
        %2178 = vmatprep.subr.mxu0 0.0
        %2179 = vmatpush2.msra.mxu0 0.0
        %2180 = vmatprep.subr.mxu0 0.0
        %2181 = vmatpush2.msra.mxu0 0.0
        %2182 = vmatprep.subr.mxu0 0.0
        %2183 = vmatpush2.msra.mxu0 0.0
        %2184 = vmatprep.subr.mxu0 0.0
        %2185 = vmatpush2.msra.mxu0 0.0
        %2186 = vmatprep.subr.mxu0 0.0
        %2187 = vmatpush2.msra.mxu0 0.0
        %2188 = vmatprep.subr.mxu0 0.0
        %2189 = vmatpush2.msra.mxu0 0.0
        %2190 = vmatprep.mubr.f32.mxu0 0.0
        %v2191 = vand.u32 %v1885, 4294901760
        %v2192 = vsub.f32 %v1885, %v2191
        %v2193 = vand.u32 %v2192, 4294901760
        %2194 = vmatmul.mubr.f32.gmra.mxu0 %v2193
        %v2195 = vpop.f32.mrf.mxu0
        %v2196 = vadd.f32 %v2120, %v2195
        %v2197 = vpop.f32.mrf.mxu0
        %v2198 = vadd.f32 %v2122, %v2197
        %2199 = vdwg.mxu0
        %2200 = vmatprep.subr.mxu0 0.0
        %2201 = vmatpush1.msra.mxu0 0.0
        %2202 = vmatprep.subr.mxu0 0.0
        %2203 = vmatpush1.msra.mxu0 0.0
        %2204 = vmatprep.subr.mxu0 0.0
        %2205 = vmatpush1.msra.mxu0 0.0
        %2206 = vmatprep.subr.mxu0 0.0
        %2207 = vmatpush1.msra.mxu0 0.0
        %2208 = vmatprep.subr.mxu0 0.0
        %2209 = vmatpush1.msra.mxu0 0.0
        %2210 = vmatprep.subr.mxu0 0.0
        %2211 = vmatpush1.msra.mxu0 0.0
        %2212 = vmatprep.subr.mxu0 0.0
        %2213 = vmatpush1.msra.mxu0 0.0
        %2214 = vmatprep.subr.mxu0 0.0
        %2215 = vmatpush1.msra.mxu0 0.0
        %2216 = vmatprep.subr.mxu0 0.0
        %2217 = vmatpush1.msra.mxu0 0.0
        %2218 = vmatprep.subr.mxu0 0.0
        %2219 = vmatpush1.msra.mxu0 0.0
        %2220 = vmatprep.subr.mxu0 0.0
        %2221 = vmatpush1.msra.mxu0 0.0
        %2222 = vmatprep.subr.mxu0 0.0
        %2223 = vmatpush1.msra.mxu0 0.0
        %2224 = vmatprep.subr.mxu0 0.0
        %2225 = vmatpush1.msra.mxu0 0.0
        %2226 = vmatprep.subr.mxu0 0.0
        %2227 = vmatpush1.msra.mxu0 0.0
        %2228 = vmatprep.subr.mxu0 0.0
        %2229 = vmatpush1.msra.mxu0 0.0
        %v2230 = vand.u32 %v1881, 4294901760
        %v2231 = vsub.f32 %v1881, %v2230
        %v2232 = vand.u32 %v2231, 4294901760
        %2233 = vmatprep.subr.mxu0 %v2232
        %v2234 = vand.u32 %v1880, 4294901760
        %v2235 = vsub.f32 %v1880, %v2234
        %v2236 = vand.u32 %v2235, 4294901760
        %2237 = vmatpush1.msra.mxu0 %v2236
        %2238 = vmatprep.subr.mxu0 0.0
        %2239 = vmatpush2.msra.mxu0 0.0
        %2240 = vmatprep.subr.mxu0 0.0
        %2241 = vmatpush2.msra.mxu0 0.0
        %2242 = vmatprep.subr.mxu0 0.0
        %2243 = vmatpush2.msra.mxu0 0.0
        %2244 = vmatprep.subr.mxu0 0.0
        %2245 = vmatpush2.msra.mxu0 0.0
        %2246 = vmatprep.subr.mxu0 0.0
        %2247 = vmatpush2.msra.mxu0 0.0
        %2248 = vmatprep.subr.mxu0 0.0
        %2249 = vmatpush2.msra.mxu0 0.0
        %2250 = vmatprep.subr.mxu0 0.0
        %2251 = vmatpush2.msra.mxu0 0.0
        %2252 = vmatprep.subr.mxu0 0.0
        %2253 = vmatpush2.msra.mxu0 0.0
        %2254 = vmatprep.subr.mxu0 0.0
        %2255 = vmatpush2.msra.mxu0 0.0
        %2256 = vmatprep.subr.mxu0 0.0
        %2257 = vmatpush2.msra.mxu0 0.0
        %2258 = vmatprep.subr.mxu0 0.0
        %2259 = vmatpush2.msra.mxu0 0.0
        %2260 = vmatprep.subr.mxu0 0.0
        %2261 = vmatpush2.msra.mxu0 0.0
        %2262 = vmatprep.subr.mxu0 0.0
        %2263 = vmatpush2.msra.mxu0 0.0
        %2264 = vmatprep.subr.mxu0 0.0
        %2265 = vmatpush2.msra.mxu0 0.0
        %2266 = vmatprep.subr.mxu0 0.0
        %2267 = vmatpush2.msra.mxu0 0.0
        %2268 = vmatprep.subr.mxu0 0.0
        %2269 = vmatpush2.msra.mxu0 0.0
        %2270 = vmatprep.mubr.f32.mxu0 0.0
        %v2271 = vand.u32 %v1885, 4294901760
        %2272 = vmatmul.mubr.f32.gmra.mxu0 %v2271
        %v2273 = vpop.f32.mrf.mxu0
        %v2274 = vadd.f32 %v2196, %v2273
        %v2275 = vpop.f32.mrf.mxu0
        %v2276 = vadd.f32 %v2198, %v2275
        %2277 = vdwg.mxu0
        %2278 = vmatprep.subr.mxu0 0.0
        %2279 = vmatpush1.msra.mxu0 0.0
        %2280 = vmatprep.subr.mxu0 0.0
        %2281 = vmatpush1.msra.mxu0 0.0
        %2282 = vmatprep.subr.mxu0 0.0
        %2283 = vmatpush1.msra.mxu0 0.0
        %2284 = vmatprep.subr.mxu0 0.0
        %2285 = vmatpush1.msra.mxu0 0.0
        %2286 = vmatprep.subr.mxu0 0.0
        %2287 = vmatpush1.msra.mxu0 0.0
        %2288 = vmatprep.subr.mxu0 0.0
        %2289 = vmatpush1.msra.mxu0 0.0
        %2290 = vmatprep.subr.mxu0 0.0
        %2291 = vmatpush1.msra.mxu0 0.0
        %2292 = vmatprep.subr.mxu0 0.0
        %2293 = vmatpush1.msra.mxu0 0.0
        %2294 = vmatprep.subr.mxu0 0.0
        %2295 = vmatpush1.msra.mxu0 0.0
        %2296 = vmatprep.subr.mxu0 0.0
        %2297 = vmatpush1.msra.mxu0 0.0
        %2298 = vmatprep.subr.mxu0 0.0
        %2299 = vmatpush1.msra.mxu0 0.0
        %2300 = vmatprep.subr.mxu0 0.0
        %2301 = vmatpush1.msra.mxu0 0.0
        %2302 = vmatprep.subr.mxu0 0.0
        %2303 = vmatpush1.msra.mxu0 0.0
        %2304 = vmatprep.subr.mxu0 0.0
        %2305 = vmatpush1.msra.mxu0 0.0
        %2306 = vmatprep.subr.mxu0 0.0
        %2307 = vmatpush1.msra.mxu0 0.0
        %v2308 = vand.u32 %v1881, 4294901760
        %2309 = vmatprep.subr.mxu0 %v2308
        %v2310 = vand.u32 %v1880, 4294901760
        %2311 = vmatpush1.msra.mxu0 %v2310
        %2312 = vmatprep.subr.mxu0 0.0
        %2313 = vmatpush2.msra.mxu0 0.0
        %2314 = vmatprep.subr.mxu0 0.0
        %2315 = vmatpush2.msra.mxu0 0.0
        %2316 = vmatprep.subr.mxu0 0.0
        %2317 = vmatpush2.msra.mxu0 0.0
        %2318 = vmatprep.subr.mxu0 0.0
        %2319 = vmatpush2.msra.mxu0 0.0
        %2320 = vmatprep.subr.mxu0 0.0
        %2321 = vmatpush2.msra.mxu0 0.0
        %2322 = vmatprep.subr.mxu0 0.0
        %2323 = vmatpush2.msra.mxu0 0.0
        %2324 = vmatprep.subr.mxu0 0.0
        %2325 = vmatpush2.msra.mxu0 0.0
        %2326 = vmatprep.subr.mxu0 0.0
        %2327 = vmatpush2.msra.mxu0 0.0
        %2328 = vmatprep.subr.mxu0 0.0
        %2329 = vmatpush2.msra.mxu0 0.0
        %2330 = vmatprep.subr.mxu0 0.0
        %2331 = vmatpush2.msra.mxu0 0.0
        %2332 = vmatprep.subr.mxu0 0.0
        %2333 = vmatpush2.msra.mxu0 0.0
        %2334 = vmatprep.subr.mxu0 0.0
        %2335 = vmatpush2.msra.mxu0 0.0
        %2336 = vmatprep.subr.mxu0 0.0
        %2337 = vmatpush2.msra.mxu0 0.0
        %2338 = vmatprep.subr.mxu0 0.0
        %2339 = vmatpush2.msra.mxu0 0.0
        %2340 = vmatprep.subr.mxu0 0.0
        %2341 = vmatpush2.msra.mxu0 0.0
        %2342 = vmatprep.subr.mxu0 0.0
        %2343 = vmatpush2.msra.mxu0 0.0
        %2344 = vmatprep.mubr.f32.mxu0 0.0
        %v2345 = vand.u32 %v1885, 4294901760
        %2346 = vmatmul.mubr.f32.gmra.mxu0 %v2345
        %v2347 = vpop.f32.mrf.mxu0
        %v2348 = vadd.f32 %v2274, %v2347
        %v2349 = vpop.f32.mrf.mxu0
        %v2350 = vadd.f32 %v2276, %v2349
        %2351 = vdwg.mxu0
        %v2352 = vadd.f32 %v1843, %v2348
        %v2353 = vadd.f32 %v1844, %v2350
        %s2354 = scalar_lea.vmem %s7, 8
        %v2355 = vld [vmem:[%s2354] sm:$0x3]
        %v2357 = vlaneseq
        %v2358 = vshrl.u32 %v2357, 7
        %v2359 = vsub.s32 0, %v2358
        %v2360 = vrot.slane %v2355, %v2359
        %v2361 = vlaneseq
        %v2362 = vshrl.u32 %v2361, 7
        %v2363 = vsub.s32 1, %v2362
        %v2364 = vrot.slane %v2355, %v2363
        %2365 = vrot.lane.b32.xlu0 %v2360, 17
        %v2366 = vpop.permute.xlu0 %2365
        %2367 = vrot.lane.b32.xlu0 %v2364, 17
        %v2368 = vpop.permute.xlu0 %2367
        %v2369 = vsel %vm306, %v2366, %v2368
        %v2373 = vmul.f32 %v342, %v2366
        %v2374 = vmul.f32 %v343, %v2369
        %v2375 = vmul.f32 %v359, %v2368
        %s2376 = scalar_lea.vmem %s3, 32
        %v2377 = vld [vmem:[%s2376] sm:$0xff]
        %2381 = vrot.lane.b32.xlu0 %v2373, 111
        %v2382 = vpop.permute.xlu0 %2381
        %2383 = vrot.lane.b32.xlu0 %v2374, 111
        %v2384 = vpop.permute.xlu0 %2383
        %2385 = vrot.lane.b32.xlu0 %v2375, 111
        %v2386 = vpop.permute.xlu0 %2385
        %vm2387 = vcmask 908288
        %v2388 = vsel %vm2387, %v2382, %v2384
        %v2389 = vsel %vm2387, %v2384, %v2386
        %v2393 = vsel %vm399, %v2377, 0
        %2395 = vmatprep.subr.mxu0 0.0
        %2396 = vmatpush1.msra.mxu0 0.0
        %2397 = vmatprep.subr.mxu0 0.0
        %2398 = vmatpush1.msra.mxu0 0.0
        %2399 = vmatprep.subr.mxu0 0.0
        %2400 = vmatpush1.msra.mxu0 0.0
        %2401 = vmatprep.subr.mxu0 0.0
        %2402 = vmatpush1.msra.mxu0 0.0
        %2403 = vmatprep.subr.mxu0 0.0
        %2404 = vmatpush1.msra.mxu0 0.0
        %2405 = vmatprep.subr.mxu0 0.0
        %2406 = vmatpush1.msra.mxu0 0.0
        %2407 = vmatprep.subr.mxu0 0.0
        %2408 = vmatpush1.msra.mxu0 0.0
        %2409 = vmatprep.subr.mxu0 0.0
        %2410 = vmatpush1.msra.mxu0 0.0
        %2411 = vmatprep.subr.mxu0 0.0
        %2412 = vmatpush1.msra.mxu0 0.0
        %2413 = vmatprep.subr.mxu0 0.0
        %2414 = vmatpush1.msra.mxu0 0.0
        %2415 = vmatprep.subr.mxu0 0.0
        %2416 = vmatpush1.msra.mxu0 0.0
        %2417 = vmatprep.subr.mxu0 0.0
        %2418 = vmatpush1.msra.mxu0 0.0
        %2419 = vmatprep.subr.mxu0 0.0
        %2420 = vmatpush1.msra.mxu0 0.0
        %2421 = vmatprep.subr.mxu0 0.0
        %2422 = vmatpush1.msra.mxu0 0.0
        %2423 = vmatprep.subr.mxu0 0.0
        %2424 = vmatpush1.msra.mxu0 0.0
        %v2425 = vand.u32 %v2389, 4294901760
        %2426 = vmatprep.subr.mxu0 %v2425
        %v2427 = vand.u32 %v2388, 4294901760
        %2428 = vmatpush1.msra.mxu0 %v2427
        %2429 = vmatprep.subr.mxu0 0.0
        %2430 = vmatpush2.msra.mxu0 0.0
        %2431 = vmatprep.subr.mxu0 0.0
        %2432 = vmatpush2.msra.mxu0 0.0
        %2433 = vmatprep.subr.mxu0 0.0
        %2434 = vmatpush2.msra.mxu0 0.0
        %2435 = vmatprep.subr.mxu0 0.0
        %2436 = vmatpush2.msra.mxu0 0.0
        %2437 = vmatprep.subr.mxu0 0.0
        %2438 = vmatpush2.msra.mxu0 0.0
        %2439 = vmatprep.subr.mxu0 0.0
        %2440 = vmatpush2.msra.mxu0 0.0
        %2441 = vmatprep.subr.mxu0 0.0
        %2442 = vmatpush2.msra.mxu0 0.0
        %2443 = vmatprep.subr.mxu0 0.0
        %2444 = vmatpush2.msra.mxu0 0.0
        %2445 = vmatprep.subr.mxu0 0.0
        %2446 = vmatpush2.msra.mxu0 0.0
        %2447 = vmatprep.subr.mxu0 0.0
        %2448 = vmatpush2.msra.mxu0 0.0
        %2449 = vmatprep.subr.mxu0 0.0
        %2450 = vmatpush2.msra.mxu0 0.0
        %2451 = vmatprep.subr.mxu0 0.0
        %2452 = vmatpush2.msra.mxu0 0.0
        %2453 = vmatprep.subr.mxu0 0.0
        %2454 = vmatpush2.msra.mxu0 0.0
        %2455 = vmatprep.subr.mxu0 0.0
        %2456 = vmatpush2.msra.mxu0 0.0
        %2457 = vmatprep.subr.mxu0 0.0
        %2458 = vmatpush2.msra.mxu0 0.0
        %2459 = vmatprep.subr.mxu0 0.0
        %2460 = vmatpush2.msra.mxu0 0.0
        %2461 = vmatprep.mubr.f32.mxu0 0.0
        %v2462 = vand.u32 %v2393, 4294901760
        %v2463 = vsub.f32 %v2393, %v2462
        %v2464 = vand.u32 %v2463, 4294901760
        %v2465 = vsub.f32 %v2463, %v2464
        %v2466 = vand.u32 %v2465, 4294901760
        %2467 = vmatmul.mubr.f32.gmra.mxu0 %v2466
        %v2468 = vpop.f32.mrf.mxu0
        %v2469 = vadd.f32 0.0, %v2468
        %v2470 = vpop.f32.mrf.mxu0
        %v2471 = vadd.f32 0.0, %v2470
        %2472 = vdwg.mxu0
        %2473 = vmatprep.subr.mxu0 0.0
        %2474 = vmatpush1.msra.mxu0 0.0
        %2475 = vmatprep.subr.mxu0 0.0
        %2476 = vmatpush1.msra.mxu0 0.0
        %2477 = vmatprep.subr.mxu0 0.0
        %2478 = vmatpush1.msra.mxu0 0.0
        %2479 = vmatprep.subr.mxu0 0.0
        %2480 = vmatpush1.msra.mxu0 0.0
        %2481 = vmatprep.subr.mxu0 0.0
        %2482 = vmatpush1.msra.mxu0 0.0
        %2483 = vmatprep.subr.mxu0 0.0
        %2484 = vmatpush1.msra.mxu0 0.0
        %2485 = vmatprep.subr.mxu0 0.0
        %2486 = vmatpush1.msra.mxu0 0.0
        %2487 = vmatprep.subr.mxu0 0.0
        %2488 = vmatpush1.msra.mxu0 0.0
        %2489 = vmatprep.subr.mxu0 0.0
        %2490 = vmatpush1.msra.mxu0 0.0
        %2491 = vmatprep.subr.mxu0 0.0
        %2492 = vmatpush1.msra.mxu0 0.0
        %2493 = vmatprep.subr.mxu0 0.0
        %2494 = vmatpush1.msra.mxu0 0.0
        %2495 = vmatprep.subr.mxu0 0.0
        %2496 = vmatpush1.msra.mxu0 0.0
        %2497 = vmatprep.subr.mxu0 0.0
        %2498 = vmatpush1.msra.mxu0 0.0
        %2499 = vmatprep.subr.mxu0 0.0
        %2500 = vmatpush1.msra.mxu0 0.0
        %2501 = vmatprep.subr.mxu0 0.0
        %2502 = vmatpush1.msra.mxu0 0.0
        %v2503 = vand.u32 %v2389, 4294901760
        %v2504 = vsub.f32 %v2389, %v2503
        %v2505 = vand.u32 %v2504, 4294901760
        %v2506 = vsub.f32 %v2504, %v2505
        %v2507 = vand.u32 %v2506, 4294901760
        %2508 = vmatprep.subr.mxu0 %v2507
        %v2509 = vand.u32 %v2388, 4294901760
        %v2510 = vsub.f32 %v2388, %v2509
        %v2511 = vand.u32 %v2510, 4294901760
        %v2512 = vsub.f32 %v2510, %v2511
        %v2513 = vand.u32 %v2512, 4294901760
        %2514 = vmatpush1.msra.mxu0 %v2513
        %2515 = vmatprep.subr.mxu0 0.0
        %2516 = vmatpush2.msra.mxu0 0.0
        %2517 = vmatprep.subr.mxu0 0.0
        %2518 = vmatpush2.msra.mxu0 0.0
        %2519 = vmatprep.subr.mxu0 0.0
        %2520 = vmatpush2.msra.mxu0 0.0
        %2521 = vmatprep.subr.mxu0 0.0
        %2522 = vmatpush2.msra.mxu0 0.0
        %2523 = vmatprep.subr.mxu0 0.0
        %2524 = vmatpush2.msra.mxu0 0.0
        %2525 = vmatprep.subr.mxu0 0.0
        %2526 = vmatpush2.msra.mxu0 0.0
        %2527 = vmatprep.subr.mxu0 0.0
        %2528 = vmatpush2.msra.mxu0 0.0
        %2529 = vmatprep.subr.mxu0 0.0
        %2530 = vmatpush2.msra.mxu0 0.0
        %2531 = vmatprep.subr.mxu0 0.0
        %2532 = vmatpush2.msra.mxu0 0.0
        %2533 = vmatprep.subr.mxu0 0.0
        %2534 = vmatpush2.msra.mxu0 0.0
        %2535 = vmatprep.subr.mxu0 0.0
        %2536 = vmatpush2.msra.mxu0 0.0
        %2537 = vmatprep.subr.mxu0 0.0
        %2538 = vmatpush2.msra.mxu0 0.0
        %2539 = vmatprep.subr.mxu0 0.0
        %2540 = vmatpush2.msra.mxu0 0.0
        %2541 = vmatprep.subr.mxu0 0.0
        %2542 = vmatpush2.msra.mxu0 0.0
        %2543 = vmatprep.subr.mxu0 0.0
        %2544 = vmatpush2.msra.mxu0 0.0
        %2545 = vmatprep.subr.mxu0 0.0
        %2546 = vmatpush2.msra.mxu0 0.0
        %2547 = vmatprep.mubr.f32.mxu0 0.0
        %v2548 = vand.u32 %v2393, 4294901760
        %2549 = vmatmul.mubr.f32.gmra.mxu0 %v2548
        %v2550 = vpop.f32.mrf.mxu0
        %v2551 = vadd.f32 %v2469, %v2550
        %v2552 = vpop.f32.mrf.mxu0
        %v2553 = vadd.f32 %v2471, %v2552
        %2554 = vdwg.mxu0
        %2555 = vmatprep.subr.mxu0 0.0
        %2556 = vmatpush1.msra.mxu0 0.0
        %2557 = vmatprep.subr.mxu0 0.0
        %2558 = vmatpush1.msra.mxu0 0.0
        %2559 = vmatprep.subr.mxu0 0.0
        %2560 = vmatpush1.msra.mxu0 0.0
        %2561 = vmatprep.subr.mxu0 0.0
        %2562 = vmatpush1.msra.mxu0 0.0
        %2563 = vmatprep.subr.mxu0 0.0
        %2564 = vmatpush1.msra.mxu0 0.0
        %2565 = vmatprep.subr.mxu0 0.0
        %2566 = vmatpush1.msra.mxu0 0.0
        %2567 = vmatprep.subr.mxu0 0.0
        %2568 = vmatpush1.msra.mxu0 0.0
        %2569 = vmatprep.subr.mxu0 0.0
        %2570 = vmatpush1.msra.mxu0 0.0
        %2571 = vmatprep.subr.mxu0 0.0
        %2572 = vmatpush1.msra.mxu0 0.0
        %2573 = vmatprep.subr.mxu0 0.0
        %2574 = vmatpush1.msra.mxu0 0.0
        %2575 = vmatprep.subr.mxu0 0.0
        %2576 = vmatpush1.msra.mxu0 0.0
        %2577 = vmatprep.subr.mxu0 0.0
        %2578 = vmatpush1.msra.mxu0 0.0
        %2579 = vmatprep.subr.mxu0 0.0
        %2580 = vmatpush1.msra.mxu0 0.0
        %2581 = vmatprep.subr.mxu0 0.0
        %2582 = vmatpush1.msra.mxu0 0.0
        %2583 = vmatprep.subr.mxu0 0.0
        %2584 = vmatpush1.msra.mxu0 0.0
        %v2585 = vand.u32 %v2389, 4294901760
        %v2586 = vsub.f32 %v2389, %v2585
        %2587 = vmatprep.subr.mxu0 %v2586
        %v2588 = vand.u32 %v2388, 4294901760
        %v2589 = vsub.f32 %v2388, %v2588
        %2590 = vmatpush1.msra.mxu0 %v2589
        %2591 = vmatprep.subr.mxu0 0.0
        %2592 = vmatpush2.msra.mxu0 0.0
        %2593 = vmatprep.subr.mxu0 0.0
        %2594 = vmatpush2.msra.mxu0 0.0
        %2595 = vmatprep.subr.mxu0 0.0
        %2596 = vmatpush2.msra.mxu0 0.0
        %2597 = vmatprep.subr.mxu0 0.0
        %2598 = vmatpush2.msra.mxu0 0.0
        %2599 = vmatprep.subr.mxu0 0.0
        %2600 = vmatpush2.msra.mxu0 0.0
        %2601 = vmatprep.subr.mxu0 0.0
        %2602 = vmatpush2.msra.mxu0 0.0
        %2603 = vmatprep.subr.mxu0 0.0
        %2604 = vmatpush2.msra.mxu0 0.0
        %2605 = vmatprep.subr.mxu0 0.0
        %2606 = vmatpush2.msra.mxu0 0.0
        %2607 = vmatprep.subr.mxu0 0.0
        %2608 = vmatpush2.msra.mxu0 0.0
        %2609 = vmatprep.subr.mxu0 0.0
        %2610 = vmatpush2.msra.mxu0 0.0
        %2611 = vmatprep.subr.mxu0 0.0
        %2612 = vmatpush2.msra.mxu0 0.0
        %2613 = vmatprep.subr.mxu0 0.0
        %2614 = vmatpush2.msra.mxu0 0.0
        %2615 = vmatprep.subr.mxu0 0.0
        %2616 = vmatpush2.msra.mxu0 0.0
        %2617 = vmatprep.subr.mxu0 0.0
        %2618 = vmatpush2.msra.mxu0 0.0
        %2619 = vmatprep.subr.mxu0 0.0
        %2620 = vmatpush2.msra.mxu0 0.0
        %2621 = vmatprep.subr.mxu0 0.0
        %2622 = vmatpush2.msra.mxu0 0.0
        %2623 = vmatprep.mubr.f32.mxu0 0.0
        %v2624 = vand.u32 %v2393, 4294901760
        %v2625 = vsub.f32 %v2393, %v2624
        %2626 = vmatmul.mubr.f32.gmra.mxu0 %v2625
        %v2627 = vpop.f32.mrf.mxu0
        %v2628 = vadd.f32 %v2551, %v2627
        %v2629 = vpop.f32.mrf.mxu0
        %v2630 = vadd.f32 %v2553, %v2629
        %2631 = vdwg.mxu0
        %2632 = vmatprep.subr.mxu0 0.0
        %2633 = vmatpush1.msra.mxu0 0.0
        %2634 = vmatprep.subr.mxu0 0.0
        %2635 = vmatpush1.msra.mxu0 0.0
        %2636 = vmatprep.subr.mxu0 0.0
        %2637 = vmatpush1.msra.mxu0 0.0
        %2638 = vmatprep.subr.mxu0 0.0
        %2639 = vmatpush1.msra.mxu0 0.0
        %2640 = vmatprep.subr.mxu0 0.0
        %2641 = vmatpush1.msra.mxu0 0.0
        %2642 = vmatprep.subr.mxu0 0.0
        %2643 = vmatpush1.msra.mxu0 0.0
        %2644 = vmatprep.subr.mxu0 0.0
        %2645 = vmatpush1.msra.mxu0 0.0
        %2646 = vmatprep.subr.mxu0 0.0
        %2647 = vmatpush1.msra.mxu0 0.0
        %2648 = vmatprep.subr.mxu0 0.0
        %2649 = vmatpush1.msra.mxu0 0.0
        %2650 = vmatprep.subr.mxu0 0.0
        %2651 = vmatpush1.msra.mxu0 0.0
        %2652 = vmatprep.subr.mxu0 0.0
        %2653 = vmatpush1.msra.mxu0 0.0
        %2654 = vmatprep.subr.mxu0 0.0
        %2655 = vmatpush1.msra.mxu0 0.0
        %2656 = vmatprep.subr.mxu0 0.0
        %2657 = vmatpush1.msra.mxu0 0.0
        %2658 = vmatprep.subr.mxu0 0.0
        %2659 = vmatpush1.msra.mxu0 0.0
        %2660 = vmatprep.subr.mxu0 0.0
        %2661 = vmatpush1.msra.mxu0 0.0
        %v2662 = vand.u32 %v2389, 4294901760
        %2663 = vmatprep.subr.mxu0 %v2662
        %v2664 = vand.u32 %v2388, 4294901760
        %2665 = vmatpush1.msra.mxu0 %v2664
        %2666 = vmatprep.subr.mxu0 0.0
        %2667 = vmatpush2.msra.mxu0 0.0
        %2668 = vmatprep.subr.mxu0 0.0
        %2669 = vmatpush2.msra.mxu0 0.0
        %2670 = vmatprep.subr.mxu0 0.0
        %2671 = vmatpush2.msra.mxu0 0.0
        %2672 = vmatprep.subr.mxu0 0.0
        %2673 = vmatpush2.msra.mxu0 0.0
        %2674 = vmatprep.subr.mxu0 0.0
        %2675 = vmatpush2.msra.mxu0 0.0
        %2676 = vmatprep.subr.mxu0 0.0
        %2677 = vmatpush2.msra.mxu0 0.0
        %2678 = vmatprep.subr.mxu0 0.0
        %2679 = vmatpush2.msra.mxu0 0.0
        %2680 = vmatprep.subr.mxu0 0.0
        %2681 = vmatpush2.msra.mxu0 0.0
        %2682 = vmatprep.subr.mxu0 0.0
        %2683 = vmatpush2.msra.mxu0 0.0
        %2684 = vmatprep.subr.mxu0 0.0
        %2685 = vmatpush2.msra.mxu0 0.0
        %2686 = vmatprep.subr.mxu0 0.0
        %2687 = vmatpush2.msra.mxu0 0.0
        %2688 = vmatprep.subr.mxu0 0.0
        %2689 = vmatpush2.msra.mxu0 0.0
        %2690 = vmatprep.subr.mxu0 0.0
        %2691 = vmatpush2.msra.mxu0 0.0
        %2692 = vmatprep.subr.mxu0 0.0
        %2693 = vmatpush2.msra.mxu0 0.0
        %2694 = vmatprep.subr.mxu0 0.0
        %2695 = vmatpush2.msra.mxu0 0.0
        %2696 = vmatprep.subr.mxu0 0.0
        %2697 = vmatpush2.msra.mxu0 0.0
        %2698 = vmatprep.mubr.f32.mxu0 0.0
        %v2699 = vand.u32 %v2393, 4294901760
        %v2700 = vsub.f32 %v2393, %v2699
        %v2701 = vand.u32 %v2700, 4294901760
        %2702 = vmatmul.mubr.f32.gmra.mxu0 %v2701
        %v2703 = vpop.f32.mrf.mxu0
        %v2704 = vadd.f32 %v2628, %v2703
        %v2705 = vpop.f32.mrf.mxu0
        %v2706 = vadd.f32 %v2630, %v2705
        %2707 = vdwg.mxu0
        %2708 = vmatprep.subr.mxu0 0.0
        %2709 = vmatpush1.msra.mxu0 0.0
        %2710 = vmatprep.subr.mxu0 0.0
        %2711 = vmatpush1.msra.mxu0 0.0
        %2712 = vmatprep.subr.mxu0 0.0
        %2713 = vmatpush1.msra.mxu0 0.0
        %2714 = vmatprep.subr.mxu0 0.0
        %2715 = vmatpush1.msra.mxu0 0.0
        %2716 = vmatprep.subr.mxu0 0.0
        %2717 = vmatpush1.msra.mxu0 0.0
        %2718 = vmatprep.subr.mxu0 0.0
        %2719 = vmatpush1.msra.mxu0 0.0
        %2720 = vmatprep.subr.mxu0 0.0
        %2721 = vmatpush1.msra.mxu0 0.0
        %2722 = vmatprep.subr.mxu0 0.0
        %2723 = vmatpush1.msra.mxu0 0.0
        %2724 = vmatprep.subr.mxu0 0.0
        %2725 = vmatpush1.msra.mxu0 0.0
        %2726 = vmatprep.subr.mxu0 0.0
        %2727 = vmatpush1.msra.mxu0 0.0
        %2728 = vmatprep.subr.mxu0 0.0
        %2729 = vmatpush1.msra.mxu0 0.0
        %2730 = vmatprep.subr.mxu0 0.0
        %2731 = vmatpush1.msra.mxu0 0.0
        %2732 = vmatprep.subr.mxu0 0.0
        %2733 = vmatpush1.msra.mxu0 0.0
        %2734 = vmatprep.subr.mxu0 0.0
        %2735 = vmatpush1.msra.mxu0 0.0
        %2736 = vmatprep.subr.mxu0 0.0
        %2737 = vmatpush1.msra.mxu0 0.0
        %v2738 = vand.u32 %v2389, 4294901760
        %v2739 = vsub.f32 %v2389, %v2738
        %v2740 = vand.u32 %v2739, 4294901760
        %2741 = vmatprep.subr.mxu0 %v2740
        %v2742 = vand.u32 %v2388, 4294901760
        %v2743 = vsub.f32 %v2388, %v2742
        %v2744 = vand.u32 %v2743, 4294901760
        %2745 = vmatpush1.msra.mxu0 %v2744
        %2746 = vmatprep.subr.mxu0 0.0
        %2747 = vmatpush2.msra.mxu0 0.0
        %2748 = vmatprep.subr.mxu0 0.0
        %2749 = vmatpush2.msra.mxu0 0.0
        %2750 = vmatprep.subr.mxu0 0.0
        %2751 = vmatpush2.msra.mxu0 0.0
        %2752 = vmatprep.subr.mxu0 0.0
        %2753 = vmatpush2.msra.mxu0 0.0
        %2754 = vmatprep.subr.mxu0 0.0
        %2755 = vmatpush2.msra.mxu0 0.0
        %2756 = vmatprep.subr.mxu0 0.0
        %2757 = vmatpush2.msra.mxu0 0.0
        %2758 = vmatprep.subr.mxu0 0.0
        %2759 = vmatpush2.msra.mxu0 0.0
        %2760 = vmatprep.subr.mxu0 0.0
        %2761 = vmatpush2.msra.mxu0 0.0
        %2762 = vmatprep.subr.mxu0 0.0
        %2763 = vmatpush2.msra.mxu0 0.0
        %2764 = vmatprep.subr.mxu0 0.0
        %2765 = vmatpush2.msra.mxu0 0.0
        %2766 = vmatprep.subr.mxu0 0.0
        %2767 = vmatpush2.msra.mxu0 0.0
        %2768 = vmatprep.subr.mxu0 0.0
        %2769 = vmatpush2.msra.mxu0 0.0
        %2770 = vmatprep.subr.mxu0 0.0
        %2771 = vmatpush2.msra.mxu0 0.0
        %2772 = vmatprep.subr.mxu0 0.0
        %2773 = vmatpush2.msra.mxu0 0.0
        %2774 = vmatprep.subr.mxu0 0.0
        %2775 = vmatpush2.msra.mxu0 0.0
        %2776 = vmatprep.subr.mxu0 0.0
        %2777 = vmatpush2.msra.mxu0 0.0
        %2778 = vmatprep.mubr.f32.mxu0 0.0
        %v2779 = vand.u32 %v2393, 4294901760
        %2780 = vmatmul.mubr.f32.gmra.mxu0 %v2779
        %v2781 = vpop.f32.mrf.mxu0
        %v2782 = vadd.f32 %v2704, %v2781
        %v2783 = vpop.f32.mrf.mxu0
        %v2784 = vadd.f32 %v2706, %v2783
        %2785 = vdwg.mxu0
        %2786 = vmatprep.subr.mxu0 0.0
        %2787 = vmatpush1.msra.mxu0 0.0
        %2788 = vmatprep.subr.mxu0 0.0
        %2789 = vmatpush1.msra.mxu0 0.0
        %2790 = vmatprep.subr.mxu0 0.0
        %2791 = vmatpush1.msra.mxu0 0.0
        %2792 = vmatprep.subr.mxu0 0.0
        %2793 = vmatpush1.msra.mxu0 0.0
        %2794 = vmatprep.subr.mxu0 0.0
        %2795 = vmatpush1.msra.mxu0 0.0
        %2796 = vmatprep.subr.mxu0 0.0
        %2797 = vmatpush1.msra.mxu0 0.0
        %2798 = vmatprep.subr.mxu0 0.0
        %2799 = vmatpush1.msra.mxu0 0.0
        %2800 = vmatprep.subr.mxu0 0.0
        %2801 = vmatpush1.msra.mxu0 0.0
        %2802 = vmatprep.subr.mxu0 0.0
        %2803 = vmatpush1.msra.mxu0 0.0
        %2804 = vmatprep.subr.mxu0 0.0
        %2805 = vmatpush1.msra.mxu0 0.0
        %2806 = vmatprep.subr.mxu0 0.0
        %2807 = vmatpush1.msra.mxu0 0.0
        %2808 = vmatprep.subr.mxu0 0.0
        %2809 = vmatpush1.msra.mxu0 0.0
        %2810 = vmatprep.subr.mxu0 0.0
        %2811 = vmatpush1.msra.mxu0 0.0
        %2812 = vmatprep.subr.mxu0 0.0
        %2813 = vmatpush1.msra.mxu0 0.0
        %2814 = vmatprep.subr.mxu0 0.0
        %2815 = vmatpush1.msra.mxu0 0.0
        %v2816 = vand.u32 %v2389, 4294901760
        %2817 = vmatprep.subr.mxu0 %v2816
        %v2818 = vand.u32 %v2388, 4294901760
        %2819 = vmatpush1.msra.mxu0 %v2818
        %2820 = vmatprep.subr.mxu0 0.0
        %2821 = vmatpush2.msra.mxu0 0.0
        %2822 = vmatprep.subr.mxu0 0.0
        %2823 = vmatpush2.msra.mxu0 0.0
        %2824 = vmatprep.subr.mxu0 0.0
        %2825 = vmatpush2.msra.mxu0 0.0
        %2826 = vmatprep.subr.mxu0 0.0
        %2827 = vmatpush2.msra.mxu0 0.0
        %2828 = vmatprep.subr.mxu0 0.0
        %2829 = vmatpush2.msra.mxu0 0.0
        %2830 = vmatprep.subr.mxu0 0.0
        %2831 = vmatpush2.msra.mxu0 0.0
        %2832 = vmatprep.subr.mxu0 0.0
        %2833 = vmatpush2.msra.mxu0 0.0
        %2834 = vmatprep.subr.mxu0 0.0
        %2835 = vmatpush2.msra.mxu0 0.0
        %2836 = vmatprep.subr.mxu0 0.0
        %2837 = vmatpush2.msra.mxu0 0.0
        %2838 = vmatprep.subr.mxu0 0.0
        %2839 = vmatpush2.msra.mxu0 0.0
        %2840 = vmatprep.subr.mxu0 0.0
        %2841 = vmatpush2.msra.mxu0 0.0
        %2842 = vmatprep.subr.mxu0 0.0
        %2843 = vmatpush2.msra.mxu0 0.0
        %2844 = vmatprep.subr.mxu0 0.0
        %2845 = vmatpush2.msra.mxu0 0.0
        %2846 = vmatprep.subr.mxu0 0.0
        %2847 = vmatpush2.msra.mxu0 0.0
        %2848 = vmatprep.subr.mxu0 0.0
        %2849 = vmatpush2.msra.mxu0 0.0
        %2850 = vmatprep.subr.mxu0 0.0
        %2851 = vmatpush2.msra.mxu0 0.0
        %2852 = vmatprep.mubr.f32.mxu0 0.0
        %v2853 = vand.u32 %v2393, 4294901760
        %2854 = vmatmul.mubr.f32.gmra.mxu0 %v2853
        %v2855 = vpop.f32.mrf.mxu0
        %v2856 = vadd.f32 %v2782, %v2855
        %v2857 = vpop.f32.mrf.mxu0
        %v2858 = vadd.f32 %v2784, %v2857
        %2859 = vdwg.mxu0
        %v2860 = vadd.f32 %v2352, %v2856
        %v2861 = vadd.f32 %v2353, %v2858
        %s2862 = scalar_lea.vmem %s7, 10
        %v2863 = vld [vmem:[%s2862] sm:$0x3]
        %v2865 = vlaneseq
        %v2866 = vshrl.u32 %v2865, 7
        %v2867 = vsub.s32 0, %v2866
        %v2868 = vrot.slane %v2863, %v2867
        %v2869 = vlaneseq
        %v2870 = vshrl.u32 %v2869, 7
        %v2871 = vsub.s32 1, %v2870
        %v2872 = vrot.slane %v2863, %v2871
        %2873 = vrot.lane.b32.xlu0 %v2868, 18
        %v2874 = vpop.permute.xlu0 %2873
        %2875 = vrot.lane.b32.xlu0 %v2872, 18
        %v2876 = vpop.permute.xlu0 %2875
        %vm2877 = vcmask 146432
        %v2878 = vsel %vm2877, %v2874, %v2876
        %v2882 = vmul.f32 %v342, %v2874
        %v2883 = vmul.f32 %v343, %v2878
        %v2884 = vmul.f32 %v359, %v2876
        %s2885 = scalar_lea.vmem %s3, 40
        %v2886 = vld [vmem:[%s2885] sm:$0xff]
        %2890 = vrot.lane.b32.xlu0 %v2882, 110
        %v2891 = vpop.permute.xlu0 %2890
        %2892 = vrot.lane.b32.xlu0 %v2883, 110
        %v2893 = vpop.permute.xlu0 %2892
        %2894 = vrot.lane.b32.xlu0 %v2884, 110
        %v2895 = vpop.permute.xlu0 %2894
        %vm2896 = vcmask 900096
        %v2897 = vsel %vm2896, %v2891, %v2893
        %v2898 = vsel %vm2896, %v2893, %v2895
        %v2902 = vsel %vm399, %v2886, 0
        %2904 = vmatprep.subr.mxu0 0.0
        %2905 = vmatpush1.msra.mxu0 0.0
        %2906 = vmatprep.subr.mxu0 0.0
        %2907 = vmatpush1.msra.mxu0 0.0
        %2908 = vmatprep.subr.mxu0 0.0
        %2909 = vmatpush1.msra.mxu0 0.0
        %2910 = vmatprep.subr.mxu0 0.0
        %2911 = vmatpush1.msra.mxu0 0.0
        %2912 = vmatprep.subr.mxu0 0.0
        %2913 = vmatpush1.msra.mxu0 0.0
        %2914 = vmatprep.subr.mxu0 0.0
        %2915 = vmatpush1.msra.mxu0 0.0
        %2916 = vmatprep.subr.mxu0 0.0
        %2917 = vmatpush1.msra.mxu0 0.0
        %2918 = vmatprep.subr.mxu0 0.0
        %2919 = vmatpush1.msra.mxu0 0.0
        %2920 = vmatprep.subr.mxu0 0.0
        %2921 = vmatpush1.msra.mxu0 0.0
        %2922 = vmatprep.subr.mxu0 0.0
        %2923 = vmatpush1.msra.mxu0 0.0
        %2924 = vmatprep.subr.mxu0 0.0
        %2925 = vmatpush1.msra.mxu0 0.0
        %2926 = vmatprep.subr.mxu0 0.0
        %2927 = vmatpush1.msra.mxu0 0.0
        %2928 = vmatprep.subr.mxu0 0.0
        %2929 = vmatpush1.msra.mxu0 0.0
        %2930 = vmatprep.subr.mxu0 0.0
        %2931 = vmatpush1.msra.mxu0 0.0
        %2932 = vmatprep.subr.mxu0 0.0
        %2933 = vmatpush1.msra.mxu0 0.0
        %v2934 = vand.u32 %v2898, 4294901760
        %2935 = vmatprep.subr.mxu0 %v2934
        %v2936 = vand.u32 %v2897, 4294901760
        %2937 = vmatpush1.msra.mxu0 %v2936
        %2938 = vmatprep.subr.mxu0 0.0
        %2939 = vmatpush2.msra.mxu0 0.0
        %2940 = vmatprep.subr.mxu0 0.0
        %2941 = vmatpush2.msra.mxu0 0.0
        %2942 = vmatprep.subr.mxu0 0.0
        %2943 = vmatpush2.msra.mxu0 0.0
        %2944 = vmatprep.subr.mxu0 0.0
        %2945 = vmatpush2.msra.mxu0 0.0
        %2946 = vmatprep.subr.mxu0 0.0
        %2947 = vmatpush2.msra.mxu0 0.0
        %2948 = vmatprep.subr.mxu0 0.0
        %2949 = vmatpush2.msra.mxu0 0.0
        %2950 = vmatprep.subr.mxu0 0.0
        %2951 = vmatpush2.msra.mxu0 0.0
        %2952 = vmatprep.subr.mxu0 0.0
        %2953 = vmatpush2.msra.mxu0 0.0
        %2954 = vmatprep.subr.mxu0 0.0
        %2955 = vmatpush2.msra.mxu0 0.0
        %2956 = vmatprep.subr.mxu0 0.0
        %2957 = vmatpush2.msra.mxu0 0.0
        %2958 = vmatprep.subr.mxu0 0.0
        %2959 = vmatpush2.msra.mxu0 0.0
        %2960 = vmatprep.subr.mxu0 0.0
        %2961 = vmatpush2.msra.mxu0 0.0
        %2962 = vmatprep.subr.mxu0 0.0
        %2963 = vmatpush2.msra.mxu0 0.0
        %2964 = vmatprep.subr.mxu0 0.0
        %2965 = vmatpush2.msra.mxu0 0.0
        %2966 = vmatprep.subr.mxu0 0.0
        %2967 = vmatpush2.msra.mxu0 0.0
        %2968 = vmatprep.subr.mxu0 0.0
        %2969 = vmatpush2.msra.mxu0 0.0
        %2970 = vmatprep.mubr.f32.mxu0 0.0
        %v2971 = vand.u32 %v2902, 4294901760
        %v2972 = vsub.f32 %v2902, %v2971
        %v2973 = vand.u32 %v2972, 4294901760
        %v2974 = vsub.f32 %v2972, %v2973
        %v2975 = vand.u32 %v2974, 4294901760
        %2976 = vmatmul.mubr.f32.gmra.mxu0 %v2975
        %v2977 = vpop.f32.mrf.mxu0
        %v2978 = vadd.f32 0.0, %v2977
        %v2979 = vpop.f32.mrf.mxu0
        %v2980 = vadd.f32 0.0, %v2979
        %2981 = vdwg.mxu0
        %2982 = vmatprep.subr.mxu0 0.0
        %2983 = vmatpush1.msra.mxu0 0.0
        %2984 = vmatprep.subr.mxu0 0.0
        %2985 = vmatpush1.msra.mxu0 0.0
        %2986 = vmatprep.subr.mxu0 0.0
        %2987 = vmatpush1.msra.mxu0 0.0
        %2988 = vmatprep.subr.mxu0 0.0
        %2989 = vmatpush1.msra.mxu0 0.0
        %2990 = vmatprep.subr.mxu0 0.0
        %2991 = vmatpush1.msra.mxu0 0.0
        %2992 = vmatprep.subr.mxu0 0.0
        %2993 = vmatpush1.msra.mxu0 0.0
        %2994 = vmatprep.subr.mxu0 0.0
        %2995 = vmatpush1.msra.mxu0 0.0
        %2996 = vmatprep.subr.mxu0 0.0
        %2997 = vmatpush1.msra.mxu0 0.0
        %2998 = vmatprep.subr.mxu0 0.0
        %2999 = vmatpush1.msra.mxu0 0.0
        %3000 = vmatprep.subr.mxu0 0.0
        %3001 = vmatpush1.msra.mxu0 0.0
        %3002 = vmatprep.subr.mxu0 0.0
        %3003 = vmatpush1.msra.mxu0 0.0
        %3004 = vmatprep.subr.mxu0 0.0
        %3005 = vmatpush1.msra.mxu0 0.0
        %3006 = vmatprep.subr.mxu0 0.0
        %3007 = vmatpush1.msra.mxu0 0.0
        %3008 = vmatprep.subr.mxu0 0.0
        %3009 = vmatpush1.msra.mxu0 0.0
        %3010 = vmatprep.subr.mxu0 0.0
        %3011 = vmatpush1.msra.mxu0 0.0
        %v3012 = vand.u32 %v2898, 4294901760
        %v3013 = vsub.f32 %v2898, %v3012
        %v3014 = vand.u32 %v3013, 4294901760
        %v3015 = vsub.f32 %v3013, %v3014
        %v3016 = vand.u32 %v3015, 4294901760
        %3017 = vmatprep.subr.mxu0 %v3016
        %v3018 = vand.u32 %v2897, 4294901760
        %v3019 = vsub.f32 %v2897, %v3018
        %v3020 = vand.u32 %v3019, 4294901760
        %v3021 = vsub.f32 %v3019, %v3020
        %v3022 = vand.u32 %v3021, 4294901760
        %3023 = vmatpush1.msra.mxu0 %v3022
        %3024 = vmatprep.subr.mxu0 0.0
        %3025 = vmatpush2.msra.mxu0 0.0
        %3026 = vmatprep.subr.mxu0 0.0
        %3027 = vmatpush2.msra.mxu0 0.0
        %3028 = vmatprep.subr.mxu0 0.0
        %3029 = vmatpush2.msra.mxu0 0.0
        %3030 = vmatprep.subr.mxu0 0.0
        %3031 = vmatpush2.msra.mxu0 0.0
        %3032 = vmatprep.subr.mxu0 0.0
        %3033 = vmatpush2.msra.mxu0 0.0
        %3034 = vmatprep.subr.mxu0 0.0
        %3035 = vmatpush2.msra.mxu0 0.0
        %3036 = vmatprep.subr.mxu0 0.0
        %3037 = vmatpush2.msra.mxu0 0.0
        %3038 = vmatprep.subr.mxu0 0.0
        %3039 = vmatpush2.msra.mxu0 0.0
        %3040 = vmatprep.subr.mxu0 0.0
        %3041 = vmatpush2.msra.mxu0 0.0
        %3042 = vmatprep.subr.mxu0 0.0
        %3043 = vmatpush2.msra.mxu0 0.0
        %3044 = vmatprep.subr.mxu0 0.0
        %3045 = vmatpush2.msra.mxu0 0.0
        %3046 = vmatprep.subr.mxu0 0.0
        %3047 = vmatpush2.msra.mxu0 0.0
        %3048 = vmatprep.subr.mxu0 0.0
        %3049 = vmatpush2.msra.mxu0 0.0
        %3050 = vmatprep.subr.mxu0 0.0
        %3051 = vmatpush2.msra.mxu0 0.0
        %3052 = vmatprep.subr.mxu0 0.0
        %3053 = vmatpush2.msra.mxu0 0.0
        %3054 = vmatprep.subr.mxu0 0.0
        %3055 = vmatpush2.msra.mxu0 0.0
        %3056 = vmatprep.mubr.f32.mxu0 0.0
        %v3057 = vand.u32 %v2902, 4294901760
        %3058 = vmatmul.mubr.f32.gmra.mxu0 %v3057
        %v3059 = vpop.f32.mrf.mxu0
        %v3060 = vadd.f32 %v2978, %v3059
        %v3061 = vpop.f32.mrf.mxu0
        %v3062 = vadd.f32 %v2980, %v3061
        %3063 = vdwg.mxu0
        %3064 = vmatprep.subr.mxu0 0.0
        %3065 = vmatpush1.msra.mxu0 0.0
        %3066 = vmatprep.subr.mxu0 0.0
        %3067 = vmatpush1.msra.mxu0 0.0
        %3068 = vmatprep.subr.mxu0 0.0
        %3069 = vmatpush1.msra.mxu0 0.0
        %3070 = vmatprep.subr.mxu0 0.0
        %3071 = vmatpush1.msra.mxu0 0.0
        %3072 = vmatprep.subr.mxu0 0.0
        %3073 = vmatpush1.msra.mxu0 0.0
        %3074 = vmatprep.subr.mxu0 0.0
        %3075 = vmatpush1.msra.mxu0 0.0
        %3076 = vmatprep.subr.mxu0 0.0
        %3077 = vmatpush1.msra.mxu0 0.0
        %3078 = vmatprep.subr.mxu0 0.0
        %3079 = vmatpush1.msra.mxu0 0.0
        %3080 = vmatprep.subr.mxu0 0.0
        %3081 = vmatpush1.msra.mxu0 0.0
        %3082 = vmatprep.subr.mxu0 0.0
        %3083 = vmatpush1.msra.mxu0 0.0
        %3084 = vmatprep.subr.mxu0 0.0
        %3085 = vmatpush1.msra.mxu0 0.0
        %3086 = vmatprep.subr.mxu0 0.0
        %3087 = vmatpush1.msra.mxu0 0.0
        %3088 = vmatprep.subr.mxu0 0.0
        %3089 = vmatpush1.msra.mxu0 0.0
        %3090 = vmatprep.subr.mxu0 0.0
        %3091 = vmatpush1.msra.mxu0 0.0
        %3092 = vmatprep.subr.mxu0 0.0
        %3093 = vmatpush1.msra.mxu0 0.0
        %v3094 = vand.u32 %v2898, 4294901760
        %v3095 = vsub.f32 %v2898, %v3094
        %3096 = vmatprep.subr.mxu0 %v3095
        %v3097 = vand.u32 %v2897, 4294901760
        %v3098 = vsub.f32 %v2897, %v3097
        %3099 = vmatpush1.msra.mxu0 %v3098
        %3100 = vmatprep.subr.mxu0 0.0
        %3101 = vmatpush2.msra.mxu0 0.0
        %3102 = vmatprep.subr.mxu0 0.0
        %3103 = vmatpush2.msra.mxu0 0.0
        %3104 = vmatprep.subr.mxu0 0.0
        %3105 = vmatpush2.msra.mxu0 0.0
        %3106 = vmatprep.subr.mxu0 0.0
        %3107 = vmatpush2.msra.mxu0 0.0
        %3108 = vmatprep.subr.mxu0 0.0
        %3109 = vmatpush2.msra.mxu0 0.0
        %3110 = vmatprep.subr.mxu0 0.0
        %3111 = vmatpush2.msra.mxu0 0.0
        %3112 = vmatprep.subr.mxu0 0.0
        %3113 = vmatpush2.msra.mxu0 0.0
        %3114 = vmatprep.subr.mxu0 0.0
        %3115 = vmatpush2.msra.mxu0 0.0
        %3116 = vmatprep.subr.mxu0 0.0
        %3117 = vmatpush2.msra.mxu0 0.0
        %3118 = vmatprep.subr.mxu0 0.0
        %3119 = vmatpush2.msra.mxu0 0.0
        %3120 = vmatprep.subr.mxu0 0.0
        %3121 = vmatpush2.msra.mxu0 0.0
        %3122 = vmatprep.subr.mxu0 0.0
        %3123 = vmatpush2.msra.mxu0 0.0
        %3124 = vmatprep.subr.mxu0 0.0
        %3125 = vmatpush2.msra.mxu0 0.0
        %3126 = vmatprep.subr.mxu0 0.0
        %3127 = vmatpush2.msra.mxu0 0.0
        %3128 = vmatprep.subr.mxu0 0.0
        %3129 = vmatpush2.msra.mxu0 0.0
        %3130 = vmatprep.subr.mxu0 0.0
        %3131 = vmatpush2.msra.mxu0 0.0
        %3132 = vmatprep.mubr.f32.mxu0 0.0
        %v3133 = vand.u32 %v2902, 4294901760
        %v3134 = vsub.f32 %v2902, %v3133
        %3135 = vmatmul.mubr.f32.gmra.mxu0 %v3134
        %v3136 = vpop.f32.mrf.mxu0
        %v3137 = vadd.f32 %v3060, %v3136
        %v3138 = vpop.f32.mrf.mxu0
        %v3139 = vadd.f32 %v3062, %v3138
        %3140 = vdwg.mxu0
        %3141 = vmatprep.subr.mxu0 0.0
        %3142 = vmatpush1.msra.mxu0 0.0
        %3143 = vmatprep.subr.mxu0 0.0
        %3144 = vmatpush1.msra.mxu0 0.0
        %3145 = vmatprep.subr.mxu0 0.0
        %3146 = vmatpush1.msra.mxu0 0.0
        %3147 = vmatprep.subr.mxu0 0.0
        %3148 = vmatpush1.msra.mxu0 0.0
        %3149 = vmatprep.subr.mxu0 0.0
        %3150 = vmatpush1.msra.mxu0 0.0
        %3151 = vmatprep.subr.mxu0 0.0
        %3152 = vmatpush1.msra.mxu0 0.0
        %3153 = vmatprep.subr.mxu0 0.0
        %3154 = vmatpush1.msra.mxu0 0.0
        %3155 = vmatprep.subr.mxu0 0.0
        %3156 = vmatpush1.msra.mxu0 0.0
        %3157 = vmatprep.subr.mxu0 0.0
        %3158 = vmatpush1.msra.mxu0 0.0
        %3159 = vmatprep.subr.mxu0 0.0
        %3160 = vmatpush1.msra.mxu0 0.0
        %3161 = vmatprep.subr.mxu0 0.0
        %3162 = vmatpush1.msra.mxu0 0.0
        %3163 = vmatprep.subr.mxu0 0.0
        %3164 = vmatpush1.msra.mxu0 0.0
        %3165 = vmatprep.subr.mxu0 0.0
        %3166 = vmatpush1.msra.mxu0 0.0
        %3167 = vmatprep.subr.mxu0 0.0
        %3168 = vmatpush1.msra.mxu0 0.0
        %3169 = vmatprep.subr.mxu0 0.0
        %3170 = vmatpush1.msra.mxu0 0.0
        %v3171 = vand.u32 %v2898, 4294901760
        %3172 = vmatprep.subr.mxu0 %v3171
        %v3173 = vand.u32 %v2897, 4294901760
        %3174 = vmatpush1.msra.mxu0 %v3173
        %3175 = vmatprep.subr.mxu0 0.0
        %3176 = vmatpush2.msra.mxu0 0.0
        %3177 = vmatprep.subr.mxu0 0.0
        %3178 = vmatpush2.msra.mxu0 0.0
        %3179 = vmatprep.subr.mxu0 0.0
        %3180 = vmatpush2.msra.mxu0 0.0
        %3181 = vmatprep.subr.mxu0 0.0
        %3182 = vmatpush2.msra.mxu0 0.0
        %3183 = vmatprep.subr.mxu0 0.0
        %3184 = vmatpush2.msra.mxu0 0.0
        %3185 = vmatprep.subr.mxu0 0.0
        %3186 = vmatpush2.msra.mxu0 0.0
        %3187 = vmatprep.subr.mxu0 0.0
        %3188 = vmatpush2.msra.mxu0 0.0
        %3189 = vmatprep.subr.mxu0 0.0
        %3190 = vmatpush2.msra.mxu0 0.0
        %3191 = vmatprep.subr.mxu0 0.0
        %3192 = vmatpush2.msra.mxu0 0.0
        %3193 = vmatprep.subr.mxu0 0.0
        %3194 = vmatpush2.msra.mxu0 0.0
        %3195 = vmatprep.subr.mxu0 0.0
        %3196 = vmatpush2.msra.mxu0 0.0
        %3197 = vmatprep.subr.mxu0 0.0
        %3198 = vmatpush2.msra.mxu0 0.0
        %3199 = vmatprep.subr.mxu0 0.0
        %3200 = vmatpush2.msra.mxu0 0.0
        %3201 = vmatprep.subr.mxu0 0.0
        %3202 = vmatpush2.msra.mxu0 0.0
        %3203 = vmatprep.subr.mxu0 0.0
        %3204 = vmatpush2.msra.mxu0 0.0
        %3205 = vmatprep.subr.mxu0 0.0
        %3206 = vmatpush2.msra.mxu0 0.0
        %3207 = vmatprep.mubr.f32.mxu0 0.0
        %v3208 = vand.u32 %v2902, 4294901760
        %v3209 = vsub.f32 %v2902, %v3208
        %v3210 = vand.u32 %v3209, 4294901760
        %3211 = vmatmul.mubr.f32.gmra.mxu0 %v3210
        %v3212 = vpop.f32.mrf.mxu0
        %v3213 = vadd.f32 %v3137, %v3212
        %v3214 = vpop.f32.mrf.mxu0
        %v3215 = vadd.f32 %v3139, %v3214
        %3216 = vdwg.mxu0
        %3217 = vmatprep.subr.mxu0 0.0
        %3218 = vmatpush1.msra.mxu0 0.0
        %3219 = vmatprep.subr.mxu0 0.0
        %3220 = vmatpush1.msra.mxu0 0.0
        %3221 = vmatprep.subr.mxu0 0.0
        %3222 = vmatpush1.msra.mxu0 0.0
        %3223 = vmatprep.subr.mxu0 0.0
        %3224 = vmatpush1.msra.mxu0 0.0
        %3225 = vmatprep.subr.mxu0 0.0
        %3226 = vmatpush1.msra.mxu0 0.0
        %3227 = vmatprep.subr.mxu0 0.0
        %3228 = vmatpush1.msra.mxu0 0.0
        %3229 = vmatprep.subr.mxu0 0.0
        %3230 = vmatpush1.msra.mxu0 0.0
        %3231 = vmatprep.subr.mxu0 0.0
        %3232 = vmatpush1.msra.mxu0 0.0
        %3233 = vmatprep.subr.mxu0 0.0
        %3234 = vmatpush1.msra.mxu0 0.0
        %3235 = vmatprep.subr.mxu0 0.0
        %3236 = vmatpush1.msra.mxu0 0.0
        %3237 = vmatprep.subr.mxu0 0.0
        %3238 = vmatpush1.msra.mxu0 0.0
        %3239 = vmatprep.subr.mxu0 0.0
        %3240 = vmatpush1.msra.mxu0 0.0
        %3241 = vmatprep.subr.mxu0 0.0
        %3242 = vmatpush1.msra.mxu0 0.0
        %3243 = vmatprep.subr.mxu0 0.0
        %3244 = vmatpush1.msra.mxu0 0.0
        %3245 = vmatprep.subr.mxu0 0.0
        %3246 = vmatpush1.msra.mxu0 0.0
        %v3247 = vand.u32 %v2898, 4294901760
        %v3248 = vsub.f32 %v2898, %v3247
        %v3249 = vand.u32 %v3248, 4294901760
        %3250 = vmatprep.subr.mxu0 %v3249
        %v3251 = vand.u32 %v2897, 4294901760
        %v3252 = vsub.f32 %v2897, %v3251
        %v3253 = vand.u32 %v3252, 4294901760
        %3254 = vmatpush1.msra.mxu0 %v3253
        %3255 = vmatprep.subr.mxu0 0.0
        %3256 = vmatpush2.msra.mxu0 0.0
        %3257 = vmatprep.subr.mxu0 0.0
        %3258 = vmatpush2.msra.mxu0 0.0
        %3259 = vmatprep.subr.mxu0 0.0
        %3260 = vmatpush2.msra.mxu0 0.0
        %3261 = vmatprep.subr.mxu0 0.0
        %3262 = vmatpush2.msra.mxu0 0.0
        %3263 = vmatprep.subr.mxu0 0.0
        %3264 = vmatpush2.msra.mxu0 0.0
        %3265 = vmatprep.subr.mxu0 0.0
        %3266 = vmatpush2.msra.mxu0 0.0
        %3267 = vmatprep.subr.mxu0 0.0
        %3268 = vmatpush2.msra.mxu0 0.0
        %3269 = vmatprep.subr.mxu0 0.0
        %3270 = vmatpush2.msra.mxu0 0.0
        %3271 = vmatprep.subr.mxu0 0.0
        %3272 = vmatpush2.msra.mxu0 0.0
        %3273 = vmatprep.subr.mxu0 0.0
        %3274 = vmatpush2.msra.mxu0 0.0
        %3275 = vmatprep.subr.mxu0 0.0
        %3276 = vmatpush2.msra.mxu0 0.0
        %3277 = vmatprep.subr.mxu0 0.0
        %3278 = vmatpush2.msra.mxu0 0.0
        %3279 = vmatprep.subr.mxu0 0.0
        %3280 = vmatpush2.msra.mxu0 0.0
        %3281 = vmatprep.subr.mxu0 0.0
        %3282 = vmatpush2.msra.mxu0 0.0
        %3283 = vmatprep.subr.mxu0 0.0
        %3284 = vmatpush2.msra.mxu0 0.0
        %3285 = vmatprep.subr.mxu0 0.0
        %3286 = vmatpush2.msra.mxu0 0.0
        %3287 = vmatprep.mubr.f32.mxu0 0.0
        %v3288 = vand.u32 %v2902, 4294901760
        %3289 = vmatmul.mubr.f32.gmra.mxu0 %v3288
        %v3290 = vpop.f32.mrf.mxu0
        %v3291 = vadd.f32 %v3213, %v3290
        %v3292 = vpop.f32.mrf.mxu0
        %v3293 = vadd.f32 %v3215, %v3292
        %3294 = vdwg.mxu0
        %3295 = vmatprep.subr.mxu0 0.0
        %3296 = vmatpush1.msra.mxu0 0.0
        %3297 = vmatprep.subr.mxu0 0.0
        %3298 = vmatpush1.msra.mxu0 0.0
        %3299 = vmatprep.subr.mxu0 0.0
        %3300 = vmatpush1.msra.mxu0 0.0
        %3301 = vmatprep.subr.mxu0 0.0
        %3302 = vmatpush1.msra.mxu0 0.0
        %3303 = vmatprep.subr.mxu0 0.0
        %3304 = vmatpush1.msra.mxu0 0.0
        %3305 = vmatprep.subr.mxu0 0.0
        %3306 = vmatpush1.msra.mxu0 0.0
        %3307 = vmatprep.subr.mxu0 0.0
        %3308 = vmatpush1.msra.mxu0 0.0
        %3309 = vmatprep.subr.mxu0 0.0
        %3310 = vmatpush1.msra.mxu0 0.0
        %3311 = vmatprep.subr.mxu0 0.0
        %3312 = vmatpush1.msra.mxu0 0.0
        %3313 = vmatprep.subr.mxu0 0.0
        %3314 = vmatpush1.msra.mxu0 0.0
        %3315 = vmatprep.subr.mxu0 0.0
        %3316 = vmatpush1.msra.mxu0 0.0
        %3317 = vmatprep.subr.mxu0 0.0
        %3318 = vmatpush1.msra.mxu0 0.0
        %3319 = vmatprep.subr.mxu0 0.0
        %3320 = vmatpush1.msra.mxu0 0.0
        %3321 = vmatprep.subr.mxu0 0.0
        %3322 = vmatpush1.msra.mxu0 0.0
        %3323 = vmatprep.subr.mxu0 0.0
        %3324 = vmatpush1.msra.mxu0 0.0
        %v3325 = vand.u32 %v2898, 4294901760
        %3326 = vmatprep.subr.mxu0 %v3325
        %v3327 = vand.u32 %v2897, 4294901760
        %3328 = vmatpush1.msra.mxu0 %v3327
        %3329 = vmatprep.subr.mxu0 0.0
        %3330 = vmatpush2.msra.mxu0 0.0
        %3331 = vmatprep.subr.mxu0 0.0
        %3332 = vmatpush2.msra.mxu0 0.0
        %3333 = vmatprep.subr.mxu0 0.0
        %3334 = vmatpush2.msra.mxu0 0.0
        %3335 = vmatprep.subr.mxu0 0.0
        %3336 = vmatpush2.msra.mxu0 0.0
        %3337 = vmatprep.subr.mxu0 0.0
        %3338 = vmatpush2.msra.mxu0 0.0
        %3339 = vmatprep.subr.mxu0 0.0
        %3340 = vmatpush2.msra.mxu0 0.0
        %3341 = vmatprep.subr.mxu0 0.0
        %3342 = vmatpush2.msra.mxu0 0.0
        %3343 = vmatprep.subr.mxu0 0.0
        %3344 = vmatpush2.msra.mxu0 0.0
        %3345 = vmatprep.subr.mxu0 0.0
        %3346 = vmatpush2.msra.mxu0 0.0
        %3347 = vmatprep.subr.mxu0 0.0
        %3348 = vmatpush2.msra.mxu0 0.0
        %3349 = vmatprep.subr.mxu0 0.0
        %3350 = vmatpush2.msra.mxu0 0.0
        %3351 = vmatprep.subr.mxu0 0.0
        %3352 = vmatpush2.msra.mxu0 0.0
        %3353 = vmatprep.subr.mxu0 0.0
        %3354 = vmatpush2.msra.mxu0 0.0
        %3355 = vmatprep.subr.mxu0 0.0
        %3356 = vmatpush2.msra.mxu0 0.0
        %3357 = vmatprep.subr.mxu0 0.0
        %3358 = vmatpush2.msra.mxu0 0.0
        %3359 = vmatprep.subr.mxu0 0.0
        %3360 = vmatpush2.msra.mxu0 0.0
        %3361 = vmatprep.mubr.f32.mxu0 0.0
        %v3362 = vand.u32 %v2902, 4294901760
        %3363 = vmatmul.mubr.f32.gmra.mxu0 %v3362
        %v3364 = vpop.f32.mrf.mxu0
        %v3365 = vadd.f32 %v3291, %v3364
        %v3366 = vpop.f32.mrf.mxu0
        %v3367 = vadd.f32 %v3293, %v3366
        %3368 = vdwg.mxu0
        %v3369 = vadd.f32 %v2860, %v3365
        %v3370 = vadd.f32 %v2861, %v3367
        %s3371 = scalar_lea.vmem %s7, 12
        %v3372 = vld [vmem:[%s3371] sm:$0x3]
        %v3374 = vlaneseq
        %v3375 = vshrl.u32 %v3374, 7
        %v3376 = vsub.s32 0, %v3375
        %v3377 = vrot.slane %v3372, %v3376
        %v3378 = vlaneseq
        %v3379 = vshrl.u32 %v3378, 7
        %v3380 = vsub.s32 1, %v3379
        %v3381 = vrot.slane %v3372, %v3380
        %3382 = vrot.lane.b32.xlu0 %v3377, 32
        %v3383 = vpop.permute.xlu0 %3382
        %3384 = vrot.lane.b32.xlu0 %v3381, 32
        %v3385 = vpop.permute.xlu0 %3384
        %vm3386 = vcmask 261120
        %v3387 = vsel %vm3386, %v3383, %v3385
        %v3391 = vmul.f32 %v342, %v3383
        %v3392 = vmul.f32 %v343, %v3387
        %v3393 = vmul.f32 %v359, %v3385
        %s3394 = scalar_lea.vmem %s3, 48
        %v3395 = vld [vmem:[%s3394] sm:$0xff]
        %3399 = vrot.lane.b32.xlu0 %v3391, 96
        %v3400 = vpop.permute.xlu0 %3399
        %3401 = vrot.lane.b32.xlu0 %v3392, 96
        %v3402 = vpop.permute.xlu0 %3401
        %3403 = vrot.lane.b32.xlu0 %v3393, 96
        %v3404 = vpop.permute.xlu0 %3403
        %vm3405 = vcmask 785408
        %v3406 = vsel %vm3405, %v3400, %v3402
        %v3407 = vsel %vm3405, %v3402, %v3404
        %v3411 = vsel %vm399, %v3395, 0
        %3413 = vmatprep.subr.mxu0 0.0
        %3414 = vmatpush1.msra.mxu0 0.0
        %3415 = vmatprep.subr.mxu0 0.0
        %3416 = vmatpush1.msra.mxu0 0.0
        %3417 = vmatprep.subr.mxu0 0.0
        %3418 = vmatpush1.msra.mxu0 0.0
        %3419 = vmatprep.subr.mxu0 0.0
        %3420 = vmatpush1.msra.mxu0 0.0
        %3421 = vmatprep.subr.mxu0 0.0
        %3422 = vmatpush1.msra.mxu0 0.0
        %3423 = vmatprep.subr.mxu0 0.0
        %3424 = vmatpush1.msra.mxu0 0.0
        %3425 = vmatprep.subr.mxu0 0.0
        %3426 = vmatpush1.msra.mxu0 0.0
        %3427 = vmatprep.subr.mxu0 0.0
        %3428 = vmatpush1.msra.mxu0 0.0
        %3429 = vmatprep.subr.mxu0 0.0
        %3430 = vmatpush1.msra.mxu0 0.0
        %3431 = vmatprep.subr.mxu0 0.0
        %3432 = vmatpush1.msra.mxu0 0.0
        %3433 = vmatprep.subr.mxu0 0.0
        %3434 = vmatpush1.msra.mxu0 0.0
        %3435 = vmatprep.subr.mxu0 0.0
        %3436 = vmatpush1.msra.mxu0 0.0
        %3437 = vmatprep.subr.mxu0 0.0
        %3438 = vmatpush1.msra.mxu0 0.0
        %3439 = vmatprep.subr.mxu0 0.0
        %3440 = vmatpush1.msra.mxu0 0.0
        %3441 = vmatprep.subr.mxu0 0.0
        %3442 = vmatpush1.msra.mxu0 0.0
        %v3443 = vand.u32 %v3407, 4294901760
        %3444 = vmatprep.subr.mxu0 %v3443
        %v3445 = vand.u32 %v3406, 4294901760
        %3446 = vmatpush1.msra.mxu0 %v3445
        %3447 = vmatprep.subr.mxu0 0.0
        %3448 = vmatpush2.msra.mxu0 0.0
        %3449 = vmatprep.subr.mxu0 0.0
        %3450 = vmatpush2.msra.mxu0 0.0
        %3451 = vmatprep.subr.mxu0 0.0
        %3452 = vmatpush2.msra.mxu0 0.0
        %3453 = vmatprep.subr.mxu0 0.0
        %3454 = vmatpush2.msra.mxu0 0.0
        %3455 = vmatprep.subr.mxu0 0.0
        %3456 = vmatpush2.msra.mxu0 0.0
        %3457 = vmatprep.subr.mxu0 0.0
        %3458 = vmatpush2.msra.mxu0 0.0
        %3459 = vmatprep.subr.mxu0 0.0
        %3460 = vmatpush2.msra.mxu0 0.0
        %3461 = vmatprep.subr.mxu0 0.0
        %3462 = vmatpush2.msra.mxu0 0.0
        %3463 = vmatprep.subr.mxu0 0.0
        %3464 = vmatpush2.msra.mxu0 0.0
        %3465 = vmatprep.subr.mxu0 0.0
        %3466 = vmatpush2.msra.mxu0 0.0
        %3467 = vmatprep.subr.mxu0 0.0
        %3468 = vmatpush2.msra.mxu0 0.0
        %3469 = vmatprep.subr.mxu0 0.0
        %3470 = vmatpush2.msra.mxu0 0.0
        %3471 = vmatprep.subr.mxu0 0.0
        %3472 = vmatpush2.msra.mxu0 0.0
        %3473 = vmatprep.subr.mxu0 0.0
        %3474 = vmatpush2.msra.mxu0 0.0
        %3475 = vmatprep.subr.mxu0 0.0
        %3476 = vmatpush2.msra.mxu0 0.0
        %3477 = vmatprep.subr.mxu0 0.0
        %3478 = vmatpush2.msra.mxu0 0.0
        %3479 = vmatprep.mubr.f32.mxu0 0.0
        %v3480 = vand.u32 %v3411, 4294901760
        %v3481 = vsub.f32 %v3411, %v3480
        %v3482 = vand.u32 %v3481, 4294901760
        %v3483 = vsub.f32 %v3481, %v3482
        %v3484 = vand.u32 %v3483, 4294901760
        %3485 = vmatmul.mubr.f32.gmra.mxu0 %v3484
        %v3486 = vpop.f32.mrf.mxu0
        %v3487 = vadd.f32 0.0, %v3486
        %v3488 = vpop.f32.mrf.mxu0
        %v3489 = vadd.f32 0.0, %v3488
        %3490 = vdwg.mxu0
        %3491 = vmatprep.subr.mxu0 0.0
        %3492 = vmatpush1.msra.mxu0 0.0
        %3493 = vmatprep.subr.mxu0 0.0
        %3494 = vmatpush1.msra.mxu0 0.0
        %3495 = vmatprep.subr.mxu0 0.0
        %3496 = vmatpush1.msra.mxu0 0.0
        %3497 = vmatprep.subr.mxu0 0.0
        %3498 = vmatpush1.msra.mxu0 0.0
        %3499 = vmatprep.subr.mxu0 0.0
        %3500 = vmatpush1.msra.mxu0 0.0
        %3501 = vmatprep.subr.mxu0 0.0
        %3502 = vmatpush1.msra.mxu0 0.0
        %3503 = vmatprep.subr.mxu0 0.0
        %3504 = vmatpush1.msra.mxu0 0.0
        %3505 = vmatprep.subr.mxu0 0.0
        %3506 = vmatpush1.msra.mxu0 0.0
        %3507 = vmatprep.subr.mxu0 0.0
        %3508 = vmatpush1.msra.mxu0 0.0
        %3509 = vmatprep.subr.mxu0 0.0
        %3510 = vmatpush1.msra.mxu0 0.0
        %3511 = vmatprep.subr.mxu0 0.0
        %3512 = vmatpush1.msra.mxu0 0.0
        %3513 = vmatprep.subr.mxu0 0.0
        %3514 = vmatpush1.msra.mxu0 0.0
        %3515 = vmatprep.subr.mxu0 0.0
        %3516 = vmatpush1.msra.mxu0 0.0
        %3517 = vmatprep.subr.mxu0 0.0
        %3518 = vmatpush1.msra.mxu0 0.0
        %3519 = vmatprep.subr.mxu0 0.0
        %3520 = vmatpush1.msra.mxu0 0.0
        %v3521 = vand.u32 %v3407, 4294901760
        %v3522 = vsub.f32 %v3407, %v3521
        %v3523 = vand.u32 %v3522, 4294901760
        %v3524 = vsub.f32 %v3522, %v3523
        %v3525 = vand.u32 %v3524, 4294901760
        %3526 = vmatprep.subr.mxu0 %v3525
        %v3527 = vand.u32 %v3406, 4294901760
        %v3528 = vsub.f32 %v3406, %v3527
        %v3529 = vand.u32 %v3528, 4294901760
        %v3530 = vsub.f32 %v3528, %v3529
        %v3531 = vand.u32 %v3530, 4294901760
        %3532 = vmatpush1.msra.mxu0 %v3531
        %3533 = vmatprep.subr.mxu0 0.0
        %3534 = vmatpush2.msra.mxu0 0.0
        %3535 = vmatprep.subr.mxu0 0.0
        %3536 = vmatpush2.msra.mxu0 0.0
        %3537 = vmatprep.subr.mxu0 0.0
        %3538 = vmatpush2.msra.mxu0 0.0
        %3539 = vmatprep.subr.mxu0 0.0
        %3540 = vmatpush2.msra.mxu0 0.0
        %3541 = vmatprep.subr.mxu0 0.0
        %3542 = vmatpush2.msra.mxu0 0.0
        %3543 = vmatprep.subr.mxu0 0.0
        %3544 = vmatpush2.msra.mxu0 0.0
        %3545 = vmatprep.subr.mxu0 0.0
        %3546 = vmatpush2.msra.mxu0 0.0
        %3547 = vmatprep.subr.mxu0 0.0
        %3548 = vmatpush2.msra.mxu0 0.0
        %3549 = vmatprep.subr.mxu0 0.0
        %3550 = vmatpush2.msra.mxu0 0.0
        %3551 = vmatprep.subr.mxu0 0.0
        %3552 = vmatpush2.msra.mxu0 0.0
        %3553 = vmatprep.subr.mxu0 0.0
        %3554 = vmatpush2.msra.mxu0 0.0
        %3555 = vmatprep.subr.mxu0 0.0
        %3556 = vmatpush2.msra.mxu0 0.0
        %3557 = vmatprep.subr.mxu0 0.0
        %3558 = vmatpush2.msra.mxu0 0.0
        %3559 = vmatprep.subr.mxu0 0.0
        %3560 = vmatpush2.msra.mxu0 0.0
        %3561 = vmatprep.subr.mxu0 0.0
        %3562 = vmatpush2.msra.mxu0 0.0
        %3563 = vmatprep.subr.mxu0 0.0
        %3564 = vmatpush2.msra.mxu0 0.0
        %3565 = vmatprep.mubr.f32.mxu0 0.0
        %v3566 = vand.u32 %v3411, 4294901760
        %3567 = vmatmul.mubr.f32.gmra.mxu0 %v3566
        %v3568 = vpop.f32.mrf.mxu0
        %v3569 = vadd.f32 %v3487, %v3568
        %v3570 = vpop.f32.mrf.mxu0
        %v3571 = vadd.f32 %v3489, %v3570
        %3572 = vdwg.mxu0
        %3573 = vmatprep.subr.mxu0 0.0
        %3574 = vmatpush1.msra.mxu0 0.0
        %3575 = vmatprep.subr.mxu0 0.0
        %3576 = vmatpush1.msra.mxu0 0.0
        %3577 = vmatprep.subr.mxu0 0.0
        %3578 = vmatpush1.msra.mxu0 0.0
        %3579 = vmatprep.subr.mxu0 0.0
        %3580 = vmatpush1.msra.mxu0 0.0
        %3581 = vmatprep.subr.mxu0 0.0
        %3582 = vmatpush1.msra.mxu0 0.0
        %3583 = vmatprep.subr.mxu0 0.0
        %3584 = vmatpush1.msra.mxu0 0.0
        %3585 = vmatprep.subr.mxu0 0.0
        %3586 = vmatpush1.msra.mxu0 0.0
        %3587 = vmatprep.subr.mxu0 0.0
        %3588 = vmatpush1.msra.mxu0 0.0
        %3589 = vmatprep.subr.mxu0 0.0
        %3590 = vmatpush1.msra.mxu0 0.0
        %3591 = vmatprep.subr.mxu0 0.0
        %3592 = vmatpush1.msra.mxu0 0.0
        %3593 = vmatprep.subr.mxu0 0.0
        %3594 = vmatpush1.msra.mxu0 0.0
        %3595 = vmatprep.subr.mxu0 0.0
        %3596 = vmatpush1.msra.mxu0 0.0
        %3597 = vmatprep.subr.mxu0 0.0
        %3598 = vmatpush1.msra.mxu0 0.0
        %3599 = vmatprep.subr.mxu0 0.0
        %3600 = vmatpush1.msra.mxu0 0.0
        %3601 = vmatprep.subr.mxu0 0.0
        %3602 = vmatpush1.msra.mxu0 0.0
        %v3603 = vand.u32 %v3407, 4294901760
        %v3604 = vsub.f32 %v3407, %v3603
        %3605 = vmatprep.subr.mxu0 %v3604
        %v3606 = vand.u32 %v3406, 4294901760
        %v3607 = vsub.f32 %v3406, %v3606
        %3608 = vmatpush1.msra.mxu0 %v3607
        %3609 = vmatprep.subr.mxu0 0.0
        %3610 = vmatpush2.msra.mxu0 0.0
        %3611 = vmatprep.subr.mxu0 0.0
        %3612 = vmatpush2.msra.mxu0 0.0
        %3613 = vmatprep.subr.mxu0 0.0
        %3614 = vmatpush2.msra.mxu0 0.0
        %3615 = vmatprep.subr.mxu0 0.0
        %3616 = vmatpush2.msra.mxu0 0.0
        %3617 = vmatprep.subr.mxu0 0.0
        %3618 = vmatpush2.msra.mxu0 0.0
        %3619 = vmatprep.subr.mxu0 0.0
        %3620 = vmatpush2.msra.mxu0 0.0
        %3621 = vmatprep.subr.mxu0 0.0
        %3622 = vmatpush2.msra.mxu0 0.0
        %3623 = vmatprep.subr.mxu0 0.0
        %3624 = vmatpush2.msra.mxu0 0.0
        %3625 = vmatprep.subr.mxu0 0.0
        %3626 = vmatpush2.msra.mxu0 0.0
        %3627 = vmatprep.subr.mxu0 0.0
        %3628 = vmatpush2.msra.mxu0 0.0
        %3629 = vmatprep.subr.mxu0 0.0
        %3630 = vmatpush2.msra.mxu0 0.0
        %3631 = vmatprep.subr.mxu0 0.0
        %3632 = vmatpush2.msra.mxu0 0.0
        %3633 = vmatprep.subr.mxu0 0.0
        %3634 = vmatpush2.msra.mxu0 0.0
        %3635 = vmatprep.subr.mxu0 0.0
        %3636 = vmatpush2.msra.mxu0 0.0
        %3637 = vmatprep.subr.mxu0 0.0
        %3638 = vmatpush2.msra.mxu0 0.0
        %3639 = vmatprep.subr.mxu0 0.0
        %3640 = vmatpush2.msra.mxu0 0.0
        %3641 = vmatprep.mubr.f32.mxu0 0.0
        %v3642 = vand.u32 %v3411, 4294901760
        %v3643 = vsub.f32 %v3411, %v3642
        %3644 = vmatmul.mubr.f32.gmra.mxu0 %v3643
        %v3645 = vpop.f32.mrf.mxu0
        %v3646 = vadd.f32 %v3569, %v3645
        %v3647 = vpop.f32.mrf.mxu0
        %v3648 = vadd.f32 %v3571, %v3647
        %3649 = vdwg.mxu0
        %3650 = vmatprep.subr.mxu0 0.0
        %3651 = vmatpush1.msra.mxu0 0.0
        %3652 = vmatprep.subr.mxu0 0.0
        %3653 = vmatpush1.msra.mxu0 0.0
        %3654 = vmatprep.subr.mxu0 0.0
        %3655 = vmatpush1.msra.mxu0 0.0
        %3656 = vmatprep.subr.mxu0 0.0
        %3657 = vmatpush1.msra.mxu0 0.0
        %3658 = vmatprep.subr.mxu0 0.0
        %3659 = vmatpush1.msra.mxu0 0.0
        %3660 = vmatprep.subr.mxu0 0.0
        %3661 = vmatpush1.msra.mxu0 0.0
        %3662 = vmatprep.subr.mxu0 0.0
        %3663 = vmatpush1.msra.mxu0 0.0
        %3664 = vmatprep.subr.mxu0 0.0
        %3665 = vmatpush1.msra.mxu0 0.0
        %3666 = vmatprep.subr.mxu0 0.0
        %3667 = vmatpush1.msra.mxu0 0.0
        %3668 = vmatprep.subr.mxu0 0.0
        %3669 = vmatpush1.msra.mxu0 0.0
        %3670 = vmatprep.subr.mxu0 0.0
        %3671 = vmatpush1.msra.mxu0 0.0
        %3672 = vmatprep.subr.mxu0 0.0
        %3673 = vmatpush1.msra.mxu0 0.0
        %3674 = vmatprep.subr.mxu0 0.0
        %3675 = vmatpush1.msra.mxu0 0.0
        %3676 = vmatprep.subr.mxu0 0.0
        %3677 = vmatpush1.msra.mxu0 0.0
        %3678 = vmatprep.subr.mxu0 0.0
        %3679 = vmatpush1.msra.mxu0 0.0
        %v3680 = vand.u32 %v3407, 4294901760
        %3681 = vmatprep.subr.mxu0 %v3680
        %v3682 = vand.u32 %v3406, 4294901760
        %3683 = vmatpush1.msra.mxu0 %v3682
        %3684 = vmatprep.subr.mxu0 0.0
        %3685 = vmatpush2.msra.mxu0 0.0
        %3686 = vmatprep.subr.mxu0 0.0
        %3687 = vmatpush2.msra.mxu0 0.0
        %3688 = vmatprep.subr.mxu0 0.0
        %3689 = vmatpush2.msra.mxu0 0.0
        %3690 = vmatprep.subr.mxu0 0.0
        %3691 = vmatpush2.msra.mxu0 0.0
        %3692 = vmatprep.subr.mxu0 0.0
        %3693 = vmatpush2.msra.mxu0 0.0
        %3694 = vmatprep.subr.mxu0 0.0
        %3695 = vmatpush2.msra.mxu0 0.0
        %3696 = vmatprep.subr.mxu0 0.0
        %3697 = vmatpush2.msra.mxu0 0.0
        %3698 = vmatprep.subr.mxu0 0.0
        %3699 = vmatpush2.msra.mxu0 0.0
        %3700 = vmatprep.subr.mxu0 0.0
        %3701 = vmatpush2.msra.mxu0 0.0
        %3702 = vmatprep.subr.mxu0 0.0
        %3703 = vmatpush2.msra.mxu0 0.0
        %3704 = vmatprep.subr.mxu0 0.0
        %3705 = vmatpush2.msra.mxu0 0.0
        %3706 = vmatprep.subr.mxu0 0.0
        %3707 = vmatpush2.msra.mxu0 0.0
        %3708 = vmatprep.subr.mxu0 0.0
        %3709 = vmatpush2.msra.mxu0 0.0
        %3710 = vmatprep.subr.mxu0 0.0
        %3711 = vmatpush2.msra.mxu0 0.0
        %3712 = vmatprep.subr.mxu0 0.0
        %3713 = vmatpush2.msra.mxu0 0.0
        %3714 = vmatprep.subr.mxu0 0.0
        %3715 = vmatpush2.msra.mxu0 0.0
        %3716 = vmatprep.mubr.f32.mxu0 0.0
        %v3717 = vand.u32 %v3411, 4294901760
        %v3718 = vsub.f32 %v3411, %v3717
        %v3719 = vand.u32 %v3718, 4294901760
        %3720 = vmatmul.mubr.f32.gmra.mxu0 %v3719
        %v3721 = vpop.f32.mrf.mxu0
        %v3722 = vadd.f32 %v3646, %v3721
        %v3723 = vpop.f32.mrf.mxu0
        %v3724 = vadd.f32 %v3648, %v3723
        %3725 = vdwg.mxu0
        %3726 = vmatprep.subr.mxu0 0.0
        %3727 = vmatpush1.msra.mxu0 0.0
        %3728 = vmatprep.subr.mxu0 0.0
        %3729 = vmatpush1.msra.mxu0 0.0
        %3730 = vmatprep.subr.mxu0 0.0
        %3731 = vmatpush1.msra.mxu0 0.0
        %3732 = vmatprep.subr.mxu0 0.0
        %3733 = vmatpush1.msra.mxu0 0.0
        %3734 = vmatprep.subr.mxu0 0.0
        %3735 = vmatpush1.msra.mxu0 0.0
        %3736 = vmatprep.subr.mxu0 0.0
        %3737 = vmatpush1.msra.mxu0 0.0
        %3738 = vmatprep.subr.mxu0 0.0
        %3739 = vmatpush1.msra.mxu0 0.0
        %3740 = vmatprep.subr.mxu0 0.0
        %3741 = vmatpush1.msra.mxu0 0.0
        %3742 = vmatprep.subr.mxu0 0.0
        %3743 = vmatpush1.msra.mxu0 0.0
        %3744 = vmatprep.subr.mxu0 0.0
        %3745 = vmatpush1.msra.mxu0 0.0
        %3746 = vmatprep.subr.mxu0 0.0
        %3747 = vmatpush1.msra.mxu0 0.0
        %3748 = vmatprep.subr.mxu0 0.0
        %3749 = vmatpush1.msra.mxu0 0.0
        %3750 = vmatprep.subr.mxu0 0.0
        %3751 = vmatpush1.msra.mxu0 0.0
        %3752 = vmatprep.subr.mxu0 0.0
        %3753 = vmatpush1.msra.mxu0 0.0
        %3754 = vmatprep.subr.mxu0 0.0
        %3755 = vmatpush1.msra.mxu0 0.0
        %v3756 = vand.u32 %v3407, 4294901760
        %v3757 = vsub.f32 %v3407, %v3756
        %v3758 = vand.u32 %v3757, 4294901760
        %3759 = vmatprep.subr.mxu0 %v3758
        %v3760 = vand.u32 %v3406, 4294901760
        %v3761 = vsub.f32 %v3406, %v3760
        %v3762 = vand.u32 %v3761, 4294901760
        %3763 = vmatpush1.msra.mxu0 %v3762
        %3764 = vmatprep.subr.mxu0 0.0
        %3765 = vmatpush2.msra.mxu0 0.0
        %3766 = vmatprep.subr.mxu0 0.0
        %3767 = vmatpush2.msra.mxu0 0.0
        %3768 = vmatprep.subr.mxu0 0.0
        %3769 = vmatpush2.msra.mxu0 0.0
        %3770 = vmatprep.subr.mxu0 0.0
        %3771 = vmatpush2.msra.mxu0 0.0
        %3772 = vmatprep.subr.mxu0 0.0
        %3773 = vmatpush2.msra.mxu0 0.0
        %3774 = vmatprep.subr.mxu0 0.0
        %3775 = vmatpush2.msra.mxu0 0.0
        %3776 = vmatprep.subr.mxu0 0.0
        %3777 = vmatpush2.msra.mxu0 0.0
        %3778 = vmatprep.subr.mxu0 0.0
        %3779 = vmatpush2.msra.mxu0 0.0
        %3780 = vmatprep.subr.mxu0 0.0
        %3781 = vmatpush2.msra.mxu0 0.0
        %3782 = vmatprep.subr.mxu0 0.0
        %3783 = vmatpush2.msra.mxu0 0.0
        %3784 = vmatprep.subr.mxu0 0.0
        %3785 = vmatpush2.msra.mxu0 0.0
        %3786 = vmatprep.subr.mxu0 0.0
        %3787 = vmatpush2.msra.mxu0 0.0
        %3788 = vmatprep.subr.mxu0 0.0
        %3789 = vmatpush2.msra.mxu0 0.0
        %3790 = vmatprep.subr.mxu0 0.0
        %3791 = vmatpush2.msra.mxu0 0.0
        %3792 = vmatprep.subr.mxu0 0.0
        %3793 = vmatpush2.msra.mxu0 0.0
        %3794 = vmatprep.subr.mxu0 0.0
        %3795 = vmatpush2.msra.mxu0 0.0
        %3796 = vmatprep.mubr.f32.mxu0 0.0
        %v3797 = vand.u32 %v3411, 4294901760
        %3798 = vmatmul.mubr.f32.gmra.mxu0 %v3797
        %v3799 = vpop.f32.mrf.mxu0
        %v3800 = vadd.f32 %v3722, %v3799
        %v3801 = vpop.f32.mrf.mxu0
        %v3802 = vadd.f32 %v3724, %v3801
        %3803 = vdwg.mxu0
        %3804 = vmatprep.subr.mxu0 0.0
        %3805 = vmatpush1.msra.mxu0 0.0
        %3806 = vmatprep.subr.mxu0 0.0
        %3807 = vmatpush1.msra.mxu0 0.0
        %3808 = vmatprep.subr.mxu0 0.0
        %3809 = vmatpush1.msra.mxu0 0.0
        %3810 = vmatprep.subr.mxu0 0.0
        %3811 = vmatpush1.msra.mxu0 0.0
        %3812 = vmatprep.subr.mxu0 0.0
        %3813 = vmatpush1.msra.mxu0 0.0
        %3814 = vmatprep.subr.mxu0 0.0
        %3815 = vmatpush1.msra.mxu0 0.0
        %3816 = vmatprep.subr.mxu0 0.0
        %3817 = vmatpush1.msra.mxu0 0.0
        %3818 = vmatprep.subr.mxu0 0.0
        %3819 = vmatpush1.msra.mxu0 0.0
        %3820 = vmatprep.subr.mxu0 0.0
        %3821 = vmatpush1.msra.mxu0 0.0
        %3822 = vmatprep.subr.mxu0 0.0
        %3823 = vmatpush1.msra.mxu0 0.0
        %3824 = vmatprep.subr.mxu0 0.0
        %3825 = vmatpush1.msra.mxu0 0.0
        %3826 = vmatprep.subr.mxu0 0.0
        %3827 = vmatpush1.msra.mxu0 0.0
        %3828 = vmatprep.subr.mxu0 0.0
        %3829 = vmatpush1.msra.mxu0 0.0
        %3830 = vmatprep.subr.mxu0 0.0
        %3831 = vmatpush1.msra.mxu0 0.0
        %3832 = vmatprep.subr.mxu0 0.0
        %3833 = vmatpush1.msra.mxu0 0.0
        %v3834 = vand.u32 %v3407, 4294901760
        %3835 = vmatprep.subr.mxu0 %v3834
        %v3836 = vand.u32 %v3406, 4294901760
        %3837 = vmatpush1.msra.mxu0 %v3836
        %3838 = vmatprep.subr.mxu0 0.0
        %3839 = vmatpush2.msra.mxu0 0.0
        %3840 = vmatprep.subr.mxu0 0.0
        %3841 = vmatpush2.msra.mxu0 0.0
        %3842 = vmatprep.subr.mxu0 0.0
        %3843 = vmatpush2.msra.mxu0 0.0
        %3844 = vmatprep.subr.mxu0 0.0
        %3845 = vmatpush2.msra.mxu0 0.0
        %3846 = vmatprep.subr.mxu0 0.0
        %3847 = vmatpush2.msra.mxu0 0.0
        %3848 = vmatprep.subr.mxu0 0.0
        %3849 = vmatpush2.msra.mxu0 0.0
        %3850 = vmatprep.subr.mxu0 0.0
        %3851 = vmatpush2.msra.mxu0 0.0
        %3852 = vmatprep.subr.mxu0 0.0
        %3853 = vmatpush2.msra.mxu0 0.0
        %3854 = vmatprep.subr.mxu0 0.0
        %3855 = vmatpush2.msra.mxu0 0.0
        %3856 = vmatprep.subr.mxu0 0.0
        %3857 = vmatpush2.msra.mxu0 0.0
        %3858 = vmatprep.subr.mxu0 0.0
        %3859 = vmatpush2.msra.mxu0 0.0
        %3860 = vmatprep.subr.mxu0 0.0
        %3861 = vmatpush2.msra.mxu0 0.0
        %3862 = vmatprep.subr.mxu0 0.0
        %3863 = vmatpush2.msra.mxu0 0.0
        %3864 = vmatprep.subr.mxu0 0.0
        %3865 = vmatpush2.msra.mxu0 0.0
        %3866 = vmatprep.subr.mxu0 0.0
        %3867 = vmatpush2.msra.mxu0 0.0
        %3868 = vmatprep.subr.mxu0 0.0
        %3869 = vmatpush2.msra.mxu0 0.0
        %3870 = vmatprep.mubr.f32.mxu0 0.0
        %v3871 = vand.u32 %v3411, 4294901760
        %3872 = vmatmul.mubr.f32.gmra.mxu0 %v3871
        %v3873 = vpop.f32.mrf.mxu0
        %v3874 = vadd.f32 %v3800, %v3873
        %v3875 = vpop.f32.mrf.mxu0
        %v3876 = vadd.f32 %v3802, %v3875
        %3877 = vdwg.mxu0
        %v3878 = vadd.f32 %v3369, %v3874
        %v3879 = vadd.f32 %v3370, %v3876
        %s3880 = scalar_lea.vmem %s7, 14
        %v3881 = vld [vmem:[%s3880] sm:$0x3]
        %v3883 = vlaneseq
        %v3884 = vshrl.u32 %v3883, 7
        %v3885 = vsub.s32 0, %v3884
        %v3886 = vrot.slane %v3881, %v3885
        %v3887 = vlaneseq
        %v3888 = vshrl.u32 %v3887, 7
        %v3889 = vsub.s32 1, %v3888
        %v3890 = vrot.slane %v3881, %v3889
        %3891 = vrot.lane.b32.xlu0 %v3886, 33
        %v3892 = vpop.permute.xlu0 %3891
        %3893 = vrot.lane.b32.xlu0 %v3890, 33
        %v3894 = vpop.permute.xlu0 %3893
        %vm3895 = vcmask 269312
        %v3896 = vsel %vm3895, %v3892, %v3894
        %v3900 = vmul.f32 %v342, %v3892
        %v3901 = vmul.f32 %v343, %v3896
        %v3902 = vmul.f32 %v359, %v3894
        %s3903 = scalar_lea.vmem %s3, 56
        %v3904 = vld [vmem:[%s3903] sm:$0xff]
        %3908 = vrot.lane.b32.xlu0 %v3900, 95
        %v3909 = vpop.permute.xlu0 %3908
        %3910 = vrot.lane.b32.xlu0 %v3901, 95
        %v3911 = vpop.permute.xlu0 %3910
        %3912 = vrot.lane.b32.xlu0 %v3902, 95
        %v3913 = vpop.permute.xlu0 %3912
        %vm3914 = vcmask 777216
        %v3915 = vsel %vm3914, %v3909, %v3911
        %v3916 = vsel %vm3914, %v3911, %v3913
        %v3920 = vsel %vm399, %v3904, 0
        %3922 = vmatprep.subr.mxu0 0.0
        %3923 = vmatpush1.msra.mxu0 0.0
        %3924 = vmatprep.subr.mxu0 0.0
        %3925 = vmatpush1.msra.mxu0 0.0
        %3926 = vmatprep.subr.mxu0 0.0
        %3927 = vmatpush1.msra.mxu0 0.0
        %3928 = vmatprep.subr.mxu0 0.0
        %3929 = vmatpush1.msra.mxu0 0.0
        %3930 = vmatprep.subr.mxu0 0.0
        %3931 = vmatpush1.msra.mxu0 0.0
        %3932 = vmatprep.subr.mxu0 0.0
        %3933 = vmatpush1.msra.mxu0 0.0
        %3934 = vmatprep.subr.mxu0 0.0
        %3935 = vmatpush1.msra.mxu0 0.0
        %3936 = vmatprep.subr.mxu0 0.0
        %3937 = vmatpush1.msra.mxu0 0.0
        %3938 = vmatprep.subr.mxu0 0.0
        %3939 = vmatpush1.msra.mxu0 0.0
        %3940 = vmatprep.subr.mxu0 0.0
        %3941 = vmatpush1.msra.mxu0 0.0
        %3942 = vmatprep.subr.mxu0 0.0
        %3943 = vmatpush1.msra.mxu0 0.0
        %3944 = vmatprep.subr.mxu0 0.0
        %3945 = vmatpush1.msra.mxu0 0.0
        %3946 = vmatprep.subr.mxu0 0.0
        %3947 = vmatpush1.msra.mxu0 0.0
        %3948 = vmatprep.subr.mxu0 0.0
        %3949 = vmatpush1.msra.mxu0 0.0
        %3950 = vmatprep.subr.mxu0 0.0
        %3951 = vmatpush1.msra.mxu0 0.0
        %v3952 = vand.u32 %v3916, 4294901760
        %3953 = vmatprep.subr.mxu0 %v3952
        %v3954 = vand.u32 %v3915, 4294901760
        %3955 = vmatpush1.msra.mxu0 %v3954
        %3956 = vmatprep.subr.mxu0 0.0
        %3957 = vmatpush2.msra.mxu0 0.0
        %3958 = vmatprep.subr.mxu0 0.0
        %3959 = vmatpush2.msra.mxu0 0.0
        %3960 = vmatprep.subr.mxu0 0.0
        %3961 = vmatpush2.msra.mxu0 0.0
        %3962 = vmatprep.subr.mxu0 0.0
        %3963 = vmatpush2.msra.mxu0 0.0
        %3964 = vmatprep.subr.mxu0 0.0
        %3965 = vmatpush2.msra.mxu0 0.0
        %3966 = vmatprep.subr.mxu0 0.0
        %3967 = vmatpush2.msra.mxu0 0.0
        %3968 = vmatprep.subr.mxu0 0.0
        %3969 = vmatpush2.msra.mxu0 0.0
        %3970 = vmatprep.subr.mxu0 0.0
        %3971 = vmatpush2.msra.mxu0 0.0
        %3972 = vmatprep.subr.mxu0 0.0
        %3973 = vmatpush2.msra.mxu0 0.0
        %3974 = vmatprep.subr.mxu0 0.0
        %3975 = vmatpush2.msra.mxu0 0.0
        %3976 = vmatprep.subr.mxu0 0.0
        %3977 = vmatpush2.msra.mxu0 0.0
        %3978 = vmatprep.subr.mxu0 0.0
        %3979 = vmatpush2.msra.mxu0 0.0
        %3980 = vmatprep.subr.mxu0 0.0
        %3981 = vmatpush2.msra.mxu0 0.0
        %3982 = vmatprep.subr.mxu0 0.0
        %3983 = vmatpush2.msra.mxu0 0.0
        %3984 = vmatprep.subr.mxu0 0.0
        %3985 = vmatpush2.msra.mxu0 0.0
        %3986 = vmatprep.subr.mxu0 0.0
        %3987 = vmatpush2.msra.mxu0 0.0
        %3988 = vmatprep.mubr.f32.mxu0 0.0
        %v3989 = vand.u32 %v3920, 4294901760
        %v3990 = vsub.f32 %v3920, %v3989
        %v3991 = vand.u32 %v3990, 4294901760
        %v3992 = vsub.f32 %v3990, %v3991
        %v3993 = vand.u32 %v3992, 4294901760
        %3994 = vmatmul.mubr.f32.gmra.mxu0 %v3993
        %v3995 = vpop.f32.mrf.mxu0
        %v3996 = vadd.f32 0.0, %v3995
        %v3997 = vpop.f32.mrf.mxu0
        %v3998 = vadd.f32 0.0, %v3997
        %3999 = vdwg.mxu0
        %4000 = vmatprep.subr.mxu0 0.0
        %4001 = vmatpush1.msra.mxu0 0.0
        %4002 = vmatprep.subr.mxu0 0.0
        %4003 = vmatpush1.msra.mxu0 0.0
        %4004 = vmatprep.subr.mxu0 0.0
        %4005 = vmatpush1.msra.mxu0 0.0
        %4006 = vmatprep.subr.mxu0 0.0
        %4007 = vmatpush1.msra.mxu0 0.0
        %4008 = vmatprep.subr.mxu0 0.0
        %4009 = vmatpush1.msra.mxu0 0.0
        %4010 = vmatprep.subr.mxu0 0.0
        %4011 = vmatpush1.msra.mxu0 0.0
        %4012 = vmatprep.subr.mxu0 0.0
        %4013 = vmatpush1.msra.mxu0 0.0
        %4014 = vmatprep.subr.mxu0 0.0
        %4015 = vmatpush1.msra.mxu0 0.0
        %4016 = vmatprep.subr.mxu0 0.0
        %4017 = vmatpush1.msra.mxu0 0.0
        %4018 = vmatprep.subr.mxu0 0.0
        %4019 = vmatpush1.msra.mxu0 0.0
        %4020 = vmatprep.subr.mxu0 0.0
        %4021 = vmatpush1.msra.mxu0 0.0
        %4022 = vmatprep.subr.mxu0 0.0
        %4023 = vmatpush1.msra.mxu0 0.0
        %4024 = vmatprep.subr.mxu0 0.0
        %4025 = vmatpush1.msra.mxu0 0.0
        %4026 = vmatprep.subr.mxu0 0.0
        %4027 = vmatpush1.msra.mxu0 0.0
        %4028 = vmatprep.subr.mxu0 0.0
        %4029 = vmatpush1.msra.mxu0 0.0
        %v4030 = vand.u32 %v3916, 4294901760
        %v4031 = vsub.f32 %v3916, %v4030
        %v4032 = vand.u32 %v4031, 4294901760
        %v4033 = vsub.f32 %v4031, %v4032
        %v4034 = vand.u32 %v4033, 4294901760
        %4035 = vmatprep.subr.mxu0 %v4034
        %v4036 = vand.u32 %v3915, 4294901760
        %v4037 = vsub.f32 %v3915, %v4036
        %v4038 = vand.u32 %v4037, 4294901760
        %v4039 = vsub.f32 %v4037, %v4038
        %v4040 = vand.u32 %v4039, 4294901760
        %4041 = vmatpush1.msra.mxu0 %v4040
        %4042 = vmatprep.subr.mxu0 0.0
        %4043 = vmatpush2.msra.mxu0 0.0
        %4044 = vmatprep.subr.mxu0 0.0
        %4045 = vmatpush2.msra.mxu0 0.0
        %4046 = vmatprep.subr.mxu0 0.0
        %4047 = vmatpush2.msra.mxu0 0.0
        %4048 = vmatprep.subr.mxu0 0.0
        %4049 = vmatpush2.msra.mxu0 0.0
        %4050 = vmatprep.subr.mxu0 0.0
        %4051 = vmatpush2.msra.mxu0 0.0
        %4052 = vmatprep.subr.mxu0 0.0
        %4053 = vmatpush2.msra.mxu0 0.0
        %4054 = vmatprep.subr.mxu0 0.0
        %4055 = vmatpush2.msra.mxu0 0.0
        %4056 = vmatprep.subr.mxu0 0.0
        %4057 = vmatpush2.msra.mxu0 0.0
        %4058 = vmatprep.subr.mxu0 0.0
        %4059 = vmatpush2.msra.mxu0 0.0
        %4060 = vmatprep.subr.mxu0 0.0
        %4061 = vmatpush2.msra.mxu0 0.0
        %4062 = vmatprep.subr.mxu0 0.0
        %4063 = vmatpush2.msra.mxu0 0.0
        %4064 = vmatprep.subr.mxu0 0.0
        %4065 = vmatpush2.msra.mxu0 0.0
        %4066 = vmatprep.subr.mxu0 0.0
        %4067 = vmatpush2.msra.mxu0 0.0
        %4068 = vmatprep.subr.mxu0 0.0
        %4069 = vmatpush2.msra.mxu0 0.0
        %4070 = vmatprep.subr.mxu0 0.0
        %4071 = vmatpush2.msra.mxu0 0.0
        %4072 = vmatprep.subr.mxu0 0.0
        %4073 = vmatpush2.msra.mxu0 0.0
        %4074 = vmatprep.mubr.f32.mxu0 0.0
        %v4075 = vand.u32 %v3920, 4294901760
        %4076 = vmatmul.mubr.f32.gmra.mxu0 %v4075
        %v4077 = vpop.f32.mrf.mxu0
        %v4078 = vadd.f32 %v3996, %v4077
        %v4079 = vpop.f32.mrf.mxu0
        %v4080 = vadd.f32 %v3998, %v4079
        %4081 = vdwg.mxu0
        %4082 = vmatprep.subr.mxu0 0.0
        %4083 = vmatpush1.msra.mxu0 0.0
        %4084 = vmatprep.subr.mxu0 0.0
        %4085 = vmatpush1.msra.mxu0 0.0
        %4086 = vmatprep.subr.mxu0 0.0
        %4087 = vmatpush1.msra.mxu0 0.0
        %4088 = vmatprep.subr.mxu0 0.0
        %4089 = vmatpush1.msra.mxu0 0.0
        %4090 = vmatprep.subr.mxu0 0.0
        %4091 = vmatpush1.msra.mxu0 0.0
        %4092 = vmatprep.subr.mxu0 0.0
        %4093 = vmatpush1.msra.mxu0 0.0
        %4094 = vmatprep.subr.mxu0 0.0
        %4095 = vmatpush1.msra.mxu0 0.0
        %4096 = vmatprep.subr.mxu0 0.0
        %4097 = vmatpush1.msra.mxu0 0.0
        %4098 = vmatprep.subr.mxu0 0.0
        %4099 = vmatpush1.msra.mxu0 0.0
        %4100 = vmatprep.subr.mxu0 0.0
        %4101 = vmatpush1.msra.mxu0 0.0
        %4102 = vmatprep.subr.mxu0 0.0
        %4103 = vmatpush1.msra.mxu0 0.0
        %4104 = vmatprep.subr.mxu0 0.0
        %4105 = vmatpush1.msra.mxu0 0.0
        %4106 = vmatprep.subr.mxu0 0.0
        %4107 = vmatpush1.msra.mxu0 0.0
        %4108 = vmatprep.subr.mxu0 0.0
        %4109 = vmatpush1.msra.mxu0 0.0
        %4110 = vmatprep.subr.mxu0 0.0
        %4111 = vmatpush1.msra.mxu0 0.0
        %v4112 = vand.u32 %v3916, 4294901760
        %v4113 = vsub.f32 %v3916, %v4112
        %4114 = vmatprep.subr.mxu0 %v4113
        %v4115 = vand.u32 %v3915, 4294901760
        %v4116 = vsub.f32 %v3915, %v4115
        %4117 = vmatpush1.msra.mxu0 %v4116
        %4118 = vmatprep.subr.mxu0 0.0
        %4119 = vmatpush2.msra.mxu0 0.0
        %4120 = vmatprep.subr.mxu0 0.0
        %4121 = vmatpush2.msra.mxu0 0.0
        %4122 = vmatprep.subr.mxu0 0.0
        %4123 = vmatpush2.msra.mxu0 0.0
        %4124 = vmatprep.subr.mxu0 0.0
        %4125 = vmatpush2.msra.mxu0 0.0
        %4126 = vmatprep.subr.mxu0 0.0
        %4127 = vmatpush2.msra.mxu0 0.0
        %4128 = vmatprep.subr.mxu0 0.0
        %4129 = vmatpush2.msra.mxu0 0.0
        %4130 = vmatprep.subr.mxu0 0.0
        %4131 = vmatpush2.msra.mxu0 0.0
        %4132 = vmatprep.subr.mxu0 0.0
        %4133 = vmatpush2.msra.mxu0 0.0
        %4134 = vmatprep.subr.mxu0 0.0
        %4135 = vmatpush2.msra.mxu0 0.0
        %4136 = vmatprep.subr.mxu0 0.0
        %4137 = vmatpush2.msra.mxu0 0.0
        %4138 = vmatprep.subr.mxu0 0.0
        %4139 = vmatpush2.msra.mxu0 0.0
        %4140 = vmatprep.subr.mxu0 0.0
        %4141 = vmatpush2.msra.mxu0 0.0
        %4142 = vmatprep.subr.mxu0 0.0
        %4143 = vmatpush2.msra.mxu0 0.0
        %4144 = vmatprep.subr.mxu0 0.0
        %4145 = vmatpush2.msra.mxu0 0.0
        %4146 = vmatprep.subr.mxu0 0.0
        %4147 = vmatpush2.msra.mxu0 0.0
        %4148 = vmatprep.subr.mxu0 0.0
        %4149 = vmatpush2.msra.mxu0 0.0
        %4150 = vmatprep.mubr.f32.mxu0 0.0
        %v4151 = vand.u32 %v3920, 4294901760
        %v4152 = vsub.f32 %v3920, %v4151
        %4153 = vmatmul.mubr.f32.gmra.mxu0 %v4152
        %v4154 = vpop.f32.mrf.mxu0
        %v4155 = vadd.f32 %v4078, %v4154
        %v4156 = vpop.f32.mrf.mxu0
        %v4157 = vadd.f32 %v4080, %v4156
        %4158 = vdwg.mxu0
        %4159 = vmatprep.subr.mxu0 0.0
        %4160 = vmatpush1.msra.mxu0 0.0
        %4161 = vmatprep.subr.mxu0 0.0
        %4162 = vmatpush1.msra.mxu0 0.0
        %4163 = vmatprep.subr.mxu0 0.0
        %4164 = vmatpush1.msra.mxu0 0.0
        %4165 = vmatprep.subr.mxu0 0.0
        %4166 = vmatpush1.msra.mxu0 0.0
        %4167 = vmatprep.subr.mxu0 0.0
        %4168 = vmatpush1.msra.mxu0 0.0
        %4169 = vmatprep.subr.mxu0 0.0
        %4170 = vmatpush1.msra.mxu0 0.0
        %4171 = vmatprep.subr.mxu0 0.0
        %4172 = vmatpush1.msra.mxu0 0.0
        %4173 = vmatprep.subr.mxu0 0.0
        %4174 = vmatpush1.msra.mxu0 0.0
        %4175 = vmatprep.subr.mxu0 0.0
        %4176 = vmatpush1.msra.mxu0 0.0
        %4177 = vmatprep.subr.mxu0 0.0
        %4178 = vmatpush1.msra.mxu0 0.0
        %4179 = vmatprep.subr.mxu0 0.0
        %4180 = vmatpush1.msra.mxu0 0.0
        %4181 = vmatprep.subr.mxu0 0.0
        %4182 = vmatpush1.msra.mxu0 0.0
        %4183 = vmatprep.subr.mxu0 0.0
        %4184 = vmatpush1.msra.mxu0 0.0
        %4185 = vmatprep.subr.mxu0 0.0
        %4186 = vmatpush1.msra.mxu0 0.0
        %4187 = vmatprep.subr.mxu0 0.0
        %4188 = vmatpush1.msra.mxu0 0.0
        %v4189 = vand.u32 %v3916, 4294901760
        %4190 = vmatprep.subr.mxu0 %v4189
        %v4191 = vand.u32 %v3915, 4294901760
        %4192 = vmatpush1.msra.mxu0 %v4191
        %4193 = vmatprep.subr.mxu0 0.0
        %4194 = vmatpush2.msra.mxu0 0.0
        %4195 = vmatprep.subr.mxu0 0.0
        %4196 = vmatpush2.msra.mxu0 0.0
        %4197 = vmatprep.subr.mxu0 0.0
        %4198 = vmatpush2.msra.mxu0 0.0
        %4199 = vmatprep.subr.mxu0 0.0
        %4200 = vmatpush2.msra.mxu0 0.0
        %4201 = vmatprep.subr.mxu0 0.0
        %4202 = vmatpush2.msra.mxu0 0.0
        %4203 = vmatprep.subr.mxu0 0.0
        %4204 = vmatpush2.msra.mxu0 0.0
        %4205 = vmatprep.subr.mxu0 0.0
        %4206 = vmatpush2.msra.mxu0 0.0
        %4207 = vmatprep.subr.mxu0 0.0
        %4208 = vmatpush2.msra.mxu0 0.0
        %4209 = vmatprep.subr.mxu0 0.0
        %4210 = vmatpush2.msra.mxu0 0.0
        %4211 = vmatprep.subr.mxu0 0.0
        %4212 = vmatpush2.msra.mxu0 0.0
        %4213 = vmatprep.subr.mxu0 0.0
        %4214 = vmatpush2.msra.mxu0 0.0
        %4215 = vmatprep.subr.mxu0 0.0
        %4216 = vmatpush2.msra.mxu0 0.0
        %4217 = vmatprep.subr.mxu0 0.0
        %4218 = vmatpush2.msra.mxu0 0.0
        %4219 = vmatprep.subr.mxu0 0.0
        %4220 = vmatpush2.msra.mxu0 0.0
        %4221 = vmatprep.subr.mxu0 0.0
        %4222 = vmatpush2.msra.mxu0 0.0
        %4223 = vmatprep.subr.mxu0 0.0
        %4224 = vmatpush2.msra.mxu0 0.0
        %4225 = vmatprep.mubr.f32.mxu0 0.0
        %v4226 = vand.u32 %v3920, 4294901760
        %v4227 = vsub.f32 %v3920, %v4226
        %v4228 = vand.u32 %v4227, 4294901760
        %4229 = vmatmul.mubr.f32.gmra.mxu0 %v4228
        %v4230 = vpop.f32.mrf.mxu0
        %v4231 = vadd.f32 %v4155, %v4230
        %v4232 = vpop.f32.mrf.mxu0
        %v4233 = vadd.f32 %v4157, %v4232
        %4234 = vdwg.mxu0
        %4235 = vmatprep.subr.mxu0 0.0
        %4236 = vmatpush1.msra.mxu0 0.0
        %4237 = vmatprep.subr.mxu0 0.0
        %4238 = vmatpush1.msra.mxu0 0.0
        %4239 = vmatprep.subr.mxu0 0.0
        %4240 = vmatpush1.msra.mxu0 0.0
        %4241 = vmatprep.subr.mxu0 0.0
        %4242 = vmatpush1.msra.mxu0 0.0
        %4243 = vmatprep.subr.mxu0 0.0
        %4244 = vmatpush1.msra.mxu0 0.0
        %4245 = vmatprep.subr.mxu0 0.0
        %4246 = vmatpush1.msra.mxu0 0.0
        %4247 = vmatprep.subr.mxu0 0.0
        %4248 = vmatpush1.msra.mxu0 0.0
        %4249 = vmatprep.subr.mxu0 0.0
        %4250 = vmatpush1.msra.mxu0 0.0
        %4251 = vmatprep.subr.mxu0 0.0
        %4252 = vmatpush1.msra.mxu0 0.0
        %4253 = vmatprep.subr.mxu0 0.0
        %4254 = vmatpush1.msra.mxu0 0.0
        %4255 = vmatprep.subr.mxu0 0.0
        %4256 = vmatpush1.msra.mxu0 0.0
        %4257 = vmatprep.subr.mxu0 0.0
        %4258 = vmatpush1.msra.mxu0 0.0
        %4259 = vmatprep.subr.mxu0 0.0
        %4260 = vmatpush1.msra.mxu0 0.0
        %4261 = vmatprep.subr.mxu0 0.0
        %4262 = vmatpush1.msra.mxu0 0.0
        %4263 = vmatprep.subr.mxu0 0.0
        %4264 = vmatpush1.msra.mxu0 0.0
        %v4265 = vand.u32 %v3916, 4294901760
        %v4266 = vsub.f32 %v3916, %v4265
        %v4267 = vand.u32 %v4266, 4294901760
        %4268 = vmatprep.subr.mxu0 %v4267
        %v4269 = vand.u32 %v3915, 4294901760
        %v4270 = vsub.f32 %v3915, %v4269
        %v4271 = vand.u32 %v4270, 4294901760
        %4272 = vmatpush1.msra.mxu0 %v4271
        %4273 = vmatprep.subr.mxu0 0.0
        %4274 = vmatpush2.msra.mxu0 0.0
        %4275 = vmatprep.subr.mxu0 0.0
        %4276 = vmatpush2.msra.mxu0 0.0
        %4277 = vmatprep.subr.mxu0 0.0
        %4278 = vmatpush2.msra.mxu0 0.0
        %4279 = vmatprep.subr.mxu0 0.0
        %4280 = vmatpush2.msra.mxu0 0.0
        %4281 = vmatprep.subr.mxu0 0.0
        %4282 = vmatpush2.msra.mxu0 0.0
        %4283 = vmatprep.subr.mxu0 0.0
        %4284 = vmatpush2.msra.mxu0 0.0
        %4285 = vmatprep.subr.mxu0 0.0
        %4286 = vmatpush2.msra.mxu0 0.0
        %4287 = vmatprep.subr.mxu0 0.0
        %4288 = vmatpush2.msra.mxu0 0.0
        %4289 = vmatprep.subr.mxu0 0.0
        %4290 = vmatpush2.msra.mxu0 0.0
        %4291 = vmatprep.subr.mxu0 0.0
        %4292 = vmatpush2.msra.mxu0 0.0
        %4293 = vmatprep.subr.mxu0 0.0
        %4294 = vmatpush2.msra.mxu0 0.0
        %4295 = vmatprep.subr.mxu0 0.0
        %4296 = vmatpush2.msra.mxu0 0.0
        %4297 = vmatprep.subr.mxu0 0.0
        %4298 = vmatpush2.msra.mxu0 0.0
        %4299 = vmatprep.subr.mxu0 0.0
        %4300 = vmatpush2.msra.mxu0 0.0
        %4301 = vmatprep.subr.mxu0 0.0
        %4302 = vmatpush2.msra.mxu0 0.0
        %4303 = vmatprep.subr.mxu0 0.0
        %4304 = vmatpush2.msra.mxu0 0.0
        %4305 = vmatprep.mubr.f32.mxu0 0.0
        %v4306 = vand.u32 %v3920, 4294901760
        %4307 = vmatmul.mubr.f32.gmra.mxu0 %v4306
        %v4308 = vpop.f32.mrf.mxu0
        %v4309 = vadd.f32 %v4231, %v4308
        %v4310 = vpop.f32.mrf.mxu0
        %v4311 = vadd.f32 %v4233, %v4310
        %4312 = vdwg.mxu0
        %4313 = vmatprep.subr.mxu0 0.0
        %4314 = vmatpush1.msra.mxu0 0.0
        %4315 = vmatprep.subr.mxu0 0.0
        %4316 = vmatpush1.msra.mxu0 0.0
        %4317 = vmatprep.subr.mxu0 0.0
        %4318 = vmatpush1.msra.mxu0 0.0
        %4319 = vmatprep.subr.mxu0 0.0
        %4320 = vmatpush1.msra.mxu0 0.0
        %4321 = vmatprep.subr.mxu0 0.0
        %4322 = vmatpush1.msra.mxu0 0.0
        %4323 = vmatprep.subr.mxu0 0.0
        %4324 = vmatpush1.msra.mxu0 0.0
        %4325 = vmatprep.subr.mxu0 0.0
        %4326 = vmatpush1.msra.mxu0 0.0
        %4327 = vmatprep.subr.mxu0 0.0
        %4328 = vmatpush1.msra.mxu0 0.0
        %4329 = vmatprep.subr.mxu0 0.0
        %4330 = vmatpush1.msra.mxu0 0.0
        %4331 = vmatprep.subr.mxu0 0.0
        %4332 = vmatpush1.msra.mxu0 0.0
        %4333 = vmatprep.subr.mxu0 0.0
        %4334 = vmatpush1.msra.mxu0 0.0
        %4335 = vmatprep.subr.mxu0 0.0
        %4336 = vmatpush1.msra.mxu0 0.0
        %4337 = vmatprep.subr.mxu0 0.0
        %4338 = vmatpush1.msra.mxu0 0.0
        %4339 = vmatprep.subr.mxu0 0.0
        %4340 = vmatpush1.msra.mxu0 0.0
        %4341 = vmatprep.subr.mxu0 0.0
        %4342 = vmatpush1.msra.mxu0 0.0
        %v4343 = vand.u32 %v3916, 4294901760
        %4344 = vmatprep.subr.mxu0 %v4343
        %v4345 = vand.u32 %v3915, 4294901760
        %4346 = vmatpush1.msra.mxu0 %v4345
        %4347 = vmatprep.subr.mxu0 0.0
        %4348 = vmatpush2.msra.mxu0 0.0
        %4349 = vmatprep.subr.mxu0 0.0
        %4350 = vmatpush2.msra.mxu0 0.0
        %4351 = vmatprep.subr.mxu0 0.0
        %4352 = vmatpush2.msra.mxu0 0.0
        %4353 = vmatprep.subr.mxu0 0.0
        %4354 = vmatpush2.msra.mxu0 0.0
        %4355 = vmatprep.subr.mxu0 0.0
        %4356 = vmatpush2.msra.mxu0 0.0
        %4357 = vmatprep.subr.mxu0 0.0
        %4358 = vmatpush2.msra.mxu0 0.0
        %4359 = vmatprep.subr.mxu0 0.0
        %4360 = vmatpush2.msra.mxu0 0.0
        %4361 = vmatprep.subr.mxu0 0.0
        %4362 = vmatpush2.msra.mxu0 0.0
        %4363 = vmatprep.subr.mxu0 0.0
        %4364 = vmatpush2.msra.mxu0 0.0
        %4365 = vmatprep.subr.mxu0 0.0
        %4366 = vmatpush2.msra.mxu0 0.0
        %4367 = vmatprep.subr.mxu0 0.0
        %4368 = vmatpush2.msra.mxu0 0.0
        %4369 = vmatprep.subr.mxu0 0.0
        %4370 = vmatpush2.msra.mxu0 0.0
        %4371 = vmatprep.subr.mxu0 0.0
        %4372 = vmatpush2.msra.mxu0 0.0
        %4373 = vmatprep.subr.mxu0 0.0
        %4374 = vmatpush2.msra.mxu0 0.0
        %4375 = vmatprep.subr.mxu0 0.0
        %4376 = vmatpush2.msra.mxu0 0.0
        %4377 = vmatprep.subr.mxu0 0.0
        %4378 = vmatpush2.msra.mxu0 0.0
        %4379 = vmatprep.mubr.f32.mxu0 0.0
        %v4380 = vand.u32 %v3920, 4294901760
        %4381 = vmatmul.mubr.f32.gmra.mxu0 %v4380
        %v4382 = vpop.f32.mrf.mxu0
        %v4383 = vadd.f32 %v4309, %v4382
        %v4384 = vpop.f32.mrf.mxu0
        %v4385 = vadd.f32 %v4311, %v4384
        %4386 = vdwg.mxu0
        %v4387 = vadd.f32 %v3878, %v4383
        %v4388 = vadd.f32 %v3879, %v4385
        %s4389 = scalar_lea.vmem %s7, 16
        %v4390 = vld [vmem:[%s4389] sm:$0x3]
        %v4392 = vlaneseq
        %v4393 = vshrl.u32 %v4392, 7
        %v4394 = vsub.s32 0, %v4393
        %v4395 = vrot.slane %v4390, %v4394
        %v4396 = vlaneseq
        %v4397 = vshrl.u32 %v4396, 7
        %v4398 = vsub.s32 1, %v4397
        %v4399 = vrot.slane %v4390, %v4398
        %4400 = vrot.lane.b32.xlu0 %v4395, 34
        %v4401 = vpop.permute.xlu0 %4400
        %4402 = vrot.lane.b32.xlu0 %v4399, 34
        %v4403 = vpop.permute.xlu0 %4402
        %vm4404 = vcmask 277504
        %v4405 = vsel %vm4404, %v4401, %v4403
        %v4409 = vmul.f32 %v342, %v4401
        %v4410 = vmul.f32 %v343, %v4405
        %v4411 = vmul.f32 %v359, %v4403
        %s4412 = scalar_lea.vmem %s3, 64
        %v4413 = vld [vmem:[%s4412] sm:$0xff]
        %4417 = vrot.lane.b32.xlu0 %v4409, 94
        %v4418 = vpop.permute.xlu0 %4417
        %4419 = vrot.lane.b32.xlu0 %v4410, 94
        %v4420 = vpop.permute.xlu0 %4419
        %4421 = vrot.lane.b32.xlu0 %v4411, 94
        %v4422 = vpop.permute.xlu0 %4421
        %vm4423 = vcmask 769024
        %v4424 = vsel %vm4423, %v4418, %v4420
        %v4425 = vsel %vm4423, %v4420, %v4422
        %v4429 = vsel %vm399, %v4413, 0
        %4431 = vmatprep.subr.mxu0 0.0
        %4432 = vmatpush1.msra.mxu0 0.0
        %4433 = vmatprep.subr.mxu0 0.0
        %4434 = vmatpush1.msra.mxu0 0.0
        %4435 = vmatprep.subr.mxu0 0.0
        %4436 = vmatpush1.msra.mxu0 0.0
        %4437 = vmatprep.subr.mxu0 0.0
        %4438 = vmatpush1.msra.mxu0 0.0
        %4439 = vmatprep.subr.mxu0 0.0
        %4440 = vmatpush1.msra.mxu0 0.0
        %4441 = vmatprep.subr.mxu0 0.0
        %4442 = vmatpush1.msra.mxu0 0.0
        %4443 = vmatprep.subr.mxu0 0.0
        %4444 = vmatpush1.msra.mxu0 0.0
        %4445 = vmatprep.subr.mxu0 0.0
        %4446 = vmatpush1.msra.mxu0 0.0
        %4447 = vmatprep.subr.mxu0 0.0
        %4448 = vmatpush1.msra.mxu0 0.0
        %4449 = vmatprep.subr.mxu0 0.0
        %4450 = vmatpush1.msra.mxu0 0.0
        %4451 = vmatprep.subr.mxu0 0.0
        %4452 = vmatpush1.msra.mxu0 0.0
        %4453 = vmatprep.subr.mxu0 0.0
        %4454 = vmatpush1.msra.mxu0 0.0
        %4455 = vmatprep.subr.mxu0 0.0
        %4456 = vmatpush1.msra.mxu0 0.0
        %4457 = vmatprep.subr.mxu0 0.0
        %4458 = vmatpush1.msra.mxu0 0.0
        %4459 = vmatprep.subr.mxu0 0.0
        %4460 = vmatpush1.msra.mxu0 0.0
        %v4461 = vand.u32 %v4425, 4294901760
        %4462 = vmatprep.subr.mxu0 %v4461
        %v4463 = vand.u32 %v4424, 4294901760
        %4464 = vmatpush1.msra.mxu0 %v4463
        %4465 = vmatprep.subr.mxu0 0.0
        %4466 = vmatpush2.msra.mxu0 0.0
        %4467 = vmatprep.subr.mxu0 0.0
        %4468 = vmatpush2.msra.mxu0 0.0
        %4469 = vmatprep.subr.mxu0 0.0
        %4470 = vmatpush2.msra.mxu0 0.0
        %4471 = vmatprep.subr.mxu0 0.0
        %4472 = vmatpush2.msra.mxu0 0.0
        %4473 = vmatprep.subr.mxu0 0.0
        %4474 = vmatpush2.msra.mxu0 0.0
        %4475 = vmatprep.subr.mxu0 0.0
        %4476 = vmatpush2.msra.mxu0 0.0
        %4477 = vmatprep.subr.mxu0 0.0
        %4478 = vmatpush2.msra.mxu0 0.0
        %4479 = vmatprep.subr.mxu0 0.0
        %4480 = vmatpush2.msra.mxu0 0.0
        %4481 = vmatprep.subr.mxu0 0.0
        %4482 = vmatpush2.msra.mxu0 0.0
        %4483 = vmatprep.subr.mxu0 0.0
        %4484 = vmatpush2.msra.mxu0 0.0
        %4485 = vmatprep.subr.mxu0 0.0
        %4486 = vmatpush2.msra.mxu0 0.0
        %4487 = vmatprep.subr.mxu0 0.0
        %4488 = vmatpush2.msra.mxu0 0.0
        %4489 = vmatprep.subr.mxu0 0.0
        %4490 = vmatpush2.msra.mxu0 0.0
        %4491 = vmatprep.subr.mxu0 0.0
        %4492 = vmatpush2.msra.mxu0 0.0
        %4493 = vmatprep.subr.mxu0 0.0
        %4494 = vmatpush2.msra.mxu0 0.0
        %4495 = vmatprep.subr.mxu0 0.0
        %4496 = vmatpush2.msra.mxu0 0.0
        %4497 = vmatprep.mubr.f32.mxu0 0.0
        %v4498 = vand.u32 %v4429, 4294901760
        %v4499 = vsub.f32 %v4429, %v4498
        %v4500 = vand.u32 %v4499, 4294901760
        %v4501 = vsub.f32 %v4499, %v4500
        %v4502 = vand.u32 %v4501, 4294901760
        %4503 = vmatmul.mubr.f32.gmra.mxu0 %v4502
        %v4504 = vpop.f32.mrf.mxu0
        %v4505 = vadd.f32 0.0, %v4504
        %v4506 = vpop.f32.mrf.mxu0
        %v4507 = vadd.f32 0.0, %v4506
        %4508 = vdwg.mxu0
        %4509 = vmatprep.subr.mxu0 0.0
        %4510 = vmatpush1.msra.mxu0 0.0
        %4511 = vmatprep.subr.mxu0 0.0
        %4512 = vmatpush1.msra.mxu0 0.0
        %4513 = vmatprep.subr.mxu0 0.0
        %4514 = vmatpush1.msra.mxu0 0.0
        %4515 = vmatprep.subr.mxu0 0.0
        %4516 = vmatpush1.msra.mxu0 0.0
        %4517 = vmatprep.subr.mxu0 0.0
        %4518 = vmatpush1.msra.mxu0 0.0
        %4519 = vmatprep.subr.mxu0 0.0
        %4520 = vmatpush1.msra.mxu0 0.0
        %4521 = vmatprep.subr.mxu0 0.0
        %4522 = vmatpush1.msra.mxu0 0.0
        %4523 = vmatprep.subr.mxu0 0.0
        %4524 = vmatpush1.msra.mxu0 0.0
        %4525 = vmatprep.subr.mxu0 0.0
        %4526 = vmatpush1.msra.mxu0 0.0
        %4527 = vmatprep.subr.mxu0 0.0
        %4528 = vmatpush1.msra.mxu0 0.0
        %4529 = vmatprep.subr.mxu0 0.0
        %4530 = vmatpush1.msra.mxu0 0.0
        %4531 = vmatprep.subr.mxu0 0.0
        %4532 = vmatpush1.msra.mxu0 0.0
        %4533 = vmatprep.subr.mxu0 0.0
        %4534 = vmatpush1.msra.mxu0 0.0
        %4535 = vmatprep.subr.mxu0 0.0
        %4536 = vmatpush1.msra.mxu0 0.0
        %4537 = vmatprep.subr.mxu0 0.0
        %4538 = vmatpush1.msra.mxu0 0.0
        %v4539 = vand.u32 %v4425, 4294901760
        %v4540 = vsub.f32 %v4425, %v4539
        %v4541 = vand.u32 %v4540, 4294901760
        %v4542 = vsub.f32 %v4540, %v4541
        %v4543 = vand.u32 %v4542, 4294901760
        %4544 = vmatprep.subr.mxu0 %v4543
        %v4545 = vand.u32 %v4424, 4294901760
        %v4546 = vsub.f32 %v4424, %v4545
        %v4547 = vand.u32 %v4546, 4294901760
        %v4548 = vsub.f32 %v4546, %v4547
        %v4549 = vand.u32 %v4548, 4294901760
        %4550 = vmatpush1.msra.mxu0 %v4549
        %4551 = vmatprep.subr.mxu0 0.0
        %4552 = vmatpush2.msra.mxu0 0.0
        %4553 = vmatprep.subr.mxu0 0.0
        %4554 = vmatpush2.msra.mxu0 0.0
        %4555 = vmatprep.subr.mxu0 0.0
        %4556 = vmatpush2.msra.mxu0 0.0
        %4557 = vmatprep.subr.mxu0 0.0
        %4558 = vmatpush2.msra.mxu0 0.0
        %4559 = vmatprep.subr.mxu0 0.0
        %4560 = vmatpush2.msra.mxu0 0.0
        %4561 = vmatprep.subr.mxu0 0.0
        %4562 = vmatpush2.msra.mxu0 0.0
        %4563 = vmatprep.subr.mxu0 0.0
        %4564 = vmatpush2.msra.mxu0 0.0
        %4565 = vmatprep.subr.mxu0 0.0
        %4566 = vmatpush2.msra.mxu0 0.0
        %4567 = vmatprep.subr.mxu0 0.0
        %4568 = vmatpush2.msra.mxu0 0.0
        %4569 = vmatprep.subr.mxu0 0.0
        %4570 = vmatpush2.msra.mxu0 0.0
        %4571 = vmatprep.subr.mxu0 0.0
        %4572 = vmatpush2.msra.mxu0 0.0
        %4573 = vmatprep.subr.mxu0 0.0
        %4574 = vmatpush2.msra.mxu0 0.0
        %4575 = vmatprep.subr.mxu0 0.0
        %4576 = vmatpush2.msra.mxu0 0.0
        %4577 = vmatprep.subr.mxu0 0.0
        %4578 = vmatpush2.msra.mxu0 0.0
        %4579 = vmatprep.subr.mxu0 0.0
        %4580 = vmatpush2.msra.mxu0 0.0
        %4581 = vmatprep.subr.mxu0 0.0
        %4582 = vmatpush2.msra.mxu0 0.0
        %4583 = vmatprep.mubr.f32.mxu0 0.0
        %v4584 = vand.u32 %v4429, 4294901760
        %4585 = vmatmul.mubr.f32.gmra.mxu0 %v4584
        %v4586 = vpop.f32.mrf.mxu0
        %v4587 = vadd.f32 %v4505, %v4586
        %v4588 = vpop.f32.mrf.mxu0
        %v4589 = vadd.f32 %v4507, %v4588
        %4590 = vdwg.mxu0
        %4591 = vmatprep.subr.mxu0 0.0
        %4592 = vmatpush1.msra.mxu0 0.0
        %4593 = vmatprep.subr.mxu0 0.0
        %4594 = vmatpush1.msra.mxu0 0.0
        %4595 = vmatprep.subr.mxu0 0.0
        %4596 = vmatpush1.msra.mxu0 0.0
        %4597 = vmatprep.subr.mxu0 0.0
        %4598 = vmatpush1.msra.mxu0 0.0
        %4599 = vmatprep.subr.mxu0 0.0
        %4600 = vmatpush1.msra.mxu0 0.0
        %4601 = vmatprep.subr.mxu0 0.0
        %4602 = vmatpush1.msra.mxu0 0.0
        %4603 = vmatprep.subr.mxu0 0.0
        %4604 = vmatpush1.msra.mxu0 0.0
        %4605 = vmatprep.subr.mxu0 0.0
        %4606 = vmatpush1.msra.mxu0 0.0
        %4607 = vmatprep.subr.mxu0 0.0
        %4608 = vmatpush1.msra.mxu0 0.0
        %4609 = vmatprep.subr.mxu0 0.0
        %4610 = vmatpush1.msra.mxu0 0.0
        %4611 = vmatprep.subr.mxu0 0.0
        %4612 = vmatpush1.msra.mxu0 0.0
        %4613 = vmatprep.subr.mxu0 0.0
        %4614 = vmatpush1.msra.mxu0 0.0
        %4615 = vmatprep.subr.mxu0 0.0
        %4616 = vmatpush1.msra.mxu0 0.0
        %4617 = vmatprep.subr.mxu0 0.0
        %4618 = vmatpush1.msra.mxu0 0.0
        %4619 = vmatprep.subr.mxu0 0.0
        %4620 = vmatpush1.msra.mxu0 0.0
        %v4621 = vand.u32 %v4425, 4294901760
        %v4622 = vsub.f32 %v4425, %v4621
        %4623 = vmatprep.subr.mxu0 %v4622
        %v4624 = vand.u32 %v4424, 4294901760
        %v4625 = vsub.f32 %v4424, %v4624
        %4626 = vmatpush1.msra.mxu0 %v4625
        %4627 = vmatprep.subr.mxu0 0.0
        %4628 = vmatpush2.msra.mxu0 0.0
        %4629 = vmatprep.subr.mxu0 0.0
        %4630 = vmatpush2.msra.mxu0 0.0
        %4631 = vmatprep.subr.mxu0 0.0
        %4632 = vmatpush2.msra.mxu0 0.0
        %4633 = vmatprep.subr.mxu0 0.0
        %4634 = vmatpush2.msra.mxu0 0.0
        %4635 = vmatprep.subr.mxu0 0.0
        %4636 = vmatpush2.msra.mxu0 0.0
        %4637 = vmatprep.subr.mxu0 0.0
        %4638 = vmatpush2.msra.mxu0 0.0
        %4639 = vmatprep.subr.mxu0 0.0
        %4640 = vmatpush2.msra.mxu0 0.0
        %4641 = vmatprep.subr.mxu0 0.0
        %4642 = vmatpush2.msra.mxu0 0.0
        %4643 = vmatprep.subr.mxu0 0.0
        %4644 = vmatpush2.msra.mxu0 0.0
        %4645 = vmatprep.subr.mxu0 0.0
        %4646 = vmatpush2.msra.mxu0 0.0
        %4647 = vmatprep.subr.mxu0 0.0
        %4648 = vmatpush2.msra.mxu0 0.0
        %4649 = vmatprep.subr.mxu0 0.0
        %4650 = vmatpush2.msra.mxu0 0.0
        %4651 = vmatprep.subr.mxu0 0.0
        %4652 = vmatpush2.msra.mxu0 0.0
        %4653 = vmatprep.subr.mxu0 0.0
        %4654 = vmatpush2.msra.mxu0 0.0
        %4655 = vmatprep.subr.mxu0 0.0
        %4656 = vmatpush2.msra.mxu0 0.0
        %4657 = vmatprep.subr.mxu0 0.0
        %4658 = vmatpush2.msra.mxu0 0.0
        %4659 = vmatprep.mubr.f32.mxu0 0.0
        %v4660 = vand.u32 %v4429, 4294901760
        %v4661 = vsub.f32 %v4429, %v4660
        %4662 = vmatmul.mubr.f32.gmra.mxu0 %v4661
        %v4663 = vpop.f32.mrf.mxu0
        %v4664 = vadd.f32 %v4587, %v4663
        %v4665 = vpop.f32.mrf.mxu0
        %v4666 = vadd.f32 %v4589, %v4665
        %4667 = vdwg.mxu0
        %4668 = vmatprep.subr.mxu0 0.0
        %4669 = vmatpush1.msra.mxu0 0.0
        %4670 = vmatprep.subr.mxu0 0.0
        %4671 = vmatpush1.msra.mxu0 0.0
        %4672 = vmatprep.subr.mxu0 0.0
        %4673 = vmatpush1.msra.mxu0 0.0
        %4674 = vmatprep.subr.mxu0 0.0
        %4675 = vmatpush1.msra.mxu0 0.0
        %4676 = vmatprep.subr.mxu0 0.0
        %4677 = vmatpush1.msra.mxu0 0.0
        %4678 = vmatprep.subr.mxu0 0.0
        %4679 = vmatpush1.msra.mxu0 0.0
        %4680 = vmatprep.subr.mxu0 0.0
        %4681 = vmatpush1.msra.mxu0 0.0
        %4682 = vmatprep.subr.mxu0 0.0
        %4683 = vmatpush1.msra.mxu0 0.0
        %4684 = vmatprep.subr.mxu0 0.0
        %4685 = vmatpush1.msra.mxu0 0.0
        %4686 = vmatprep.subr.mxu0 0.0
        %4687 = vmatpush1.msra.mxu0 0.0
        %4688 = vmatprep.subr.mxu0 0.0
        %4689 = vmatpush1.msra.mxu0 0.0
        %4690 = vmatprep.subr.mxu0 0.0
        %4691 = vmatpush1.msra.mxu0 0.0
        %4692 = vmatprep.subr.mxu0 0.0
        %4693 = vmatpush1.msra.mxu0 0.0
        %4694 = vmatprep.subr.mxu0 0.0
        %4695 = vmatpush1.msra.mxu0 0.0
        %4696 = vmatprep.subr.mxu0 0.0
        %4697 = vmatpush1.msra.mxu0 0.0
        %v4698 = vand.u32 %v4425, 4294901760
        %4699 = vmatprep.subr.mxu0 %v4698
        %v4700 = vand.u32 %v4424, 4294901760
        %4701 = vmatpush1.msra.mxu0 %v4700
        %4702 = vmatprep.subr.mxu0 0.0
        %4703 = vmatpush2.msra.mxu0 0.0
        %4704 = vmatprep.subr.mxu0 0.0
        %4705 = vmatpush2.msra.mxu0 0.0
        %4706 = vmatprep.subr.mxu0 0.0
        %4707 = vmatpush2.msra.mxu0 0.0
        %4708 = vmatprep.subr.mxu0 0.0
        %4709 = vmatpush2.msra.mxu0 0.0
        %4710 = vmatprep.subr.mxu0 0.0
        %4711 = vmatpush2.msra.mxu0 0.0
        %4712 = vmatprep.subr.mxu0 0.0
        %4713 = vmatpush2.msra.mxu0 0.0
        %4714 = vmatprep.subr.mxu0 0.0
        %4715 = vmatpush2.msra.mxu0 0.0
        %4716 = vmatprep.subr.mxu0 0.0
        %4717 = vmatpush2.msra.mxu0 0.0
        %4718 = vmatprep.subr.mxu0 0.0
        %4719 = vmatpush2.msra.mxu0 0.0
        %4720 = vmatprep.subr.mxu0 0.0
        %4721 = vmatpush2.msra.mxu0 0.0
        %4722 = vmatprep.subr.mxu0 0.0
        %4723 = vmatpush2.msra.mxu0 0.0
        %4724 = vmatprep.subr.mxu0 0.0
        %4725 = vmatpush2.msra.mxu0 0.0
        %4726 = vmatprep.subr.mxu0 0.0
        %4727 = vmatpush2.msra.mxu0 0.0
        %4728 = vmatprep.subr.mxu0 0.0
        %4729 = vmatpush2.msra.mxu0 0.0
        %4730 = vmatprep.subr.mxu0 0.0
        %4731 = vmatpush2.msra.mxu0 0.0
        %4732 = vmatprep.subr.mxu0 0.0
        %4733 = vmatpush2.msra.mxu0 0.0
        %4734 = vmatprep.mubr.f32.mxu0 0.0
        %v4735 = vand.u32 %v4429, 4294901760
        %v4736 = vsub.f32 %v4429, %v4735
        %v4737 = vand.u32 %v4736, 4294901760
        %4738 = vmatmul.mubr.f32.gmra.mxu0 %v4737
        %v4739 = vpop.f32.mrf.mxu0
        %v4740 = vadd.f32 %v4664, %v4739
        %v4741 = vpop.f32.mrf.mxu0
        %v4742 = vadd.f32 %v4666, %v4741
        %4743 = vdwg.mxu0
        %4744 = vmatprep.subr.mxu0 0.0
        %4745 = vmatpush1.msra.mxu0 0.0
        %4746 = vmatprep.subr.mxu0 0.0
        %4747 = vmatpush1.msra.mxu0 0.0
        %4748 = vmatprep.subr.mxu0 0.0
        %4749 = vmatpush1.msra.mxu0 0.0
        %4750 = vmatprep.subr.mxu0 0.0
        %4751 = vmatpush1.msra.mxu0 0.0
        %4752 = vmatprep.subr.mxu0 0.0
        %4753 = vmatpush1.msra.mxu0 0.0
        %4754 = vmatprep.subr.mxu0 0.0
        %4755 = vmatpush1.msra.mxu0 0.0
        %4756 = vmatprep.subr.mxu0 0.0
        %4757 = vmatpush1.msra.mxu0 0.0
        %4758 = vmatprep.subr.mxu0 0.0
        %4759 = vmatpush1.msra.mxu0 0.0
        %4760 = vmatprep.subr.mxu0 0.0
        %4761 = vmatpush1.msra.mxu0 0.0
        %4762 = vmatprep.subr.mxu0 0.0
        %4763 = vmatpush1.msra.mxu0 0.0
        %4764 = vmatprep.subr.mxu0 0.0
        %4765 = vmatpush1.msra.mxu0 0.0
        %4766 = vmatprep.subr.mxu0 0.0
        %4767 = vmatpush1.msra.mxu0 0.0
        %4768 = vmatprep.subr.mxu0 0.0
        %4769 = vmatpush1.msra.mxu0 0.0
        %4770 = vmatprep.subr.mxu0 0.0
        %4771 = vmatpush1.msra.mxu0 0.0
        %4772 = vmatprep.subr.mxu0 0.0
        %4773 = vmatpush1.msra.mxu0 0.0
        %v4774 = vand.u32 %v4425, 4294901760
        %v4775 = vsub.f32 %v4425, %v4774
        %v4776 = vand.u32 %v4775, 4294901760
        %4777 = vmatprep.subr.mxu0 %v4776
        %v4778 = vand.u32 %v4424, 4294901760
        %v4779 = vsub.f32 %v4424, %v4778
        %v4780 = vand.u32 %v4779, 4294901760
        %4781 = vmatpush1.msra.mxu0 %v4780
        %4782 = vmatprep.subr.mxu0 0.0
        %4783 = vmatpush2.msra.mxu0 0.0
        %4784 = vmatprep.subr.mxu0 0.0
        %4785 = vmatpush2.msra.mxu0 0.0
        %4786 = vmatprep.subr.mxu0 0.0
        %4787 = vmatpush2.msra.mxu0 0.0
        %4788 = vmatprep.subr.mxu0 0.0
        %4789 = vmatpush2.msra.mxu0 0.0
        %4790 = vmatprep.subr.mxu0 0.0
        %4791 = vmatpush2.msra.mxu0 0.0
        %4792 = vmatprep.subr.mxu0 0.0
        %4793 = vmatpush2.msra.mxu0 0.0
        %4794 = vmatprep.subr.mxu0 0.0
        %4795 = vmatpush2.msra.mxu0 0.0
        %4796 = vmatprep.subr.mxu0 0.0
        %4797 = vmatpush2.msra.mxu0 0.0
        %4798 = vmatprep.subr.mxu0 0.0
        %4799 = vmatpush2.msra.mxu0 0.0
        %4800 = vmatprep.subr.mxu0 0.0
        %4801 = vmatpush2.msra.mxu0 0.0
        %4802 = vmatprep.subr.mxu0 0.0
        %4803 = vmatpush2.msra.mxu0 0.0
        %4804 = vmatprep.subr.mxu0 0.0
        %4805 = vmatpush2.msra.mxu0 0.0
        %4806 = vmatprep.subr.mxu0 0.0
        %4807 = vmatpush2.msra.mxu0 0.0
        %4808 = vmatprep.subr.mxu0 0.0
        %4809 = vmatpush2.msra.mxu0 0.0
        %4810 = vmatprep.subr.mxu0 0.0
        %4811 = vmatpush2.msra.mxu0 0.0
        %4812 = vmatprep.subr.mxu0 0.0
        %4813 = vmatpush2.msra.mxu0 0.0
        %4814 = vmatprep.mubr.f32.mxu0 0.0
        %v4815 = vand.u32 %v4429, 4294901760
        %4816 = vmatmul.mubr.f32.gmra.mxu0 %v4815
        %v4817 = vpop.f32.mrf.mxu0
        %v4818 = vadd.f32 %v4740, %v4817
        %v4819 = vpop.f32.mrf.mxu0
        %v4820 = vadd.f32 %v4742, %v4819
        %4821 = vdwg.mxu0
        %4822 = vmatprep.subr.mxu0 0.0
        %4823 = vmatpush1.msra.mxu0 0.0
        %4824 = vmatprep.subr.mxu0 0.0
        %4825 = vmatpush1.msra.mxu0 0.0
        %4826 = vmatprep.subr.mxu0 0.0
        %4827 = vmatpush1.msra.mxu0 0.0
        %4828 = vmatprep.subr.mxu0 0.0
        %4829 = vmatpush1.msra.mxu0 0.0
        %4830 = vmatprep.subr.mxu0 0.0
        %4831 = vmatpush1.msra.mxu0 0.0
        %4832 = vmatprep.subr.mxu0 0.0
        %4833 = vmatpush1.msra.mxu0 0.0
        %4834 = vmatprep.subr.mxu0 0.0
        %4835 = vmatpush1.msra.mxu0 0.0
        %4836 = vmatprep.subr.mxu0 0.0
        %4837 = vmatpush1.msra.mxu0 0.0
        %4838 = vmatprep.subr.mxu0 0.0
        %4839 = vmatpush1.msra.mxu0 0.0
        %4840 = vmatprep.subr.mxu0 0.0
        %4841 = vmatpush1.msra.mxu0 0.0
        %4842 = vmatprep.subr.mxu0 0.0
        %4843 = vmatpush1.msra.mxu0 0.0
        %4844 = vmatprep.subr.mxu0 0.0
        %4845 = vmatpush1.msra.mxu0 0.0
        %4846 = vmatprep.subr.mxu0 0.0
        %4847 = vmatpush1.msra.mxu0 0.0
        %4848 = vmatprep.subr.mxu0 0.0
        %4849 = vmatpush1.msra.mxu0 0.0
        %4850 = vmatprep.subr.mxu0 0.0
        %4851 = vmatpush1.msra.mxu0 0.0
        %v4852 = vand.u32 %v4425, 4294901760
        %4853 = vmatprep.subr.mxu0 %v4852
        %v4854 = vand.u32 %v4424, 4294901760
        %4855 = vmatpush1.msra.mxu0 %v4854
        %4856 = vmatprep.subr.mxu0 0.0
        %4857 = vmatpush2.msra.mxu0 0.0
        %4858 = vmatprep.subr.mxu0 0.0
        %4859 = vmatpush2.msra.mxu0 0.0
        %4860 = vmatprep.subr.mxu0 0.0
        %4861 = vmatpush2.msra.mxu0 0.0
        %4862 = vmatprep.subr.mxu0 0.0
        %4863 = vmatpush2.msra.mxu0 0.0
        %4864 = vmatprep.subr.mxu0 0.0
        %4865 = vmatpush2.msra.mxu0 0.0
        %4866 = vmatprep.subr.mxu0 0.0
        %4867 = vmatpush2.msra.mxu0 0.0
        %4868 = vmatprep.subr.mxu0 0.0
        %4869 = vmatpush2.msra.mxu0 0.0
        %4870 = vmatprep.subr.mxu0 0.0
        %4871 = vmatpush2.msra.mxu0 0.0
        %4872 = vmatprep.subr.mxu0 0.0
        %4873 = vmatpush2.msra.mxu0 0.0
        %4874 = vmatprep.subr.mxu0 0.0
        %4875 = vmatpush2.msra.mxu0 0.0
        %4876 = vmatprep.subr.mxu0 0.0
        %4877 = vmatpush2.msra.mxu0 0.0
        %4878 = vmatprep.subr.mxu0 0.0
        %4879 = vmatpush2.msra.mxu0 0.0
        %4880 = vmatprep.subr.mxu0 0.0
        %4881 = vmatpush2.msra.mxu0 0.0
        %4882 = vmatprep.subr.mxu0 0.0
        %4883 = vmatpush2.msra.mxu0 0.0
        %4884 = vmatprep.subr.mxu0 0.0
        %4885 = vmatpush2.msra.mxu0 0.0
        %4886 = vmatprep.subr.mxu0 0.0
        %4887 = vmatpush2.msra.mxu0 0.0
        %4888 = vmatprep.mubr.f32.mxu0 0.0
        %v4889 = vand.u32 %v4429, 4294901760
        %4890 = vmatmul.mubr.f32.gmra.mxu0 %v4889
        %v4891 = vpop.f32.mrf.mxu0
        %v4892 = vadd.f32 %v4818, %v4891
        %v4893 = vpop.f32.mrf.mxu0
        %v4894 = vadd.f32 %v4820, %v4893
        %4895 = vdwg.mxu0
        %v4896 = vadd.f32 %v4387, %v4892
        %v4897 = vadd.f32 %v4388, %v4894
        %v4898 = vld [vmem:[%s4] sm:$0xff]
        %4900 = vset.pattern.permute.xlu0 0
        %4901 = vperm.xlu0 %4900, %v4898
        %v4902 = vpop.permute.xlu0 %4901
        %v4904 = vmul.f32 %v4896, %v4902
        %v4905 = vmul.f32 %v4897, %v4902
        %v4906 = vld [vmem:[%s5] sm:$0xff]
        %4908 = vset.pattern.permute.xlu0 0
        %4909 = vperm.xlu0 %4908, %v4906
        %v4910 = vpop.permute.xlu0 %4909
        %v4912 = vadd.f32 %v4904, %v4910
        %v4913 = vadd.f32 %v4905, %v4910
        %v4914 = vmax.f32 %v4912, 0.0
        %v4915 = vmax.f32 %v4913, 0.0
        %4918 = vrot.lane.b32.xlu0 %v4914, 17
        %v4919 = vpop.permute.xlu0 %4918
        %4920 = vrot.lane.b32.xlu0 %v4915, 17
        %v4921 = vpop.permute.xlu0 %4920
        %v4922 = vsel %vm306, %v4919, %v4921
        %4926 = vst.msk [vmem:[#allocation2] sm:$0xff] %vm338, %v4919
        %4927 = vst [vmem:[#allocation2 + $0x8] sm:$0xff] %v4922
        %4928 = vst.msk [vmem:[#allocation2 + $0x10] sm:$0xff] %vm306, %v4921
        %v4929 = vld [vmem:[#allocation2] sm:$0xff]
        %v4930 = vld [vmem:[#allocation2 + $0x8] sm:$0xff]
        %v4931 = vld [vmem:[%s7] sm:$0x3]
        %v4933 = vlaneseq
        %v4934 = vshrl.u32 %v4933, 7
        %v4935 = vsub.s32 0, %v4934
        %v4936 = vrot.slane %v4931, %v4935
        %v4937 = vlaneseq
        %v4938 = vshrl.u32 %v4937, 7
        %v4939 = vsub.s32 1, %v4938
        %v4940 = vrot.slane %v4931, %v4939
        %v4943 = vmul.f32 %v4929, %v4936
        %v4944 = vmul.f32 %v4930, %v4940
        %v4945 = vld [vmem:[%s6] sm:$0xff]
        %v4946 = vld [vmem:[#allocation2 + $0x10] sm:$0xff]
        %v4947 = vld [vmem:[%s360] sm:$0x3]
        %v4949 = vlaneseq
        %v4950 = vshrl.u32 %v4949, 7
        %v4951 = vsub.s32 0, %v4950
        %v4952 = vrot.slane %v4947, %v4951
        %v4953 = vlaneseq
        %v4954 = vshrl.u32 %v4953, 7
        %v4955 = vsub.s32 1, %v4954
        %v4956 = vrot.slane %v4947, %v4955
        %4957 = vrot.lane.b32.xlu0 %v4952, 1
        %v4958 = vpop.permute.xlu0 %4957
        %4959 = vrot.lane.b32.xlu0 %v4956, 1
        %v4960 = vpop.permute.xlu0 %4959
        %v4961 = vsel %vm375, %v4958, %v4960
        %v4965 = vmul.f32 %v4929, %v4958
        %v4966 = vmul.f32 %v4930, %v4961
        %v4967 = vmul.f32 %v4946, %v4960
        %s4968 = scalar_lea.vmem %s6, 8
        %v4969 = vld [vmem:[%s4968] sm:$0xff]
        %4973 = vrot.lane.b32.xlu0 %v4965, 127
        %v4974 = vpop.permute.xlu0 %4973
        %4975 = vrot.lane.b32.xlu0 %v4966, 127
        %v4976 = vpop.permute.xlu0 %4975
        %4977 = vrot.lane.b32.xlu0 %v4967, 127
        %v4978 = vpop.permute.xlu0 %4977
        %v4979 = vsel %vm394, %v4974, %v4976
        %v4980 = vsel %vm394, %v4976, %v4978
        %v4984 = vsel %vm399, %v4969, 0
        %4986 = vmatprep.subr.mxu0 0.0
        %4987 = vmatpush1.msra.mxu0 0.0
        %4988 = vmatprep.subr.mxu0 0.0
        %4989 = vmatpush1.msra.mxu0 0.0
        %4990 = vmatprep.subr.mxu0 0.0
        %4991 = vmatpush1.msra.mxu0 0.0
        %4992 = vmatprep.subr.mxu0 0.0
        %4993 = vmatpush1.msra.mxu0 0.0
        %4994 = vmatprep.subr.mxu0 0.0
        %4995 = vmatpush1.msra.mxu0 0.0
        %4996 = vmatprep.subr.mxu0 0.0
        %4997 = vmatpush1.msra.mxu0 0.0
        %4998 = vmatprep.subr.mxu0 0.0
        %4999 = vmatpush1.msra.mxu0 0.0
        %5000 = vmatprep.subr.mxu0 0.0
        %5001 = vmatpush1.msra.mxu0 0.0
        %5002 = vmatprep.subr.mxu0 0.0
        %5003 = vmatpush1.msra.mxu0 0.0
        %5004 = vmatprep.subr.mxu0 0.0
        %5005 = vmatpush1.msra.mxu0 0.0
        %5006 = vmatprep.subr.mxu0 0.0
        %5007 = vmatpush1.msra.mxu0 0.0
        %5008 = vmatprep.subr.mxu0 0.0
        %5009 = vmatpush1.msra.mxu0 0.0
        %5010 = vmatprep.subr.mxu0 0.0
        %5011 = vmatpush1.msra.mxu0 0.0
        %5012 = vmatprep.subr.mxu0 0.0
        %5013 = vmatpush1.msra.mxu0 0.0
        %5014 = vmatprep.subr.mxu0 0.0
        %5015 = vmatpush1.msra.mxu0 0.0
        %v5016 = vand.u32 %v4980, 4294901760
        %5017 = vmatprep.subr.mxu0 %v5016
        %v5018 = vand.u32 %v4979, 4294901760
        %5019 = vmatpush1.msra.mxu0 %v5018
        %5020 = vmatprep.subr.mxu0 0.0
        %5021 = vmatpush2.msra.mxu0 0.0
        %5022 = vmatprep.subr.mxu0 0.0
        %5023 = vmatpush2.msra.mxu0 0.0
        %5024 = vmatprep.subr.mxu0 0.0
        %5025 = vmatpush2.msra.mxu0 0.0
        %5026 = vmatprep.subr.mxu0 0.0
        %5027 = vmatpush2.msra.mxu0 0.0
        %5028 = vmatprep.subr.mxu0 0.0
        %5029 = vmatpush2.msra.mxu0 0.0
        %5030 = vmatprep.subr.mxu0 0.0
        %5031 = vmatpush2.msra.mxu0 0.0
        %5032 = vmatprep.subr.mxu0 0.0
        %5033 = vmatpush2.msra.mxu0 0.0
        %5034 = vmatprep.subr.mxu0 0.0
        %5035 = vmatpush2.msra.mxu0 0.0
        %5036 = vmatprep.subr.mxu0 0.0
        %5037 = vmatpush2.msra.mxu0 0.0
        %5038 = vmatprep.subr.mxu0 0.0
        %5039 = vmatpush2.msra.mxu0 0.0
        %5040 = vmatprep.subr.mxu0 0.0
        %5041 = vmatpush2.msra.mxu0 0.0
        %5042 = vmatprep.subr.mxu0 0.0
        %5043 = vmatpush2.msra.mxu0 0.0
        %5044 = vmatprep.subr.mxu0 0.0
        %5045 = vmatpush2.msra.mxu0 0.0
        %5046 = vmatprep.subr.mxu0 0.0
        %5047 = vmatpush2.msra.mxu0 0.0
        %5048 = vmatprep.subr.mxu0 0.0
        %5049 = vmatpush2.msra.mxu0 0.0
        %5050 = vmatprep.subr.mxu0 0.0
        %5051 = vmatpush2.msra.mxu0 0.0
        %5052 = vmatprep.mubr.f32.mxu0 0.0
        %v5053 = vand.u32 %v4984, 4294901760
        %v5054 = vsub.f32 %v4984, %v5053
        %v5055 = vand.u32 %v5054, 4294901760
        %v5056 = vsub.f32 %v5054, %v5055
        %v5057 = vand.u32 %v5056, 4294901760
        %5058 = vmatmul.mubr.f32.gmra.mxu0 %v5057
        %v5059 = vpop.f32.mrf.mxu0
        %v5060 = vadd.f32 0.0, %v5059
        %v5061 = vpop.f32.mrf.mxu0
        %v5062 = vadd.f32 0.0, %v5061
        %5063 = vdwg.mxu0
        %5064 = vmatprep.subr.mxu0 0.0
        %5065 = vmatpush1.msra.mxu0 0.0
        %5066 = vmatprep.subr.mxu0 0.0
        %5067 = vmatpush1.msra.mxu0 0.0
        %5068 = vmatprep.subr.mxu0 0.0
        %5069 = vmatpush1.msra.mxu0 0.0
        %5070 = vmatprep.subr.mxu0 0.0
        %5071 = vmatpush1.msra.mxu0 0.0
        %5072 = vmatprep.subr.mxu0 0.0
        %5073 = vmatpush1.msra.mxu0 0.0
        %5074 = vmatprep.subr.mxu0 0.0
        %5075 = vmatpush1.msra.mxu0 0.0
        %5076 = vmatprep.subr.mxu0 0.0
        %5077 = vmatpush1.msra.mxu0 0.0
        %5078 = vmatprep.subr.mxu0 0.0
        %5079 = vmatpush1.msra.mxu0 0.0
        %5080 = vmatprep.subr.mxu0 0.0
        %5081 = vmatpush1.msra.mxu0 0.0
        %5082 = vmatprep.subr.mxu0 0.0
        %5083 = vmatpush1.msra.mxu0 0.0
        %5084 = vmatprep.subr.mxu0 0.0
        %5085 = vmatpush1.msra.mxu0 0.0
        %5086 = vmatprep.subr.mxu0 0.0
        %5087 = vmatpush1.msra.mxu0 0.0
        %5088 = vmatprep.subr.mxu0 0.0
        %5089 = vmatpush1.msra.mxu0 0.0
        %5090 = vmatprep.subr.mxu0 0.0
        %5091 = vmatpush1.msra.mxu0 0.0
        %5092 = vmatprep.subr.mxu0 0.0
        %5093 = vmatpush1.msra.mxu0 0.0
        %v5094 = vand.u32 %v4980, 4294901760
        %v5095 = vsub.f32 %v4980, %v5094
        %v5096 = vand.u32 %v5095, 4294901760
        %v5097 = vsub.f32 %v5095, %v5096
        %v5098 = vand.u32 %v5097, 4294901760
        %5099 = vmatprep.subr.mxu0 %v5098
        %v5100 = vand.u32 %v4979, 4294901760
        %v5101 = vsub.f32 %v4979, %v5100
        %v5102 = vand.u32 %v5101, 4294901760
        %v5103 = vsub.f32 %v5101, %v5102
        %v5104 = vand.u32 %v5103, 4294901760
        %5105 = vmatpush1.msra.mxu0 %v5104
        %5106 = vmatprep.subr.mxu0 0.0
        %5107 = vmatpush2.msra.mxu0 0.0
        %5108 = vmatprep.subr.mxu0 0.0
        %5109 = vmatpush2.msra.mxu0 0.0
        %5110 = vmatprep.subr.mxu0 0.0
        %5111 = vmatpush2.msra.mxu0 0.0
        %5112 = vmatprep.subr.mxu0 0.0
        %5113 = vmatpush2.msra.mxu0 0.0
        %5114 = vmatprep.subr.mxu0 0.0
        %5115 = vmatpush2.msra.mxu0 0.0
        %5116 = vmatprep.subr.mxu0 0.0
        %5117 = vmatpush2.msra.mxu0 0.0
        %5118 = vmatprep.subr.mxu0 0.0
        %5119 = vmatpush2.msra.mxu0 0.0
        %5120 = vmatprep.subr.mxu0 0.0
        %5121 = vmatpush2.msra.mxu0 0.0
        %5122 = vmatprep.subr.mxu0 0.0
        %5123 = vmatpush2.msra.mxu0 0.0
        %5124 = vmatprep.subr.mxu0 0.0
        %5125 = vmatpush2.msra.mxu0 0.0
        %5126 = vmatprep.subr.mxu0 0.0
        %5127 = vmatpush2.msra.mxu0 0.0
        %5128 = vmatprep.subr.mxu0 0.0
        %5129 = vmatpush2.msra.mxu0 0.0
        %5130 = vmatprep.subr.mxu0 0.0
        %5131 = vmatpush2.msra.mxu0 0.0
        %5132 = vmatprep.subr.mxu0 0.0
        %5133 = vmatpush2.msra.mxu0 0.0
        %5134 = vmatprep.subr.mxu0 0.0
        %5135 = vmatpush2.msra.mxu0 0.0
        %5136 = vmatprep.subr.mxu0 0.0
        %5137 = vmatpush2.msra.mxu0 0.0
        %5138 = vmatprep.mubr.f32.mxu0 0.0
        %v5139 = vand.u32 %v4984, 4294901760
        %5140 = vmatmul.mubr.f32.gmra.mxu0 %v5139
        %v5141 = vpop.f32.mrf.mxu0
        %v5142 = vadd.f32 %v5060, %v5141
        %v5143 = vpop.f32.mrf.mxu0
        %v5144 = vadd.f32 %v5062, %v5143
        %5145 = vdwg.mxu0
        %5146 = vmatprep.subr.mxu0 0.0
        %5147 = vmatpush1.msra.mxu0 0.0
        %5148 = vmatprep.subr.mxu0 0.0
        %5149 = vmatpush1.msra.mxu0 0.0
        %5150 = vmatprep.subr.mxu0 0.0
        %5151 = vmatpush1.msra.mxu0 0.0
        %5152 = vmatprep.subr.mxu0 0.0
        %5153 = vmatpush1.msra.mxu0 0.0
        %5154 = vmatprep.subr.mxu0 0.0
        %5155 = vmatpush1.msra.mxu0 0.0
        %5156 = vmatprep.subr.mxu0 0.0
        %5157 = vmatpush1.msra.mxu0 0.0
        %5158 = vmatprep.subr.mxu0 0.0
        %5159 = vmatpush1.msra.mxu0 0.0
        %5160 = vmatprep.subr.mxu0 0.0
        %5161 = vmatpush1.msra.mxu0 0.0
        %5162 = vmatprep.subr.mxu0 0.0
        %5163 = vmatpush1.msra.mxu0 0.0
        %5164 = vmatprep.subr.mxu0 0.0
        %5165 = vmatpush1.msra.mxu0 0.0
        %5166 = vmatprep.subr.mxu0 0.0
        %5167 = vmatpush1.msra.mxu0 0.0
        %5168 = vmatprep.subr.mxu0 0.0
        %5169 = vmatpush1.msra.mxu0 0.0
        %5170 = vmatprep.subr.mxu0 0.0
        %5171 = vmatpush1.msra.mxu0 0.0
        %5172 = vmatprep.subr.mxu0 0.0
        %5173 = vmatpush1.msra.mxu0 0.0
        %5174 = vmatprep.subr.mxu0 0.0
        %5175 = vmatpush1.msra.mxu0 0.0
        %v5176 = vand.u32 %v4980, 4294901760
        %v5177 = vsub.f32 %v4980, %v5176
        %5178 = vmatprep.subr.mxu0 %v5177
        %v5179 = vand.u32 %v4979, 4294901760
        %v5180 = vsub.f32 %v4979, %v5179
        %5181 = vmatpush1.msra.mxu0 %v5180
        %5182 = vmatprep.subr.mxu0 0.0
        %5183 = vmatpush2.msra.mxu0 0.0
        %5184 = vmatprep.subr.mxu0 0.0
        %5185 = vmatpush2.msra.mxu0 0.0
        %5186 = vmatprep.subr.mxu0 0.0
        %5187 = vmatpush2.msra.mxu0 0.0
        %5188 = vmatprep.subr.mxu0 0.0
        %5189 = vmatpush2.msra.mxu0 0.0
        %5190 = vmatprep.subr.mxu0 0.0
        %5191 = vmatpush2.msra.mxu0 0.0
        %5192 = vmatprep.subr.mxu0 0.0
        %5193 = vmatpush2.msra.mxu0 0.0
        %5194 = vmatprep.subr.mxu0 0.0
        %5195 = vmatpush2.msra.mxu0 0.0
        %5196 = vmatprep.subr.mxu0 0.0
        %5197 = vmatpush2.msra.mxu0 0.0
        %5198 = vmatprep.subr.mxu0 0.0
        %5199 = vmatpush2.msra.mxu0 0.0
        %5200 = vmatprep.subr.mxu0 0.0
        %5201 = vmatpush2.msra.mxu0 0.0
        %5202 = vmatprep.subr.mxu0 0.0
        %5203 = vmatpush2.msra.mxu0 0.0
        %5204 = vmatprep.subr.mxu0 0.0
        %5205 = vmatpush2.msra.mxu0 0.0
        %5206 = vmatprep.subr.mxu0 0.0
        %5207 = vmatpush2.msra.mxu0 0.0
        %5208 = vmatprep.subr.mxu0 0.0
        %5209 = vmatpush2.msra.mxu0 0.0
        %5210 = vmatprep.subr.mxu0 0.0
        %5211 = vmatpush2.msra.mxu0 0.0
        %5212 = vmatprep.subr.mxu0 0.0
        %5213 = vmatpush2.msra.mxu0 0.0
        %5214 = vmatprep.mubr.f32.mxu0 0.0
        %v5215 = vand.u32 %v4984, 4294901760
        %v5216 = vsub.f32 %v4984, %v5215
        %5217 = vmatmul.mubr.f32.gmra.mxu0 %v5216
        %v5218 = vpop.f32.mrf.mxu0
        %v5219 = vadd.f32 %v5142, %v5218
        %v5220 = vpop.f32.mrf.mxu0
        %v5221 = vadd.f32 %v5144, %v5220
        %5222 = vdwg.mxu0
        %5223 = vmatprep.subr.mxu0 0.0
        %5224 = vmatpush1.msra.mxu0 0.0
        %5225 = vmatprep.subr.mxu0 0.0
        %5226 = vmatpush1.msra.mxu0 0.0
        %5227 = vmatprep.subr.mxu0 0.0
        %5228 = vmatpush1.msra.mxu0 0.0
        %5229 = vmatprep.subr.mxu0 0.0
        %5230 = vmatpush1.msra.mxu0 0.0
        %5231 = vmatprep.subr.mxu0 0.0
        %5232 = vmatpush1.msra.mxu0 0.0
        %5233 = vmatprep.subr.mxu0 0.0
        %5234 = vmatpush1.msra.mxu0 0.0
        %5235 = vmatprep.subr.mxu0 0.0
        %5236 = vmatpush1.msra.mxu0 0.0
        %5237 = vmatprep.subr.mxu0 0.0
        %5238 = vmatpush1.msra.mxu0 0.0
        %5239 = vmatprep.subr.mxu0 0.0
        %5240 = vmatpush1.msra.mxu0 0.0
        %5241 = vmatprep.subr.mxu0 0.0
        %5242 = vmatpush1.msra.mxu0 0.0
        %5243 = vmatprep.subr.mxu0 0.0
        %5244 = vmatpush1.msra.mxu0 0.0
        %5245 = vmatprep.subr.mxu0 0.0
        %5246 = vmatpush1.msra.mxu0 0.0
        %5247 = vmatprep.subr.mxu0 0.0
        %5248 = vmatpush1.msra.mxu0 0.0
        %5249 = vmatprep.subr.mxu0 0.0
        %5250 = vmatpush1.msra.mxu0 0.0
        %5251 = vmatprep.subr.mxu0 0.0
        %5252 = vmatpush1.msra.mxu0 0.0
        %v5253 = vand.u32 %v4980, 4294901760
        %5254 = vmatprep.subr.mxu0 %v5253
        %v5255 = vand.u32 %v4979, 4294901760
        %5256 = vmatpush1.msra.mxu0 %v5255
        %5257 = vmatprep.subr.mxu0 0.0
        %5258 = vmatpush2.msra.mxu0 0.0
        %5259 = vmatprep.subr.mxu0 0.0
        %5260 = vmatpush2.msra.mxu0 0.0
        %5261 = vmatprep.subr.mxu0 0.0
        %5262 = vmatpush2.msra.mxu0 0.0
        %5263 = vmatprep.subr.mxu0 0.0
        %5264 = vmatpush2.msra.mxu0 0.0
        %5265 = vmatprep.subr.mxu0 0.0
        %5266 = vmatpush2.msra.mxu0 0.0
        %5267 = vmatprep.subr.mxu0 0.0
        %5268 = vmatpush2.msra.mxu0 0.0
        %5269 = vmatprep.subr.mxu0 0.0
        %5270 = vmatpush2.msra.mxu0 0.0
        %5271 = vmatprep.subr.mxu0 0.0
        %5272 = vmatpush2.msra.mxu0 0.0
        %5273 = vmatprep.subr.mxu0 0.0
        %5274 = vmatpush2.msra.mxu0 0.0
        %5275 = vmatprep.subr.mxu0 0.0
        %5276 = vmatpush2.msra.mxu0 0.0
        %5277 = vmatprep.subr.mxu0 0.0
        %5278 = vmatpush2.msra.mxu0 0.0
        %5279 = vmatprep.subr.mxu0 0.0
        %5280 = vmatpush2.msra.mxu0 0.0
        %5281 = vmatprep.subr.mxu0 0.0
        %5282 = vmatpush2.msra.mxu0 0.0
        %5283 = vmatprep.subr.mxu0 0.0
        %5284 = vmatpush2.msra.mxu0 0.0
        %5285 = vmatprep.subr.mxu0 0.0
        %5286 = vmatpush2.msra.mxu0 0.0
        %5287 = vmatprep.subr.mxu0 0.0
        %5288 = vmatpush2.msra.mxu0 0.0
        %5289 = vmatprep.mubr.f32.mxu0 0.0
        %v5290 = vand.u32 %v4984, 4294901760
        %v5291 = vsub.f32 %v4984, %v5290
        %v5292 = vand.u32 %v5291, 4294901760
        %5293 = vmatmul.mubr.f32.gmra.mxu0 %v5292
        %v5294 = vpop.f32.mrf.mxu0
        %v5295 = vadd.f32 %v5219, %v5294
        %v5296 = vpop.f32.mrf.mxu0
        %v5297 = vadd.f32 %v5221, %v5296
        %5298 = vdwg.mxu0
        %5299 = vmatprep.subr.mxu0 0.0
        %5300 = vmatpush1.msra.mxu0 0.0
        %5301 = vmatprep.subr.mxu0 0.0
        %5302 = vmatpush1.msra.mxu0 0.0
        %5303 = vmatprep.subr.mxu0 0.0
        %5304 = vmatpush1.msra.mxu0 0.0
        %5305 = vmatprep.subr.mxu0 0.0
        %5306 = vmatpush1.msra.mxu0 0.0
        %5307 = vmatprep.subr.mxu0 0.0
        %5308 = vmatpush1.msra.mxu0 0.0
        %5309 = vmatprep.subr.mxu0 0.0
        %5310 = vmatpush1.msra.mxu0 0.0
        %5311 = vmatprep.subr.mxu0 0.0
        %5312 = vmatpush1.msra.mxu0 0.0
        %5313 = vmatprep.subr.mxu0 0.0
        %5314 = vmatpush1.msra.mxu0 0.0
        %5315 = vmatprep.subr.mxu0 0.0
        %5316 = vmatpush1.msra.mxu0 0.0
        %5317 = vmatprep.subr.mxu0 0.0
        %5318 = vmatpush1.msra.mxu0 0.0
        %5319 = vmatprep.subr.mxu0 0.0
        %5320 = vmatpush1.msra.mxu0 0.0
        %5321 = vmatprep.subr.mxu0 0.0
        %5322 = vmatpush1.msra.mxu0 0.0
        %5323 = vmatprep.subr.mxu0 0.0
        %5324 = vmatpush1.msra.mxu0 0.0
        %5325 = vmatprep.subr.mxu0 0.0
        %5326 = vmatpush1.msra.mxu0 0.0
        %5327 = vmatprep.subr.mxu0 0.0
        %5328 = vmatpush1.msra.mxu0 0.0
        %v5329 = vand.u32 %v4980, 4294901760
        %v5330 = vsub.f32 %v4980, %v5329
        %v5331 = vand.u32 %v5330, 4294901760
        %5332 = vmatprep.subr.mxu0 %v5331
        %v5333 = vand.u32 %v4979, 4294901760
        %v5334 = vsub.f32 %v4979, %v5333
        %v5335 = vand.u32 %v5334, 4294901760
        %5336 = vmatpush1.msra.mxu0 %v5335
        %5337 = vmatprep.subr.mxu0 0.0
        %5338 = vmatpush2.msra.mxu0 0.0
        %5339 = vmatprep.subr.mxu0 0.0
        %5340 = vmatpush2.msra.mxu0 0.0
        %5341 = vmatprep.subr.mxu0 0.0
        %5342 = vmatpush2.msra.mxu0 0.0
        %5343 = vmatprep.subr.mxu0 0.0
        %5344 = vmatpush2.msra.mxu0 0.0
        %5345 = vmatprep.subr.mxu0 0.0
        %5346 = vmatpush2.msra.mxu0 0.0
        %5347 = vmatprep.subr.mxu0 0.0
        %5348 = vmatpush2.msra.mxu0 0.0
        %5349 = vmatprep.subr.mxu0 0.0
        %5350 = vmatpush2.msra.mxu0 0.0
        %5351 = vmatprep.subr.mxu0 0.0
        %5352 = vmatpush2.msra.mxu0 0.0
        %5353 = vmatprep.subr.mxu0 0.0
        %5354 = vmatpush2.msra.mxu0 0.0
        %5355 = vmatprep.subr.mxu0 0.0
        %5356 = vmatpush2.msra.mxu0 0.0
        %5357 = vmatprep.subr.mxu0 0.0
        %5358 = vmatpush2.msra.mxu0 0.0
        %5359 = vmatprep.subr.mxu0 0.0
        %5360 = vmatpush2.msra.mxu0 0.0
        %5361 = vmatprep.subr.mxu0 0.0
        %5362 = vmatpush2.msra.mxu0 0.0
        %5363 = vmatprep.subr.mxu0 0.0
        %5364 = vmatpush2.msra.mxu0 0.0
        %5365 = vmatprep.subr.mxu0 0.0
        %5366 = vmatpush2.msra.mxu0 0.0
        %5367 = vmatprep.subr.mxu0 0.0
        %5368 = vmatpush2.msra.mxu0 0.0
        %5369 = vmatprep.mubr.f32.mxu0 0.0
        %v5370 = vand.u32 %v4984, 4294901760
        %5371 = vmatmul.mubr.f32.gmra.mxu0 %v5370
        %v5372 = vpop.f32.mrf.mxu0
        %v5373 = vadd.f32 %v5295, %v5372
        %v5374 = vpop.f32.mrf.mxu0
        %v5375 = vadd.f32 %v5297, %v5374
        %5376 = vdwg.mxu0
        %5377 = vmatprep.subr.mxu0 0.0
        %5378 = vmatpush1.msra.mxu0 0.0
        %5379 = vmatprep.subr.mxu0 0.0
        %5380 = vmatpush1.msra.mxu0 0.0
        %5381 = vmatprep.subr.mxu0 0.0
        %5382 = vmatpush1.msra.mxu0 0.0
        %5383 = vmatprep.subr.mxu0 0.0
        %5384 = vmatpush1.msra.mxu0 0.0
        %5385 = vmatprep.subr.mxu0 0.0
        %5386 = vmatpush1.msra.mxu0 0.0
        %5387 = vmatprep.subr.mxu0 0.0
        %5388 = vmatpush1.msra.mxu0 0.0
        %5389 = vmatprep.subr.mxu0 0.0
        %5390 = vmatpush1.msra.mxu0 0.0
        %5391 = vmatprep.subr.mxu0 0.0
        %5392 = vmatpush1.msra.mxu0 0.0
        %5393 = vmatprep.subr.mxu0 0.0
        %5394 = vmatpush1.msra.mxu0 0.0
        %5395 = vmatprep.subr.mxu0 0.0
        %5396 = vmatpush1.msra.mxu0 0.0
        %5397 = vmatprep.subr.mxu0 0.0
        %5398 = vmatpush1.msra.mxu0 0.0
        %5399 = vmatprep.subr.mxu0 0.0
        %5400 = vmatpush1.msra.mxu0 0.0
        %5401 = vmatprep.subr.mxu0 0.0
        %5402 = vmatpush1.msra.mxu0 0.0
        %5403 = vmatprep.subr.mxu0 0.0
        %5404 = vmatpush1.msra.mxu0 0.0
        %5405 = vmatprep.subr.mxu0 0.0
        %5406 = vmatpush1.msra.mxu0 0.0
        %v5407 = vand.u32 %v4980, 4294901760
        %5408 = vmatprep.subr.mxu0 %v5407
        %v5409 = vand.u32 %v4979, 4294901760
        %5410 = vmatpush1.msra.mxu0 %v5409
        %5411 = vmatprep.subr.mxu0 0.0
        %5412 = vmatpush2.msra.mxu0 0.0
        %5413 = vmatprep.subr.mxu0 0.0
        %5414 = vmatpush2.msra.mxu0 0.0
        %5415 = vmatprep.subr.mxu0 0.0
        %5416 = vmatpush2.msra.mxu0 0.0
        %5417 = vmatprep.subr.mxu0 0.0
        %5418 = vmatpush2.msra.mxu0 0.0
        %5419 = vmatprep.subr.mxu0 0.0
        %5420 = vmatpush2.msra.mxu0 0.0
        %5421 = vmatprep.subr.mxu0 0.0
        %5422 = vmatpush2.msra.mxu0 0.0
        %5423 = vmatprep.subr.mxu0 0.0
        %5424 = vmatpush2.msra.mxu0 0.0
        %5425 = vmatprep.subr.mxu0 0.0
        %5426 = vmatpush2.msra.mxu0 0.0
        %5427 = vmatprep.subr.mxu0 0.0
        %5428 = vmatpush2.msra.mxu0 0.0
        %5429 = vmatprep.subr.mxu0 0.0
        %5430 = vmatpush2.msra.mxu0 0.0
        %5431 = vmatprep.subr.mxu0 0.0
        %5432 = vmatpush2.msra.mxu0 0.0
        %5433 = vmatprep.subr.mxu0 0.0
        %5434 = vmatpush2.msra.mxu0 0.0
        %5435 = vmatprep.subr.mxu0 0.0
        %5436 = vmatpush2.msra.mxu0 0.0
        %5437 = vmatprep.subr.mxu0 0.0
        %5438 = vmatpush2.msra.mxu0 0.0
        %5439 = vmatprep.subr.mxu0 0.0
        %5440 = vmatpush2.msra.mxu0 0.0
        %5441 = vmatprep.subr.mxu0 0.0
        %5442 = vmatpush2.msra.mxu0 0.0
        %5443 = vmatprep.mubr.f32.mxu0 0.0
        %v5444 = vand.u32 %v4984, 4294901760
        %5445 = vmatmul.mubr.f32.gmra.mxu0 %v5444
        %v5446 = vpop.f32.mrf.mxu0
        %v5447 = vadd.f32 %v5373, %v5446
        %v5448 = vpop.f32.mrf.mxu0
        %v5449 = vadd.f32 %v5375, %v5448
        %5450 = vdwg.mxu0
        %v5452 = vsel %vm399, %v4945, 0
        %5454 = vmatprep.subr.mxu0 0.0
        %5455 = vmatpush1.msra.mxu0 0.0
        %5456 = vmatprep.subr.mxu0 0.0
        %5457 = vmatpush1.msra.mxu0 0.0
        %5458 = vmatprep.subr.mxu0 0.0
        %5459 = vmatpush1.msra.mxu0 0.0
        %5460 = vmatprep.subr.mxu0 0.0
        %5461 = vmatpush1.msra.mxu0 0.0
        %5462 = vmatprep.subr.mxu0 0.0
        %5463 = vmatpush1.msra.mxu0 0.0
        %5464 = vmatprep.subr.mxu0 0.0
        %5465 = vmatpush1.msra.mxu0 0.0
        %5466 = vmatprep.subr.mxu0 0.0
        %5467 = vmatpush1.msra.mxu0 0.0
        %5468 = vmatprep.subr.mxu0 0.0
        %5469 = vmatpush1.msra.mxu0 0.0
        %5470 = vmatprep.subr.mxu0 0.0
        %5471 = vmatpush1.msra.mxu0 0.0
        %5472 = vmatprep.subr.mxu0 0.0
        %5473 = vmatpush1.msra.mxu0 0.0
        %5474 = vmatprep.subr.mxu0 0.0
        %5475 = vmatpush1.msra.mxu0 0.0
        %5476 = vmatprep.subr.mxu0 0.0
        %5477 = vmatpush1.msra.mxu0 0.0
        %5478 = vmatprep.subr.mxu0 0.0
        %5479 = vmatpush1.msra.mxu0 0.0
        %5480 = vmatprep.subr.mxu0 0.0
        %5481 = vmatpush1.msra.mxu0 0.0
        %5482 = vmatprep.subr.mxu0 0.0
        %5483 = vmatpush1.msra.mxu0 0.0
        %v5484 = vand.u32 %v4944, 4294901760
        %5485 = vmatprep.subr.mxu0 %v5484
        %v5486 = vand.u32 %v4943, 4294901760
        %5487 = vmatpush1.msra.mxu0 %v5486
        %5488 = vmatprep.subr.mxu0 0.0
        %5489 = vmatpush2.msra.mxu0 0.0
        %5490 = vmatprep.subr.mxu0 0.0
        %5491 = vmatpush2.msra.mxu0 0.0
        %5492 = vmatprep.subr.mxu0 0.0
        %5493 = vmatpush2.msra.mxu0 0.0
        %5494 = vmatprep.subr.mxu0 0.0
        %5495 = vmatpush2.msra.mxu0 0.0
        %5496 = vmatprep.subr.mxu0 0.0
        %5497 = vmatpush2.msra.mxu0 0.0
        %5498 = vmatprep.subr.mxu0 0.0
        %5499 = vmatpush2.msra.mxu0 0.0
        %5500 = vmatprep.subr.mxu0 0.0
        %5501 = vmatpush2.msra.mxu0 0.0
        %5502 = vmatprep.subr.mxu0 0.0
        %5503 = vmatpush2.msra.mxu0 0.0
        %5504 = vmatprep.subr.mxu0 0.0
        %5505 = vmatpush2.msra.mxu0 0.0
        %5506 = vmatprep.subr.mxu0 0.0
        %5507 = vmatpush2.msra.mxu0 0.0
        %5508 = vmatprep.subr.mxu0 0.0
        %5509 = vmatpush2.msra.mxu0 0.0
        %5510 = vmatprep.subr.mxu0 0.0
        %5511 = vmatpush2.msra.mxu0 0.0
        %5512 = vmatprep.subr.mxu0 0.0
        %5513 = vmatpush2.msra.mxu0 0.0
        %5514 = vmatprep.subr.mxu0 0.0
        %5515 = vmatpush2.msra.mxu0 0.0
        %5516 = vmatprep.subr.mxu0 0.0
        %5517 = vmatpush2.msra.mxu0 0.0
        %5518 = vmatprep.subr.mxu0 0.0
        %5519 = vmatpush2.msra.mxu0 0.0
        %5520 = vmatprep.mubr.f32.mxu0 0.0
        %v5521 = vand.u32 %v5452, 4294901760
        %v5522 = vsub.f32 %v5452, %v5521
        %v5523 = vand.u32 %v5522, 4294901760
        %v5524 = vsub.f32 %v5522, %v5523
        %v5525 = vand.u32 %v5524, 4294901760
        %5526 = vmatmul.mubr.f32.gmra.mxu0 %v5525
        %v5527 = vpop.f32.mrf.mxu0
        %v5528 = vadd.f32 %v5447, %v5527
        %v5529 = vpop.f32.mrf.mxu0
        %v5530 = vadd.f32 %v5449, %v5529
        %5531 = vdwg.mxu0
        %5532 = vmatprep.subr.mxu0 0.0
        %5533 = vmatpush1.msra.mxu0 0.0
        %5534 = vmatprep.subr.mxu0 0.0
        %5535 = vmatpush1.msra.mxu0 0.0
        %5536 = vmatprep.subr.mxu0 0.0
        %5537 = vmatpush1.msra.mxu0 0.0
        %5538 = vmatprep.subr.mxu0 0.0
        %5539 = vmatpush1.msra.mxu0 0.0
        %5540 = vmatprep.subr.mxu0 0.0
        %5541 = vmatpush1.msra.mxu0 0.0
        %5542 = vmatprep.subr.mxu0 0.0
        %5543 = vmatpush1.msra.mxu0 0.0
        %5544 = vmatprep.subr.mxu0 0.0
        %5545 = vmatpush1.msra.mxu0 0.0
        %5546 = vmatprep.subr.mxu0 0.0
        %5547 = vmatpush1.msra.mxu0 0.0
        %5548 = vmatprep.subr.mxu0 0.0
        %5549 = vmatpush1.msra.mxu0 0.0
        %5550 = vmatprep.subr.mxu0 0.0
        %5551 = vmatpush1.msra.mxu0 0.0
        %5552 = vmatprep.subr.mxu0 0.0
        %5553 = vmatpush1.msra.mxu0 0.0
        %5554 = vmatprep.subr.mxu0 0.0
        %5555 = vmatpush1.msra.mxu0 0.0
        %5556 = vmatprep.subr.mxu0 0.0
        %5557 = vmatpush1.msra.mxu0 0.0
        %5558 = vmatprep.subr.mxu0 0.0
        %5559 = vmatpush1.msra.mxu0 0.0
        %5560 = vmatprep.subr.mxu0 0.0
        %5561 = vmatpush1.msra.mxu0 0.0
        %v5562 = vand.u32 %v4944, 4294901760
        %v5563 = vsub.f32 %v4944, %v5562
        %v5564 = vand.u32 %v5563, 4294901760
        %v5565 = vsub.f32 %v5563, %v5564
        %v5566 = vand.u32 %v5565, 4294901760
        %5567 = vmatprep.subr.mxu0 %v5566
        %v5568 = vand.u32 %v4943, 4294901760
        %v5569 = vsub.f32 %v4943, %v5568
        %v5570 = vand.u32 %v5569, 4294901760
        %v5571 = vsub.f32 %v5569, %v5570
        %v5572 = vand.u32 %v5571, 4294901760
        %5573 = vmatpush1.msra.mxu0 %v5572
        %5574 = vmatprep.subr.mxu0 0.0
        %5575 = vmatpush2.msra.mxu0 0.0
        %5576 = vmatprep.subr.mxu0 0.0
        %5577 = vmatpush2.msra.mxu0 0.0
        %5578 = vmatprep.subr.mxu0 0.0
        %5579 = vmatpush2.msra.mxu0 0.0
        %5580 = vmatprep.subr.mxu0 0.0
        %5581 = vmatpush2.msra.mxu0 0.0
        %5582 = vmatprep.subr.mxu0 0.0
        %5583 = vmatpush2.msra.mxu0 0.0
        %5584 = vmatprep.subr.mxu0 0.0
        %5585 = vmatpush2.msra.mxu0 0.0
        %5586 = vmatprep.subr.mxu0 0.0
        %5587 = vmatpush2.msra.mxu0 0.0
        %5588 = vmatprep.subr.mxu0 0.0
        %5589 = vmatpush2.msra.mxu0 0.0
        %5590 = vmatprep.subr.mxu0 0.0
        %5591 = vmatpush2.msra.mxu0 0.0
        %5592 = vmatprep.subr.mxu0 0.0
        %5593 = vmatpush2.msra.mxu0 0.0
        %5594 = vmatprep.subr.mxu0 0.0
        %5595 = vmatpush2.msra.mxu0 0.0
        %5596 = vmatprep.subr.mxu0 0.0
        %5597 = vmatpush2.msra.mxu0 0.0
        %5598 = vmatprep.subr.mxu0 0.0
        %5599 = vmatpush2.msra.mxu0 0.0
        %5600 = vmatprep.subr.mxu0 0.0
        %5601 = vmatpush2.msra.mxu0 0.0
        %5602 = vmatprep.subr.mxu0 0.0
        %5603 = vmatpush2.msra.mxu0 0.0
        %5604 = vmatprep.subr.mxu0 0.0
        %5605 = vmatpush2.msra.mxu0 0.0
        %5606 = vmatprep.mubr.f32.mxu0 0.0
        %v5607 = vand.u32 %v5452, 4294901760
        %5608 = vmatmul.mubr.f32.gmra.mxu0 %v5607
        %v5609 = vpop.f32.mrf.mxu0
        %v5610 = vadd.f32 %v5528, %v5609
        %v5611 = vpop.f32.mrf.mxu0
        %v5612 = vadd.f32 %v5530, %v5611
        %5613 = vdwg.mxu0
        %5614 = vmatprep.subr.mxu0 0.0
        %5615 = vmatpush1.msra.mxu0 0.0
        %5616 = vmatprep.subr.mxu0 0.0
        %5617 = vmatpush1.msra.mxu0 0.0
        %5618 = vmatprep.subr.mxu0 0.0
        %5619 = vmatpush1.msra.mxu0 0.0
        %5620 = vmatprep.subr.mxu0 0.0
        %5621 = vmatpush1.msra.mxu0 0.0
        %5622 = vmatprep.subr.mxu0 0.0
        %5623 = vmatpush1.msra.mxu0 0.0
        %5624 = vmatprep.subr.mxu0 0.0
        %5625 = vmatpush1.msra.mxu0 0.0
        %5626 = vmatprep.subr.mxu0 0.0
        %5627 = vmatpush1.msra.mxu0 0.0
        %5628 = vmatprep.subr.mxu0 0.0
        %5629 = vmatpush1.msra.mxu0 0.0
        %5630 = vmatprep.subr.mxu0 0.0
        %5631 = vmatpush1.msra.mxu0 0.0
        %5632 = vmatprep.subr.mxu0 0.0
        %5633 = vmatpush1.msra.mxu0 0.0
        %5634 = vmatprep.subr.mxu0 0.0
        %5635 = vmatpush1.msra.mxu0 0.0
        %5636 = vmatprep.subr.mxu0 0.0
        %5637 = vmatpush1.msra.mxu0 0.0
        %5638 = vmatprep.subr.mxu0 0.0
        %5639 = vmatpush1.msra.mxu0 0.0
        %5640 = vmatprep.subr.mxu0 0.0
        %5641 = vmatpush1.msra.mxu0 0.0
        %5642 = vmatprep.subr.mxu0 0.0
        %5643 = vmatpush1.msra.mxu0 0.0
        %v5644 = vand.u32 %v4944, 4294901760
        %v5645 = vsub.f32 %v4944, %v5644
        %5646 = vmatprep.subr.mxu0 %v5645
        %v5647 = vand.u32 %v4943, 4294901760
        %v5648 = vsub.f32 %v4943, %v5647
        %5649 = vmatpush1.msra.mxu0 %v5648
        %5650 = vmatprep.subr.mxu0 0.0
        %5651 = vmatpush2.msra.mxu0 0.0
        %5652 = vmatprep.subr.mxu0 0.0
        %5653 = vmatpush2.msra.mxu0 0.0
        %5654 = vmatprep.subr.mxu0 0.0
        %5655 = vmatpush2.msra.mxu0 0.0
        %5656 = vmatprep.subr.mxu0 0.0
        %5657 = vmatpush2.msra.mxu0 0.0
        %5658 = vmatprep.subr.mxu0 0.0
        %5659 = vmatpush2.msra.mxu0 0.0
        %5660 = vmatprep.subr.mxu0 0.0
        %5661 = vmatpush2.msra.mxu0 0.0
        %5662 = vmatprep.subr.mxu0 0.0
        %5663 = vmatpush2.msra.mxu0 0.0
        %5664 = vmatprep.subr.mxu0 0.0
        %5665 = vmatpush2.msra.mxu0 0.0
        %5666 = vmatprep.subr.mxu0 0.0
        %5667 = vmatpush2.msra.mxu0 0.0
        %5668 = vmatprep.subr.mxu0 0.0
        %5669 = vmatpush2.msra.mxu0 0.0
        %5670 = vmatprep.subr.mxu0 0.0
        %5671 = vmatpush2.msra.mxu0 0.0
        %5672 = vmatprep.subr.mxu0 0.0
        %5673 = vmatpush2.msra.mxu0 0.0
        %5674 = vmatprep.subr.mxu0 0.0
        %5675 = vmatpush2.msra.mxu0 0.0
        %5676 = vmatprep.subr.mxu0 0.0
        %5677 = vmatpush2.msra.mxu0 0.0
        %5678 = vmatprep.subr.mxu0 0.0
        %5679 = vmatpush2.msra.mxu0 0.0
        %5680 = vmatprep.subr.mxu0 0.0
        %5681 = vmatpush2.msra.mxu0 0.0
        %5682 = vmatprep.mubr.f32.mxu0 0.0
        %v5683 = vand.u32 %v5452, 4294901760
        %v5684 = vsub.f32 %v5452, %v5683
        %5685 = vmatmul.mubr.f32.gmra.mxu0 %v5684
        %v5686 = vpop.f32.mrf.mxu0
        %v5687 = vadd.f32 %v5610, %v5686
        %v5688 = vpop.f32.mrf.mxu0
        %v5689 = vadd.f32 %v5612, %v5688
        %5690 = vdwg.mxu0
        %5691 = vmatprep.subr.mxu0 0.0
        %5692 = vmatpush1.msra.mxu0 0.0
        %5693 = vmatprep.subr.mxu0 0.0
        %5694 = vmatpush1.msra.mxu0 0.0
        %5695 = vmatprep.subr.mxu0 0.0
        %5696 = vmatpush1.msra.mxu0 0.0
        %5697 = vmatprep.subr.mxu0 0.0
        %5698 = vmatpush1.msra.mxu0 0.0
        %5699 = vmatprep.subr.mxu0 0.0
        %5700 = vmatpush1.msra.mxu0 0.0
        %5701 = vmatprep.subr.mxu0 0.0
        %5702 = vmatpush1.msra.mxu0 0.0
        %5703 = vmatprep.subr.mxu0 0.0
        %5704 = vmatpush1.msra.mxu0 0.0
        %5705 = vmatprep.subr.mxu0 0.0
        %5706 = vmatpush1.msra.mxu0 0.0
        %5707 = vmatprep.subr.mxu0 0.0
        %5708 = vmatpush1.msra.mxu0 0.0
        %5709 = vmatprep.subr.mxu0 0.0
        %5710 = vmatpush1.msra.mxu0 0.0
        %5711 = vmatprep.subr.mxu0 0.0
        %5712 = vmatpush1.msra.mxu0 0.0
        %5713 = vmatprep.subr.mxu0 0.0
        %5714 = vmatpush1.msra.mxu0 0.0
        %5715 = vmatprep.subr.mxu0 0.0
        %5716 = vmatpush1.msra.mxu0 0.0
        %5717 = vmatprep.subr.mxu0 0.0
        %5718 = vmatpush1.msra.mxu0 0.0
        %5719 = vmatprep.subr.mxu0 0.0
        %5720 = vmatpush1.msra.mxu0 0.0
        %v5721 = vand.u32 %v4944, 4294901760
        %5722 = vmatprep.subr.mxu0 %v5721
        %v5723 = vand.u32 %v4943, 4294901760
        %5724 = vmatpush1.msra.mxu0 %v5723
        %5725 = vmatprep.subr.mxu0 0.0
        %5726 = vmatpush2.msra.mxu0 0.0
        %5727 = vmatprep.subr.mxu0 0.0
        %5728 = vmatpush2.msra.mxu0 0.0
        %5729 = vmatprep.subr.mxu0 0.0
        %5730 = vmatpush2.msra.mxu0 0.0
        %5731 = vmatprep.subr.mxu0 0.0
        %5732 = vmatpush2.msra.mxu0 0.0
        %5733 = vmatprep.subr.mxu0 0.0
        %5734 = vmatpush2.msra.mxu0 0.0
        %5735 = vmatprep.subr.mxu0 0.0
        %5736 = vmatpush2.msra.mxu0 0.0
        %5737 = vmatprep.subr.mxu0 0.0
        %5738 = vmatpush2.msra.mxu0 0.0
        %5739 = vmatprep.subr.mxu0 0.0
        %5740 = vmatpush2.msra.mxu0 0.0
        %5741 = vmatprep.subr.mxu0 0.0
        %5742 = vmatpush2.msra.mxu0 0.0
        %5743 = vmatprep.subr.mxu0 0.0
        %5744 = vmatpush2.msra.mxu0 0.0
        %5745 = vmatprep.subr.mxu0 0.0
        %5746 = vmatpush2.msra.mxu0 0.0
        %5747 = vmatprep.subr.mxu0 0.0
        %5748 = vmatpush2.msra.mxu0 0.0
        %5749 = vmatprep.subr.mxu0 0.0
        %5750 = vmatpush2.msra.mxu0 0.0
        %5751 = vmatprep.subr.mxu0 0.0
        %5752 = vmatpush2.msra.mxu0 0.0
        %5753 = vmatprep.subr.mxu0 0.0
        %5754 = vmatpush2.msra.mxu0 0.0
        %5755 = vmatprep.subr.mxu0 0.0
        %5756 = vmatpush2.msra.mxu0 0.0
        %5757 = vmatprep.mubr.f32.mxu0 0.0
        %v5758 = vand.u32 %v5452, 4294901760
        %v5759 = vsub.f32 %v5452, %v5758
        %v5760 = vand.u32 %v5759, 4294901760
        %5761 = vmatmul.mubr.f32.gmra.mxu0 %v5760
        %v5762 = vpop.f32.mrf.mxu0
        %v5763 = vadd.f32 %v5687, %v5762
        %v5764 = vpop.f32.mrf.mxu0
        %v5765 = vadd.f32 %v5689, %v5764
        %5766 = vdwg.mxu0
        %5767 = vmatprep.subr.mxu0 0.0
        %5768 = vmatpush1.msra.mxu0 0.0
        %5769 = vmatprep.subr.mxu0 0.0
        %5770 = vmatpush1.msra.mxu0 0.0
        %5771 = vmatprep.subr.mxu0 0.0
        %5772 = vmatpush1.msra.mxu0 0.0
        %5773 = vmatprep.subr.mxu0 0.0
        %5774 = vmatpush1.msra.mxu0 0.0
        %5775 = vmatprep.subr.mxu0 0.0
        %5776 = vmatpush1.msra.mxu0 0.0
        %5777 = vmatprep.subr.mxu0 0.0
        %5778 = vmatpush1.msra.mxu0 0.0
        %5779 = vmatprep.subr.mxu0 0.0
        %5780 = vmatpush1.msra.mxu0 0.0
        %5781 = vmatprep.subr.mxu0 0.0
        %5782 = vmatpush1.msra.mxu0 0.0
        %5783 = vmatprep.subr.mxu0 0.0
        %5784 = vmatpush1.msra.mxu0 0.0
        %5785 = vmatprep.subr.mxu0 0.0
        %5786 = vmatpush1.msra.mxu0 0.0
        %5787 = vmatprep.subr.mxu0 0.0
        %5788 = vmatpush1.msra.mxu0 0.0
        %5789 = vmatprep.subr.mxu0 0.0
        %5790 = vmatpush1.msra.mxu0 0.0
        %5791 = vmatprep.subr.mxu0 0.0
        %5792 = vmatpush1.msra.mxu0 0.0
        %5793 = vmatprep.subr.mxu0 0.0
        %5794 = vmatpush1.msra.mxu0 0.0
        %5795 = vmatprep.subr.mxu0 0.0
        %5796 = vmatpush1.msra.mxu0 0.0
        %v5797 = vand.u32 %v4944, 4294901760
        %v5798 = vsub.f32 %v4944, %v5797
        %v5799 = vand.u32 %v5798, 4294901760
        %5800 = vmatprep.subr.mxu0 %v5799
        %v5801 = vand.u32 %v4943, 4294901760
        %v5802 = vsub.f32 %v4943, %v5801
        %v5803 = vand.u32 %v5802, 4294901760
        %5804 = vmatpush1.msra.mxu0 %v5803
        %5805 = vmatprep.subr.mxu0 0.0
        %5806 = vmatpush2.msra.mxu0 0.0
        %5807 = vmatprep.subr.mxu0 0.0
        %5808 = vmatpush2.msra.mxu0 0.0
        %5809 = vmatprep.subr.mxu0 0.0
        %5810 = vmatpush2.msra.mxu0 0.0
        %5811 = vmatprep.subr.mxu0 0.0
        %5812 = vmatpush2.msra.mxu0 0.0
        %5813 = vmatprep.subr.mxu0 0.0
        %5814 = vmatpush2.msra.mxu0 0.0
        %5815 = vmatprep.subr.mxu0 0.0
        %5816 = vmatpush2.msra.mxu0 0.0
        %5817 = vmatprep.subr.mxu0 0.0
        %5818 = vmatpush2.msra.mxu0 0.0
        %5819 = vmatprep.subr.mxu0 0.0
        %5820 = vmatpush2.msra.mxu0 0.0
        %5821 = vmatprep.subr.mxu0 0.0
        %5822 = vmatpush2.msra.mxu0 0.0
        %5823 = vmatprep.subr.mxu0 0.0
        %5824 = vmatpush2.msra.mxu0 0.0
        %5825 = vmatprep.subr.mxu0 0.0
        %5826 = vmatpush2.msra.mxu0 0.0
        %5827 = vmatprep.subr.mxu0 0.0
        %5828 = vmatpush2.msra.mxu0 0.0
        %5829 = vmatprep.subr.mxu0 0.0
        %5830 = vmatpush2.msra.mxu0 0.0
        %5831 = vmatprep.subr.mxu0 0.0
        %5832 = vmatpush2.msra.mxu0 0.0
        %5833 = vmatprep.subr.mxu0 0.0
        %5834 = vmatpush2.msra.mxu0 0.0
        %5835 = vmatprep.subr.mxu0 0.0
        %5836 = vmatpush2.msra.mxu0 0.0
        %5837 = vmatprep.mubr.f32.mxu0 0.0
        %v5838 = vand.u32 %v5452, 4294901760
        %5839 = vmatmul.mubr.f32.gmra.mxu0 %v5838
        %v5840 = vpop.f32.mrf.mxu0
        %v5841 = vadd.f32 %v5763, %v5840
        %v5842 = vpop.f32.mrf.mxu0
        %v5843 = vadd.f32 %v5765, %v5842
        %5844 = vdwg.mxu0
        %5845 = vmatprep.subr.mxu0 0.0
        %5846 = vmatpush1.msra.mxu0 0.0
        %5847 = vmatprep.subr.mxu0 0.0
        %5848 = vmatpush1.msra.mxu0 0.0
        %5849 = vmatprep.subr.mxu0 0.0
        %5850 = vmatpush1.msra.mxu0 0.0
        %5851 = vmatprep.subr.mxu0 0.0
        %5852 = vmatpush1.msra.mxu0 0.0
        %5853 = vmatprep.subr.mxu0 0.0
        %5854 = vmatpush1.msra.mxu0 0.0
        %5855 = vmatprep.subr.mxu0 0.0
        %5856 = vmatpush1.msra.mxu0 0.0
        %5857 = vmatprep.subr.mxu0 0.0
        %5858 = vmatpush1.msra.mxu0 0.0
        %5859 = vmatprep.subr.mxu0 0.0
        %5860 = vmatpush1.msra.mxu0 0.0
        %5861 = vmatprep.subr.mxu0 0.0
        %5862 = vmatpush1.msra.mxu0 0.0
        %5863 = vmatprep.subr.mxu0 0.0
        %5864 = vmatpush1.msra.mxu0 0.0
        %5865 = vmatprep.subr.mxu0 0.0
        %5866 = vmatpush1.msra.mxu0 0.0
        %5867 = vmatprep.subr.mxu0 0.0
        %5868 = vmatpush1.msra.mxu0 0.0
        %5869 = vmatprep.subr.mxu0 0.0
        %5870 = vmatpush1.msra.mxu0 0.0
        %5871 = vmatprep.subr.mxu0 0.0
        %5872 = vmatpush1.msra.mxu0 0.0
        %5873 = vmatprep.subr.mxu0 0.0
        %5874 = vmatpush1.msra.mxu0 0.0
        %v5875 = vand.u32 %v4944, 4294901760
        %5876 = vmatprep.subr.mxu0 %v5875
        %v5877 = vand.u32 %v4943, 4294901760
        %5878 = vmatpush1.msra.mxu0 %v5877
        %5879 = vmatprep.subr.mxu0 0.0
        %5880 = vmatpush2.msra.mxu0 0.0
        %5881 = vmatprep.subr.mxu0 0.0
        %5882 = vmatpush2.msra.mxu0 0.0
        %5883 = vmatprep.subr.mxu0 0.0
        %5884 = vmatpush2.msra.mxu0 0.0
        %5885 = vmatprep.subr.mxu0 0.0
        %5886 = vmatpush2.msra.mxu0 0.0
        %5887 = vmatprep.subr.mxu0 0.0
        %5888 = vmatpush2.msra.mxu0 0.0
        %5889 = vmatprep.subr.mxu0 0.0
        %5890 = vmatpush2.msra.mxu0 0.0
        %5891 = vmatprep.subr.mxu0 0.0
        %5892 = vmatpush2.msra.mxu0 0.0
        %5893 = vmatprep.subr.mxu0 0.0
        %5894 = vmatpush2.msra.mxu0 0.0
        %5895 = vmatprep.subr.mxu0 0.0
        %5896 = vmatpush2.msra.mxu0 0.0
        %5897 = vmatprep.subr.mxu0 0.0
        %5898 = vmatpush2.msra.mxu0 0.0
        %5899 = vmatprep.subr.mxu0 0.0
        %5900 = vmatpush2.msra.mxu0 0.0
        %5901 = vmatprep.subr.mxu0 0.0
        %5902 = vmatpush2.msra.mxu0 0.0
        %5903 = vmatprep.subr.mxu0 0.0
        %5904 = vmatpush2.msra.mxu0 0.0
        %5905 = vmatprep.subr.mxu0 0.0
        %5906 = vmatpush2.msra.mxu0 0.0
        %5907 = vmatprep.subr.mxu0 0.0
        %5908 = vmatpush2.msra.mxu0 0.0
        %5909 = vmatprep.subr.mxu0 0.0
        %5910 = vmatpush2.msra.mxu0 0.0
        %5911 = vmatprep.mubr.f32.mxu0 0.0
        %v5912 = vand.u32 %v5452, 4294901760
        %5913 = vmatmul.mubr.f32.gmra.mxu0 %v5912
        %v5914 = vpop.f32.mrf.mxu0
        %v5915 = vadd.f32 %v5841, %v5914
        %v5916 = vpop.f32.mrf.mxu0
        %v5917 = vadd.f32 %v5843, %v5916
        %5918 = vdwg.mxu0
        %v5919 = vld [vmem:[%s1336] sm:$0x3]
        %v5921 = vlaneseq
        %v5922 = vshrl.u32 %v5921, 7
        %v5923 = vsub.s32 0, %v5922
        %v5924 = vrot.slane %v5919, %v5923
        %v5925 = vlaneseq
        %v5926 = vshrl.u32 %v5925, 7
        %v5927 = vsub.s32 1, %v5926
        %v5928 = vrot.slane %v5919, %v5927
        %5929 = vrot.lane.b32.xlu0 %v5924, 2
        %v5930 = vpop.permute.xlu0 %5929
        %5931 = vrot.lane.b32.xlu0 %v5928, 2
        %v5932 = vpop.permute.xlu0 %5931
        %v5933 = vsel %vm1351, %v5930, %v5932
        %v5937 = vmul.f32 %v4929, %v5930
        %v5938 = vmul.f32 %v4930, %v5933
        %v5939 = vmul.f32 %v4946, %v5932
        %s5940 = scalar_lea.vmem %s6, 16
        %v5941 = vld [vmem:[%s5940] sm:$0xff]
        %5945 = vrot.lane.b32.xlu0 %v5937, 126
        %v5946 = vpop.permute.xlu0 %5945
        %5947 = vrot.lane.b32.xlu0 %v5938, 126
        %v5948 = vpop.permute.xlu0 %5947
        %5949 = vrot.lane.b32.xlu0 %v5939, 126
        %v5950 = vpop.permute.xlu0 %5949
        %v5951 = vsel %vm1370, %v5946, %v5948
        %v5952 = vsel %vm1370, %v5948, %v5950
        %v5956 = vsel %vm399, %v5941, 0
        %5958 = vmatprep.subr.mxu0 0.0
        %5959 = vmatpush1.msra.mxu0 0.0
        %5960 = vmatprep.subr.mxu0 0.0
        %5961 = vmatpush1.msra.mxu0 0.0
        %5962 = vmatprep.subr.mxu0 0.0
        %5963 = vmatpush1.msra.mxu0 0.0
        %5964 = vmatprep.subr.mxu0 0.0
        %5965 = vmatpush1.msra.mxu0 0.0
        %5966 = vmatprep.subr.mxu0 0.0
        %5967 = vmatpush1.msra.mxu0 0.0
        %5968 = vmatprep.subr.mxu0 0.0
        %5969 = vmatpush1.msra.mxu0 0.0
        %5970 = vmatprep.subr.mxu0 0.0
        %5971 = vmatpush1.msra.mxu0 0.0
        %5972 = vmatprep.subr.mxu0 0.0
        %5973 = vmatpush1.msra.mxu0 0.0
        %5974 = vmatprep.subr.mxu0 0.0
        %5975 = vmatpush1.msra.mxu0 0.0
        %5976 = vmatprep.subr.mxu0 0.0
        %5977 = vmatpush1.msra.mxu0 0.0
        %5978 = vmatprep.subr.mxu0 0.0
        %5979 = vmatpush1.msra.mxu0 0.0
        %5980 = vmatprep.subr.mxu0 0.0
        %5981 = vmatpush1.msra.mxu0 0.0
        %5982 = vmatprep.subr.mxu0 0.0
        %5983 = vmatpush1.msra.mxu0 0.0
        %5984 = vmatprep.subr.mxu0 0.0
        %5985 = vmatpush1.msra.mxu0 0.0
        %5986 = vmatprep.subr.mxu0 0.0
        %5987 = vmatpush1.msra.mxu0 0.0
        %v5988 = vand.u32 %v5952, 4294901760
        %5989 = vmatprep.subr.mxu0 %v5988
        %v5990 = vand.u32 %v5951, 4294901760
        %5991 = vmatpush1.msra.mxu0 %v5990
        %5992 = vmatprep.subr.mxu0 0.0
        %5993 = vmatpush2.msra.mxu0 0.0
        %5994 = vmatprep.subr.mxu0 0.0
        %5995 = vmatpush2.msra.mxu0 0.0
        %5996 = vmatprep.subr.mxu0 0.0
        %5997 = vmatpush2.msra.mxu0 0.0
        %5998 = vmatprep.subr.mxu0 0.0
        %5999 = vmatpush2.msra.mxu0 0.0
        %6000 = vmatprep.subr.mxu0 0.0
        %6001 = vmatpush2.msra.mxu0 0.0
        %6002 = vmatprep.subr.mxu0 0.0
        %6003 = vmatpush2.msra.mxu0 0.0
        %6004 = vmatprep.subr.mxu0 0.0
        %6005 = vmatpush2.msra.mxu0 0.0
        %6006 = vmatprep.subr.mxu0 0.0
        %6007 = vmatpush2.msra.mxu0 0.0
        %6008 = vmatprep.subr.mxu0 0.0
        %6009 = vmatpush2.msra.mxu0 0.0
        %6010 = vmatprep.subr.mxu0 0.0
        %6011 = vmatpush2.msra.mxu0 0.0
        %6012 = vmatprep.subr.mxu0 0.0
        %6013 = vmatpush2.msra.mxu0 0.0
        %6014 = vmatprep.subr.mxu0 0.0
        %6015 = vmatpush2.msra.mxu0 0.0
        %6016 = vmatprep.subr.mxu0 0.0
        %6017 = vmatpush2.msra.mxu0 0.0
        %6018 = vmatprep.subr.mxu0 0.0
        %6019 = vmatpush2.msra.mxu0 0.0
        %6020 = vmatprep.subr.mxu0 0.0
        %6021 = vmatpush2.msra.mxu0 0.0
        %6022 = vmatprep.subr.mxu0 0.0
        %6023 = vmatpush2.msra.mxu0 0.0
        %6024 = vmatprep.mubr.f32.mxu0 0.0
        %v6025 = vand.u32 %v5956, 4294901760
        %v6026 = vsub.f32 %v5956, %v6025
        %v6027 = vand.u32 %v6026, 4294901760
        %v6028 = vsub.f32 %v6026, %v6027
        %v6029 = vand.u32 %v6028, 4294901760
        %6030 = vmatmul.mubr.f32.gmra.mxu0 %v6029
        %v6031 = vpop.f32.mrf.mxu0
        %v6032 = vadd.f32 0.0, %v6031
        %v6033 = vpop.f32.mrf.mxu0
        %v6034 = vadd.f32 0.0, %v6033
        %6035 = vdwg.mxu0
        %6036 = vmatprep.subr.mxu0 0.0
        %6037 = vmatpush1.msra.mxu0 0.0
        %6038 = vmatprep.subr.mxu0 0.0
        %6039 = vmatpush1.msra.mxu0 0.0
        %6040 = vmatprep.subr.mxu0 0.0
        %6041 = vmatpush1.msra.mxu0 0.0
        %6042 = vmatprep.subr.mxu0 0.0
        %6043 = vmatpush1.msra.mxu0 0.0
        %6044 = vmatprep.subr.mxu0 0.0
        %6045 = vmatpush1.msra.mxu0 0.0
        %6046 = vmatprep.subr.mxu0 0.0
        %6047 = vmatpush1.msra.mxu0 0.0
        %6048 = vmatprep.subr.mxu0 0.0
        %6049 = vmatpush1.msra.mxu0 0.0
        %6050 = vmatprep.subr.mxu0 0.0
        %6051 = vmatpush1.msra.mxu0 0.0
        %6052 = vmatprep.subr.mxu0 0.0
        %6053 = vmatpush1.msra.mxu0 0.0
        %6054 = vmatprep.subr.mxu0 0.0
        %6055 = vmatpush1.msra.mxu0 0.0
        %6056 = vmatprep.subr.mxu0 0.0
        %6057 = vmatpush1.msra.mxu0 0.0
        %6058 = vmatprep.subr.mxu0 0.0
        %6059 = vmatpush1.msra.mxu0 0.0
        %6060 = vmatprep.subr.mxu0 0.0
        %6061 = vmatpush1.msra.mxu0 0.0
        %6062 = vmatprep.subr.mxu0 0.0
        %6063 = vmatpush1.msra.mxu0 0.0
        %6064 = vmatprep.subr.mxu0 0.0
        %6065 = vmatpush1.msra.mxu0 0.0
        %v6066 = vand.u32 %v5952, 4294901760
        %v6067 = vsub.f32 %v5952, %v6066
        %v6068 = vand.u32 %v6067, 4294901760
        %v6069 = vsub.f32 %v6067, %v6068
        %v6070 = vand.u32 %v6069, 4294901760
        %6071 = vmatprep.subr.mxu0 %v6070
        %v6072 = vand.u32 %v5951, 4294901760
        %v6073 = vsub.f32 %v5951, %v6072
        %v6074 = vand.u32 %v6073, 4294901760
        %v6075 = vsub.f32 %v6073, %v6074
        %v6076 = vand.u32 %v6075, 4294901760
        %6077 = vmatpush1.msra.mxu0 %v6076
        %6078 = vmatprep.subr.mxu0 0.0
        %6079 = vmatpush2.msra.mxu0 0.0
        %6080 = vmatprep.subr.mxu0 0.0
        %6081 = vmatpush2.msra.mxu0 0.0
        %6082 = vmatprep.subr.mxu0 0.0
        %6083 = vmatpush2.msra.mxu0 0.0
        %6084 = vmatprep.subr.mxu0 0.0
        %6085 = vmatpush2.msra.mxu0 0.0
        %6086 = vmatprep.subr.mxu0 0.0
        %6087 = vmatpush2.msra.mxu0 0.0
        %6088 = vmatprep.subr.mxu0 0.0
        %6089 = vmatpush2.msra.mxu0 0.0
        %6090 = vmatprep.subr.mxu0 0.0
        %6091 = vmatpush2.msra.mxu0 0.0
        %6092 = vmatprep.subr.mxu0 0.0
        %6093 = vmatpush2.msra.mxu0 0.0
        %6094 = vmatprep.subr.mxu0 0.0
        %6095 = vmatpush2.msra.mxu0 0.0
        %6096 = vmatprep.subr.mxu0 0.0
        %6097 = vmatpush2.msra.mxu0 0.0
        %6098 = vmatprep.subr.mxu0 0.0
        %6099 = vmatpush2.msra.mxu0 0.0
        %6100 = vmatprep.subr.mxu0 0.0
        %6101 = vmatpush2.msra.mxu0 0.0
        %6102 = vmatprep.subr.mxu0 0.0
        %6103 = vmatpush2.msra.mxu0 0.0
        %6104 = vmatprep.subr.mxu0 0.0
        %6105 = vmatpush2.msra.mxu0 0.0
        %6106 = vmatprep.subr.mxu0 0.0
        %6107 = vmatpush2.msra.mxu0 0.0
        %6108 = vmatprep.subr.mxu0 0.0
        %6109 = vmatpush2.msra.mxu0 0.0
        %6110 = vmatprep.mubr.f32.mxu0 0.0
        %v6111 = vand.u32 %v5956, 4294901760
        %6112 = vmatmul.mubr.f32.gmra.mxu0 %v6111
        %v6113 = vpop.f32.mrf.mxu0
        %v6114 = vadd.f32 %v6032, %v6113
        %v6115 = vpop.f32.mrf.mxu0
        %v6116 = vadd.f32 %v6034, %v6115
        %6117 = vdwg.mxu0
        %6118 = vmatprep.subr.mxu0 0.0
        %6119 = vmatpush1.msra.mxu0 0.0
        %6120 = vmatprep.subr.mxu0 0.0
        %6121 = vmatpush1.msra.mxu0 0.0
        %6122 = vmatprep.subr.mxu0 0.0
        %6123 = vmatpush1.msra.mxu0 0.0
        %6124 = vmatprep.subr.mxu0 0.0
        %6125 = vmatpush1.msra.mxu0 0.0
        %6126 = vmatprep.subr.mxu0 0.0
        %6127 = vmatpush1.msra.mxu0 0.0
        %6128 = vmatprep.subr.mxu0 0.0
        %6129 = vmatpush1.msra.mxu0 0.0
        %6130 = vmatprep.subr.mxu0 0.0
        %6131 = vmatpush1.msra.mxu0 0.0
        %6132 = vmatprep.subr.mxu0 0.0
        %6133 = vmatpush1.msra.mxu0 0.0
        %6134 = vmatprep.subr.mxu0 0.0
        %6135 = vmatpush1.msra.mxu0 0.0
        %6136 = vmatprep.subr.mxu0 0.0
        %6137 = vmatpush1.msra.mxu0 0.0
        %6138 = vmatprep.subr.mxu0 0.0
        %6139 = vmatpush1.msra.mxu0 0.0
        %6140 = vmatprep.subr.mxu0 0.0
        %6141 = vmatpush1.msra.mxu0 0.0
        %6142 = vmatprep.subr.mxu0 0.0
        %6143 = vmatpush1.msra.mxu0 0.0
        %6144 = vmatprep.subr.mxu0 0.0
        %6145 = vmatpush1.msra.mxu0 0.0
        %6146 = vmatprep.subr.mxu0 0.0
        %6147 = vmatpush1.msra.mxu0 0.0
        %v6148 = vand.u32 %v5952, 4294901760
        %v6149 = vsub.f32 %v5952, %v6148
        %6150 = vmatprep.subr.mxu0 %v6149
        %v6151 = vand.u32 %v5951, 4294901760
        %v6152 = vsub.f32 %v5951, %v6151
        %6153 = vmatpush1.msra.mxu0 %v6152
        %6154 = vmatprep.subr.mxu0 0.0
        %6155 = vmatpush2.msra.mxu0 0.0
        %6156 = vmatprep.subr.mxu0 0.0
        %6157 = vmatpush2.msra.mxu0 0.0
        %6158 = vmatprep.subr.mxu0 0.0
        %6159 = vmatpush2.msra.mxu0 0.0
        %6160 = vmatprep.subr.mxu0 0.0
        %6161 = vmatpush2.msra.mxu0 0.0
        %6162 = vmatprep.subr.mxu0 0.0
        %6163 = vmatpush2.msra.mxu0 0.0
        %6164 = vmatprep.subr.mxu0 0.0
        %6165 = vmatpush2.msra.mxu0 0.0
        %6166 = vmatprep.subr.mxu0 0.0
        %6167 = vmatpush2.msra.mxu0 0.0
        %6168 = vmatprep.subr.mxu0 0.0
        %6169 = vmatpush2.msra.mxu0 0.0
        %6170 = vmatprep.subr.mxu0 0.0
        %6171 = vmatpush2.msra.mxu0 0.0
        %6172 = vmatprep.subr.mxu0 0.0
        %6173 = vmatpush2.msra.mxu0 0.0
        %6174 = vmatprep.subr.mxu0 0.0
        %6175 = vmatpush2.msra.mxu0 0.0
        %6176 = vmatprep.subr.mxu0 0.0
        %6177 = vmatpush2.msra.mxu0 0.0
        %6178 = vmatprep.subr.mxu0 0.0
        %6179 = vmatpush2.msra.mxu0 0.0
        %6180 = vmatprep.subr.mxu0 0.0
        %6181 = vmatpush2.msra.mxu0 0.0
        %6182 = vmatprep.subr.mxu0 0.0
        %6183 = vmatpush2.msra.mxu0 0.0
        %6184 = vmatprep.subr.mxu0 0.0
        %6185 = vmatpush2.msra.mxu0 0.0
        %6186 = vmatprep.mubr.f32.mxu0 0.0
        %v6187 = vand.u32 %v5956, 4294901760
        %v6188 = vsub.f32 %v5956, %v6187
        %6189 = vmatmul.mubr.f32.gmra.mxu0 %v6188
        %v6190 = vpop.f32.mrf.mxu0
        %v6191 = vadd.f32 %v6114, %v6190
        %v6192 = vpop.f32.mrf.mxu0
        %v6193 = vadd.f32 %v6116, %v6192
        %6194 = vdwg.mxu0
        %6195 = vmatprep.subr.mxu0 0.0
        %6196 = vmatpush1.msra.mxu0 0.0
        %6197 = vmatprep.subr.mxu0 0.0
        %6198 = vmatpush1.msra.mxu0 0.0
        %6199 = vmatprep.subr.mxu0 0.0
        %6200 = vmatpush1.msra.mxu0 0.0
        %6201 = vmatprep.subr.mxu0 0.0
        %6202 = vmatpush1.msra.mxu0 0.0
        %6203 = vmatprep.subr.mxu0 0.0
        %6204 = vmatpush1.msra.mxu0 0.0
        %6205 = vmatprep.subr.mxu0 0.0
        %6206 = vmatpush1.msra.mxu0 0.0
        %6207 = vmatprep.subr.mxu0 0.0
        %6208 = vmatpush1.msra.mxu0 0.0
        %6209 = vmatprep.subr.mxu0 0.0
        %6210 = vmatpush1.msra.mxu0 0.0
        %6211 = vmatprep.subr.mxu0 0.0
        %6212 = vmatpush1.msra.mxu0 0.0
        %6213 = vmatprep.subr.mxu0 0.0
        %6214 = vmatpush1.msra.mxu0 0.0
        %6215 = vmatprep.subr.mxu0 0.0
        %6216 = vmatpush1.msra.mxu0 0.0
        %6217 = vmatprep.subr.mxu0 0.0
        %6218 = vmatpush1.msra.mxu0 0.0
        %6219 = vmatprep.subr.mxu0 0.0
        %6220 = vmatpush1.msra.mxu0 0.0
        %6221 = vmatprep.subr.mxu0 0.0
        %6222 = vmatpush1.msra.mxu0 0.0
        %6223 = vmatprep.subr.mxu0 0.0
        %6224 = vmatpush1.msra.mxu0 0.0
        %v6225 = vand.u32 %v5952, 4294901760
        %6226 = vmatprep.subr.mxu0 %v6225
        %v6227 = vand.u32 %v5951, 4294901760
        %6228 = vmatpush1.msra.mxu0 %v6227
        %6229 = vmatprep.subr.mxu0 0.0
        %6230 = vmatpush2.msra.mxu0 0.0
        %6231 = vmatprep.subr.mxu0 0.0
        %6232 = vmatpush2.msra.mxu0 0.0
        %6233 = vmatprep.subr.mxu0 0.0
        %6234 = vmatpush2.msra.mxu0 0.0
        %6235 = vmatprep.subr.mxu0 0.0
        %6236 = vmatpush2.msra.mxu0 0.0
        %6237 = vmatprep.subr.mxu0 0.0
        %6238 = vmatpush2.msra.mxu0 0.0
        %6239 = vmatprep.subr.mxu0 0.0
        %6240 = vmatpush2.msra.mxu0 0.0
        %6241 = vmatprep.subr.mxu0 0.0
        %6242 = vmatpush2.msra.mxu0 0.0
        %6243 = vmatprep.subr.mxu0 0.0
        %6244 = vmatpush2.msra.mxu0 0.0
        %6245 = vmatprep.subr.mxu0 0.0
        %6246 = vmatpush2.msra.mxu0 0.0
        %6247 = vmatprep.subr.mxu0 0.0
        %6248 = vmatpush2.msra.mxu0 0.0
        %6249 = vmatprep.subr.mxu0 0.0
        %6250 = vmatpush2.msra.mxu0 0.0
        %6251 = vmatprep.subr.mxu0 0.0
        %6252 = vmatpush2.msra.mxu0 0.0
        %6253 = vmatprep.subr.mxu0 0.0
        %6254 = vmatpush2.msra.mxu0 0.0
        %6255 = vmatprep.subr.mxu0 0.0
        %6256 = vmatpush2.msra.mxu0 0.0
        %6257 = vmatprep.subr.mxu0 0.0
        %6258 = vmatpush2.msra.mxu0 0.0
        %6259 = vmatprep.subr.mxu0 0.0
        %6260 = vmatpush2.msra.mxu0 0.0
        %6261 = vmatprep.mubr.f32.mxu0 0.0
        %v6262 = vand.u32 %v5956, 4294901760
        %v6263 = vsub.f32 %v5956, %v6262
        %v6264 = vand.u32 %v6263, 4294901760
        %6265 = vmatmul.mubr.f32.gmra.mxu0 %v6264
        %v6266 = vpop.f32.mrf.mxu0
        %v6267 = vadd.f32 %v6191, %v6266
        %v6268 = vpop.f32.mrf.mxu0
        %v6269 = vadd.f32 %v6193, %v6268
        %6270 = vdwg.mxu0
        %6271 = vmatprep.subr.mxu0 0.0
        %6272 = vmatpush1.msra.mxu0 0.0
        %6273 = vmatprep.subr.mxu0 0.0
        %6274 = vmatpush1.msra.mxu0 0.0
        %6275 = vmatprep.subr.mxu0 0.0
        %6276 = vmatpush1.msra.mxu0 0.0
        %6277 = vmatprep.subr.mxu0 0.0
        %6278 = vmatpush1.msra.mxu0 0.0
        %6279 = vmatprep.subr.mxu0 0.0
        %6280 = vmatpush1.msra.mxu0 0.0
        %6281 = vmatprep.subr.mxu0 0.0
        %6282 = vmatpush1.msra.mxu0 0.0
        %6283 = vmatprep.subr.mxu0 0.0
        %6284 = vmatpush1.msra.mxu0 0.0
        %6285 = vmatprep.subr.mxu0 0.0
        %6286 = vmatpush1.msra.mxu0 0.0
        %6287 = vmatprep.subr.mxu0 0.0
        %6288 = vmatpush1.msra.mxu0 0.0
        %6289 = vmatprep.subr.mxu0 0.0
        %6290 = vmatpush1.msra.mxu0 0.0
        %6291 = vmatprep.subr.mxu0 0.0
        %6292 = vmatpush1.msra.mxu0 0.0
        %6293 = vmatprep.subr.mxu0 0.0
        %6294 = vmatpush1.msra.mxu0 0.0
        %6295 = vmatprep.subr.mxu0 0.0
        %6296 = vmatpush1.msra.mxu0 0.0
        %6297 = vmatprep.subr.mxu0 0.0
        %6298 = vmatpush1.msra.mxu0 0.0
        %6299 = vmatprep.subr.mxu0 0.0
        %6300 = vmatpush1.msra.mxu0 0.0
        %v6301 = vand.u32 %v5952, 4294901760
        %v6302 = vsub.f32 %v5952, %v6301
        %v6303 = vand.u32 %v6302, 4294901760
        %6304 = vmatprep.subr.mxu0 %v6303
        %v6305 = vand.u32 %v5951, 4294901760
        %v6306 = vsub.f32 %v5951, %v6305
        %v6307 = vand.u32 %v6306, 4294901760
        %6308 = vmatpush1.msra.mxu0 %v6307
        %6309 = vmatprep.subr.mxu0 0.0
        %6310 = vmatpush2.msra.mxu0 0.0
        %6311 = vmatprep.subr.mxu0 0.0
        %6312 = vmatpush2.msra.mxu0 0.0
        %6313 = vmatprep.subr.mxu0 0.0
        %6314 = vmatpush2.msra.mxu0 0.0
        %6315 = vmatprep.subr.mxu0 0.0
        %6316 = vmatpush2.msra.mxu0 0.0
        %6317 = vmatprep.subr.mxu0 0.0
        %6318 = vmatpush2.msra.mxu0 0.0
        %6319 = vmatprep.subr.mxu0 0.0
        %6320 = vmatpush2.msra.mxu0 0.0
        %6321 = vmatprep.subr.mxu0 0.0
        %6322 = vmatpush2.msra.mxu0 0.0
        %6323 = vmatprep.subr.mxu0 0.0
        %6324 = vmatpush2.msra.mxu0 0.0
        %6325 = vmatprep.subr.mxu0 0.0
        %6326 = vmatpush2.msra.mxu0 0.0
        %6327 = vmatprep.subr.mxu0 0.0
        %6328 = vmatpush2.msra.mxu0 0.0
        %6329 = vmatprep.subr.mxu0 0.0
        %6330 = vmatpush2.msra.mxu0 0.0
        %6331 = vmatprep.subr.mxu0 0.0
        %6332 = vmatpush2.msra.mxu0 0.0
        %6333 = vmatprep.subr.mxu0 0.0
        %6334 = vmatpush2.msra.mxu0 0.0
        %6335 = vmatprep.subr.mxu0 0.0
        %6336 = vmatpush2.msra.mxu0 0.0
        %6337 = vmatprep.subr.mxu0 0.0
        %6338 = vmatpush2.msra.mxu0 0.0
        %6339 = vmatprep.subr.mxu0 0.0
        %6340 = vmatpush2.msra.mxu0 0.0
        %6341 = vmatprep.mubr.f32.mxu0 0.0
        %v6342 = vand.u32 %v5956, 4294901760
        %6343 = vmatmul.mubr.f32.gmra.mxu0 %v6342
        %v6344 = vpop.f32.mrf.mxu0
        %v6345 = vadd.f32 %v6267, %v6344
        %v6346 = vpop.f32.mrf.mxu0
        %v6347 = vadd.f32 %v6269, %v6346
        %6348 = vdwg.mxu0
        %6349 = vmatprep.subr.mxu0 0.0
        %6350 = vmatpush1.msra.mxu0 0.0
        %6351 = vmatprep.subr.mxu0 0.0
        %6352 = vmatpush1.msra.mxu0 0.0
        %6353 = vmatprep.subr.mxu0 0.0
        %6354 = vmatpush1.msra.mxu0 0.0
        %6355 = vmatprep.subr.mxu0 0.0
        %6356 = vmatpush1.msra.mxu0 0.0
        %6357 = vmatprep.subr.mxu0 0.0
        %6358 = vmatpush1.msra.mxu0 0.0
        %6359 = vmatprep.subr.mxu0 0.0
        %6360 = vmatpush1.msra.mxu0 0.0
        %6361 = vmatprep.subr.mxu0 0.0
        %6362 = vmatpush1.msra.mxu0 0.0
        %6363 = vmatprep.subr.mxu0 0.0
        %6364 = vmatpush1.msra.mxu0 0.0
        %6365 = vmatprep.subr.mxu0 0.0
        %6366 = vmatpush1.msra.mxu0 0.0
        %6367 = vmatprep.subr.mxu0 0.0
        %6368 = vmatpush1.msra.mxu0 0.0
        %6369 = vmatprep.subr.mxu0 0.0
        %6370 = vmatpush1.msra.mxu0 0.0
        %6371 = vmatprep.subr.mxu0 0.0
        %6372 = vmatpush1.msra.mxu0 0.0
        %6373 = vmatprep.subr.mxu0 0.0
        %6374 = vmatpush1.msra.mxu0 0.0
        %6375 = vmatprep.subr.mxu0 0.0
        %6376 = vmatpush1.msra.mxu0 0.0
        %6377 = vmatprep.subr.mxu0 0.0
        %6378 = vmatpush1.msra.mxu0 0.0
        %v6379 = vand.u32 %v5952, 4294901760
        %6380 = vmatprep.subr.mxu0 %v6379
        %v6381 = vand.u32 %v5951, 4294901760
        %6382 = vmatpush1.msra.mxu0 %v6381
        %6383 = vmatprep.subr.mxu0 0.0
        %6384 = vmatpush2.msra.mxu0 0.0
        %6385 = vmatprep.subr.mxu0 0.0
        %6386 = vmatpush2.msra.mxu0 0.0
        %6387 = vmatprep.subr.mxu0 0.0
        %6388 = vmatpush2.msra.mxu0 0.0
        %6389 = vmatprep.subr.mxu0 0.0
        %6390 = vmatpush2.msra.mxu0 0.0
        %6391 = vmatprep.subr.mxu0 0.0
        %6392 = vmatpush2.msra.mxu0 0.0
        %6393 = vmatprep.subr.mxu0 0.0
        %6394 = vmatpush2.msra.mxu0 0.0
        %6395 = vmatprep.subr.mxu0 0.0
        %6396 = vmatpush2.msra.mxu0 0.0
        %6397 = vmatprep.subr.mxu0 0.0
        %6398 = vmatpush2.msra.mxu0 0.0
        %6399 = vmatprep.subr.mxu0 0.0
        %6400 = vmatpush2.msra.mxu0 0.0
        %6401 = vmatprep.subr.mxu0 0.0
        %6402 = vmatpush2.msra.mxu0 0.0
        %6403 = vmatprep.subr.mxu0 0.0
        %6404 = vmatpush2.msra.mxu0 0.0
        %6405 = vmatprep.subr.mxu0 0.0
        %6406 = vmatpush2.msra.mxu0 0.0
        %6407 = vmatprep.subr.mxu0 0.0
        %6408 = vmatpush2.msra.mxu0 0.0
        %6409 = vmatprep.subr.mxu0 0.0
        %6410 = vmatpush2.msra.mxu0 0.0
        %6411 = vmatprep.subr.mxu0 0.0
        %6412 = vmatpush2.msra.mxu0 0.0
        %6413 = vmatprep.subr.mxu0 0.0
        %6414 = vmatpush2.msra.mxu0 0.0
        %6415 = vmatprep.mubr.f32.mxu0 0.0
        %v6416 = vand.u32 %v5956, 4294901760
        %6417 = vmatmul.mubr.f32.gmra.mxu0 %v6416
        %v6418 = vpop.f32.mrf.mxu0
        %v6419 = vadd.f32 %v6345, %v6418
        %v6420 = vpop.f32.mrf.mxu0
        %v6421 = vadd.f32 %v6347, %v6420
        %6422 = vdwg.mxu0
        %v6423 = vadd.f32 %v5915, %v6419
        %v6424 = vadd.f32 %v5917, %v6421
        %v6425 = vld [vmem:[%s1845] sm:$0x3]
        %v6427 = vlaneseq
        %v6428 = vshrl.u32 %v6427, 7
        %v6429 = vsub.s32 0, %v6428
        %v6430 = vrot.slane %v6425, %v6429
        %v6431 = vlaneseq
        %v6432 = vshrl.u32 %v6431, 7
        %v6433 = vsub.s32 1, %v6432
        %v6434 = vrot.slane %v6425, %v6433
        %6435 = vrot.lane.b32.xlu0 %v6430, 16
        %v6436 = vpop.permute.xlu0 %6435
        %6437 = vrot.lane.b32.xlu0 %v6434, 16
        %v6438 = vpop.permute.xlu0 %6437
        %v6439 = vsel %vm1860, %v6436, %v6438
        %v6443 = vmul.f32 %v4929, %v6436
        %v6444 = vmul.f32 %v4930, %v6439
        %v6445 = vmul.f32 %v4946, %v6438
        %s6446 = scalar_lea.vmem %s6, 24
        %v6447 = vld [vmem:[%s6446] sm:$0xff]
        %6451 = vrot.lane.b32.xlu0 %v6443, 112
        %v6452 = vpop.permute.xlu0 %6451
        %6453 = vrot.lane.b32.xlu0 %v6444, 112
        %v6454 = vpop.permute.xlu0 %6453
        %6455 = vrot.lane.b32.xlu0 %v6445, 112
        %v6456 = vpop.permute.xlu0 %6455
        %v6457 = vsel %vm1879, %v6452, %v6454
        %v6458 = vsel %vm1879, %v6454, %v6456
        %v6462 = vsel %vm399, %v6447, 0
        %6464 = vmatprep.subr.mxu0 0.0
        %6465 = vmatpush1.msra.mxu0 0.0
        %6466 = vmatprep.subr.mxu0 0.0
        %6467 = vmatpush1.msra.mxu0 0.0
        %6468 = vmatprep.subr.mxu0 0.0
        %6469 = vmatpush1.msra.mxu0 0.0
        %6470 = vmatprep.subr.mxu0 0.0
        %6471 = vmatpush1.msra.mxu0 0.0
        %6472 = vmatprep.subr.mxu0 0.0
        %6473 = vmatpush1.msra.mxu0 0.0
        %6474 = vmatprep.subr.mxu0 0.0
        %6475 = vmatpush1.msra.mxu0 0.0
        %6476 = vmatprep.subr.mxu0 0.0
        %6477 = vmatpush1.msra.mxu0 0.0
        %6478 = vmatprep.subr.mxu0 0.0
        %6479 = vmatpush1.msra.mxu0 0.0
        %6480 = vmatprep.subr.mxu0 0.0
        %6481 = vmatpush1.msra.mxu0 0.0
        %6482 = vmatprep.subr.mxu0 0.0
        %6483 = vmatpush1.msra.mxu0 0.0
        %6484 = vmatprep.subr.mxu0 0.0
        %6485 = vmatpush1.msra.mxu0 0.0
        %6486 = vmatprep.subr.mxu0 0.0
        %6487 = vmatpush1.msra.mxu0 0.0
        %6488 = vmatprep.subr.mxu0 0.0
        %6489 = vmatpush1.msra.mxu0 0.0
        %6490 = vmatprep.subr.mxu0 0.0
        %6491 = vmatpush1.msra.mxu0 0.0
        %6492 = vmatprep.subr.mxu0 0.0
        %6493 = vmatpush1.msra.mxu0 0.0
        %v6494 = vand.u32 %v6458, 4294901760
        %6495 = vmatprep.subr.mxu0 %v6494
        %v6496 = vand.u32 %v6457, 4294901760
        %6497 = vmatpush1.msra.mxu0 %v6496
        %6498 = vmatprep.subr.mxu0 0.0
        %6499 = vmatpush2.msra.mxu0 0.0
        %6500 = vmatprep.subr.mxu0 0.0
        %6501 = vmatpush2.msra.mxu0 0.0
        %6502 = vmatprep.subr.mxu0 0.0
        %6503 = vmatpush2.msra.mxu0 0.0
        %6504 = vmatprep.subr.mxu0 0.0
        %6505 = vmatpush2.msra.mxu0 0.0
        %6506 = vmatprep.subr.mxu0 0.0
        %6507 = vmatpush2.msra.mxu0 0.0
        %6508 = vmatprep.subr.mxu0 0.0
        %6509 = vmatpush2.msra.mxu0 0.0
        %6510 = vmatprep.subr.mxu0 0.0
        %6511 = vmatpush2.msra.mxu0 0.0
        %6512 = vmatprep.subr.mxu0 0.0
        %6513 = vmatpush2.msra.mxu0 0.0
        %6514 = vmatprep.subr.mxu0 0.0
        %6515 = vmatpush2.msra.mxu0 0.0
        %6516 = vmatprep.subr.mxu0 0.0
        %6517 = vmatpush2.msra.mxu0 0.0
        %6518 = vmatprep.subr.mxu0 0.0
        %6519 = vmatpush2.msra.mxu0 0.0
        %6520 = vmatprep.subr.mxu0 0.0
        %6521 = vmatpush2.msra.mxu0 0.0
        %6522 = vmatprep.subr.mxu0 0.0
        %6523 = vmatpush2.msra.mxu0 0.0
        %6524 = vmatprep.subr.mxu0 0.0
        %6525 = vmatpush2.msra.mxu0 0.0
        %6526 = vmatprep.subr.mxu0 0.0
        %6527 = vmatpush2.msra.mxu0 0.0
        %6528 = vmatprep.subr.mxu0 0.0
        %6529 = vmatpush2.msra.mxu0 0.0
        %6530 = vmatprep.mubr.f32.mxu0 0.0
        %v6531 = vand.u32 %v6462, 4294901760
        %v6532 = vsub.f32 %v6462, %v6531
        %v6533 = vand.u32 %v6532, 4294901760
        %v6534 = vsub.f32 %v6532, %v6533
        %v6535 = vand.u32 %v6534, 4294901760
        %6536 = vmatmul.mubr.f32.gmra.mxu0 %v6535
        %v6537 = vpop.f32.mrf.mxu0
        %v6538 = vadd.f32 0.0, %v6537
        %v6539 = vpop.f32.mrf.mxu0
        %v6540 = vadd.f32 0.0, %v6539
        %6541 = vdwg.mxu0
        %6542 = vmatprep.subr.mxu0 0.0
        %6543 = vmatpush1.msra.mxu0 0.0
        %6544 = vmatprep.subr.mxu0 0.0
        %6545 = vmatpush1.msra.mxu0 0.0
        %6546 = vmatprep.subr.mxu0 0.0
        %6547 = vmatpush1.msra.mxu0 0.0
        %6548 = vmatprep.subr.mxu0 0.0
        %6549 = vmatpush1.msra.mxu0 0.0
        %6550 = vmatprep.subr.mxu0 0.0
        %6551 = vmatpush1.msra.mxu0 0.0
        %6552 = vmatprep.subr.mxu0 0.0
        %6553 = vmatpush1.msra.mxu0 0.0
        %6554 = vmatprep.subr.mxu0 0.0
        %6555 = vmatpush1.msra.mxu0 0.0
        %6556 = vmatprep.subr.mxu0 0.0
        %6557 = vmatpush1.msra.mxu0 0.0
        %6558 = vmatprep.subr.mxu0 0.0
        %6559 = vmatpush1.msra.mxu0 0.0
        %6560 = vmatprep.subr.mxu0 0.0
        %6561 = vmatpush1.msra.mxu0 0.0
        %6562 = vmatprep.subr.mxu0 0.0
        %6563 = vmatpush1.msra.mxu0 0.0
        %6564 = vmatprep.subr.mxu0 0.0
        %6565 = vmatpush1.msra.mxu0 0.0
        %6566 = vmatprep.subr.mxu0 0.0
        %6567 = vmatpush1.msra.mxu0 0.0
        %6568 = vmatprep.subr.mxu0 0.0
        %6569 = vmatpush1.msra.mxu0 0.0
        %6570 = vmatprep.subr.mxu0 0.0
        %6571 = vmatpush1.msra.mxu0 0.0
        %v6572 = vand.u32 %v6458, 4294901760
        %v6573 = vsub.f32 %v6458, %v6572
        %v6574 = vand.u32 %v6573, 4294901760
        %v6575 = vsub.f32 %v6573, %v6574
        %v6576 = vand.u32 %v6575, 4294901760
        %6577 = vmatprep.subr.mxu0 %v6576
        %v6578 = vand.u32 %v6457, 4294901760
        %v6579 = vsub.f32 %v6457, %v6578
        %v6580 = vand.u32 %v6579, 4294901760
        %v6581 = vsub.f32 %v6579, %v6580
        %v6582 = vand.u32 %v6581, 4294901760
        %6583 = vmatpush1.msra.mxu0 %v6582
        %6584 = vmatprep.subr.mxu0 0.0
        %6585 = vmatpush2.msra.mxu0 0.0
        %6586 = vmatprep.subr.mxu0 0.0
        %6587 = vmatpush2.msra.mxu0 0.0
        %6588 = vmatprep.subr.mxu0 0.0
        %6589 = vmatpush2.msra.mxu0 0.0
        %6590 = vmatprep.subr.mxu0 0.0
        %6591 = vmatpush2.msra.mxu0 0.0
        %6592 = vmatprep.subr.mxu0 0.0
        %6593 = vmatpush2.msra.mxu0 0.0
        %6594 = vmatprep.subr.mxu0 0.0
        %6595 = vmatpush2.msra.mxu0 0.0
        %6596 = vmatprep.subr.mxu0 0.0
        %6597 = vmatpush2.msra.mxu0 0.0
        %6598 = vmatprep.subr.mxu0 0.0
        %6599 = vmatpush2.msra.mxu0 0.0
        %6600 = vmatprep.subr.mxu0 0.0
        %6601 = vmatpush2.msra.mxu0 0.0
        %6602 = vmatprep.subr.mxu0 0.0
        %6603 = vmatpush2.msra.mxu0 0.0
        %6604 = vmatprep.subr.mxu0 0.0
        %6605 = vmatpush2.msra.mxu0 0.0
        %6606 = vmatprep.subr.mxu0 0.0
        %6607 = vmatpush2.msra.mxu0 0.0
        %6608 = vmatprep.subr.mxu0 0.0
        %6609 = vmatpush2.msra.mxu0 0.0
        %6610 = vmatprep.subr.mxu0 0.0
        %6611 = vmatpush2.msra.mxu0 0.0
        %6612 = vmatprep.subr.mxu0 0.0
        %6613 = vmatpush2.msra.mxu0 0.0
        %6614 = vmatprep.subr.mxu0 0.0
        %6615 = vmatpush2.msra.mxu0 0.0
        %6616 = vmatprep.mubr.f32.mxu0 0.0
        %v6617 = vand.u32 %v6462, 4294901760
        %6618 = vmatmul.mubr.f32.gmra.mxu0 %v6617
        %v6619 = vpop.f32.mrf.mxu0
        %v6620 = vadd.f32 %v6538, %v6619
        %v6621 = vpop.f32.mrf.mxu0
        %v6622 = vadd.f32 %v6540, %v6621
        %6623 = vdwg.mxu0
        %6624 = vmatprep.subr.mxu0 0.0
        %6625 = vmatpush1.msra.mxu0 0.0
        %6626 = vmatprep.subr.mxu0 0.0
        %6627 = vmatpush1.msra.mxu0 0.0
        %6628 = vmatprep.subr.mxu0 0.0
        %6629 = vmatpush1.msra.mxu0 0.0
        %6630 = vmatprep.subr.mxu0 0.0
        %6631 = vmatpush1.msra.mxu0 0.0
        %6632 = vmatprep.subr.mxu0 0.0
        %6633 = vmatpush1.msra.mxu0 0.0
        %6634 = vmatprep.subr.mxu0 0.0
        %6635 = vmatpush1.msra.mxu0 0.0
        %6636 = vmatprep.subr.mxu0 0.0
        %6637 = vmatpush1.msra.mxu0 0.0
        %6638 = vmatprep.subr.mxu0 0.0
        %6639 = vmatpush1.msra.mxu0 0.0
        %6640 = vmatprep.subr.mxu0 0.0
        %6641 = vmatpush1.msra.mxu0 0.0
        %6642 = vmatprep.subr.mxu0 0.0
        %6643 = vmatpush1.msra.mxu0 0.0
        %6644 = vmatprep.subr.mxu0 0.0
        %6645 = vmatpush1.msra.mxu0 0.0
        %6646 = vmatprep.subr.mxu0 0.0
        %6647 = vmatpush1.msra.mxu0 0.0
        %6648 = vmatprep.subr.mxu0 0.0
        %6649 = vmatpush1.msra.mxu0 0.0
        %6650 = vmatprep.subr.mxu0 0.0
        %6651 = vmatpush1.msra.mxu0 0.0
        %6652 = vmatprep.subr.mxu0 0.0
        %6653 = vmatpush1.msra.mxu0 0.0
        %v6654 = vand.u32 %v6458, 4294901760
        %v6655 = vsub.f32 %v6458, %v6654
        %6656 = vmatprep.subr.mxu0 %v6655
        %v6657 = vand.u32 %v6457, 4294901760
        %v6658 = vsub.f32 %v6457, %v6657
        %6659 = vmatpush1.msra.mxu0 %v6658
        %6660 = vmatprep.subr.mxu0 0.0
        %6661 = vmatpush2.msra.mxu0 0.0
        %6662 = vmatprep.subr.mxu0 0.0
        %6663 = vmatpush2.msra.mxu0 0.0
        %6664 = vmatprep.subr.mxu0 0.0
        %6665 = vmatpush2.msra.mxu0 0.0
        %6666 = vmatprep.subr.mxu0 0.0
        %6667 = vmatpush2.msra.mxu0 0.0
        %6668 = vmatprep.subr.mxu0 0.0
        %6669 = vmatpush2.msra.mxu0 0.0
        %6670 = vmatprep.subr.mxu0 0.0
        %6671 = vmatpush2.msra.mxu0 0.0
        %6672 = vmatprep.subr.mxu0 0.0
        %6673 = vmatpush2.msra.mxu0 0.0
        %6674 = vmatprep.subr.mxu0 0.0
        %6675 = vmatpush2.msra.mxu0 0.0
        %6676 = vmatprep.subr.mxu0 0.0
        %6677 = vmatpush2.msra.mxu0 0.0
        %6678 = vmatprep.subr.mxu0 0.0
        %6679 = vmatpush2.msra.mxu0 0.0
        %6680 = vmatprep.subr.mxu0 0.0
        %6681 = vmatpush2.msra.mxu0 0.0
        %6682 = vmatprep.subr.mxu0 0.0
        %6683 = vmatpush2.msra.mxu0 0.0
        %6684 = vmatprep.subr.mxu0 0.0
        %6685 = vmatpush2.msra.mxu0 0.0
        %6686 = vmatprep.subr.mxu0 0.0
        %6687 = vmatpush2.msra.mxu0 0.0
        %6688 = vmatprep.subr.mxu0 0.0
        %6689 = vmatpush2.msra.mxu0 0.0
        %6690 = vmatprep.subr.mxu0 0.0
        %6691 = vmatpush2.msra.mxu0 0.0
        %6692 = vmatprep.mubr.f32.mxu0 0.0
        %v6693 = vand.u32 %v6462, 4294901760
        %v6694 = vsub.f32 %v6462, %v6693
        %6695 = vmatmul.mubr.f32.gmra.mxu0 %v6694
        %v6696 = vpop.f32.mrf.mxu0
        %v6697 = vadd.f32 %v6620, %v6696
        %v6698 = vpop.f32.mrf.mxu0
        %v6699 = vadd.f32 %v6622, %v6698
        %6700 = vdwg.mxu0
        %6701 = vmatprep.subr.mxu0 0.0
        %6702 = vmatpush1.msra.mxu0 0.0
        %6703 = vmatprep.subr.mxu0 0.0
        %6704 = vmatpush1.msra.mxu0 0.0
        %6705 = vmatprep.subr.mxu0 0.0
        %6706 = vmatpush1.msra.mxu0 0.0
        %6707 = vmatprep.subr.mxu0 0.0
        %6708 = vmatpush1.msra.mxu0 0.0
        %6709 = vmatprep.subr.mxu0 0.0
        %6710 = vmatpush1.msra.mxu0 0.0
        %6711 = vmatprep.subr.mxu0 0.0
        %6712 = vmatpush1.msra.mxu0 0.0
        %6713 = vmatprep.subr.mxu0 0.0
        %6714 = vmatpush1.msra.mxu0 0.0
        %6715 = vmatprep.subr.mxu0 0.0
        %6716 = vmatpush1.msra.mxu0 0.0
        %6717 = vmatprep.subr.mxu0 0.0
        %6718 = vmatpush1.msra.mxu0 0.0
        %6719 = vmatprep.subr.mxu0 0.0
        %6720 = vmatpush1.msra.mxu0 0.0
        %6721 = vmatprep.subr.mxu0 0.0
        %6722 = vmatpush1.msra.mxu0 0.0
        %6723 = vmatprep.subr.mxu0 0.0
        %6724 = vmatpush1.msra.mxu0 0.0
        %6725 = vmatprep.subr.mxu0 0.0
        %6726 = vmatpush1.msra.mxu0 0.0
        %6727 = vmatprep.subr.mxu0 0.0
        %6728 = vmatpush1.msra.mxu0 0.0
        %6729 = vmatprep.subr.mxu0 0.0
        %6730 = vmatpush1.msra.mxu0 0.0
        %v6731 = vand.u32 %v6458, 4294901760
        %6732 = vmatprep.subr.mxu0 %v6731
        %v6733 = vand.u32 %v6457, 4294901760
        %6734 = vmatpush1.msra.mxu0 %v6733
        %6735 = vmatprep.subr.mxu0 0.0
        %6736 = vmatpush2.msra.mxu0 0.0
        %6737 = vmatprep.subr.mxu0 0.0
        %6738 = vmatpush2.msra.mxu0 0.0
        %6739 = vmatprep.subr.mxu0 0.0
        %6740 = vmatpush2.msra.mxu0 0.0
        %6741 = vmatprep.subr.mxu0 0.0
        %6742 = vmatpush2.msra.mxu0 0.0
        %6743 = vmatprep.subr.mxu0 0.0
        %6744 = vmatpush2.msra.mxu0 0.0
        %6745 = vmatprep.subr.mxu0 0.0
        %6746 = vmatpush2.msra.mxu0 0.0
        %6747 = vmatprep.subr.mxu0 0.0
        %6748 = vmatpush2.msra.mxu0 0.0
        %6749 = vmatprep.subr.mxu0 0.0
        %6750 = vmatpush2.msra.mxu0 0.0
        %6751 = vmatprep.subr.mxu0 0.0
        %6752 = vmatpush2.msra.mxu0 0.0
        %6753 = vmatprep.subr.mxu0 0.0
        %6754 = vmatpush2.msra.mxu0 0.0
        %6755 = vmatprep.subr.mxu0 0.0
        %6756 = vmatpush2.msra.mxu0 0.0
        %6757 = vmatprep.subr.mxu0 0.0
        %6758 = vmatpush2.msra.mxu0 0.0
        %6759 = vmatprep.subr.mxu0 0.0
        %6760 = vmatpush2.msra.mxu0 0.0
        %6761 = vmatprep.subr.mxu0 0.0
        %6762 = vmatpush2.msra.mxu0 0.0
        %6763 = vmatprep.subr.mxu0 0.0
        %6764 = vmatpush2.msra.mxu0 0.0
        %6765 = vmatprep.subr.mxu0 0.0
        %6766 = vmatpush2.msra.mxu0 0.0
        %6767 = vmatprep.mubr.f32.mxu0 0.0
        %v6768 = vand.u32 %v6462, 4294901760
        %v6769 = vsub.f32 %v6462, %v6768
        %v6770 = vand.u32 %v6769, 4294901760
        %6771 = vmatmul.mubr.f32.gmra.mxu0 %v6770
        %v6772 = vpop.f32.mrf.mxu0
        %v6773 = vadd.f32 %v6697, %v6772
        %v6774 = vpop.f32.mrf.mxu0
        %v6775 = vadd.f32 %v6699, %v6774
        %6776 = vdwg.mxu0
        %6777 = vmatprep.subr.mxu0 0.0
        %6778 = vmatpush1.msra.mxu0 0.0
        %6779 = vmatprep.subr.mxu0 0.0
        %6780 = vmatpush1.msra.mxu0 0.0
        %6781 = vmatprep.subr.mxu0 0.0
        %6782 = vmatpush1.msra.mxu0 0.0
        %6783 = vmatprep.subr.mxu0 0.0
        %6784 = vmatpush1.msra.mxu0 0.0
        %6785 = vmatprep.subr.mxu0 0.0
        %6786 = vmatpush1.msra.mxu0 0.0
        %6787 = vmatprep.subr.mxu0 0.0
        %6788 = vmatpush1.msra.mxu0 0.0
        %6789 = vmatprep.subr.mxu0 0.0
        %6790 = vmatpush1.msra.mxu0 0.0
        %6791 = vmatprep.subr.mxu0 0.0
        %6792 = vmatpush1.msra.mxu0 0.0
        %6793 = vmatprep.subr.mxu0 0.0
        %6794 = vmatpush1.msra.mxu0 0.0
        %6795 = vmatprep.subr.mxu0 0.0
        %6796 = vmatpush1.msra.mxu0 0.0
        %6797 = vmatprep.subr.mxu0 0.0
        %6798 = vmatpush1.msra.mxu0 0.0
        %6799 = vmatprep.subr.mxu0 0.0
        %6800 = vmatpush1.msra.mxu0 0.0
        %6801 = vmatprep.subr.mxu0 0.0
        %6802 = vmatpush1.msra.mxu0 0.0
        %6803 = vmatprep.subr.mxu0 0.0
        %6804 = vmatpush1.msra.mxu0 0.0
        %6805 = vmatprep.subr.mxu0 0.0
        %6806 = vmatpush1.msra.mxu0 0.0
        %v6807 = vand.u32 %v6458, 4294901760
        %v6808 = vsub.f32 %v6458, %v6807
        %v6809 = vand.u32 %v6808, 4294901760
        %6810 = vmatprep.subr.mxu0 %v6809
        %v6811 = vand.u32 %v6457, 4294901760
        %v6812 = vsub.f32 %v6457, %v6811
        %v6813 = vand.u32 %v6812, 4294901760
        %6814 = vmatpush1.msra.mxu0 %v6813
        %6815 = vmatprep.subr.mxu0 0.0
        %6816 = vmatpush2.msra.mxu0 0.0
        %6817 = vmatprep.subr.mxu0 0.0
        %6818 = vmatpush2.msra.mxu0 0.0
        %6819 = vmatprep.subr.mxu0 0.0
        %6820 = vmatpush2.msra.mxu0 0.0
        %6821 = vmatprep.subr.mxu0 0.0
        %6822 = vmatpush2.msra.mxu0 0.0
        %6823 = vmatprep.subr.mxu0 0.0
        %6824 = vmatpush2.msra.mxu0 0.0
        %6825 = vmatprep.subr.mxu0 0.0
        %6826 = vmatpush2.msra.mxu0 0.0
        %6827 = vmatprep.subr.mxu0 0.0
        %6828 = vmatpush2.msra.mxu0 0.0
        %6829 = vmatprep.subr.mxu0 0.0
        %6830 = vmatpush2.msra.mxu0 0.0
        %6831 = vmatprep.subr.mxu0 0.0
        %6832 = vmatpush2.msra.mxu0 0.0
        %6833 = vmatprep.subr.mxu0 0.0
        %6834 = vmatpush2.msra.mxu0 0.0
        %6835 = vmatprep.subr.mxu0 0.0
        %6836 = vmatpush2.msra.mxu0 0.0
        %6837 = vmatprep.subr.mxu0 0.0
        %6838 = vmatpush2.msra.mxu0 0.0
        %6839 = vmatprep.subr.mxu0 0.0
        %6840 = vmatpush2.msra.mxu0 0.0
        %6841 = vmatprep.subr.mxu0 0.0
        %6842 = vmatpush2.msra.mxu0 0.0
        %6843 = vmatprep.subr.mxu0 0.0
        %6844 = vmatpush2.msra.mxu0 0.0
        %6845 = vmatprep.subr.mxu0 0.0
        %6846 = vmatpush2.msra.mxu0 0.0
        %6847 = vmatprep.mubr.f32.mxu0 0.0
        %v6848 = vand.u32 %v6462, 4294901760
        %6849 = vmatmul.mubr.f32.gmra.mxu0 %v6848
        %v6850 = vpop.f32.mrf.mxu0
        %v6851 = vadd.f32 %v6773, %v6850
        %v6852 = vpop.f32.mrf.mxu0
        %v6853 = vadd.f32 %v6775, %v6852
        %6854 = vdwg.mxu0
        %6855 = vmatprep.subr.mxu0 0.0
        %6856 = vmatpush1.msra.mxu0 0.0
        %6857 = vmatprep.subr.mxu0 0.0
        %6858 = vmatpush1.msra.mxu0 0.0
        %6859 = vmatprep.subr.mxu0 0.0
        %6860 = vmatpush1.msra.mxu0 0.0
        %6861 = vmatprep.subr.mxu0 0.0
        %6862 = vmatpush1.msra.mxu0 0.0
        %6863 = vmatprep.subr.mxu0 0.0
        %6864 = vmatpush1.msra.mxu0 0.0
        %6865 = vmatprep.subr.mxu0 0.0
        %6866 = vmatpush1.msra.mxu0 0.0
        %6867 = vmatprep.subr.mxu0 0.0
        %6868 = vmatpush1.msra.mxu0 0.0
        %6869 = vmatprep.subr.mxu0 0.0
        %6870 = vmatpush1.msra.mxu0 0.0
        %6871 = vmatprep.subr.mxu0 0.0
        %6872 = vmatpush1.msra.mxu0 0.0
        %6873 = vmatprep.subr.mxu0 0.0
        %6874 = vmatpush1.msra.mxu0 0.0
        %6875 = vmatprep.subr.mxu0 0.0
        %6876 = vmatpush1.msra.mxu0 0.0
        %6877 = vmatprep.subr.mxu0 0.0
        %6878 = vmatpush1.msra.mxu0 0.0
        %6879 = vmatprep.subr.mxu0 0.0
        %6880 = vmatpush1.msra.mxu0 0.0
        %6881 = vmatprep.subr.mxu0 0.0
        %6882 = vmatpush1.msra.mxu0 0.0
        %6883 = vmatprep.subr.mxu0 0.0
        %6884 = vmatpush1.msra.mxu0 0.0
        %v6885 = vand.u32 %v6458, 4294901760
        %6886 = vmatprep.subr.mxu0 %v6885
        %v6887 = vand.u32 %v6457, 4294901760
        %6888 = vmatpush1.msra.mxu0 %v6887
        %6889 = vmatprep.subr.mxu0 0.0
        %6890 = vmatpush2.msra.mxu0 0.0
        %6891 = vmatprep.subr.mxu0 0.0
        %6892 = vmatpush2.msra.mxu0 0.0
        %6893 = vmatprep.subr.mxu0 0.0
        %6894 = vmatpush2.msra.mxu0 0.0
        %6895 = vmatprep.subr.mxu0 0.0
        %6896 = vmatpush2.msra.mxu0 0.0
        %6897 = vmatprep.subr.mxu0 0.0
        %6898 = vmatpush2.msra.mxu0 0.0
        %6899 = vmatprep.subr.mxu0 0.0
        %6900 = vmatpush2.msra.mxu0 0.0
        %6901 = vmatprep.subr.mxu0 0.0
        %6902 = vmatpush2.msra.mxu0 0.0
        %6903 = vmatprep.subr.mxu0 0.0
        %6904 = vmatpush2.msra.mxu0 0.0
        %6905 = vmatprep.subr.mxu0 0.0
        %6906 = vmatpush2.msra.mxu0 0.0
        %6907 = vmatprep.subr.mxu0 0.0
        %6908 = vmatpush2.msra.mxu0 0.0
        %6909 = vmatprep.subr.mxu0 0.0
        %6910 = vmatpush2.msra.mxu0 0.0
        %6911 = vmatprep.subr.mxu0 0.0
        %6912 = vmatpush2.msra.mxu0 0.0
        %6913 = vmatprep.subr.mxu0 0.0
        %6914 = vmatpush2.msra.mxu0 0.0
        %6915 = vmatprep.subr.mxu0 0.0
        %6916 = vmatpush2.msra.mxu0 0.0
        %6917 = vmatprep.subr.mxu0 0.0
        %6918 = vmatpush2.msra.mxu0 0.0
        %6919 = vmatprep.subr.mxu0 0.0
        %6920 = vmatpush2.msra.mxu0 0.0
        %6921 = vmatprep.mubr.f32.mxu0 0.0
        %v6922 = vand.u32 %v6462, 4294901760
        %6923 = vmatmul.mubr.f32.gmra.mxu0 %v6922
        %v6924 = vpop.f32.mrf.mxu0
        %v6925 = vadd.f32 %v6851, %v6924
        %v6926 = vpop.f32.mrf.mxu0
        %v6927 = vadd.f32 %v6853, %v6926
        %6928 = vdwg.mxu0
        %v6929 = vadd.f32 %v6423, %v6925
        %v6930 = vadd.f32 %v6424, %v6927
        %v6931 = vld [vmem:[%s2354] sm:$0x3]
        %v6933 = vlaneseq
        %v6934 = vshrl.u32 %v6933, 7
        %v6935 = vsub.s32 0, %v6934
        %v6936 = vrot.slane %v6931, %v6935
        %v6937 = vlaneseq
        %v6938 = vshrl.u32 %v6937, 7
        %v6939 = vsub.s32 1, %v6938
        %v6940 = vrot.slane %v6931, %v6939
        %6941 = vrot.lane.b32.xlu0 %v6936, 17
        %v6942 = vpop.permute.xlu0 %6941
        %6943 = vrot.lane.b32.xlu0 %v6940, 17
        %v6944 = vpop.permute.xlu0 %6943
        %v6945 = vsel %vm306, %v6942, %v6944
        %v6949 = vmul.f32 %v4929, %v6942
        %v6950 = vmul.f32 %v4930, %v6945
        %v6951 = vmul.f32 %v4946, %v6944
        %s6952 = scalar_lea.vmem %s6, 32
        %v6953 = vld [vmem:[%s6952] sm:$0xff]
        %6957 = vrot.lane.b32.xlu0 %v6949, 111
        %v6958 = vpop.permute.xlu0 %6957
        %6959 = vrot.lane.b32.xlu0 %v6950, 111
        %v6960 = vpop.permute.xlu0 %6959
        %6961 = vrot.lane.b32.xlu0 %v6951, 111
        %v6962 = vpop.permute.xlu0 %6961
        %v6963 = vsel %vm2387, %v6958, %v6960
        %v6964 = vsel %vm2387, %v6960, %v6962
        %v6968 = vsel %vm399, %v6953, 0
        %6970 = vmatprep.subr.mxu0 0.0
        %6971 = vmatpush1.msra.mxu0 0.0
        %6972 = vmatprep.subr.mxu0 0.0
        %6973 = vmatpush1.msra.mxu0 0.0
        %6974 = vmatprep.subr.mxu0 0.0
        %6975 = vmatpush1.msra.mxu0 0.0
        %6976 = vmatprep.subr.mxu0 0.0
        %6977 = vmatpush1.msra.mxu0 0.0
        %6978 = vmatprep.subr.mxu0 0.0
        %6979 = vmatpush1.msra.mxu0 0.0
        %6980 = vmatprep.subr.mxu0 0.0
        %6981 = vmatpush1.msra.mxu0 0.0
        %6982 = vmatprep.subr.mxu0 0.0
        %6983 = vmatpush1.msra.mxu0 0.0
        %6984 = vmatprep.subr.mxu0 0.0
        %6985 = vmatpush1.msra.mxu0 0.0
        %6986 = vmatprep.subr.mxu0 0.0
        %6987 = vmatpush1.msra.mxu0 0.0
        %6988 = vmatprep.subr.mxu0 0.0
        %6989 = vmatpush1.msra.mxu0 0.0
        %6990 = vmatprep.subr.mxu0 0.0
        %6991 = vmatpush1.msra.mxu0 0.0
        %6992 = vmatprep.subr.mxu0 0.0
        %6993 = vmatpush1.msra.mxu0 0.0
        %6994 = vmatprep.subr.mxu0 0.0
        %6995 = vmatpush1.msra.mxu0 0.0
        %6996 = vmatprep.subr.mxu0 0.0
        %6997 = vmatpush1.msra.mxu0 0.0
        %6998 = vmatprep.subr.mxu0 0.0
        %6999 = vmatpush1.msra.mxu0 0.0
        %v7000 = vand.u32 %v6964, 4294901760
        %7001 = vmatprep.subr.mxu0 %v7000
        %v7002 = vand.u32 %v6963, 4294901760
        %7003 = vmatpush1.msra.mxu0 %v7002
        %7004 = vmatprep.subr.mxu0 0.0
        %7005 = vmatpush2.msra.mxu0 0.0
        %7006 = vmatprep.subr.mxu0 0.0
        %7007 = vmatpush2.msra.mxu0 0.0
        %7008 = vmatprep.subr.mxu0 0.0
        %7009 = vmatpush2.msra.mxu0 0.0
        %7010 = vmatprep.subr.mxu0 0.0
        %7011 = vmatpush2.msra.mxu0 0.0
        %7012 = vmatprep.subr.mxu0 0.0
        %7013 = vmatpush2.msra.mxu0 0.0
        %7014 = vmatprep.subr.mxu0 0.0
        %7015 = vmatpush2.msra.mxu0 0.0
        %7016 = vmatprep.subr.mxu0 0.0
        %7017 = vmatpush2.msra.mxu0 0.0
        %7018 = vmatprep.subr.mxu0 0.0
        %7019 = vmatpush2.msra.mxu0 0.0
        %7020 = vmatprep.subr.mxu0 0.0
        %7021 = vmatpush2.msra.mxu0 0.0
        %7022 = vmatprep.subr.mxu0 0.0
        %7023 = vmatpush2.msra.mxu0 0.0
        %7024 = vmatprep.subr.mxu0 0.0
        %7025 = vmatpush2.msra.mxu0 0.0
        %7026 = vmatprep.subr.mxu0 0.0
        %7027 = vmatpush2.msra.mxu0 0.0
        %7028 = vmatprep.subr.mxu0 0.0
        %7029 = vmatpush2.msra.mxu0 0.0
        %7030 = vmatprep.subr.mxu0 0.0
        %7031 = vmatpush2.msra.mxu0 0.0
        %7032 = vmatprep.subr.mxu0 0.0
        %7033 = vmatpush2.msra.mxu0 0.0
        %7034 = vmatprep.subr.mxu0 0.0
        %7035 = vmatpush2.msra.mxu0 0.0
        %7036 = vmatprep.mubr.f32.mxu0 0.0
        %v7037 = vand.u32 %v6968, 4294901760
        %v7038 = vsub.f32 %v6968, %v7037
        %v7039 = vand.u32 %v7038, 4294901760
        %v7040 = vsub.f32 %v7038, %v7039
        %v7041 = vand.u32 %v7040, 4294901760
        %7042 = vmatmul.mubr.f32.gmra.mxu0 %v7041
        %v7043 = vpop.f32.mrf.mxu0
        %v7044 = vadd.f32 0.0, %v7043
        %v7045 = vpop.f32.mrf.mxu0
        %v7046 = vadd.f32 0.0, %v7045
        %7047 = vdwg.mxu0
        %7048 = vmatprep.subr.mxu0 0.0
        %7049 = vmatpush1.msra.mxu0 0.0
        %7050 = vmatprep.subr.mxu0 0.0
        %7051 = vmatpush1.msra.mxu0 0.0
        %7052 = vmatprep.subr.mxu0 0.0
        %7053 = vmatpush1.msra.mxu0 0.0
        %7054 = vmatprep.subr.mxu0 0.0
        %7055 = vmatpush1.msra.mxu0 0.0
        %7056 = vmatprep.subr.mxu0 0.0
        %7057 = vmatpush1.msra.mxu0 0.0
        %7058 = vmatprep.subr.mxu0 0.0
        %7059 = vmatpush1.msra.mxu0 0.0
        %7060 = vmatprep.subr.mxu0 0.0
        %7061 = vmatpush1.msra.mxu0 0.0
        %7062 = vmatprep.subr.mxu0 0.0
        %7063 = vmatpush1.msra.mxu0 0.0
        %7064 = vmatprep.subr.mxu0 0.0
        %7065 = vmatpush1.msra.mxu0 0.0
        %7066 = vmatprep.subr.mxu0 0.0
        %7067 = vmatpush1.msra.mxu0 0.0
        %7068 = vmatprep.subr.mxu0 0.0
        %7069 = vmatpush1.msra.mxu0 0.0
        %7070 = vmatprep.subr.mxu0 0.0
        %7071 = vmatpush1.msra.mxu0 0.0
        %7072 = vmatprep.subr.mxu0 0.0
        %7073 = vmatpush1.msra.mxu0 0.0
        %7074 = vmatprep.subr.mxu0 0.0
        %7075 = vmatpush1.msra.mxu0 0.0
        %7076 = vmatprep.subr.mxu0 0.0
        %7077 = vmatpush1.msra.mxu0 0.0
        %v7078 = vand.u32 %v6964, 4294901760
        %v7079 = vsub.f32 %v6964, %v7078
        %v7080 = vand.u32 %v7079, 4294901760
        %v7081 = vsub.f32 %v7079, %v7080
        %v7082 = vand.u32 %v7081, 4294901760
        %7083 = vmatprep.subr.mxu0 %v7082
        %v7084 = vand.u32 %v6963, 4294901760
        %v7085 = vsub.f32 %v6963, %v7084
        %v7086 = vand.u32 %v7085, 4294901760
        %v7087 = vsub.f32 %v7085, %v7086
        %v7088 = vand.u32 %v7087, 4294901760
        %7089 = vmatpush1.msra.mxu0 %v7088
        %7090 = vmatprep.subr.mxu0 0.0
        %7091 = vmatpush2.msra.mxu0 0.0
        %7092 = vmatprep.subr.mxu0 0.0
        %7093 = vmatpush2.msra.mxu0 0.0
        %7094 = vmatprep.subr.mxu0 0.0
        %7095 = vmatpush2.msra.mxu0 0.0
        %7096 = vmatprep.subr.mxu0 0.0
        %7097 = vmatpush2.msra.mxu0 0.0
        %7098 = vmatprep.subr.mxu0 0.0
        %7099 = vmatpush2.msra.mxu0 0.0
        %7100 = vmatprep.subr.mxu0 0.0
        %7101 = vmatpush2.msra.mxu0 0.0
        %7102 = vmatprep.subr.mxu0 0.0
        %7103 = vmatpush2.msra.mxu0 0.0
        %7104 = vmatprep.subr.mxu0 0.0
        %7105 = vmatpush2.msra.mxu0 0.0
        %7106 = vmatprep.subr.mxu0 0.0
        %7107 = vmatpush2.msra.mxu0 0.0
        %7108 = vmatprep.subr.mxu0 0.0
        %7109 = vmatpush2.msra.mxu0 0.0
        %7110 = vmatprep.subr.mxu0 0.0
        %7111 = vmatpush2.msra.mxu0 0.0
        %7112 = vmatprep.subr.mxu0 0.0
        %7113 = vmatpush2.msra.mxu0 0.0
        %7114 = vmatprep.subr.mxu0 0.0
        %7115 = vmatpush2.msra.mxu0 0.0
        %7116 = vmatprep.subr.mxu0 0.0
        %7117 = vmatpush2.msra.mxu0 0.0
        %7118 = vmatprep.subr.mxu0 0.0
        %7119 = vmatpush2.msra.mxu0 0.0
        %7120 = vmatprep.subr.mxu0 0.0
        %7121 = vmatpush2.msra.mxu0 0.0
        %7122 = vmatprep.mubr.f32.mxu0 0.0
        %v7123 = vand.u32 %v6968, 4294901760
        %7124 = vmatmul.mubr.f32.gmra.mxu0 %v7123
        %v7125 = vpop.f32.mrf.mxu0
        %v7126 = vadd.f32 %v7044, %v7125
        %v7127 = vpop.f32.mrf.mxu0
        %v7128 = vadd.f32 %v7046, %v7127
        %7129 = vdwg.mxu0
        %7130 = vmatprep.subr.mxu0 0.0
        %7131 = vmatpush1.msra.mxu0 0.0
        %7132 = vmatprep.subr.mxu0 0.0
        %7133 = vmatpush1.msra.mxu0 0.0
        %7134 = vmatprep.subr.mxu0 0.0
        %7135 = vmatpush1.msra.mxu0 0.0
        %7136 = vmatprep.subr.mxu0 0.0
        %7137 = vmatpush1.msra.mxu0 0.0
        %7138 = vmatprep.subr.mxu0 0.0
        %7139 = vmatpush1.msra.mxu0 0.0
        %7140 = vmatprep.subr.mxu0 0.0
        %7141 = vmatpush1.msra.mxu0 0.0
        %7142 = vmatprep.subr.mxu0 0.0
        %7143 = vmatpush1.msra.mxu0 0.0
        %7144 = vmatprep.subr.mxu0 0.0
        %7145 = vmatpush1.msra.mxu0 0.0
        %7146 = vmatprep.subr.mxu0 0.0
        %7147 = vmatpush1.msra.mxu0 0.0
        %7148 = vmatprep.subr.mxu0 0.0
        %7149 = vmatpush1.msra.mxu0 0.0
        %7150 = vmatprep.subr.mxu0 0.0
        %7151 = vmatpush1.msra.mxu0 0.0
        %7152 = vmatprep.subr.mxu0 0.0
        %7153 = vmatpush1.msra.mxu0 0.0
        %7154 = vmatprep.subr.mxu0 0.0
        %7155 = vmatpush1.msra.mxu0 0.0
        %7156 = vmatprep.subr.mxu0 0.0
        %7157 = vmatpush1.msra.mxu0 0.0
        %7158 = vmatprep.subr.mxu0 0.0
        %7159 = vmatpush1.msra.mxu0 0.0
        %v7160 = vand.u32 %v6964, 4294901760
        %v7161 = vsub.f32 %v6964, %v7160
        %7162 = vmatprep.subr.mxu0 %v7161
        %v7163 = vand.u32 %v6963, 4294901760
        %v7164 = vsub.f32 %v6963, %v7163
        %7165 = vmatpush1.msra.mxu0 %v7164
        %7166 = vmatprep.subr.mxu0 0.0
        %7167 = vmatpush2.msra.mxu0 0.0
        %7168 = vmatprep.subr.mxu0 0.0
        %7169 = vmatpush2.msra.mxu0 0.0
        %7170 = vmatprep.subr.mxu0 0.0
        %7171 = vmatpush2.msra.mxu0 0.0
        %7172 = vmatprep.subr.mxu0 0.0
        %7173 = vmatpush2.msra.mxu0 0.0
        %7174 = vmatprep.subr.mxu0 0.0
        %7175 = vmatpush2.msra.mxu0 0.0
        %7176 = vmatprep.subr.mxu0 0.0
        %7177 = vmatpush2.msra.mxu0 0.0
        %7178 = vmatprep.subr.mxu0 0.0
        %7179 = vmatpush2.msra.mxu0 0.0
        %7180 = vmatprep.subr.mxu0 0.0
        %7181 = vmatpush2.msra.mxu0 0.0
        %7182 = vmatprep.subr.mxu0 0.0
        %7183 = vmatpush2.msra.mxu0 0.0
        %7184 = vmatprep.subr.mxu0 0.0
        %7185 = vmatpush2.msra.mxu0 0.0
        %7186 = vmatprep.subr.mxu0 0.0
        %7187 = vmatpush2.msra.mxu0 0.0
        %7188 = vmatprep.subr.mxu0 0.0
        %7189 = vmatpush2.msra.mxu0 0.0
        %7190 = vmatprep.subr.mxu0 0.0
        %7191 = vmatpush2.msra.mxu0 0.0
        %7192 = vmatprep.subr.mxu0 0.0
        %7193 = vmatpush2.msra.mxu0 0.0
        %7194 = vmatprep.subr.mxu0 0.0
        %7195 = vmatpush2.msra.mxu0 0.0
        %7196 = vmatprep.subr.mxu0 0.0
        %7197 = vmatpush2.msra.mxu0 0.0
        %7198 = vmatprep.mubr.f32.mxu0 0.0
        %v7199 = vand.u32 %v6968, 4294901760
        %v7200 = vsub.f32 %v6968, %v7199
        %7201 = vmatmul.mubr.f32.gmra.mxu0 %v7200
        %v7202 = vpop.f32.mrf.mxu0
        %v7203 = vadd.f32 %v7126, %v7202
        %v7204 = vpop.f32.mrf.mxu0
        %v7205 = vadd.f32 %v7128, %v7204
        %7206 = vdwg.mxu0
        %7207 = vmatprep.subr.mxu0 0.0
        %7208 = vmatpush1.msra.mxu0 0.0
        %7209 = vmatprep.subr.mxu0 0.0
        %7210 = vmatpush1.msra.mxu0 0.0
        %7211 = vmatprep.subr.mxu0 0.0
        %7212 = vmatpush1.msra.mxu0 0.0
        %7213 = vmatprep.subr.mxu0 0.0
        %7214 = vmatpush1.msra.mxu0 0.0
        %7215 = vmatprep.subr.mxu0 0.0
        %7216 = vmatpush1.msra.mxu0 0.0
        %7217 = vmatprep.subr.mxu0 0.0
        %7218 = vmatpush1.msra.mxu0 0.0
        %7219 = vmatprep.subr.mxu0 0.0
        %7220 = vmatpush1.msra.mxu0 0.0
        %7221 = vmatprep.subr.mxu0 0.0
        %7222 = vmatpush1.msra.mxu0 0.0
        %7223 = vmatprep.subr.mxu0 0.0
        %7224 = vmatpush1.msra.mxu0 0.0
        %7225 = vmatprep.subr.mxu0 0.0
        %7226 = vmatpush1.msra.mxu0 0.0
        %7227 = vmatprep.subr.mxu0 0.0
        %7228 = vmatpush1.msra.mxu0 0.0
        %7229 = vmatprep.subr.mxu0 0.0
        %7230 = vmatpush1.msra.mxu0 0.0
        %7231 = vmatprep.subr.mxu0 0.0
        %7232 = vmatpush1.msra.mxu0 0.0
        %7233 = vmatprep.subr.mxu0 0.0
        %7234 = vmatpush1.msra.mxu0 0.0
        %7235 = vmatprep.subr.mxu0 0.0
        %7236 = vmatpush1.msra.mxu0 0.0
        %v7237 = vand.u32 %v6964, 4294901760
        %7238 = vmatprep.subr.mxu0 %v7237
        %v7239 = vand.u32 %v6963, 4294901760
        %7240 = vmatpush1.msra.mxu0 %v7239
        %7241 = vmatprep.subr.mxu0 0.0
        %7242 = vmatpush2.msra.mxu0 0.0
        %7243 = vmatprep.subr.mxu0 0.0
        %7244 = vmatpush2.msra.mxu0 0.0
        %7245 = vmatprep.subr.mxu0 0.0
        %7246 = vmatpush2.msra.mxu0 0.0
        %7247 = vmatprep.subr.mxu0 0.0
        %7248 = vmatpush2.msra.mxu0 0.0
        %7249 = vmatprep.subr.mxu0 0.0
        %7250 = vmatpush2.msra.mxu0 0.0
        %7251 = vmatprep.subr.mxu0 0.0
        %7252 = vmatpush2.msra.mxu0 0.0
        %7253 = vmatprep.subr.mxu0 0.0
        %7254 = vmatpush2.msra.mxu0 0.0
        %7255 = vmatprep.subr.mxu0 0.0
        %7256 = vmatpush2.msra.mxu0 0.0
        %7257 = vmatprep.subr.mxu0 0.0
        %7258 = vmatpush2.msra.mxu0 0.0
        %7259 = vmatprep.subr.mxu0 0.0
        %7260 = vmatpush2.msra.mxu0 0.0
        %7261 = vmatprep.subr.mxu0 0.0
        %7262 = vmatpush2.msra.mxu0 0.0
        %7263 = vmatprep.subr.mxu0 0.0
        %7264 = vmatpush2.msra.mxu0 0.0
        %7265 = vmatprep.subr.mxu0 0.0
        %7266 = vmatpush2.msra.mxu0 0.0
        %7267 = vmatprep.subr.mxu0 0.0
        %7268 = vmatpush2.msra.mxu0 0.0
        %7269 = vmatprep.subr.mxu0 0.0
        %7270 = vmatpush2.msra.mxu0 0.0
        %7271 = vmatprep.subr.mxu0 0.0
        %7272 = vmatpush2.msra.mxu0 0.0
        %7273 = vmatprep.mubr.f32.mxu0 0.0
        %v7274 = vand.u32 %v6968, 4294901760
        %v7275 = vsub.f32 %v6968, %v7274
        %v7276 = vand.u32 %v7275, 4294901760
        %7277 = vmatmul.mubr.f32.gmra.mxu0 %v7276
        %v7278 = vpop.f32.mrf.mxu0
        %v7279 = vadd.f32 %v7203, %v7278
        %v7280 = vpop.f32.mrf.mxu0
        %v7281 = vadd.f32 %v7205, %v7280
        %7282 = vdwg.mxu0
        %7283 = vmatprep.subr.mxu0 0.0
        %7284 = vmatpush1.msra.mxu0 0.0
        %7285 = vmatprep.subr.mxu0 0.0
        %7286 = vmatpush1.msra.mxu0 0.0
        %7287 = vmatprep.subr.mxu0 0.0
        %7288 = vmatpush1.msra.mxu0 0.0
        %7289 = vmatprep.subr.mxu0 0.0
        %7290 = vmatpush1.msra.mxu0 0.0
        %7291 = vmatprep.subr.mxu0 0.0
        %7292 = vmatpush1.msra.mxu0 0.0
        %7293 = vmatprep.subr.mxu0 0.0
        %7294 = vmatpush1.msra.mxu0 0.0
        %7295 = vmatprep.subr.mxu0 0.0
        %7296 = vmatpush1.msra.mxu0 0.0
        %7297 = vmatprep.subr.mxu0 0.0
        %7298 = vmatpush1.msra.mxu0 0.0
        %7299 = vmatprep.subr.mxu0 0.0
        %7300 = vmatpush1.msra.mxu0 0.0
        %7301 = vmatprep.subr.mxu0 0.0
        %7302 = vmatpush1.msra.mxu0 0.0
        %7303 = vmatprep.subr.mxu0 0.0
        %7304 = vmatpush1.msra.mxu0 0.0
        %7305 = vmatprep.subr.mxu0 0.0
        %7306 = vmatpush1.msra.mxu0 0.0
        %7307 = vmatprep.subr.mxu0 0.0
        %7308 = vmatpush1.msra.mxu0 0.0
        %7309 = vmatprep.subr.mxu0 0.0
        %7310 = vmatpush1.msra.mxu0 0.0
        %7311 = vmatprep.subr.mxu0 0.0
        %7312 = vmatpush1.msra.mxu0 0.0
        %v7313 = vand.u32 %v6964, 4294901760
        %v7314 = vsub.f32 %v6964, %v7313
        %v7315 = vand.u32 %v7314, 4294901760
        %7316 = vmatprep.subr.mxu0 %v7315
        %v7317 = vand.u32 %v6963, 4294901760
        %v7318 = vsub.f32 %v6963, %v7317
        %v7319 = vand.u32 %v7318, 4294901760
        %7320 = vmatpush1.msra.mxu0 %v7319
        %7321 = vmatprep.subr.mxu0 0.0
        %7322 = vmatpush2.msra.mxu0 0.0
        %7323 = vmatprep.subr.mxu0 0.0
        %7324 = vmatpush2.msra.mxu0 0.0
        %7325 = vmatprep.subr.mxu0 0.0
        %7326 = vmatpush2.msra.mxu0 0.0
        %7327 = vmatprep.subr.mxu0 0.0
        %7328 = vmatpush2.msra.mxu0 0.0
        %7329 = vmatprep.subr.mxu0 0.0
        %7330 = vmatpush2.msra.mxu0 0.0
        %7331 = vmatprep.subr.mxu0 0.0
        %7332 = vmatpush2.msra.mxu0 0.0
        %7333 = vmatprep.subr.mxu0 0.0
        %7334 = vmatpush2.msra.mxu0 0.0
        %7335 = vmatprep.subr.mxu0 0.0
        %7336 = vmatpush2.msra.mxu0 0.0
        %7337 = vmatprep.subr.mxu0 0.0
        %7338 = vmatpush2.msra.mxu0 0.0
        %7339 = vmatprep.subr.mxu0 0.0
        %7340 = vmatpush2.msra.mxu0 0.0
        %7341 = vmatprep.subr.mxu0 0.0
        %7342 = vmatpush2.msra.mxu0 0.0
        %7343 = vmatprep.subr.mxu0 0.0
        %7344 = vmatpush2.msra.mxu0 0.0
        %7345 = vmatprep.subr.mxu0 0.0
        %7346 = vmatpush2.msra.mxu0 0.0
        %7347 = vmatprep.subr.mxu0 0.0
        %7348 = vmatpush2.msra.mxu0 0.0
        %7349 = vmatprep.subr.mxu0 0.0
        %7350 = vmatpush2.msra.mxu0 0.0
        %7351 = vmatprep.subr.mxu0 0.0
        %7352 = vmatpush2.msra.mxu0 0.0
        %7353 = vmatprep.mubr.f32.mxu0 0.0
        %v7354 = vand.u32 %v6968, 4294901760
        %7355 = vmatmul.mubr.f32.gmra.mxu0 %v7354
        %v7356 = vpop.f32.mrf.mxu0
        %v7357 = vadd.f32 %v7279, %v7356
        %v7358 = vpop.f32.mrf.mxu0
        %v7359 = vadd.f32 %v7281, %v7358
        %7360 = vdwg.mxu0
        %7361 = vmatprep.subr.mxu0 0.0
        %7362 = vmatpush1.msra.mxu0 0.0
        %7363 = vmatprep.subr.mxu0 0.0
        %7364 = vmatpush1.msra.mxu0 0.0
        %7365 = vmatprep.subr.mxu0 0.0
        %7366 = vmatpush1.msra.mxu0 0.0
        %7367 = vmatprep.subr.mxu0 0.0
        %7368 = vmatpush1.msra.mxu0 0.0
        %7369 = vmatprep.subr.mxu0 0.0
        %7370 = vmatpush1.msra.mxu0 0.0
        %7371 = vmatprep.subr.mxu0 0.0
        %7372 = vmatpush1.msra.mxu0 0.0
        %7373 = vmatprep.subr.mxu0 0.0
        %7374 = vmatpush1.msra.mxu0 0.0
        %7375 = vmatprep.subr.mxu0 0.0
        %7376 = vmatpush1.msra.mxu0 0.0
        %7377 = vmatprep.subr.mxu0 0.0
        %7378 = vmatpush1.msra.mxu0 0.0
        %7379 = vmatprep.subr.mxu0 0.0
        %7380 = vmatpush1.msra.mxu0 0.0
        %7381 = vmatprep.subr.mxu0 0.0
        %7382 = vmatpush1.msra.mxu0 0.0
        %7383 = vmatprep.subr.mxu0 0.0
        %7384 = vmatpush1.msra.mxu0 0.0
        %7385 = vmatprep.subr.mxu0 0.0
        %7386 = vmatpush1.msra.mxu0 0.0
        %7387 = vmatprep.subr.mxu0 0.0
        %7388 = vmatpush1.msra.mxu0 0.0
        %7389 = vmatprep.subr.mxu0 0.0
        %7390 = vmatpush1.msra.mxu0 0.0
        %v7391 = vand.u32 %v6964, 4294901760
        %7392 = vmatprep.subr.mxu0 %v7391
        %v7393 = vand.u32 %v6963, 4294901760
        %7394 = vmatpush1.msra.mxu0 %v7393
        %7395 = vmatprep.subr.mxu0 0.0
        %7396 = vmatpush2.msra.mxu0 0.0
        %7397 = vmatprep.subr.mxu0 0.0
        %7398 = vmatpush2.msra.mxu0 0.0
        %7399 = vmatprep.subr.mxu0 0.0
        %7400 = vmatpush2.msra.mxu0 0.0
        %7401 = vmatprep.subr.mxu0 0.0
        %7402 = vmatpush2.msra.mxu0 0.0
        %7403 = vmatprep.subr.mxu0 0.0
        %7404 = vmatpush2.msra.mxu0 0.0
        %7405 = vmatprep.subr.mxu0 0.0
        %7406 = vmatpush2.msra.mxu0 0.0
        %7407 = vmatprep.subr.mxu0 0.0
        %7408 = vmatpush2.msra.mxu0 0.0
        %7409 = vmatprep.subr.mxu0 0.0
        %7410 = vmatpush2.msra.mxu0 0.0
        %7411 = vmatprep.subr.mxu0 0.0
        %7412 = vmatpush2.msra.mxu0 0.0
        %7413 = vmatprep.subr.mxu0 0.0
        %7414 = vmatpush2.msra.mxu0 0.0
        %7415 = vmatprep.subr.mxu0 0.0
        %7416 = vmatpush2.msra.mxu0 0.0
        %7417 = vmatprep.subr.mxu0 0.0
        %7418 = vmatpush2.msra.mxu0 0.0
        %7419 = vmatprep.subr.mxu0 0.0
        %7420 = vmatpush2.msra.mxu0 0.0
        %7421 = vmatprep.subr.mxu0 0.0
        %7422 = vmatpush2.msra.mxu0 0.0
        %7423 = vmatprep.subr.mxu0 0.0
        %7424 = vmatpush2.msra.mxu0 0.0
        %7425 = vmatprep.subr.mxu0 0.0
        %7426 = vmatpush2.msra.mxu0 0.0
        %7427 = vmatprep.mubr.f32.mxu0 0.0
        %v7428 = vand.u32 %v6968, 4294901760
        %7429 = vmatmul.mubr.f32.gmra.mxu0 %v7428
        %v7430 = vpop.f32.mrf.mxu0
        %v7431 = vadd.f32 %v7357, %v7430
        %v7432 = vpop.f32.mrf.mxu0
        %v7433 = vadd.f32 %v7359, %v7432
        %7434 = vdwg.mxu0
        %v7435 = vadd.f32 %v6929, %v7431
        %v7436 = vadd.f32 %v6930, %v7433
        %v7437 = vld [vmem:[%s2862] sm:$0x3]
        %v7439 = vlaneseq
        %v7440 = vshrl.u32 %v7439, 7
        %v7441 = vsub.s32 0, %v7440
        %v7442 = vrot.slane %v7437, %v7441
        %v7443 = vlaneseq
        %v7444 = vshrl.u32 %v7443, 7
        %v7445 = vsub.s32 1, %v7444
        %v7446 = vrot.slane %v7437, %v7445
        %7447 = vrot.lane.b32.xlu0 %v7442, 18
        %v7448 = vpop.permute.xlu0 %7447
        %7449 = vrot.lane.b32.xlu0 %v7446, 18
        %v7450 = vpop.permute.xlu0 %7449
        %v7451 = vsel %vm2877, %v7448, %v7450
        %v7455 = vmul.f32 %v4929, %v7448
        %v7456 = vmul.f32 %v4930, %v7451
        %v7457 = vmul.f32 %v4946, %v7450
        %s7458 = scalar_lea.vmem %s6, 40
        %v7459 = vld [vmem:[%s7458] sm:$0xff]
        %7463 = vrot.lane.b32.xlu0 %v7455, 110
        %v7464 = vpop.permute.xlu0 %7463
        %7465 = vrot.lane.b32.xlu0 %v7456, 110
        %v7466 = vpop.permute.xlu0 %7465
        %7467 = vrot.lane.b32.xlu0 %v7457, 110
        %v7468 = vpop.permute.xlu0 %7467
        %v7469 = vsel %vm2896, %v7464, %v7466
        %v7470 = vsel %vm2896, %v7466, %v7468
        %v7474 = vsel %vm399, %v7459, 0
        %7476 = vmatprep.subr.mxu0 0.0
        %7477 = vmatpush1.msra.mxu0 0.0
        %7478 = vmatprep.subr.mxu0 0.0
        %7479 = vmatpush1.msra.mxu0 0.0
        %7480 = vmatprep.subr.mxu0 0.0
        %7481 = vmatpush1.msra.mxu0 0.0
        %7482 = vmatprep.subr.mxu0 0.0
        %7483 = vmatpush1.msra.mxu0 0.0
        %7484 = vmatprep.subr.mxu0 0.0
        %7485 = vmatpush1.msra.mxu0 0.0
        %7486 = vmatprep.subr.mxu0 0.0
        %7487 = vmatpush1.msra.mxu0 0.0
        %7488 = vmatprep.subr.mxu0 0.0
        %7489 = vmatpush1.msra.mxu0 0.0
        %7490 = vmatprep.subr.mxu0 0.0
        %7491 = vmatpush1.msra.mxu0 0.0
        %7492 = vmatprep.subr.mxu0 0.0
        %7493 = vmatpush1.msra.mxu0 0.0
        %7494 = vmatprep.subr.mxu0 0.0
        %7495 = vmatpush1.msra.mxu0 0.0
        %7496 = vmatprep.subr.mxu0 0.0
        %7497 = vmatpush1.msra.mxu0 0.0
        %7498 = vmatprep.subr.mxu0 0.0
        %7499 = vmatpush1.msra.mxu0 0.0
        %7500 = vmatprep.subr.mxu0 0.0
        %7501 = vmatpush1.msra.mxu0 0.0
        %7502 = vmatprep.subr.mxu0 0.0
        %7503 = vmatpush1.msra.mxu0 0.0
        %7504 = vmatprep.subr.mxu0 0.0
        %7505 = vmatpush1.msra.mxu0 0.0
        %v7506 = vand.u32 %v7470, 4294901760
        %7507 = vmatprep.subr.mxu0 %v7506
        %v7508 = vand.u32 %v7469, 4294901760
        %7509 = vmatpush1.msra.mxu0 %v7508
        %7510 = vmatprep.subr.mxu0 0.0
        %7511 = vmatpush2.msra.mxu0 0.0
        %7512 = vmatprep.subr.mxu0 0.0
        %7513 = vmatpush2.msra.mxu0 0.0
        %7514 = vmatprep.subr.mxu0 0.0
        %7515 = vmatpush2.msra.mxu0 0.0
        %7516 = vmatprep.subr.mxu0 0.0
        %7517 = vmatpush2.msra.mxu0 0.0
        %7518 = vmatprep.subr.mxu0 0.0
        %7519 = vmatpush2.msra.mxu0 0.0
        %7520 = vmatprep.subr.mxu0 0.0
        %7521 = vmatpush2.msra.mxu0 0.0
        %7522 = vmatprep.subr.mxu0 0.0
        %7523 = vmatpush2.msra.mxu0 0.0
        %7524 = vmatprep.subr.mxu0 0.0
        %7525 = vmatpush2.msra.mxu0 0.0
        %7526 = vmatprep.subr.mxu0 0.0
        %7527 = vmatpush2.msra.mxu0 0.0
        %7528 = vmatprep.subr.mxu0 0.0
        %7529 = vmatpush2.msra.mxu0 0.0
        %7530 = vmatprep.subr.mxu0 0.0
        %7531 = vmatpush2.msra.mxu0 0.0
        %7532 = vmatprep.subr.mxu0 0.0
        %7533 = vmatpush2.msra.mxu0 0.0
        %7534 = vmatprep.subr.mxu0 0.0
        %7535 = vmatpush2.msra.mxu0 0.0
        %7536 = vmatprep.subr.mxu0 0.0
        %7537 = vmatpush2.msra.mxu0 0.0
        %7538 = vmatprep.subr.mxu0 0.0
        %7539 = vmatpush2.msra.mxu0 0.0
        %7540 = vmatprep.subr.mxu0 0.0
        %7541 = vmatpush2.msra.mxu0 0.0
        %7542 = vmatprep.mubr.f32.mxu0 0.0
        %v7543 = vand.u32 %v7474, 4294901760
        %v7544 = vsub.f32 %v7474, %v7543
        %v7545 = vand.u32 %v7544, 4294901760
        %v7546 = vsub.f32 %v7544, %v7545
        %v7547 = vand.u32 %v7546, 4294901760
        %7548 = vmatmul.mubr.f32.gmra.mxu0 %v7547
        %v7549 = vpop.f32.mrf.mxu0
        %v7550 = vadd.f32 0.0, %v7549
        %v7551 = vpop.f32.mrf.mxu0
        %v7552 = vadd.f32 0.0, %v7551
        %7553 = vdwg.mxu0
        %7554 = vmatprep.subr.mxu0 0.0
        %7555 = vmatpush1.msra.mxu0 0.0
        %7556 = vmatprep.subr.mxu0 0.0
        %7557 = vmatpush1.msra.mxu0 0.0
        %7558 = vmatprep.subr.mxu0 0.0
        %7559 = vmatpush1.msra.mxu0 0.0
        %7560 = vmatprep.subr.mxu0 0.0
        %7561 = vmatpush1.msra.mxu0 0.0
        %7562 = vmatprep.subr.mxu0 0.0
        %7563 = vmatpush1.msra.mxu0 0.0
        %7564 = vmatprep.subr.mxu0 0.0
        %7565 = vmatpush1.msra.mxu0 0.0
        %7566 = vmatprep.subr.mxu0 0.0
        %7567 = vmatpush1.msra.mxu0 0.0
        %7568 = vmatprep.subr.mxu0 0.0
        %7569 = vmatpush1.msra.mxu0 0.0
        %7570 = vmatprep.subr.mxu0 0.0
        %7571 = vmatpush1.msra.mxu0 0.0
        %7572 = vmatprep.subr.mxu0 0.0
        %7573 = vmatpush1.msra.mxu0 0.0
        %7574 = vmatprep.subr.mxu0 0.0
        %7575 = vmatpush1.msra.mxu0 0.0
        %7576 = vmatprep.subr.mxu0 0.0
        %7577 = vmatpush1.msra.mxu0 0.0
        %7578 = vmatprep.subr.mxu0 0.0
        %7579 = vmatpush1.msra.mxu0 0.0
        %7580 = vmatprep.subr.mxu0 0.0
        %7581 = vmatpush1.msra.mxu0 0.0
        %7582 = vmatprep.subr.mxu0 0.0
        %7583 = vmatpush1.msra.mxu0 0.0
        %v7584 = vand.u32 %v7470, 4294901760
        %v7585 = vsub.f32 %v7470, %v7584
        %v7586 = vand.u32 %v7585, 4294901760
        %v7587 = vsub.f32 %v7585, %v7586
        %v7588 = vand.u32 %v7587, 4294901760
        %7589 = vmatprep.subr.mxu0 %v7588
        %v7590 = vand.u32 %v7469, 4294901760
        %v7591 = vsub.f32 %v7469, %v7590
        %v7592 = vand.u32 %v7591, 4294901760
        %v7593 = vsub.f32 %v7591, %v7592
        %v7594 = vand.u32 %v7593, 4294901760
        %7595 = vmatpush1.msra.mxu0 %v7594
        %7596 = vmatprep.subr.mxu0 0.0
        %7597 = vmatpush2.msra.mxu0 0.0
        %7598 = vmatprep.subr.mxu0 0.0
        %7599 = vmatpush2.msra.mxu0 0.0
        %7600 = vmatprep.subr.mxu0 0.0
        %7601 = vmatpush2.msra.mxu0 0.0
        %7602 = vmatprep.subr.mxu0 0.0
        %7603 = vmatpush2.msra.mxu0 0.0
        %7604 = vmatprep.subr.mxu0 0.0
        %7605 = vmatpush2.msra.mxu0 0.0
        %7606 = vmatprep.subr.mxu0 0.0
        %7607 = vmatpush2.msra.mxu0 0.0
        %7608 = vmatprep.subr.mxu0 0.0
        %7609 = vmatpush2.msra.mxu0 0.0
        %7610 = vmatprep.subr.mxu0 0.0
        %7611 = vmatpush2.msra.mxu0 0.0
        %7612 = vmatprep.subr.mxu0 0.0
        %7613 = vmatpush2.msra.mxu0 0.0
        %7614 = vmatprep.subr.mxu0 0.0
        %7615 = vmatpush2.msra.mxu0 0.0
        %7616 = vmatprep.subr.mxu0 0.0
        %7617 = vmatpush2.msra.mxu0 0.0
        %7618 = vmatprep.subr.mxu0 0.0
        %7619 = vmatpush2.msra.mxu0 0.0
        %7620 = vmatprep.subr.mxu0 0.0
        %7621 = vmatpush2.msra.mxu0 0.0
        %7622 = vmatprep.subr.mxu0 0.0
        %7623 = vmatpush2.msra.mxu0 0.0
        %7624 = vmatprep.subr.mxu0 0.0
        %7625 = vmatpush2.msra.mxu0 0.0
        %7626 = vmatprep.subr.mxu0 0.0
        %7627 = vmatpush2.msra.mxu0 0.0
        %7628 = vmatprep.mubr.f32.mxu0 0.0
        %v7629 = vand.u32 %v7474, 4294901760
        %7630 = vmatmul.mubr.f32.gmra.mxu0 %v7629
        %v7631 = vpop.f32.mrf.mxu0
        %v7632 = vadd.f32 %v7550, %v7631
        %v7633 = vpop.f32.mrf.mxu0
        %v7634 = vadd.f32 %v7552, %v7633
        %7635 = vdwg.mxu0
        %7636 = vmatprep.subr.mxu0 0.0
        %7637 = vmatpush1.msra.mxu0 0.0
        %7638 = vmatprep.subr.mxu0 0.0
        %7639 = vmatpush1.msra.mxu0 0.0
        %7640 = vmatprep.subr.mxu0 0.0
        %7641 = vmatpush1.msra.mxu0 0.0
        %7642 = vmatprep.subr.mxu0 0.0
        %7643 = vmatpush1.msra.mxu0 0.0
        %7644 = vmatprep.subr.mxu0 0.0
        %7645 = vmatpush1.msra.mxu0 0.0
        %7646 = vmatprep.subr.mxu0 0.0
        %7647 = vmatpush1.msra.mxu0 0.0
        %7648 = vmatprep.subr.mxu0 0.0
        %7649 = vmatpush1.msra.mxu0 0.0
        %7650 = vmatprep.subr.mxu0 0.0
        %7651 = vmatpush1.msra.mxu0 0.0
        %7652 = vmatprep.subr.mxu0 0.0
        %7653 = vmatpush1.msra.mxu0 0.0
        %7654 = vmatprep.subr.mxu0 0.0
        %7655 = vmatpush1.msra.mxu0 0.0
        %7656 = vmatprep.subr.mxu0 0.0
        %7657 = vmatpush1.msra.mxu0 0.0
        %7658 = vmatprep.subr.mxu0 0.0
        %7659 = vmatpush1.msra.mxu0 0.0
        %7660 = vmatprep.subr.mxu0 0.0
        %7661 = vmatpush1.msra.mxu0 0.0
        %7662 = vmatprep.subr.mxu0 0.0
        %7663 = vmatpush1.msra.mxu0 0.0
        %7664 = vmatprep.subr.mxu0 0.0
        %7665 = vmatpush1.msra.mxu0 0.0
        %v7666 = vand.u32 %v7470, 4294901760
        %v7667 = vsub.f32 %v7470, %v7666
        %7668 = vmatprep.subr.mxu0 %v7667
        %v7669 = vand.u32 %v7469, 4294901760
        %v7670 = vsub.f32 %v7469, %v7669
        %7671 = vmatpush1.msra.mxu0 %v7670
        %7672 = vmatprep.subr.mxu0 0.0
        %7673 = vmatpush2.msra.mxu0 0.0
        %7674 = vmatprep.subr.mxu0 0.0
        %7675 = vmatpush2.msra.mxu0 0.0
        %7676 = vmatprep.subr.mxu0 0.0
        %7677 = vmatpush2.msra.mxu0 0.0
        %7678 = vmatprep.subr.mxu0 0.0
        %7679 = vmatpush2.msra.mxu0 0.0
        %7680 = vmatprep.subr.mxu0 0.0
        %7681 = vmatpush2.msra.mxu0 0.0
        %7682 = vmatprep.subr.mxu0 0.0
        %7683 = vmatpush2.msra.mxu0 0.0
        %7684 = vmatprep.subr.mxu0 0.0
        %7685 = vmatpush2.msra.mxu0 0.0
        %7686 = vmatprep.subr.mxu0 0.0
        %7687 = vmatpush2.msra.mxu0 0.0
        %7688 = vmatprep.subr.mxu0 0.0
        %7689 = vmatpush2.msra.mxu0 0.0
        %7690 = vmatprep.subr.mxu0 0.0
        %7691 = vmatpush2.msra.mxu0 0.0
        %7692 = vmatprep.subr.mxu0 0.0
        %7693 = vmatpush2.msra.mxu0 0.0
        %7694 = vmatprep.subr.mxu0 0.0
        %7695 = vmatpush2.msra.mxu0 0.0
        %7696 = vmatprep.subr.mxu0 0.0
        %7697 = vmatpush2.msra.mxu0 0.0
        %7698 = vmatprep.subr.mxu0 0.0
        %7699 = vmatpush2.msra.mxu0 0.0
        %7700 = vmatprep.subr.mxu0 0.0
        %7701 = vmatpush2.msra.mxu0 0.0
        %7702 = vmatprep.subr.mxu0 0.0
        %7703 = vmatpush2.msra.mxu0 0.0
        %7704 = vmatprep.mubr.f32.mxu0 0.0
        %v7705 = vand.u32 %v7474, 4294901760
        %v7706 = vsub.f32 %v7474, %v7705
        %7707 = vmatmul.mubr.f32.gmra.mxu0 %v7706
        %v7708 = vpop.f32.mrf.mxu0
        %v7709 = vadd.f32 %v7632, %v7708
        %v7710 = vpop.f32.mrf.mxu0
        %v7711 = vadd.f32 %v7634, %v7710
        %7712 = vdwg.mxu0
        %7713 = vmatprep.subr.mxu0 0.0
        %7714 = vmatpush1.msra.mxu0 0.0
        %7715 = vmatprep.subr.mxu0 0.0
        %7716 = vmatpush1.msra.mxu0 0.0
        %7717 = vmatprep.subr.mxu0 0.0
        %7718 = vmatpush1.msra.mxu0 0.0
        %7719 = vmatprep.subr.mxu0 0.0
        %7720 = vmatpush1.msra.mxu0 0.0
        %7721 = vmatprep.subr.mxu0 0.0
        %7722 = vmatpush1.msra.mxu0 0.0
        %7723 = vmatprep.subr.mxu0 0.0
        %7724 = vmatpush1.msra.mxu0 0.0
        %7725 = vmatprep.subr.mxu0 0.0
        %7726 = vmatpush1.msra.mxu0 0.0
        %7727 = vmatprep.subr.mxu0 0.0
        %7728 = vmatpush1.msra.mxu0 0.0
        %7729 = vmatprep.subr.mxu0 0.0
        %7730 = vmatpush1.msra.mxu0 0.0
        %7731 = vmatprep.subr.mxu0 0.0
        %7732 = vmatpush1.msra.mxu0 0.0
        %7733 = vmatprep.subr.mxu0 0.0
        %7734 = vmatpush1.msra.mxu0 0.0
        %7735 = vmatprep.subr.mxu0 0.0
        %7736 = vmatpush1.msra.mxu0 0.0
        %7737 = vmatprep.subr.mxu0 0.0
        %7738 = vmatpush1.msra.mxu0 0.0
        %7739 = vmatprep.subr.mxu0 0.0
        %7740 = vmatpush1.msra.mxu0 0.0
        %7741 = vmatprep.subr.mxu0 0.0
        %7742 = vmatpush1.msra.mxu0 0.0
        %v7743 = vand.u32 %v7470, 4294901760
        %7744 = vmatprep.subr.mxu0 %v7743
        %v7745 = vand.u32 %v7469, 4294901760
        %7746 = vmatpush1.msra.mxu0 %v7745
        %7747 = vmatprep.subr.mxu0 0.0
        %7748 = vmatpush2.msra.mxu0 0.0
        %7749 = vmatprep.subr.mxu0 0.0
        %7750 = vmatpush2.msra.mxu0 0.0
        %7751 = vmatprep.subr.mxu0 0.0
        %7752 = vmatpush2.msra.mxu0 0.0
        %7753 = vmatprep.subr.mxu0 0.0
        %7754 = vmatpush2.msra.mxu0 0.0
        %7755 = vmatprep.subr.mxu0 0.0
        %7756 = vmatpush2.msra.mxu0 0.0
        %7757 = vmatprep.subr.mxu0 0.0
        %7758 = vmatpush2.msra.mxu0 0.0
        %7759 = vmatprep.subr.mxu0 0.0
        %7760 = vmatpush2.msra.mxu0 0.0
        %7761 = vmatprep.subr.mxu0 0.0
        %7762 = vmatpush2.msra.mxu0 0.0
        %7763 = vmatprep.subr.mxu0 0.0
        %7764 = vmatpush2.msra.mxu0 0.0
        %7765 = vmatprep.subr.mxu0 0.0
        %7766 = vmatpush2.msra.mxu0 0.0
        %7767 = vmatprep.subr.mxu0 0.0
        %7768 = vmatpush2.msra.mxu0 0.0
        %7769 = vmatprep.subr.mxu0 0.0
        %7770 = vmatpush2.msra.mxu0 0.0
        %7771 = vmatprep.subr.mxu0 0.0
        %7772 = vmatpush2.msra.mxu0 0.0
        %7773 = vmatprep.subr.mxu0 0.0
        %7774 = vmatpush2.msra.mxu0 0.0
        %7775 = vmatprep.subr.mxu0 0.0
        %7776 = vmatpush2.msra.mxu0 0.0
        %7777 = vmatprep.subr.mxu0 0.0
        %7778 = vmatpush2.msra.mxu0 0.0
        %7779 = vmatprep.mubr.f32.mxu0 0.0
        %v7780 = vand.u32 %v7474, 4294901760
        %v7781 = vsub.f32 %v7474, %v7780
        %v7782 = vand.u32 %v7781, 4294901760
        %7783 = vmatmul.mubr.f32.gmra.mxu0 %v7782
        %v7784 = vpop.f32.mrf.mxu0
        %v7785 = vadd.f32 %v7709, %v7784
        %v7786 = vpop.f32.mrf.mxu0
        %v7787 = vadd.f32 %v7711, %v7786
        %7788 = vdwg.mxu0
        %7789 = vmatprep.subr.mxu0 0.0
        %7790 = vmatpush1.msra.mxu0 0.0
        %7791 = vmatprep.subr.mxu0 0.0
        %7792 = vmatpush1.msra.mxu0 0.0
        %7793 = vmatprep.subr.mxu0 0.0
        %7794 = vmatpush1.msra.mxu0 0.0
        %7795 = vmatprep.subr.mxu0 0.0
        %7796 = vmatpush1.msra.mxu0 0.0
        %7797 = vmatprep.subr.mxu0 0.0
        %7798 = vmatpush1.msra.mxu0 0.0
        %7799 = vmatprep.subr.mxu0 0.0
        %7800 = vmatpush1.msra.mxu0 0.0
        %7801 = vmatprep.subr.mxu0 0.0
        %7802 = vmatpush1.msra.mxu0 0.0
        %7803 = vmatprep.subr.mxu0 0.0
        %7804 = vmatpush1.msra.mxu0 0.0
        %7805 = vmatprep.subr.mxu0 0.0
        %7806 = vmatpush1.msra.mxu0 0.0
        %7807 = vmatprep.subr.mxu0 0.0
        %7808 = vmatpush1.msra.mxu0 0.0
        %7809 = vmatprep.subr.mxu0 0.0
        %7810 = vmatpush1.msra.mxu0 0.0
        %7811 = vmatprep.subr.mxu0 0.0
        %7812 = vmatpush1.msra.mxu0 0.0
        %7813 = vmatprep.subr.mxu0 0.0
        %7814 = vmatpush1.msra.mxu0 0.0
        %7815 = vmatprep.subr.mxu0 0.0
        %7816 = vmatpush1.msra.mxu0 0.0
        %7817 = vmatprep.subr.mxu0 0.0
        %7818 = vmatpush1.msra.mxu0 0.0
        %v7819 = vand.u32 %v7470, 4294901760
        %v7820 = vsub.f32 %v7470, %v7819
        %v7821 = vand.u32 %v7820, 4294901760
        %7822 = vmatprep.subr.mxu0 %v7821
        %v7823 = vand.u32 %v7469, 4294901760
        %v7824 = vsub.f32 %v7469, %v7823
        %v7825 = vand.u32 %v7824, 4294901760
        %7826 = vmatpush1.msra.mxu0 %v7825
        %7827 = vmatprep.subr.mxu0 0.0
        %7828 = vmatpush2.msra.mxu0 0.0
        %7829 = vmatprep.subr.mxu0 0.0
        %7830 = vmatpush2.msra.mxu0 0.0
        %7831 = vmatprep.subr.mxu0 0.0
        %7832 = vmatpush2.msra.mxu0 0.0
        %7833 = vmatprep.subr.mxu0 0.0
        %7834 = vmatpush2.msra.mxu0 0.0
        %7835 = vmatprep.subr.mxu0 0.0
        %7836 = vmatpush2.msra.mxu0 0.0
        %7837 = vmatprep.subr.mxu0 0.0
        %7838 = vmatpush2.msra.mxu0 0.0
        %7839 = vmatprep.subr.mxu0 0.0
        %7840 = vmatpush2.msra.mxu0 0.0
        %7841 = vmatprep.subr.mxu0 0.0
        %7842 = vmatpush2.msra.mxu0 0.0
        %7843 = vmatprep.subr.mxu0 0.0
        %7844 = vmatpush2.msra.mxu0 0.0
        %7845 = vmatprep.subr.mxu0 0.0
        %7846 = vmatpush2.msra.mxu0 0.0
        %7847 = vmatprep.subr.mxu0 0.0
        %7848 = vmatpush2.msra.mxu0 0.0
        %7849 = vmatprep.subr.mxu0 0.0
        %7850 = vmatpush2.msra.mxu0 0.0
        %7851 = vmatprep.subr.mxu0 0.0
        %7852 = vmatpush2.msra.mxu0 0.0
        %7853 = vmatprep.subr.mxu0 0.0
        %7854 = vmatpush2.msra.mxu0 0.0
        %7855 = vmatprep.subr.mxu0 0.0
        %7856 = vmatpush2.msra.mxu0 0.0
        %7857 = vmatprep.subr.mxu0 0.0
        %7858 = vmatpush2.msra.mxu0 0.0
        %7859 = vmatprep.mubr.f32.mxu0 0.0
        %v7860 = vand.u32 %v7474, 4294901760
        %7861 = vmatmul.mubr.f32.gmra.mxu0 %v7860
        %v7862 = vpop.f32.mrf.mxu0
        %v7863 = vadd.f32 %v7785, %v7862
        %v7864 = vpop.f32.mrf.mxu0
        %v7865 = vadd.f32 %v7787, %v7864
        %7866 = vdwg.mxu0
        %7867 = vmatprep.subr.mxu0 0.0
        %7868 = vmatpush1.msra.mxu0 0.0
        %7869 = vmatprep.subr.mxu0 0.0
        %7870 = vmatpush1.msra.mxu0 0.0
        %7871 = vmatprep.subr.mxu0 0.0
        %7872 = vmatpush1.msra.mxu0 0.0
        %7873 = vmatprep.subr.mxu0 0.0
        %7874 = vmatpush1.msra.mxu0 0.0
        %7875 = vmatprep.subr.mxu0 0.0
        %7876 = vmatpush1.msra.mxu0 0.0
        %7877 = vmatprep.subr.mxu0 0.0
        %7878 = vmatpush1.msra.mxu0 0.0
        %7879 = vmatprep.subr.mxu0 0.0
        %7880 = vmatpush1.msra.mxu0 0.0
        %7881 = vmatprep.subr.mxu0 0.0
        %7882 = vmatpush1.msra.mxu0 0.0
        %7883 = vmatprep.subr.mxu0 0.0
        %7884 = vmatpush1.msra.mxu0 0.0
        %7885 = vmatprep.subr.mxu0 0.0
        %7886 = vmatpush1.msra.mxu0 0.0
        %7887 = vmatprep.subr.mxu0 0.0
        %7888 = vmatpush1.msra.mxu0 0.0
        %7889 = vmatprep.subr.mxu0 0.0
        %7890 = vmatpush1.msra.mxu0 0.0
        %7891 = vmatprep.subr.mxu0 0.0
        %7892 = vmatpush1.msra.mxu0 0.0
        %7893 = vmatprep.subr.mxu0 0.0
        %7894 = vmatpush1.msra.mxu0 0.0
        %7895 = vmatprep.subr.mxu0 0.0
        %7896 = vmatpush1.msra.mxu0 0.0
        %v7897 = vand.u32 %v7470, 4294901760
        %7898 = vmatprep.subr.mxu0 %v7897
        %v7899 = vand.u32 %v7469, 4294901760
        %7900 = vmatpush1.msra.mxu0 %v7899
        %7901 = vmatprep.subr.mxu0 0.0
        %7902 = vmatpush2.msra.mxu0 0.0
        %7903 = vmatprep.subr.mxu0 0.0
        %7904 = vmatpush2.msra.mxu0 0.0
        %7905 = vmatprep.subr.mxu0 0.0
        %7906 = vmatpush2.msra.mxu0 0.0
        %7907 = vmatprep.subr.mxu0 0.0
        %7908 = vmatpush2.msra.mxu0 0.0
        %7909 = vmatprep.subr.mxu0 0.0
        %7910 = vmatpush2.msra.mxu0 0.0
        %7911 = vmatprep.subr.mxu0 0.0
        %7912 = vmatpush2.msra.mxu0 0.0
        %7913 = vmatprep.subr.mxu0 0.0
        %7914 = vmatpush2.msra.mxu0 0.0
        %7915 = vmatprep.subr.mxu0 0.0
        %7916 = vmatpush2.msra.mxu0 0.0
        %7917 = vmatprep.subr.mxu0 0.0
        %7918 = vmatpush2.msra.mxu0 0.0
        %7919 = vmatprep.subr.mxu0 0.0
        %7920 = vmatpush2.msra.mxu0 0.0
        %7921 = vmatprep.subr.mxu0 0.0
        %7922 = vmatpush2.msra.mxu0 0.0
        %7923 = vmatprep.subr.mxu0 0.0
        %7924 = vmatpush2.msra.mxu0 0.0
        %7925 = vmatprep.subr.mxu0 0.0
        %7926 = vmatpush2.msra.mxu0 0.0
        %7927 = vmatprep.subr.mxu0 0.0
        %7928 = vmatpush2.msra.mxu0 0.0
        %7929 = vmatprep.subr.mxu0 0.0
        %7930 = vmatpush2.msra.mxu0 0.0
        %7931 = vmatprep.subr.mxu0 0.0
        %7932 = vmatpush2.msra.mxu0 0.0
        %7933 = vmatprep.mubr.f32.mxu0 0.0
        %v7934 = vand.u32 %v7474, 4294901760
        %7935 = vmatmul.mubr.f32.gmra.mxu0 %v7934
        %v7936 = vpop.f32.mrf.mxu0
        %v7937 = vadd.f32 %v7863, %v7936
        %v7938 = vpop.f32.mrf.mxu0
        %v7939 = vadd.f32 %v7865, %v7938
        %7940 = vdwg.mxu0
        %v7941 = vadd.f32 %v7435, %v7937
        %v7942 = vadd.f32 %v7436, %v7939
        %v7943 = vld [vmem:[%s3371] sm:$0x3]
        %v7945 = vlaneseq
        %v7946 = vshrl.u32 %v7945, 7
        %v7947 = vsub.s32 0, %v7946
        %v7948 = vrot.slane %v7943, %v7947
        %v7949 = vlaneseq
        %v7950 = vshrl.u32 %v7949, 7
        %v7951 = vsub.s32 1, %v7950
        %v7952 = vrot.slane %v7943, %v7951
        %7953 = vrot.lane.b32.xlu0 %v7948, 32
        %v7954 = vpop.permute.xlu0 %7953
        %7955 = vrot.lane.b32.xlu0 %v7952, 32
        %v7956 = vpop.permute.xlu0 %7955
        %v7957 = vsel %vm3386, %v7954, %v7956
        %v7961 = vmul.f32 %v4929, %v7954
        %v7962 = vmul.f32 %v4930, %v7957
        %v7963 = vmul.f32 %v4946, %v7956
        %s7964 = scalar_lea.vmem %s6, 48
        %v7965 = vld [vmem:[%s7964] sm:$0xff]
        %7969 = vrot.lane.b32.xlu0 %v7961, 96
        %v7970 = vpop.permute.xlu0 %7969
        %7971 = vrot.lane.b32.xlu0 %v7962, 96
        %v7972 = vpop.permute.xlu0 %7971
        %7973 = vrot.lane.b32.xlu0 %v7963, 96
        %v7974 = vpop.permute.xlu0 %7973
        %v7975 = vsel %vm3405, %v7970, %v7972
        %v7976 = vsel %vm3405, %v7972, %v7974
        %v7980 = vsel %vm399, %v7965, 0
        %7982 = vmatprep.subr.mxu0 0.0
        %7983 = vmatpush1.msra.mxu0 0.0
        %7984 = vmatprep.subr.mxu0 0.0
        %7985 = vmatpush1.msra.mxu0 0.0
        %7986 = vmatprep.subr.mxu0 0.0
        %7987 = vmatpush1.msra.mxu0 0.0
        %7988 = vmatprep.subr.mxu0 0.0
        %7989 = vmatpush1.msra.mxu0 0.0
        %7990 = vmatprep.subr.mxu0 0.0
        %7991 = vmatpush1.msra.mxu0 0.0
        %7992 = vmatprep.subr.mxu0 0.0
        %7993 = vmatpush1.msra.mxu0 0.0
        %7994 = vmatprep.subr.mxu0 0.0
        %7995 = vmatpush1.msra.mxu0 0.0
        %7996 = vmatprep.subr.mxu0 0.0
        %7997 = vmatpush1.msra.mxu0 0.0
        %7998 = vmatprep.subr.mxu0 0.0
        %7999 = vmatpush1.msra.mxu0 0.0
        %8000 = vmatprep.subr.mxu0 0.0
        %8001 = vmatpush1.msra.mxu0 0.0
        %8002 = vmatprep.subr.mxu0 0.0
        %8003 = vmatpush1.msra.mxu0 0.0
        %8004 = vmatprep.subr.mxu0 0.0
        %8005 = vmatpush1.msra.mxu0 0.0
        %8006 = vmatprep.subr.mxu0 0.0
        %8007 = vmatpush1.msra.mxu0 0.0
        %8008 = vmatprep.subr.mxu0 0.0
        %8009 = vmatpush1.msra.mxu0 0.0
        %8010 = vmatprep.subr.mxu0 0.0
        %8011 = vmatpush1.msra.mxu0 0.0
        %v8012 = vand.u32 %v7976, 4294901760
        %8013 = vmatprep.subr.mxu0 %v8012
        %v8014 = vand.u32 %v7975, 4294901760
        %8015 = vmatpush1.msra.mxu0 %v8014
        %8016 = vmatprep.subr.mxu0 0.0
        %8017 = vmatpush2.msra.mxu0 0.0
        %8018 = vmatprep.subr.mxu0 0.0
        %8019 = vmatpush2.msra.mxu0 0.0
        %8020 = vmatprep.subr.mxu0 0.0
        %8021 = vmatpush2.msra.mxu0 0.0
        %8022 = vmatprep.subr.mxu0 0.0
        %8023 = vmatpush2.msra.mxu0 0.0
        %8024 = vmatprep.subr.mxu0 0.0
        %8025 = vmatpush2.msra.mxu0 0.0
        %8026 = vmatprep.subr.mxu0 0.0
        %8027 = vmatpush2.msra.mxu0 0.0
        %8028 = vmatprep.subr.mxu0 0.0
        %8029 = vmatpush2.msra.mxu0 0.0
        %8030 = vmatprep.subr.mxu0 0.0
        %8031 = vmatpush2.msra.mxu0 0.0
        %8032 = vmatprep.subr.mxu0 0.0
        %8033 = vmatpush2.msra.mxu0 0.0
        %8034 = vmatprep.subr.mxu0 0.0
        %8035 = vmatpush2.msra.mxu0 0.0
        %8036 = vmatprep.subr.mxu0 0.0
        %8037 = vmatpush2.msra.mxu0 0.0
        %8038 = vmatprep.subr.mxu0 0.0
        %8039 = vmatpush2.msra.mxu0 0.0
        %8040 = vmatprep.subr.mxu0 0.0
        %8041 = vmatpush2.msra.mxu0 0.0
        %8042 = vmatprep.subr.mxu0 0.0
        %8043 = vmatpush2.msra.mxu0 0.0
        %8044 = vmatprep.subr.mxu0 0.0
        %8045 = vmatpush2.msra.mxu0 0.0
        %8046 = vmatprep.subr.mxu0 0.0
        %8047 = vmatpush2.msra.mxu0 0.0
        %8048 = vmatprep.mubr.f32.mxu0 0.0
        %v8049 = vand.u32 %v7980, 4294901760
        %v8050 = vsub.f32 %v7980, %v8049
        %v8051 = vand.u32 %v8050, 4294901760
        %v8052 = vsub.f32 %v8050, %v8051
        %v8053 = vand.u32 %v8052, 4294901760
        %8054 = vmatmul.mubr.f32.gmra.mxu0 %v8053
        %v8055 = vpop.f32.mrf.mxu0
        %v8056 = vadd.f32 0.0, %v8055
        %v8057 = vpop.f32.mrf.mxu0
        %v8058 = vadd.f32 0.0, %v8057
        %8059 = vdwg.mxu0
        %8060 = vmatprep.subr.mxu0 0.0
        %8061 = vmatpush1.msra.mxu0 0.0
        %8062 = vmatprep.subr.mxu0 0.0
        %8063 = vmatpush1.msra.mxu0 0.0
        %8064 = vmatprep.subr.mxu0 0.0
        %8065 = vmatpush1.msra.mxu0 0.0
        %8066 = vmatprep.subr.mxu0 0.0
        %8067 = vmatpush1.msra.mxu0 0.0
        %8068 = vmatprep.subr.mxu0 0.0
        %8069 = vmatpush1.msra.mxu0 0.0
        %8070 = vmatprep.subr.mxu0 0.0
        %8071 = vmatpush1.msra.mxu0 0.0
        %8072 = vmatprep.subr.mxu0 0.0
        %8073 = vmatpush1.msra.mxu0 0.0
        %8074 = vmatprep.subr.mxu0 0.0
        %8075 = vmatpush1.msra.mxu0 0.0
        %8076 = vmatprep.subr.mxu0 0.0
        %8077 = vmatpush1.msra.mxu0 0.0
        %8078 = vmatprep.subr.mxu0 0.0
        %8079 = vmatpush1.msra.mxu0 0.0
        %8080 = vmatprep.subr.mxu0 0.0
        %8081 = vmatpush1.msra.mxu0 0.0
        %8082 = vmatprep.subr.mxu0 0.0
        %8083 = vmatpush1.msra.mxu0 0.0
        %8084 = vmatprep.subr.mxu0 0.0
        %8085 = vmatpush1.msra.mxu0 0.0
        %8086 = vmatprep.subr.mxu0 0.0
        %8087 = vmatpush1.msra.mxu0 0.0
        %8088 = vmatprep.subr.mxu0 0.0
        %8089 = vmatpush1.msra.mxu0 0.0
        %v8090 = vand.u32 %v7976, 4294901760
        %v8091 = vsub.f32 %v7976, %v8090
        %v8092 = vand.u32 %v8091, 4294901760
        %v8093 = vsub.f32 %v8091, %v8092
        %v8094 = vand.u32 %v8093, 4294901760
        %8095 = vmatprep.subr.mxu0 %v8094
        %v8096 = vand.u32 %v7975, 4294901760
        %v8097 = vsub.f32 %v7975, %v8096
        %v8098 = vand.u32 %v8097, 4294901760
        %v8099 = vsub.f32 %v8097, %v8098
        %v8100 = vand.u32 %v8099, 4294901760
        %8101 = vmatpush1.msra.mxu0 %v8100
        %8102 = vmatprep.subr.mxu0 0.0
        %8103 = vmatpush2.msra.mxu0 0.0
        %8104 = vmatprep.subr.mxu0 0.0
        %8105 = vmatpush2.msra.mxu0 0.0
        %8106 = vmatprep.subr.mxu0 0.0
        %8107 = vmatpush2.msra.mxu0 0.0
        %8108 = vmatprep.subr.mxu0 0.0
        %8109 = vmatpush2.msra.mxu0 0.0
        %8110 = vmatprep.subr.mxu0 0.0
        %8111 = vmatpush2.msra.mxu0 0.0
        %8112 = vmatprep.subr.mxu0 0.0
        %8113 = vmatpush2.msra.mxu0 0.0
        %8114 = vmatprep.subr.mxu0 0.0
        %8115 = vmatpush2.msra.mxu0 0.0
        %8116 = vmatprep.subr.mxu0 0.0
        %8117 = vmatpush2.msra.mxu0 0.0
        %8118 = vmatprep.subr.mxu0 0.0
        %8119 = vmatpush2.msra.mxu0 0.0
        %8120 = vmatprep.subr.mxu0 0.0
        %8121 = vmatpush2.msra.mxu0 0.0
        %8122 = vmatprep.subr.mxu0 0.0
        %8123 = vmatpush2.msra.mxu0 0.0
        %8124 = vmatprep.subr.mxu0 0.0
        %8125 = vmatpush2.msra.mxu0 0.0
        %8126 = vmatprep.subr.mxu0 0.0
        %8127 = vmatpush2.msra.mxu0 0.0
        %8128 = vmatprep.subr.mxu0 0.0
        %8129 = vmatpush2.msra.mxu0 0.0
        %8130 = vmatprep.subr.mxu0 0.0
        %8131 = vmatpush2.msra.mxu0 0.0
        %8132 = vmatprep.subr.mxu0 0.0
        %8133 = vmatpush2.msra.mxu0 0.0
        %8134 = vmatprep.mubr.f32.mxu0 0.0
        %v8135 = vand.u32 %v7980, 4294901760
        %8136 = vmatmul.mubr.f32.gmra.mxu0 %v8135
        %v8137 = vpop.f32.mrf.mxu0
        %v8138 = vadd.f32 %v8056, %v8137
        %v8139 = vpop.f32.mrf.mxu0
        %v8140 = vadd.f32 %v8058, %v8139
        %8141 = vdwg.mxu0
        %8142 = vmatprep.subr.mxu0 0.0
        %8143 = vmatpush1.msra.mxu0 0.0
        %8144 = vmatprep.subr.mxu0 0.0
        %8145 = vmatpush1.msra.mxu0 0.0
        %8146 = vmatprep.subr.mxu0 0.0
        %8147 = vmatpush1.msra.mxu0 0.0
        %8148 = vmatprep.subr.mxu0 0.0
        %8149 = vmatpush1.msra.mxu0 0.0
        %8150 = vmatprep.subr.mxu0 0.0
        %8151 = vmatpush1.msra.mxu0 0.0
        %8152 = vmatprep.subr.mxu0 0.0
        %8153 = vmatpush1.msra.mxu0 0.0
        %8154 = vmatprep.subr.mxu0 0.0
        %8155 = vmatpush1.msra.mxu0 0.0
        %8156 = vmatprep.subr.mxu0 0.0
        %8157 = vmatpush1.msra.mxu0 0.0
        %8158 = vmatprep.subr.mxu0 0.0
        %8159 = vmatpush1.msra.mxu0 0.0
        %8160 = vmatprep.subr.mxu0 0.0
        %8161 = vmatpush1.msra.mxu0 0.0
        %8162 = vmatprep.subr.mxu0 0.0
        %8163 = vmatpush1.msra.mxu0 0.0
        %8164 = vmatprep.subr.mxu0 0.0
        %8165 = vmatpush1.msra.mxu0 0.0
        %8166 = vmatprep.subr.mxu0 0.0
        %8167 = vmatpush1.msra.mxu0 0.0
        %8168 = vmatprep.subr.mxu0 0.0
        %8169 = vmatpush1.msra.mxu0 0.0
        %8170 = vmatprep.subr.mxu0 0.0
        %8171 = vmatpush1.msra.mxu0 0.0
        %v8172 = vand.u32 %v7976, 4294901760
        %v8173 = vsub.f32 %v7976, %v8172
        %8174 = vmatprep.subr.mxu0 %v8173
        %v8175 = vand.u32 %v7975, 4294901760
        %v8176 = vsub.f32 %v7975, %v8175
        %8177 = vmatpush1.msra.mxu0 %v8176
        %8178 = vmatprep.subr.mxu0 0.0
        %8179 = vmatpush2.msra.mxu0 0.0
        %8180 = vmatprep.subr.mxu0 0.0
        %8181 = vmatpush2.msra.mxu0 0.0
        %8182 = vmatprep.subr.mxu0 0.0
        %8183 = vmatpush2.msra.mxu0 0.0
        %8184 = vmatprep.subr.mxu0 0.0
        %8185 = vmatpush2.msra.mxu0 0.0
        %8186 = vmatprep.subr.mxu0 0.0
        %8187 = vmatpush2.msra.mxu0 0.0
        %8188 = vmatprep.subr.mxu0 0.0
        %8189 = vmatpush2.msra.mxu0 0.0
        %8190 = vmatprep.subr.mxu0 0.0
        %8191 = vmatpush2.msra.mxu0 0.0
        %8192 = vmatprep.subr.mxu0 0.0
        %8193 = vmatpush2.msra.mxu0 0.0
        %8194 = vmatprep.subr.mxu0 0.0
        %8195 = vmatpush2.msra.mxu0 0.0
        %8196 = vmatprep.subr.mxu0 0.0
        %8197 = vmatpush2.msra.mxu0 0.0
        %8198 = vmatprep.subr.mxu0 0.0
        %8199 = vmatpush2.msra.mxu0 0.0
        %8200 = vmatprep.subr.mxu0 0.0
        %8201 = vmatpush2.msra.mxu0 0.0
        %8202 = vmatprep.subr.mxu0 0.0
        %8203 = vmatpush2.msra.mxu0 0.0
        %8204 = vmatprep.subr.mxu0 0.0
        %8205 = vmatpush2.msra.mxu0 0.0
        %8206 = vmatprep.subr.mxu0 0.0
        %8207 = vmatpush2.msra.mxu0 0.0
        %8208 = vmatprep.subr.mxu0 0.0
        %8209 = vmatpush2.msra.mxu0 0.0
        %8210 = vmatprep.mubr.f32.mxu0 0.0
        %v8211 = vand.u32 %v7980, 4294901760
        %v8212 = vsub.f32 %v7980, %v8211
        %8213 = vmatmul.mubr.f32.gmra.mxu0 %v8212
        %v8214 = vpop.f32.mrf.mxu0
        %v8215 = vadd.f32 %v8138, %v8214
        %v8216 = vpop.f32.mrf.mxu0
        %v8217 = vadd.f32 %v8140, %v8216
        %8218 = vdwg.mxu0
        %8219 = vmatprep.subr.mxu0 0.0
        %8220 = vmatpush1.msra.mxu0 0.0
        %8221 = vmatprep.subr.mxu0 0.0
        %8222 = vmatpush1.msra.mxu0 0.0
        %8223 = vmatprep.subr.mxu0 0.0
        %8224 = vmatpush1.msra.mxu0 0.0
        %8225 = vmatprep.subr.mxu0 0.0
        %8226 = vmatpush1.msra.mxu0 0.0
        %8227 = vmatprep.subr.mxu0 0.0
        %8228 = vmatpush1.msra.mxu0 0.0
        %8229 = vmatprep.subr.mxu0 0.0
        %8230 = vmatpush1.msra.mxu0 0.0
        %8231 = vmatprep.subr.mxu0 0.0
        %8232 = vmatpush1.msra.mxu0 0.0
        %8233 = vmatprep.subr.mxu0 0.0
        %8234 = vmatpush1.msra.mxu0 0.0
        %8235 = vmatprep.subr.mxu0 0.0
        %8236 = vmatpush1.msra.mxu0 0.0
        %8237 = vmatprep.subr.mxu0 0.0
        %8238 = vmatpush1.msra.mxu0 0.0
        %8239 = vmatprep.subr.mxu0 0.0
        %8240 = vmatpush1.msra.mxu0 0.0
        %8241 = vmatprep.subr.mxu0 0.0
        %8242 = vmatpush1.msra.mxu0 0.0
        %8243 = vmatprep.subr.mxu0 0.0
        %8244 = vmatpush1.msra.mxu0 0.0
        %8245 = vmatprep.subr.mxu0 0.0
        %8246 = vmatpush1.msra.mxu0 0.0
        %8247 = vmatprep.subr.mxu0 0.0
        %8248 = vmatpush1.msra.mxu0 0.0
        %v8249 = vand.u32 %v7976, 4294901760
        %8250 = vmatprep.subr.mxu0 %v8249
        %v8251 = vand.u32 %v7975, 4294901760
        %8252 = vmatpush1.msra.mxu0 %v8251
        %8253 = vmatprep.subr.mxu0 0.0
        %8254 = vmatpush2.msra.mxu0 0.0
        %8255 = vmatprep.subr.mxu0 0.0
        %8256 = vmatpush2.msra.mxu0 0.0
        %8257 = vmatprep.subr.mxu0 0.0
        %8258 = vmatpush2.msra.mxu0 0.0
        %8259 = vmatprep.subr.mxu0 0.0
        %8260 = vmatpush2.msra.mxu0 0.0
        %8261 = vmatprep.subr.mxu0 0.0
        %8262 = vmatpush2.msra.mxu0 0.0
        %8263 = vmatprep.subr.mxu0 0.0
        %8264 = vmatpush2.msra.mxu0 0.0
        %8265 = vmatprep.subr.mxu0 0.0
        %8266 = vmatpush2.msra.mxu0 0.0
        %8267 = vmatprep.subr.mxu0 0.0
        %8268 = vmatpush2.msra.mxu0 0.0
        %8269 = vmatprep.subr.mxu0 0.0
        %8270 = vmatpush2.msra.mxu0 0.0
        %8271 = vmatprep.subr.mxu0 0.0
        %8272 = vmatpush2.msra.mxu0 0.0
        %8273 = vmatprep.subr.mxu0 0.0
        %8274 = vmatpush2.msra.mxu0 0.0
        %8275 = vmatprep.subr.mxu0 0.0
        %8276 = vmatpush2.msra.mxu0 0.0
        %8277 = vmatprep.subr.mxu0 0.0
        %8278 = vmatpush2.msra.mxu0 0.0
        %8279 = vmatprep.subr.mxu0 0.0
        %8280 = vmatpush2.msra.mxu0 0.0
        %8281 = vmatprep.subr.mxu0 0.0
        %8282 = vmatpush2.msra.mxu0 0.0
        %8283 = vmatprep.subr.mxu0 0.0
        %8284 = vmatpush2.msra.mxu0 0.0
        %8285 = vmatprep.mubr.f32.mxu0 0.0
        %v8286 = vand.u32 %v7980, 4294901760
        %v8287 = vsub.f32 %v7980, %v8286
        %v8288 = vand.u32 %v8287, 4294901760
        %8289 = vmatmul.mubr.f32.gmra.mxu0 %v8288
        %v8290 = vpop.f32.mrf.mxu0
        %v8291 = vadd.f32 %v8215, %v8290
        %v8292 = vpop.f32.mrf.mxu0
        %v8293 = vadd.f32 %v8217, %v8292
        %8294 = vdwg.mxu0
        %8295 = vmatprep.subr.mxu0 0.0
        %8296 = vmatpush1.msra.mxu0 0.0
        %8297 = vmatprep.subr.mxu0 0.0
        %8298 = vmatpush1.msra.mxu0 0.0
        %8299 = vmatprep.subr.mxu0 0.0
        %8300 = vmatpush1.msra.mxu0 0.0
        %8301 = vmatprep.subr.mxu0 0.0
        %8302 = vmatpush1.msra.mxu0 0.0
        %8303 = vmatprep.subr.mxu0 0.0
        %8304 = vmatpush1.msra.mxu0 0.0
        %8305 = vmatprep.subr.mxu0 0.0
        %8306 = vmatpush1.msra.mxu0 0.0
        %8307 = vmatprep.subr.mxu0 0.0
        %8308 = vmatpush1.msra.mxu0 0.0
        %8309 = vmatprep.subr.mxu0 0.0
        %8310 = vmatpush1.msra.mxu0 0.0
        %8311 = vmatprep.subr.mxu0 0.0
        %8312 = vmatpush1.msra.mxu0 0.0
        %8313 = vmatprep.subr.mxu0 0.0
        %8314 = vmatpush1.msra.mxu0 0.0
        %8315 = vmatprep.subr.mxu0 0.0
        %8316 = vmatpush1.msra.mxu0 0.0
        %8317 = vmatprep.subr.mxu0 0.0
        %8318 = vmatpush1.msra.mxu0 0.0
        %8319 = vmatprep.subr.mxu0 0.0
        %8320 = vmatpush1.msra.mxu0 0.0
        %8321 = vmatprep.subr.mxu0 0.0
        %8322 = vmatpush1.msra.mxu0 0.0
        %8323 = vmatprep.subr.mxu0 0.0
        %8324 = vmatpush1.msra.mxu0 0.0
        %v8325 = vand.u32 %v7976, 4294901760
        %v8326 = vsub.f32 %v7976, %v8325
        %v8327 = vand.u32 %v8326, 4294901760
        %8328 = vmatprep.subr.mxu0 %v8327
        %v8329 = vand.u32 %v7975, 4294901760
        %v8330 = vsub.f32 %v7975, %v8329
        %v8331 = vand.u32 %v8330, 4294901760
        %8332 = vmatpush1.msra.mxu0 %v8331
        %8333 = vmatprep.subr.mxu0 0.0
        %8334 = vmatpush2.msra.mxu0 0.0
        %8335 = vmatprep.subr.mxu0 0.0
        %8336 = vmatpush2.msra.mxu0 0.0
        %8337 = vmatprep.subr.mxu0 0.0
        %8338 = vmatpush2.msra.mxu0 0.0
        %8339 = vmatprep.subr.mxu0 0.0
        %8340 = vmatpush2.msra.mxu0 0.0
        %8341 = vmatprep.subr.mxu0 0.0
        %8342 = vmatpush2.msra.mxu0 0.0
        %8343 = vmatprep.subr.mxu0 0.0
        %8344 = vmatpush2.msra.mxu0 0.0
        %8345 = vmatprep.subr.mxu0 0.0
        %8346 = vmatpush2.msra.mxu0 0.0
        %8347 = vmatprep.subr.mxu0 0.0
        %8348 = vmatpush2.msra.mxu0 0.0
        %8349 = vmatprep.subr.mxu0 0.0
        %8350 = vmatpush2.msra.mxu0 0.0
        %8351 = vmatprep.subr.mxu0 0.0
        %8352 = vmatpush2.msra.mxu0 0.0
        %8353 = vmatprep.subr.mxu0 0.0
        %8354 = vmatpush2.msra.mxu0 0.0
        %8355 = vmatprep.subr.mxu0 0.0
        %8356 = vmatpush2.msra.mxu0 0.0
        %8357 = vmatprep.subr.mxu0 0.0
        %8358 = vmatpush2.msra.mxu0 0.0
        %8359 = vmatprep.subr.mxu0 0.0
        %8360 = vmatpush2.msra.mxu0 0.0
        %8361 = vmatprep.subr.mxu0 0.0
        %8362 = vmatpush2.msra.mxu0 0.0
        %8363 = vmatprep.subr.mxu0 0.0
        %8364 = vmatpush2.msra.mxu0 0.0
        %8365 = vmatprep.mubr.f32.mxu0 0.0
        %v8366 = vand.u32 %v7980, 4294901760
        %8367 = vmatmul.mubr.f32.gmra.mxu0 %v8366
        %v8368 = vpop.f32.mrf.mxu0
        %v8369 = vadd.f32 %v8291, %v8368
        %v8370 = vpop.f32.mrf.mxu0
        %v8371 = vadd.f32 %v8293, %v8370
        %8372 = vdwg.mxu0
        %8373 = vmatprep.subr.mxu0 0.0
        %8374 = vmatpush1.msra.mxu0 0.0
        %8375 = vmatprep.subr.mxu0 0.0
        %8376 = vmatpush1.msra.mxu0 0.0
        %8377 = vmatprep.subr.mxu0 0.0
        %8378 = vmatpush1.msra.mxu0 0.0
        %8379 = vmatprep.subr.mxu0 0.0
        %8380 = vmatpush1.msra.mxu0 0.0
        %8381 = vmatprep.subr.mxu0 0.0
        %8382 = vmatpush1.msra.mxu0 0.0
        %8383 = vmatprep.subr.mxu0 0.0
        %8384 = vmatpush1.msra.mxu0 0.0
        %8385 = vmatprep.subr.mxu0 0.0
        %8386 = vmatpush1.msra.mxu0 0.0
        %8387 = vmatprep.subr.mxu0 0.0
        %8388 = vmatpush1.msra.mxu0 0.0
        %8389 = vmatprep.subr.mxu0 0.0
        %8390 = vmatpush1.msra.mxu0 0.0
        %8391 = vmatprep.subr.mxu0 0.0
        %8392 = vmatpush1.msra.mxu0 0.0
        %8393 = vmatprep.subr.mxu0 0.0
        %8394 = vmatpush1.msra.mxu0 0.0
        %8395 = vmatprep.subr.mxu0 0.0
        %8396 = vmatpush1.msra.mxu0 0.0
        %8397 = vmatprep.subr.mxu0 0.0
        %8398 = vmatpush1.msra.mxu0 0.0
        %8399 = vmatprep.subr.mxu0 0.0
        %8400 = vmatpush1.msra.mxu0 0.0
        %8401 = vmatprep.subr.mxu0 0.0
        %8402 = vmatpush1.msra.mxu0 0.0
        %v8403 = vand.u32 %v7976, 4294901760
        %8404 = vmatprep.subr.mxu0 %v8403
        %v8405 = vand.u32 %v7975, 4294901760
        %8406 = vmatpush1.msra.mxu0 %v8405
        %8407 = vmatprep.subr.mxu0 0.0
        %8408 = vmatpush2.msra.mxu0 0.0
        %8409 = vmatprep.subr.mxu0 0.0
        %8410 = vmatpush2.msra.mxu0 0.0
        %8411 = vmatprep.subr.mxu0 0.0
        %8412 = vmatpush2.msra.mxu0 0.0
        %8413 = vmatprep.subr.mxu0 0.0
        %8414 = vmatpush2.msra.mxu0 0.0
        %8415 = vmatprep.subr.mxu0 0.0
        %8416 = vmatpush2.msra.mxu0 0.0
        %8417 = vmatprep.subr.mxu0 0.0
        %8418 = vmatpush2.msra.mxu0 0.0
        %8419 = vmatprep.subr.mxu0 0.0
        %8420 = vmatpush2.msra.mxu0 0.0
        %8421 = vmatprep.subr.mxu0 0.0
        %8422 = vmatpush2.msra.mxu0 0.0
        %8423 = vmatprep.subr.mxu0 0.0
        %8424 = vmatpush2.msra.mxu0 0.0
        %8425 = vmatprep.subr.mxu0 0.0
        %8426 = vmatpush2.msra.mxu0 0.0
        %8427 = vmatprep.subr.mxu0 0.0
        %8428 = vmatpush2.msra.mxu0 0.0
        %8429 = vmatprep.subr.mxu0 0.0
        %8430 = vmatpush2.msra.mxu0 0.0
        %8431 = vmatprep.subr.mxu0 0.0
        %8432 = vmatpush2.msra.mxu0 0.0
        %8433 = vmatprep.subr.mxu0 0.0
        %8434 = vmatpush2.msra.mxu0 0.0
        %8435 = vmatprep.subr.mxu0 0.0
        %8436 = vmatpush2.msra.mxu0 0.0
        %8437 = vmatprep.subr.mxu0 0.0
        %8438 = vmatpush2.msra.mxu0 0.0
        %8439 = vmatprep.mubr.f32.mxu0 0.0
        %v8440 = vand.u32 %v7980, 4294901760
        %8441 = vmatmul.mubr.f32.gmra.mxu0 %v8440
        %v8442 = vpop.f32.mrf.mxu0
        %v8443 = vadd.f32 %v8369, %v8442
        %v8444 = vpop.f32.mrf.mxu0
        %v8445 = vadd.f32 %v8371, %v8444
        %8446 = vdwg.mxu0
        %v8447 = vadd.f32 %v7941, %v8443
        %v8448 = vadd.f32 %v7942, %v8445
        %v8449 = vld [vmem:[%s3880] sm:$0x3]
        %v8451 = vlaneseq
        %v8452 = vshrl.u32 %v8451, 7
        %v8453 = vsub.s32 0, %v8452
        %v8454 = vrot.slane %v8449, %v8453
        %v8455 = vlaneseq
        %v8456 = vshrl.u32 %v8455, 7
        %v8457 = vsub.s32 1, %v8456
        %v8458 = vrot.slane %v8449, %v8457
        %8459 = vrot.lane.b32.xlu0 %v8454, 33
        %v8460 = vpop.permute.xlu0 %8459
        %8461 = vrot.lane.b32.xlu0 %v8458, 33
        %v8462 = vpop.permute.xlu0 %8461
        %v8463 = vsel %vm3895, %v8460, %v8462
        %v8467 = vmul.f32 %v4929, %v8460
        %v8468 = vmul.f32 %v4930, %v8463
        %v8469 = vmul.f32 %v4946, %v8462
        %s8470 = scalar_lea.vmem %s6, 56
        %v8471 = vld [vmem:[%s8470] sm:$0xff]
        %8475 = vrot.lane.b32.xlu0 %v8467, 95
        %v8476 = vpop.permute.xlu0 %8475
        %8477 = vrot.lane.b32.xlu0 %v8468, 95
        %v8478 = vpop.permute.xlu0 %8477
        %8479 = vrot.lane.b32.xlu0 %v8469, 95
        %v8480 = vpop.permute.xlu0 %8479
        %v8481 = vsel %vm3914, %v8476, %v8478
        %v8482 = vsel %vm3914, %v8478, %v8480
        %v8486 = vsel %vm399, %v8471, 0
        %8488 = vmatprep.subr.mxu0 0.0
        %8489 = vmatpush1.msra.mxu0 0.0
        %8490 = vmatprep.subr.mxu0 0.0
        %8491 = vmatpush1.msra.mxu0 0.0
        %8492 = vmatprep.subr.mxu0 0.0
        %8493 = vmatpush1.msra.mxu0 0.0
        %8494 = vmatprep.subr.mxu0 0.0
        %8495 = vmatpush1.msra.mxu0 0.0
        %8496 = vmatprep.subr.mxu0 0.0
        %8497 = vmatpush1.msra.mxu0 0.0
        %8498 = vmatprep.subr.mxu0 0.0
        %8499 = vmatpush1.msra.mxu0 0.0
        %8500 = vmatprep.subr.mxu0 0.0
        %8501 = vmatpush1.msra.mxu0 0.0
        %8502 = vmatprep.subr.mxu0 0.0
        %8503 = vmatpush1.msra.mxu0 0.0
        %8504 = vmatprep.subr.mxu0 0.0
        %8505 = vmatpush1.msra.mxu0 0.0
        %8506 = vmatprep.subr.mxu0 0.0
        %8507 = vmatpush1.msra.mxu0 0.0
        %8508 = vmatprep.subr.mxu0 0.0
        %8509 = vmatpush1.msra.mxu0 0.0
        %8510 = vmatprep.subr.mxu0 0.0
        %8511 = vmatpush1.msra.mxu0 0.0
        %8512 = vmatprep.subr.mxu0 0.0
        %8513 = vmatpush1.msra.mxu0 0.0
        %8514 = vmatprep.subr.mxu0 0.0
        %8515 = vmatpush1.msra.mxu0 0.0
        %8516 = vmatprep.subr.mxu0 0.0
        %8517 = vmatpush1.msra.mxu0 0.0
        %v8518 = vand.u32 %v8482, 4294901760
        %8519 = vmatprep.subr.mxu0 %v8518
        %v8520 = vand.u32 %v8481, 4294901760
        %8521 = vmatpush1.msra.mxu0 %v8520
        %8522 = vmatprep.subr.mxu0 0.0
        %8523 = vmatpush2.msra.mxu0 0.0
        %8524 = vmatprep.subr.mxu0 0.0
        %8525 = vmatpush2.msra.mxu0 0.0
        %8526 = vmatprep.subr.mxu0 0.0
        %8527 = vmatpush2.msra.mxu0 0.0
        %8528 = vmatprep.subr.mxu0 0.0
        %8529 = vmatpush2.msra.mxu0 0.0
        %8530 = vmatprep.subr.mxu0 0.0
        %8531 = vmatpush2.msra.mxu0 0.0
        %8532 = vmatprep.subr.mxu0 0.0
        %8533 = vmatpush2.msra.mxu0 0.0
        %8534 = vmatprep.subr.mxu0 0.0
        %8535 = vmatpush2.msra.mxu0 0.0
        %8536 = vmatprep.subr.mxu0 0.0
        %8537 = vmatpush2.msra.mxu0 0.0
        %8538 = vmatprep.subr.mxu0 0.0
        %8539 = vmatpush2.msra.mxu0 0.0
        %8540 = vmatprep.subr.mxu0 0.0
        %8541 = vmatpush2.msra.mxu0 0.0
        %8542 = vmatprep.subr.mxu0 0.0
        %8543 = vmatpush2.msra.mxu0 0.0
        %8544 = vmatprep.subr.mxu0 0.0
        %8545 = vmatpush2.msra.mxu0 0.0
        %8546 = vmatprep.subr.mxu0 0.0
        %8547 = vmatpush2.msra.mxu0 0.0
        %8548 = vmatprep.subr.mxu0 0.0
        %8549 = vmatpush2.msra.mxu0 0.0
        %8550 = vmatprep.subr.mxu0 0.0
        %8551 = vmatpush2.msra.mxu0 0.0
        %8552 = vmatprep.subr.mxu0 0.0
        %8553 = vmatpush2.msra.mxu0 0.0
        %8554 = vmatprep.mubr.f32.mxu0 0.0
        %v8555 = vand.u32 %v8486, 4294901760
        %v8556 = vsub.f32 %v8486, %v8555
        %v8557 = vand.u32 %v8556, 4294901760
        %v8558 = vsub.f32 %v8556, %v8557
        %v8559 = vand.u32 %v8558, 4294901760
        %8560 = vmatmul.mubr.f32.gmra.mxu0 %v8559
        %v8561 = vpop.f32.mrf.mxu0
        %v8562 = vadd.f32 0.0, %v8561
        %v8563 = vpop.f32.mrf.mxu0
        %v8564 = vadd.f32 0.0, %v8563
        %8565 = vdwg.mxu0
        %8566 = vmatprep.subr.mxu0 0.0
        %8567 = vmatpush1.msra.mxu0 0.0
        %8568 = vmatprep.subr.mxu0 0.0
        %8569 = vmatpush1.msra.mxu0 0.0
        %8570 = vmatprep.subr.mxu0 0.0
        %8571 = vmatpush1.msra.mxu0 0.0
        %8572 = vmatprep.subr.mxu0 0.0
        %8573 = vmatpush1.msra.mxu0 0.0
        %8574 = vmatprep.subr.mxu0 0.0
        %8575 = vmatpush1.msra.mxu0 0.0
        %8576 = vmatprep.subr.mxu0 0.0
        %8577 = vmatpush1.msra.mxu0 0.0
        %8578 = vmatprep.subr.mxu0 0.0
        %8579 = vmatpush1.msra.mxu0 0.0
        %8580 = vmatprep.subr.mxu0 0.0
        %8581 = vmatpush1.msra.mxu0 0.0
        %8582 = vmatprep.subr.mxu0 0.0
        %8583 = vmatpush1.msra.mxu0 0.0
        %8584 = vmatprep.subr.mxu0 0.0
        %8585 = vmatpush1.msra.mxu0 0.0
        %8586 = vmatprep.subr.mxu0 0.0
        %8587 = vmatpush1.msra.mxu0 0.0
        %8588 = vmatprep.subr.mxu0 0.0
        %8589 = vmatpush1.msra.mxu0 0.0
        %8590 = vmatprep.subr.mxu0 0.0
        %8591 = vmatpush1.msra.mxu0 0.0
        %8592 = vmatprep.subr.mxu0 0.0
        %8593 = vmatpush1.msra.mxu0 0.0
        %8594 = vmatprep.subr.mxu0 0.0
        %8595 = vmatpush1.msra.mxu0 0.0
        %v8596 = vand.u32 %v8482, 4294901760
        %v8597 = vsub.f32 %v8482, %v8596
        %v8598 = vand.u32 %v8597, 4294901760
        %v8599 = vsub.f32 %v8597, %v8598
        %v8600 = vand.u32 %v8599, 4294901760
        %8601 = vmatprep.subr.mxu0 %v8600
        %v8602 = vand.u32 %v8481, 4294901760
        %v8603 = vsub.f32 %v8481, %v8602
        %v8604 = vand.u32 %v8603, 4294901760
        %v8605 = vsub.f32 %v8603, %v8604
        %v8606 = vand.u32 %v8605, 4294901760
        %8607 = vmatpush1.msra.mxu0 %v8606
        %8608 = vmatprep.subr.mxu0 0.0
        %8609 = vmatpush2.msra.mxu0 0.0
        %8610 = vmatprep.subr.mxu0 0.0
        %8611 = vmatpush2.msra.mxu0 0.0
        %8612 = vmatprep.subr.mxu0 0.0
        %8613 = vmatpush2.msra.mxu0 0.0
        %8614 = vmatprep.subr.mxu0 0.0
        %8615 = vmatpush2.msra.mxu0 0.0
        %8616 = vmatprep.subr.mxu0 0.0
        %8617 = vmatpush2.msra.mxu0 0.0
        %8618 = vmatprep.subr.mxu0 0.0
        %8619 = vmatpush2.msra.mxu0 0.0
        %8620 = vmatprep.subr.mxu0 0.0
        %8621 = vmatpush2.msra.mxu0 0.0
        %8622 = vmatprep.subr.mxu0 0.0
        %8623 = vmatpush2.msra.mxu0 0.0
        %8624 = vmatprep.subr.mxu0 0.0
        %8625 = vmatpush2.msra.mxu0 0.0
        %8626 = vmatprep.subr.mxu0 0.0
        %8627 = vmatpush2.msra.mxu0 0.0
        %8628 = vmatprep.subr.mxu0 0.0
        %8629 = vmatpush2.msra.mxu0 0.0
        %8630 = vmatprep.subr.mxu0 0.0
        %8631 = vmatpush2.msra.mxu0 0.0
        %8632 = vmatprep.subr.mxu0 0.0
        %8633 = vmatpush2.msra.mxu0 0.0
        %8634 = vmatprep.subr.mxu0 0.0
        %8635 = vmatpush2.msra.mxu0 0.0
        %8636 = vmatprep.subr.mxu0 0.0
        %8637 = vmatpush2.msra.mxu0 0.0
        %8638 = vmatprep.subr.mxu0 0.0
        %8639 = vmatpush2.msra.mxu0 0.0
        %8640 = vmatprep.mubr.f32.mxu0 0.0
        %v8641 = vand.u32 %v8486, 4294901760
        %8642 = vmatmul.mubr.f32.gmra.mxu0 %v8641
        %v8643 = vpop.f32.mrf.mxu0
        %v8644 = vadd.f32 %v8562, %v8643
        %v8645 = vpop.f32.mrf.mxu0
        %v8646 = vadd.f32 %v8564, %v8645
        %8647 = vdwg.mxu0
        %8648 = vmatprep.subr.mxu0 0.0
        %8649 = vmatpush1.msra.mxu0 0.0
        %8650 = vmatprep.subr.mxu0 0.0
        %8651 = vmatpush1.msra.mxu0 0.0
        %8652 = vmatprep.subr.mxu0 0.0
        %8653 = vmatpush1.msra.mxu0 0.0
        %8654 = vmatprep.subr.mxu0 0.0
        %8655 = vmatpush1.msra.mxu0 0.0
        %8656 = vmatprep.subr.mxu0 0.0
        %8657 = vmatpush1.msra.mxu0 0.0
        %8658 = vmatprep.subr.mxu0 0.0
        %8659 = vmatpush1.msra.mxu0 0.0
        %8660 = vmatprep.subr.mxu0 0.0
        %8661 = vmatpush1.msra.mxu0 0.0
        %8662 = vmatprep.subr.mxu0 0.0
        %8663 = vmatpush1.msra.mxu0 0.0
        %8664 = vmatprep.subr.mxu0 0.0
        %8665 = vmatpush1.msra.mxu0 0.0
        %8666 = vmatprep.subr.mxu0 0.0
        %8667 = vmatpush1.msra.mxu0 0.0
        %8668 = vmatprep.subr.mxu0 0.0
        %8669 = vmatpush1.msra.mxu0 0.0
        %8670 = vmatprep.subr.mxu0 0.0
        %8671 = vmatpush1.msra.mxu0 0.0
        %8672 = vmatprep.subr.mxu0 0.0
        %8673 = vmatpush1.msra.mxu0 0.0
        %8674 = vmatprep.subr.mxu0 0.0
        %8675 = vmatpush1.msra.mxu0 0.0
        %8676 = vmatprep.subr.mxu0 0.0
        %8677 = vmatpush1.msra.mxu0 0.0
        %v8678 = vand.u32 %v8482, 4294901760
        %v8679 = vsub.f32 %v8482, %v8678
        %8680 = vmatprep.subr.mxu0 %v8679
        %v8681 = vand.u32 %v8481, 4294901760
        %v8682 = vsub.f32 %v8481, %v8681
        %8683 = vmatpush1.msra.mxu0 %v8682
        %8684 = vmatprep.subr.mxu0 0.0
        %8685 = vmatpush2.msra.mxu0 0.0
        %8686 = vmatprep.subr.mxu0 0.0
        %8687 = vmatpush2.msra.mxu0 0.0
        %8688 = vmatprep.subr.mxu0 0.0
        %8689 = vmatpush2.msra.mxu0 0.0
        %8690 = vmatprep.subr.mxu0 0.0
        %8691 = vmatpush2.msra.mxu0 0.0
        %8692 = vmatprep.subr.mxu0 0.0
        %8693 = vmatpush2.msra.mxu0 0.0
        %8694 = vmatprep.subr.mxu0 0.0
        %8695 = vmatpush2.msra.mxu0 0.0
        %8696 = vmatprep.subr.mxu0 0.0
        %8697 = vmatpush2.msra.mxu0 0.0
        %8698 = vmatprep.subr.mxu0 0.0
        %8699 = vmatpush2.msra.mxu0 0.0
        %8700 = vmatprep.subr.mxu0 0.0
        %8701 = vmatpush2.msra.mxu0 0.0
        %8702 = vmatprep.subr.mxu0 0.0
        %8703 = vmatpush2.msra.mxu0 0.0
        %8704 = vmatprep.subr.mxu0 0.0
        %8705 = vmatpush2.msra.mxu0 0.0
        %8706 = vmatprep.subr.mxu0 0.0
        %8707 = vmatpush2.msra.mxu0 0.0
        %8708 = vmatprep.subr.mxu0 0.0
        %8709 = vmatpush2.msra.mxu0 0.0
        %8710 = vmatprep.subr.mxu0 0.0
        %8711 = vmatpush2.msra.mxu0 0.0
        %8712 = vmatprep.subr.mxu0 0.0
        %8713 = vmatpush2.msra.mxu0 0.0
        %8714 = vmatprep.subr.mxu0 0.0
        %8715 = vmatpush2.msra.mxu0 0.0
        %8716 = vmatprep.mubr.f32.mxu0 0.0
        %v8717 = vand.u32 %v8486, 4294901760
        %v8718 = vsub.f32 %v8486, %v8717
        %8719 = vmatmul.mubr.f32.gmra.mxu0 %v8718
        %v8720 = vpop.f32.mrf.mxu0
        %v8721 = vadd.f32 %v8644, %v8720
        %v8722 = vpop.f32.mrf.mxu0
        %v8723 = vadd.f32 %v8646, %v8722
        %8724 = vdwg.mxu0
        %8725 = vmatprep.subr.mxu0 0.0
        %8726 = vmatpush1.msra.mxu0 0.0
        %8727 = vmatprep.subr.mxu0 0.0
        %8728 = vmatpush1.msra.mxu0 0.0
        %8729 = vmatprep.subr.mxu0 0.0
        %8730 = vmatpush1.msra.mxu0 0.0
        %8731 = vmatprep.subr.mxu0 0.0
        %8732 = vmatpush1.msra.mxu0 0.0
        %8733 = vmatprep.subr.mxu0 0.0
        %8734 = vmatpush1.msra.mxu0 0.0
        %8735 = vmatprep.subr.mxu0 0.0
        %8736 = vmatpush1.msra.mxu0 0.0
        %8737 = vmatprep.subr.mxu0 0.0
        %8738 = vmatpush1.msra.mxu0 0.0
        %8739 = vmatprep.subr.mxu0 0.0
        %8740 = vmatpush1.msra.mxu0 0.0
        %8741 = vmatprep.subr.mxu0 0.0
        %8742 = vmatpush1.msra.mxu0 0.0
        %8743 = vmatprep.subr.mxu0 0.0
        %8744 = vmatpush1.msra.mxu0 0.0
        %8745 = vmatprep.subr.mxu0 0.0
        %8746 = vmatpush1.msra.mxu0 0.0
        %8747 = vmatprep.subr.mxu0 0.0
        %8748 = vmatpush1.msra.mxu0 0.0
        %8749 = vmatprep.subr.mxu0 0.0
        %8750 = vmatpush1.msra.mxu0 0.0
        %8751 = vmatprep.subr.mxu0 0.0
        %8752 = vmatpush1.msra.mxu0 0.0
        %8753 = vmatprep.subr.mxu0 0.0
        %8754 = vmatpush1.msra.mxu0 0.0
        %v8755 = vand.u32 %v8482, 4294901760
        %8756 = vmatprep.subr.mxu0 %v8755
        %v8757 = vand.u32 %v8481, 4294901760
        %8758 = vmatpush1.msra.mxu0 %v8757
        %8759 = vmatprep.subr.mxu0 0.0
        %8760 = vmatpush2.msra.mxu0 0.0
        %8761 = vmatprep.subr.mxu0 0.0
        %8762 = vmatpush2.msra.mxu0 0.0
        %8763 = vmatprep.subr.mxu0 0.0
        %8764 = vmatpush2.msra.mxu0 0.0
        %8765 = vmatprep.subr.mxu0 0.0
        %8766 = vmatpush2.msra.mxu0 0.0
        %8767 = vmatprep.subr.mxu0 0.0
        %8768 = vmatpush2.msra.mxu0 0.0
        %8769 = vmatprep.subr.mxu0 0.0
        %8770 = vmatpush2.msra.mxu0 0.0
        %8771 = vmatprep.subr.mxu0 0.0
        %8772 = vmatpush2.msra.mxu0 0.0
        %8773 = vmatprep.subr.mxu0 0.0
        %8774 = vmatpush2.msra.mxu0 0.0
        %8775 = vmatprep.subr.mxu0 0.0
        %8776 = vmatpush2.msra.mxu0 0.0
        %8777 = vmatprep.subr.mxu0 0.0
        %8778 = vmatpush2.msra.mxu0 0.0
        %8779 = vmatprep.subr.mxu0 0.0
        %8780 = vmatpush2.msra.mxu0 0.0
        %8781 = vmatprep.subr.mxu0 0.0
        %8782 = vmatpush2.msra.mxu0 0.0
        %8783 = vmatprep.subr.mxu0 0.0
        %8784 = vmatpush2.msra.mxu0 0.0
        %8785 = vmatprep.subr.mxu0 0.0
        %8786 = vmatpush2.msra.mxu0 0.0
        %8787 = vmatprep.subr.mxu0 0.0
        %8788 = vmatpush2.msra.mxu0 0.0
        %8789 = vmatprep.subr.mxu0 0.0
        %8790 = vmatpush2.msra.mxu0 0.0
        %8791 = vmatprep.mubr.f32.mxu0 0.0
        %v8792 = vand.u32 %v8486, 4294901760
        %v8793 = vsub.f32 %v8486, %v8792
        %v8794 = vand.u32 %v8793, 4294901760
        %8795 = vmatmul.mubr.f32.gmra.mxu0 %v8794
        %v8796 = vpop.f32.mrf.mxu0
        %v8797 = vadd.f32 %v8721, %v8796
        %v8798 = vpop.f32.mrf.mxu0
        %v8799 = vadd.f32 %v8723, %v8798
        %8800 = vdwg.mxu0
        %8801 = vmatprep.subr.mxu0 0.0
        %8802 = vmatpush1.msra.mxu0 0.0
        %8803 = vmatprep.subr.mxu0 0.0
        %8804 = vmatpush1.msra.mxu0 0.0
        %8805 = vmatprep.subr.mxu0 0.0
        %8806 = vmatpush1.msra.mxu0 0.0
        %8807 = vmatprep.subr.mxu0 0.0
        %8808 = vmatpush1.msra.mxu0 0.0
        %8809 = vmatprep.subr.mxu0 0.0
        %8810 = vmatpush1.msra.mxu0 0.0
        %8811 = vmatprep.subr.mxu0 0.0
        %8812 = vmatpush1.msra.mxu0 0.0
        %8813 = vmatprep.subr.mxu0 0.0
        %8814 = vmatpush1.msra.mxu0 0.0
        %8815 = vmatprep.subr.mxu0 0.0
        %8816 = vmatpush1.msra.mxu0 0.0
        %8817 = vmatprep.subr.mxu0 0.0
        %8818 = vmatpush1.msra.mxu0 0.0
        %8819 = vmatprep.subr.mxu0 0.0
        %8820 = vmatpush1.msra.mxu0 0.0
        %8821 = vmatprep.subr.mxu0 0.0
        %8822 = vmatpush1.msra.mxu0 0.0
        %8823 = vmatprep.subr.mxu0 0.0
        %8824 = vmatpush1.msra.mxu0 0.0
        %8825 = vmatprep.subr.mxu0 0.0
        %8826 = vmatpush1.msra.mxu0 0.0
        %8827 = vmatprep.subr.mxu0 0.0
        %8828 = vmatpush1.msra.mxu0 0.0
        %8829 = vmatprep.subr.mxu0 0.0
        %8830 = vmatpush1.msra.mxu0 0.0
        %v8831 = vand.u32 %v8482, 4294901760
        %v8832 = vsub.f32 %v8482, %v8831
        %v8833 = vand.u32 %v8832, 4294901760
        %8834 = vmatprep.subr.mxu0 %v8833
        %v8835 = vand.u32 %v8481, 4294901760
        %v8836 = vsub.f32 %v8481, %v8835
        %v8837 = vand.u32 %v8836, 4294901760
        %8838 = vmatpush1.msra.mxu0 %v8837
        %8839 = vmatprep.subr.mxu0 0.0
        %8840 = vmatpush2.msra.mxu0 0.0
        %8841 = vmatprep.subr.mxu0 0.0
        %8842 = vmatpush2.msra.mxu0 0.0
        %8843 = vmatprep.subr.mxu0 0.0
        %8844 = vmatpush2.msra.mxu0 0.0
        %8845 = vmatprep.subr.mxu0 0.0
        %8846 = vmatpush2.msra.mxu0 0.0
        %8847 = vmatprep.subr.mxu0 0.0
        %8848 = vmatpush2.msra.mxu0 0.0
        %8849 = vmatprep.subr.mxu0 0.0
        %8850 = vmatpush2.msra.mxu0 0.0
        %8851 = vmatprep.subr.mxu0 0.0
        %8852 = vmatpush2.msra.mxu0 0.0
        %8853 = vmatprep.subr.mxu0 0.0
        %8854 = vmatpush2.msra.mxu0 0.0
        %8855 = vmatprep.subr.mxu0 0.0
        %8856 = vmatpush2.msra.mxu0 0.0
        %8857 = vmatprep.subr.mxu0 0.0
        %8858 = vmatpush2.msra.mxu0 0.0
        %8859 = vmatprep.subr.mxu0 0.0
        %8860 = vmatpush2.msra.mxu0 0.0
        %8861 = vmatprep.subr.mxu0 0.0
        %8862 = vmatpush2.msra.mxu0 0.0
        %8863 = vmatprep.subr.mxu0 0.0
        %8864 = vmatpush2.msra.mxu0 0.0
        %8865 = vmatprep.subr.mxu0 0.0
        %8866 = vmatpush2.msra.mxu0 0.0
        %8867 = vmatprep.subr.mxu0 0.0
        %8868 = vmatpush2.msra.mxu0 0.0
        %8869 = vmatprep.subr.mxu0 0.0
        %8870 = vmatpush2.msra.mxu0 0.0
        %8871 = vmatprep.mubr.f32.mxu0 0.0
        %v8872 = vand.u32 %v8486, 4294901760
        %8873 = vmatmul.mubr.f32.gmra.mxu0 %v8872
        %v8874 = vpop.f32.mrf.mxu0
        %v8875 = vadd.f32 %v8797, %v8874
        %v8876 = vpop.f32.mrf.mxu0
        %v8877 = vadd.f32 %v8799, %v8876
        %8878 = vdwg.mxu0
        %8879 = vmatprep.subr.mxu0 0.0
        %8880 = vmatpush1.msra.mxu0 0.0
        %8881 = vmatprep.subr.mxu0 0.0
        %8882 = vmatpush1.msra.mxu0 0.0
        %8883 = vmatprep.subr.mxu0 0.0
        %8884 = vmatpush1.msra.mxu0 0.0
        %8885 = vmatprep.subr.mxu0 0.0
        %8886 = vmatpush1.msra.mxu0 0.0
        %8887 = vmatprep.subr.mxu0 0.0
        %8888 = vmatpush1.msra.mxu0 0.0
        %8889 = vmatprep.subr.mxu0 0.0
        %8890 = vmatpush1.msra.mxu0 0.0
        %8891 = vmatprep.subr.mxu0 0.0
        %8892 = vmatpush1.msra.mxu0 0.0
        %8893 = vmatprep.subr.mxu0 0.0
        %8894 = vmatpush1.msra.mxu0 0.0
        %8895 = vmatprep.subr.mxu0 0.0
        %8896 = vmatpush1.msra.mxu0 0.0
        %8897 = vmatprep.subr.mxu0 0.0
        %8898 = vmatpush1.msra.mxu0 0.0
        %8899 = vmatprep.subr.mxu0 0.0
        %8900 = vmatpush1.msra.mxu0 0.0
        %8901 = vmatprep.subr.mxu0 0.0
        %8902 = vmatpush1.msra.mxu0 0.0
        %8903 = vmatprep.subr.mxu0 0.0
        %8904 = vmatpush1.msra.mxu0 0.0
        %8905 = vmatprep.subr.mxu0 0.0
        %8906 = vmatpush1.msra.mxu0 0.0
        %8907 = vmatprep.subr.mxu0 0.0
        %8908 = vmatpush1.msra.mxu0 0.0
        %v8909 = vand.u32 %v8482, 4294901760
        %8910 = vmatprep.subr.mxu0 %v8909
        %v8911 = vand.u32 %v8481, 4294901760
        %8912 = vmatpush1.msra.mxu0 %v8911
        %8913 = vmatprep.subr.mxu0 0.0
        %8914 = vmatpush2.msra.mxu0 0.0
        %8915 = vmatprep.subr.mxu0 0.0
        %8916 = vmatpush2.msra.mxu0 0.0
        %8917 = vmatprep.subr.mxu0 0.0
        %8918 = vmatpush2.msra.mxu0 0.0
        %8919 = vmatprep.subr.mxu0 0.0
        %8920 = vmatpush2.msra.mxu0 0.0
        %8921 = vmatprep.subr.mxu0 0.0
        %8922 = vmatpush2.msra.mxu0 0.0
        %8923 = vmatprep.subr.mxu0 0.0
        %8924 = vmatpush2.msra.mxu0 0.0
        %8925 = vmatprep.subr.mxu0 0.0
        %8926 = vmatpush2.msra.mxu0 0.0
        %8927 = vmatprep.subr.mxu0 0.0
        %8928 = vmatpush2.msra.mxu0 0.0
        %8929 = vmatprep.subr.mxu0 0.0
        %8930 = vmatpush2.msra.mxu0 0.0
        %8931 = vmatprep.subr.mxu0 0.0
        %8932 = vmatpush2.msra.mxu0 0.0
        %8933 = vmatprep.subr.mxu0 0.0
        %8934 = vmatpush2.msra.mxu0 0.0
        %8935 = vmatprep.subr.mxu0 0.0
        %8936 = vmatpush2.msra.mxu0 0.0
        %8937 = vmatprep.subr.mxu0 0.0
        %8938 = vmatpush2.msra.mxu0 0.0
        %8939 = vmatprep.subr.mxu0 0.0
        %8940 = vmatpush2.msra.mxu0 0.0
        %8941 = vmatprep.subr.mxu0 0.0
        %8942 = vmatpush2.msra.mxu0 0.0
        %8943 = vmatprep.subr.mxu0 0.0
        %8944 = vmatpush2.msra.mxu0 0.0
        %8945 = vmatprep.mubr.f32.mxu0 0.0
        %v8946 = vand.u32 %v8486, 4294901760
        %8947 = vmatmul.mubr.f32.gmra.mxu0 %v8946
        %v8948 = vpop.f32.mrf.mxu0
        %v8949 = vadd.f32 %v8875, %v8948
        %v8950 = vpop.f32.mrf.mxu0
        %v8951 = vadd.f32 %v8877, %v8950
        %8952 = vdwg.mxu0
        %v8953 = vadd.f32 %v8447, %v8949
        %v8954 = vadd.f32 %v8448, %v8951
        %v8955 = vld [vmem:[%s4389] sm:$0x3]
        %v8957 = vlaneseq
        %v8958 = vshrl.u32 %v8957, 7
        %v8959 = vsub.s32 0, %v8958
        %v8960 = vrot.slane %v8955, %v8959
        %v8961 = vlaneseq
        %v8962 = vshrl.u32 %v8961, 7
        %v8963 = vsub.s32 1, %v8962
        %v8964 = vrot.slane %v8955, %v8963
        %8965 = vrot.lane.b32.xlu0 %v8960, 34
        %v8966 = vpop.permute.xlu0 %8965
        %8967 = vrot.lane.b32.xlu0 %v8964, 34
        %v8968 = vpop.permute.xlu0 %8967
        %v8969 = vsel %vm4404, %v8966, %v8968
        %v8973 = vmul.f32 %v4929, %v8966
        %v8974 = vmul.f32 %v4930, %v8969
        %v8975 = vmul.f32 %v4946, %v8968
        %s8976 = scalar_lea.vmem %s6, 64
        %v8977 = vld [vmem:[%s8976] sm:$0xff]
        %8981 = vrot.lane.b32.xlu0 %v8973, 94
        %v8982 = vpop.permute.xlu0 %8981
        %8983 = vrot.lane.b32.xlu0 %v8974, 94
        %v8984 = vpop.permute.xlu0 %8983
        %8985 = vrot.lane.b32.xlu0 %v8975, 94
        %v8986 = vpop.permute.xlu0 %8985
        %v8987 = vsel %vm4423, %v8982, %v8984
        %v8988 = vsel %vm4423, %v8984, %v8986
        %v8992 = vsel %vm399, %v8977, 0
        %8994 = vmatprep.subr.mxu0 0.0
        %8995 = vmatpush1.msra.mxu0 0.0
        %8996 = vmatprep.subr.mxu0 0.0
        %8997 = vmatpush1.msra.mxu0 0.0
        %8998 = vmatprep.subr.mxu0 0.0
        %8999 = vmatpush1.msra.mxu0 0.0
        %9000 = vmatprep.subr.mxu0 0.0
        %9001 = vmatpush1.msra.mxu0 0.0
        %9002 = vmatprep.subr.mxu0 0.0
        %9003 = vmatpush1.msra.mxu0 0.0
        %9004 = vmatprep.subr.mxu0 0.0
        %9005 = vmatpush1.msra.mxu0 0.0
        %9006 = vmatprep.subr.mxu0 0.0
        %9007 = vmatpush1.msra.mxu0 0.0
        %9008 = vmatprep.subr.mxu0 0.0
        %9009 = vmatpush1.msra.mxu0 0.0
        %9010 = vmatprep.subr.mxu0 0.0
        %9011 = vmatpush1.msra.mxu0 0.0
        %9012 = vmatprep.subr.mxu0 0.0
        %9013 = vmatpush1.msra.mxu0 0.0
        %9014 = vmatprep.subr.mxu0 0.0
        %9015 = vmatpush1.msra.mxu0 0.0
        %9016 = vmatprep.subr.mxu0 0.0
        %9017 = vmatpush1.msra.mxu0 0.0
        %9018 = vmatprep.subr.mxu0 0.0
        %9019 = vmatpush1.msra.mxu0 0.0
        %9020 = vmatprep.subr.mxu0 0.0
        %9021 = vmatpush1.msra.mxu0 0.0
        %9022 = vmatprep.subr.mxu0 0.0
        %9023 = vmatpush1.msra.mxu0 0.0
        %v9024 = vand.u32 %v8988, 4294901760
        %9025 = vmatprep.subr.mxu0 %v9024
        %v9026 = vand.u32 %v8987, 4294901760
        %9027 = vmatpush1.msra.mxu0 %v9026
        %9028 = vmatprep.subr.mxu0 0.0
        %9029 = vmatpush2.msra.mxu0 0.0
        %9030 = vmatprep.subr.mxu0 0.0
        %9031 = vmatpush2.msra.mxu0 0.0
        %9032 = vmatprep.subr.mxu0 0.0
        %9033 = vmatpush2.msra.mxu0 0.0
        %9034 = vmatprep.subr.mxu0 0.0
        %9035 = vmatpush2.msra.mxu0 0.0
        %9036 = vmatprep.subr.mxu0 0.0
        %9037 = vmatpush2.msra.mxu0 0.0
        %9038 = vmatprep.subr.mxu0 0.0
        %9039 = vmatpush2.msra.mxu0 0.0
        %9040 = vmatprep.subr.mxu0 0.0
        %9041 = vmatpush2.msra.mxu0 0.0
        %9042 = vmatprep.subr.mxu0 0.0
        %9043 = vmatpush2.msra.mxu0 0.0
        %9044 = vmatprep.subr.mxu0 0.0
        %9045 = vmatpush2.msra.mxu0 0.0
        %9046 = vmatprep.subr.mxu0 0.0
        %9047 = vmatpush2.msra.mxu0 0.0
        %9048 = vmatprep.subr.mxu0 0.0
        %9049 = vmatpush2.msra.mxu0 0.0
        %9050 = vmatprep.subr.mxu0 0.0
        %9051 = vmatpush2.msra.mxu0 0.0
        %9052 = vmatprep.subr.mxu0 0.0
        %9053 = vmatpush2.msra.mxu0 0.0
        %9054 = vmatprep.subr.mxu0 0.0
        %9055 = vmatpush2.msra.mxu0 0.0
        %9056 = vmatprep.subr.mxu0 0.0
        %9057 = vmatpush2.msra.mxu0 0.0
        %9058 = vmatprep.subr.mxu0 0.0
        %9059 = vmatpush2.msra.mxu0 0.0
        %9060 = vmatprep.mubr.f32.mxu0 0.0
        %v9061 = vand.u32 %v8992, 4294901760
        %v9062 = vsub.f32 %v8992, %v9061
        %v9063 = vand.u32 %v9062, 4294901760
        %v9064 = vsub.f32 %v9062, %v9063
        %v9065 = vand.u32 %v9064, 4294901760
        %9066 = vmatmul.mubr.f32.gmra.mxu0 %v9065
        %v9067 = vpop.f32.mrf.mxu0
        %v9068 = vadd.f32 0.0, %v9067
        %v9069 = vpop.f32.mrf.mxu0
        %v9070 = vadd.f32 0.0, %v9069
        %9071 = vdwg.mxu0
        %9072 = vmatprep.subr.mxu0 0.0
        %9073 = vmatpush1.msra.mxu0 0.0
        %9074 = vmatprep.subr.mxu0 0.0
        %9075 = vmatpush1.msra.mxu0 0.0
        %9076 = vmatprep.subr.mxu0 0.0
        %9077 = vmatpush1.msra.mxu0 0.0
        %9078 = vmatprep.subr.mxu0 0.0
        %9079 = vmatpush1.msra.mxu0 0.0
        %9080 = vmatprep.subr.mxu0 0.0
        %9081 = vmatpush1.msra.mxu0 0.0
        %9082 = vmatprep.subr.mxu0 0.0
        %9083 = vmatpush1.msra.mxu0 0.0
        %9084 = vmatprep.subr.mxu0 0.0
        %9085 = vmatpush1.msra.mxu0 0.0
        %9086 = vmatprep.subr.mxu0 0.0
        %9087 = vmatpush1.msra.mxu0 0.0
        %9088 = vmatprep.subr.mxu0 0.0
        %9089 = vmatpush1.msra.mxu0 0.0
        %9090 = vmatprep.subr.mxu0 0.0
        %9091 = vmatpush1.msra.mxu0 0.0
        %9092 = vmatprep.subr.mxu0 0.0
        %9093 = vmatpush1.msra.mxu0 0.0
        %9094 = vmatprep.subr.mxu0 0.0
        %9095 = vmatpush1.msra.mxu0 0.0
        %9096 = vmatprep.subr.mxu0 0.0
        %9097 = vmatpush1.msra.mxu0 0.0
        %9098 = vmatprep.subr.mxu0 0.0
        %9099 = vmatpush1.msra.mxu0 0.0
        %9100 = vmatprep.subr.mxu0 0.0
        %9101 = vmatpush1.msra.mxu0 0.0
        %v9102 = vand.u32 %v8988, 4294901760
        %v9103 = vsub.f32 %v8988, %v9102
        %v9104 = vand.u32 %v9103, 4294901760
        %v9105 = vsub.f32 %v9103, %v9104
        %v9106 = vand.u32 %v9105, 4294901760
        %9107 = vmatprep.subr.mxu0 %v9106
        %v9108 = vand.u32 %v8987, 4294901760
        %v9109 = vsub.f32 %v8987, %v9108
        %v9110 = vand.u32 %v9109, 4294901760
        %v9111 = vsub.f32 %v9109, %v9110
        %v9112 = vand.u32 %v9111, 4294901760
        %9113 = vmatpush1.msra.mxu0 %v9112
        %9114 = vmatprep.subr.mxu0 0.0
        %9115 = vmatpush2.msra.mxu0 0.0
        %9116 = vmatprep.subr.mxu0 0.0
        %9117 = vmatpush2.msra.mxu0 0.0
        %9118 = vmatprep.subr.mxu0 0.0
        %9119 = vmatpush2.msra.mxu0 0.0
        %9120 = vmatprep.subr.mxu0 0.0
        %9121 = vmatpush2.msra.mxu0 0.0
        %9122 = vmatprep.subr.mxu0 0.0
        %9123 = vmatpush2.msra.mxu0 0.0
        %9124 = vmatprep.subr.mxu0 0.0
        %9125 = vmatpush2.msra.mxu0 0.0
        %9126 = vmatprep.subr.mxu0 0.0
        %9127 = vmatpush2.msra.mxu0 0.0
        %9128 = vmatprep.subr.mxu0 0.0
        %9129 = vmatpush2.msra.mxu0 0.0
        %9130 = vmatprep.subr.mxu0 0.0
        %9131 = vmatpush2.msra.mxu0 0.0
        %9132 = vmatprep.subr.mxu0 0.0
        %9133 = vmatpush2.msra.mxu0 0.0
        %9134 = vmatprep.subr.mxu0 0.0
        %9135 = vmatpush2.msra.mxu0 0.0
        %9136 = vmatprep.subr.mxu0 0.0
        %9137 = vmatpush2.msra.mxu0 0.0
        %9138 = vmatprep.subr.mxu0 0.0
        %9139 = vmatpush2.msra.mxu0 0.0
        %9140 = vmatprep.subr.mxu0 0.0
        %9141 = vmatpush2.msra.mxu0 0.0
        %9142 = vmatprep.subr.mxu0 0.0
        %9143 = vmatpush2.msra.mxu0 0.0
        %9144 = vmatprep.subr.mxu0 0.0
        %9145 = vmatpush2.msra.mxu0 0.0
        %9146 = vmatprep.mubr.f32.mxu0 0.0
        %v9147 = vand.u32 %v8992, 4294901760
        %9148 = vmatmul.mubr.f32.gmra.mxu0 %v9147
        %v9149 = vpop.f32.mrf.mxu0
        %v9150 = vadd.f32 %v9068, %v9149
        %v9151 = vpop.f32.mrf.mxu0
        %v9152 = vadd.f32 %v9070, %v9151
        %9153 = vdwg.mxu0
        %9154 = vmatprep.subr.mxu0 0.0
        %9155 = vmatpush1.msra.mxu0 0.0
        %9156 = vmatprep.subr.mxu0 0.0
        %9157 = vmatpush1.msra.mxu0 0.0
        %9158 = vmatprep.subr.mxu0 0.0
        %9159 = vmatpush1.msra.mxu0 0.0
        %9160 = vmatprep.subr.mxu0 0.0
        %9161 = vmatpush1.msra.mxu0 0.0
        %9162 = vmatprep.subr.mxu0 0.0
        %9163 = vmatpush1.msra.mxu0 0.0
        %9164 = vmatprep.subr.mxu0 0.0
        %9165 = vmatpush1.msra.mxu0 0.0
        %9166 = vmatprep.subr.mxu0 0.0
        %9167 = vmatpush1.msra.mxu0 0.0
        %9168 = vmatprep.subr.mxu0 0.0
        %9169 = vmatpush1.msra.mxu0 0.0
        %9170 = vmatprep.subr.mxu0 0.0
        %9171 = vmatpush1.msra.mxu0 0.0
        %9172 = vmatprep.subr.mxu0 0.0
        %9173 = vmatpush1.msra.mxu0 0.0
        %9174 = vmatprep.subr.mxu0 0.0
        %9175 = vmatpush1.msra.mxu0 0.0
        %9176 = vmatprep.subr.mxu0 0.0
        %9177 = vmatpush1.msra.mxu0 0.0
        %9178 = vmatprep.subr.mxu0 0.0
        %9179 = vmatpush1.msra.mxu0 0.0
        %9180 = vmatprep.subr.mxu0 0.0
        %9181 = vmatpush1.msra.mxu0 0.0
        %9182 = vmatprep.subr.mxu0 0.0
        %9183 = vmatpush1.msra.mxu0 0.0
        %v9184 = vand.u32 %v8988, 4294901760
        %v9185 = vsub.f32 %v8988, %v9184
        %9186 = vmatprep.subr.mxu0 %v9185
        %v9187 = vand.u32 %v8987, 4294901760
        %v9188 = vsub.f32 %v8987, %v9187
        %9189 = vmatpush1.msra.mxu0 %v9188
        %9190 = vmatprep.subr.mxu0 0.0
        %9191 = vmatpush2.msra.mxu0 0.0
        %9192 = vmatprep.subr.mxu0 0.0
        %9193 = vmatpush2.msra.mxu0 0.0
        %9194 = vmatprep.subr.mxu0 0.0
        %9195 = vmatpush2.msra.mxu0 0.0
        %9196 = vmatprep.subr.mxu0 0.0
        %9197 = vmatpush2.msra.mxu0 0.0
        %9198 = vmatprep.subr.mxu0 0.0
        %9199 = vmatpush2.msra.mxu0 0.0
        %9200 = vmatprep.subr.mxu0 0.0
        %9201 = vmatpush2.msra.mxu0 0.0
        %9202 = vmatprep.subr.mxu0 0.0
        %9203 = vmatpush2.msra.mxu0 0.0
        %9204 = vmatprep.subr.mxu0 0.0
        %9205 = vmatpush2.msra.mxu0 0.0
        %9206 = vmatprep.subr.mxu0 0.0
        %9207 = vmatpush2.msra.mxu0 0.0
        %9208 = vmatprep.subr.mxu0 0.0
        %9209 = vmatpush2.msra.mxu0 0.0
        %9210 = vmatprep.subr.mxu0 0.0
        %9211 = vmatpush2.msra.mxu0 0.0
        %9212 = vmatprep.subr.mxu0 0.0
        %9213 = vmatpush2.msra.mxu0 0.0
        %9214 = vmatprep.subr.mxu0 0.0
        %9215 = vmatpush2.msra.mxu0 0.0
        %9216 = vmatprep.subr.mxu0 0.0
        %9217 = vmatpush2.msra.mxu0 0.0
        %9218 = vmatprep.subr.mxu0 0.0
        %9219 = vmatpush2.msra.mxu0 0.0
        %9220 = vmatprep.subr.mxu0 0.0
        %9221 = vmatpush2.msra.mxu0 0.0
        %9222 = vmatprep.mubr.f32.mxu0 0.0
        %v9223 = vand.u32 %v8992, 4294901760
        %v9224 = vsub.f32 %v8992, %v9223
        %9225 = vmatmul.mubr.f32.gmra.mxu0 %v9224
        %v9226 = vpop.f32.mrf.mxu0
        %v9227 = vadd.f32 %v9150, %v9226
        %v9228 = vpop.f32.mrf.mxu0
        %v9229 = vadd.f32 %v9152, %v9228
        %9230 = vdwg.mxu0
        %9231 = vmatprep.subr.mxu0 0.0
        %9232 = vmatpush1.msra.mxu0 0.0
        %9233 = vmatprep.subr.mxu0 0.0
        %9234 = vmatpush1.msra.mxu0 0.0
        %9235 = vmatprep.subr.mxu0 0.0
        %9236 = vmatpush1.msra.mxu0 0.0
        %9237 = vmatprep.subr.mxu0 0.0
        %9238 = vmatpush1.msra.mxu0 0.0
        %9239 = vmatprep.subr.mxu0 0.0
        %9240 = vmatpush1.msra.mxu0 0.0
        %9241 = vmatprep.subr.mxu0 0.0
        %9242 = vmatpush1.msra.mxu0 0.0
        %9243 = vmatprep.subr.mxu0 0.0
        %9244 = vmatpush1.msra.mxu0 0.0
        %9245 = vmatprep.subr.mxu0 0.0
        %9246 = vmatpush1.msra.mxu0 0.0
        %9247 = vmatprep.subr.mxu0 0.0
        %9248 = vmatpush1.msra.mxu0 0.0
        %9249 = vmatprep.subr.mxu0 0.0
        %9250 = vmatpush1.msra.mxu0 0.0
        %9251 = vmatprep.subr.mxu0 0.0
        %9252 = vmatpush1.msra.mxu0 0.0
        %9253 = vmatprep.subr.mxu0 0.0
        %9254 = vmatpush1.msra.mxu0 0.0
        %9255 = vmatprep.subr.mxu0 0.0
        %9256 = vmatpush1.msra.mxu0 0.0
        %9257 = vmatprep.subr.mxu0 0.0
        %9258 = vmatpush1.msra.mxu0 0.0
        %9259 = vmatprep.subr.mxu0 0.0
        %9260 = vmatpush1.msra.mxu0 0.0
        %v9261 = vand.u32 %v8988, 4294901760
        %9262 = vmatprep.subr.mxu0 %v9261
        %v9263 = vand.u32 %v8987, 4294901760
        %9264 = vmatpush1.msra.mxu0 %v9263
        %9265 = vmatprep.subr.mxu0 0.0
        %9266 = vmatpush2.msra.mxu0 0.0
        %9267 = vmatprep.subr.mxu0 0.0
        %9268 = vmatpush2.msra.mxu0 0.0
        %9269 = vmatprep.subr.mxu0 0.0
        %9270 = vmatpush2.msra.mxu0 0.0
        %9271 = vmatprep.subr.mxu0 0.0
        %9272 = vmatpush2.msra.mxu0 0.0
        %9273 = vmatprep.subr.mxu0 0.0
        %9274 = vmatpush2.msra.mxu0 0.0
        %9275 = vmatprep.subr.mxu0 0.0
        %9276 = vmatpush2.msra.mxu0 0.0
        %9277 = vmatprep.subr.mxu0 0.0
        %9278 = vmatpush2.msra.mxu0 0.0
        %9279 = vmatprep.subr.mxu0 0.0
        %9280 = vmatpush2.msra.mxu0 0.0
        %9281 = vmatprep.subr.mxu0 0.0
        %9282 = vmatpush2.msra.mxu0 0.0
        %9283 = vmatprep.subr.mxu0 0.0
        %9284 = vmatpush2.msra.mxu0 0.0
        %9285 = vmatprep.subr.mxu0 0.0
        %9286 = vmatpush2.msra.mxu0 0.0
        %9287 = vmatprep.subr.mxu0 0.0
        %9288 = vmatpush2.msra.mxu0 0.0
        %9289 = vmatprep.subr.mxu0 0.0
        %9290 = vmatpush2.msra.mxu0 0.0
        %9291 = vmatprep.subr.mxu0 0.0
        %9292 = vmatpush2.msra.mxu0 0.0
        %9293 = vmatprep.subr.mxu0 0.0
        %9294 = vmatpush2.msra.mxu0 0.0
        %9295 = vmatprep.subr.mxu0 0.0
        %9296 = vmatpush2.msra.mxu0 0.0
        %9297 = vmatprep.mubr.f32.mxu0 0.0
        %v9298 = vand.u32 %v8992, 4294901760
        %v9299 = vsub.f32 %v8992, %v9298
        %v9300 = vand.u32 %v9299, 4294901760
        %9301 = vmatmul.mubr.f32.gmra.mxu0 %v9300
        %v9302 = vpop.f32.mrf.mxu0
        %v9303 = vadd.f32 %v9227, %v9302
        %v9304 = vpop.f32.mrf.mxu0
        %v9305 = vadd.f32 %v9229, %v9304
        %9306 = vdwg.mxu0
        %9307 = vmatprep.subr.mxu0 0.0
        %9308 = vmatpush1.msra.mxu0 0.0
        %9309 = vmatprep.subr.mxu0 0.0
        %9310 = vmatpush1.msra.mxu0 0.0
        %9311 = vmatprep.subr.mxu0 0.0
        %9312 = vmatpush1.msra.mxu0 0.0
        %9313 = vmatprep.subr.mxu0 0.0
        %9314 = vmatpush1.msra.mxu0 0.0
        %9315 = vmatprep.subr.mxu0 0.0
        %9316 = vmatpush1.msra.mxu0 0.0
        %9317 = vmatprep.subr.mxu0 0.0
        %9318 = vmatpush1.msra.mxu0 0.0
        %9319 = vmatprep.subr.mxu0 0.0
        %9320 = vmatpush1.msra.mxu0 0.0
        %9321 = vmatprep.subr.mxu0 0.0
        %9322 = vmatpush1.msra.mxu0 0.0
        %9323 = vmatprep.subr.mxu0 0.0
        %9324 = vmatpush1.msra.mxu0 0.0
        %9325 = vmatprep.subr.mxu0 0.0
        %9326 = vmatpush1.msra.mxu0 0.0
        %9327 = vmatprep.subr.mxu0 0.0
        %9328 = vmatpush1.msra.mxu0 0.0
        %9329 = vmatprep.subr.mxu0 0.0
        %9330 = vmatpush1.msra.mxu0 0.0
        %9331 = vmatprep.subr.mxu0 0.0
        %9332 = vmatpush1.msra.mxu0 0.0
        %9333 = vmatprep.subr.mxu0 0.0
        %9334 = vmatpush1.msra.mxu0 0.0
        %9335 = vmatprep.subr.mxu0 0.0
        %9336 = vmatpush1.msra.mxu0 0.0
        %v9337 = vand.u32 %v8988, 4294901760
        %v9338 = vsub.f32 %v8988, %v9337
        %v9339 = vand.u32 %v9338, 4294901760
        %9340 = vmatprep.subr.mxu0 %v9339
        %v9341 = vand.u32 %v8987, 4294901760
        %v9342 = vsub.f32 %v8987, %v9341
        %v9343 = vand.u32 %v9342, 4294901760
        %9344 = vmatpush1.msra.mxu0 %v9343
        %9345 = vmatprep.subr.mxu0 0.0
        %9346 = vmatpush2.msra.mxu0 0.0
        %9347 = vmatprep.subr.mxu0 0.0
        %9348 = vmatpush2.msra.mxu0 0.0
        %9349 = vmatprep.subr.mxu0 0.0
        %9350 = vmatpush2.msra.mxu0 0.0
        %9351 = vmatprep.subr.mxu0 0.0
        %9352 = vmatpush2.msra.mxu0 0.0
        %9353 = vmatprep.subr.mxu0 0.0
        %9354 = vmatpush2.msra.mxu0 0.0
        %9355 = vmatprep.subr.mxu0 0.0
        %9356 = vmatpush2.msra.mxu0 0.0
        %9357 = vmatprep.subr.mxu0 0.0
        %9358 = vmatpush2.msra.mxu0 0.0
        %9359 = vmatprep.subr.mxu0 0.0
        %9360 = vmatpush2.msra.mxu0 0.0
        %9361 = vmatprep.subr.mxu0 0.0
        %9362 = vmatpush2.msra.mxu0 0.0
        %9363 = vmatprep.subr.mxu0 0.0
        %9364 = vmatpush2.msra.mxu0 0.0
        %9365 = vmatprep.subr.mxu0 0.0
        %9366 = vmatpush2.msra.mxu0 0.0
        %9367 = vmatprep.subr.mxu0 0.0
        %9368 = vmatpush2.msra.mxu0 0.0
        %9369 = vmatprep.subr.mxu0 0.0
        %9370 = vmatpush2.msra.mxu0 0.0
        %9371 = vmatprep.subr.mxu0 0.0
        %9372 = vmatpush2.msra.mxu0 0.0
        %9373 = vmatprep.subr.mxu0 0.0
        %9374 = vmatpush2.msra.mxu0 0.0
        %9375 = vmatprep.subr.mxu0 0.0
        %9376 = vmatpush2.msra.mxu0 0.0
        %9377 = vmatprep.mubr.f32.mxu0 0.0
        %v9378 = vand.u32 %v8992, 4294901760
        %9379 = vmatmul.mubr.f32.gmra.mxu0 %v9378
        %v9380 = vpop.f32.mrf.mxu0
        %v9381 = vadd.f32 %v9303, %v9380
        %v9382 = vpop.f32.mrf.mxu0
        %v9383 = vadd.f32 %v9305, %v9382
        %9384 = vdwg.mxu0
        %9385 = vmatprep.subr.mxu0 0.0
        %9386 = vmatpush1.msra.mxu0 0.0
        %9387 = vmatprep.subr.mxu0 0.0
        %9388 = vmatpush1.msra.mxu0 0.0
        %9389 = vmatprep.subr.mxu0 0.0
        %9390 = vmatpush1.msra.mxu0 0.0
        %9391 = vmatprep.subr.mxu0 0.0
        %9392 = vmatpush1.msra.mxu0 0.0
        %9393 = vmatprep.subr.mxu0 0.0
        %9394 = vmatpush1.msra.mxu0 0.0
        %9395 = vmatprep.subr.mxu0 0.0
        %9396 = vmatpush1.msra.mxu0 0.0
        %9397 = vmatprep.subr.mxu0 0.0
        %9398 = vmatpush1.msra.mxu0 0.0
        %9399 = vmatprep.subr.mxu0 0.0
        %9400 = vmatpush1.msra.mxu0 0.0
        %9401 = vmatprep.subr.mxu0 0.0
        %9402 = vmatpush1.msra.mxu0 0.0
        %9403 = vmatprep.subr.mxu0 0.0
        %9404 = vmatpush1.msra.mxu0 0.0
        %9405 = vmatprep.subr.mxu0 0.0
        %9406 = vmatpush1.msra.mxu0 0.0
        %9407 = vmatprep.subr.mxu0 0.0
        %9408 = vmatpush1.msra.mxu0 0.0
        %9409 = vmatprep.subr.mxu0 0.0
        %9410 = vmatpush1.msra.mxu0 0.0
        %9411 = vmatprep.subr.mxu0 0.0
        %9412 = vmatpush1.msra.mxu0 0.0
        %9413 = vmatprep.subr.mxu0 0.0
        %9414 = vmatpush1.msra.mxu0 0.0
        %v9415 = vand.u32 %v8988, 4294901760
        %9416 = vmatprep.subr.mxu0 %v9415
        %v9417 = vand.u32 %v8987, 4294901760
        %9418 = vmatpush1.msra.mxu0 %v9417
        %9419 = vmatprep.subr.mxu0 0.0
        %9420 = vmatpush2.msra.mxu0 0.0
        %9421 = vmatprep.subr.mxu0 0.0
        %9422 = vmatpush2.msra.mxu0 0.0
        %9423 = vmatprep.subr.mxu0 0.0
        %9424 = vmatpush2.msra.mxu0 0.0
        %9425 = vmatprep.subr.mxu0 0.0
        %9426 = vmatpush2.msra.mxu0 0.0
        %9427 = vmatprep.subr.mxu0 0.0
        %9428 = vmatpush2.msra.mxu0 0.0
        %9429 = vmatprep.subr.mxu0 0.0
        %9430 = vmatpush2.msra.mxu0 0.0
        %9431 = vmatprep.subr.mxu0 0.0
        %9432 = vmatpush2.msra.mxu0 0.0
        %9433 = vmatprep.subr.mxu0 0.0
        %9434 = vmatpush2.msra.mxu0 0.0
        %9435 = vmatprep.subr.mxu0 0.0
        %9436 = vmatpush2.msra.mxu0 0.0
        %9437 = vmatprep.subr.mxu0 0.0
        %9438 = vmatpush2.msra.mxu0 0.0
        %9439 = vmatprep.subr.mxu0 0.0
        %9440 = vmatpush2.msra.mxu0 0.0
        %9441 = vmatprep.subr.mxu0 0.0
        %9442 = vmatpush2.msra.mxu0 0.0
        %9443 = vmatprep.subr.mxu0 0.0
        %9444 = vmatpush2.msra.mxu0 0.0
        %9445 = vmatprep.subr.mxu0 0.0
        %9446 = vmatpush2.msra.mxu0 0.0
        %9447 = vmatprep.subr.mxu0 0.0
        %9448 = vmatpush2.msra.mxu0 0.0
        %9449 = vmatprep.subr.mxu0 0.0
        %9450 = vmatpush2.msra.mxu0 0.0
        %9451 = vmatprep.mubr.f32.mxu0 0.0
        %v9452 = vand.u32 %v8992, 4294901760
        %9453 = vmatmul.mubr.f32.gmra.mxu0 %v9452
        %v9454 = vpop.f32.mrf.mxu0
        %v9455 = vadd.f32 %v9381, %v9454
        %v9456 = vpop.f32.mrf.mxu0
        %v9457 = vadd.f32 %v9383, %v9456
        %9458 = vdwg.mxu0
        %v9459 = vadd.f32 %v8953, %v9455
        %v9460 = vadd.f32 %v8954, %v9457
        %v9461 = vadd.f32 %v9459, %v304
        %v9462 = vadd.f32 %v9460, %v305
        %9463 = vst [vmem:[%s298] sm:$0xff] %v9461
        %9464 = vst [vmem:[%s298 + $0x8] sm:$0xff] %v9462
        %s9465 = sand.u32 %s203, 1
        %s9466 = scalar_lea.sflag [#allocation4], %s9465
        %s9467 = sand.u32 %s203, 1
        %s9468 = smul.addr %s9467, 16
        %s9469 = scalar_lea.vmem [#allocation3], %s9468
        // Predicated region
        $region53: #{tpu_custom_call.1} parent=51 // pred_check
          %p9470 = pneg %p213
        $region54: #{tpu_custom_call.1} parent=51 // pred_check_branch
          %9472 = sbr.rel (%p9470) target = $region56
        $region55: #{tpu_custom_call.1} parent=51 // pred_region
          %s9474 = ssub.s32 256, 256
          %9475 = vsyncadd %s9466, %s9474
          %s9476 = smul.addr %s22, 2
          %s9477 = smul.addr %s9476, 128
          %s9478 = scalar_lea.hbm %s8, %s9477
          %s9480 = sshll.u32 %s9469, 4
          %s9481 = int_to_ptr.vmem [resolvable:$true] %s9480
          %9483 = dma.vmem_to_hbm [thread:$0]  %s9481, 256, %s9478, %s9466
        $region56: #{tpu_custom_call.1} parent=51 // pred_fallthru
          _
      $region52: #{tpu_custom_call.1} parent=5 // pred_fallthru
        _
      %p9484 = scmp.le.s32.totalorder 2, %s17
      // Predicated region
      $region57: #{tpu_custom_call.1} parent=5 // pred_check
        %p9485 = pneg %p9484
      $region58: #{tpu_custom_call.1} parent=5 // pred_check_branch
        %9487 = sbr.rel (%p9485) target = $region60
      $region59: #{tpu_custom_call.1} parent=5 // pred_region
        %s9488 = ssub.s32 %s17, 2
        // Predicated region
        $region61: #{tpu_custom_call.1} parent=59 // pred_check
          %p9489 = pneg %p219
        $region62: #{tpu_custom_call.1} parent=59 // pred_check_branch
          %9491 = sbr.rel (%p9489) target = $region64
        $region63: #{tpu_custom_call.1} parent=59 // pred_region
          %s9492 = sand.u32 %s204, 1
          %s9493 = scalar_lea.sflag [#allocation4], %s9492
          %s9494 = sand.u32 %s204, 1
          %s9495 = smul.addr %s9494, 16
          %s9496 = scalar_lea.vmem [#allocation3], %s9495
          %9497 = dma.done %s9493, 256
        $region64: #{tpu_custom_call.1} parent=59 // pred_fallthru
          _
      $region60: #{tpu_custom_call.1} parent=5 // pred_fallthru
        _
    $region6: #{tpu_custom_call.1} parent=1 // loop_footer
      %s21 = sadd.s32 1, %s17
    $region7: #{tpu_custom_call.1} parent=1 // loop_footer_branch
      %16 = sbr.rel target = $region3
    $region8: #{tpu_custom_call.1} parent=1 // loop_exit
      _
    %9498 = vsyncpa [#allocation4], 1
    %s9499 = scalar_lea.sflag [#allocation4], 1
    %9500 = vsyncpa %s9499, 1

</llo_original>
